<compile_context>
chip_gen: v5e
topology: v5e:2x2
jax: 0.10.0
libtpu: 0.0.40
codegen_flags: <defaults>
</compile_context>

<pallas_src>
import jax
import jax.numpy as jnp
from jax.experimental import pallas as pl
from jax.experimental.pallas import tpu as pltpu

# ---- model constants (fixed by the PyTorch module: 28x28 MNIST input) ------
C1, C2 = 64, 64        # conv1 / conv2 output channels
K1, K1P = 25, 32       # conv1 patch size (1*5*5), padded to a sublane multiple
T2 = 25                # conv2 taps (5*5)
A = 12                 # half-grid size: h1 = 2*a + parity, a in [0,12)
P1 = 4 * A * A         # 576 conv1 output positions (24*24), parity-major order
P1P = 640              # padded to 5 lane tiles
H2 = W2 = 10           # conv2 output spatial size (stride 2)
P2P = 128              # per-image conv2 position axis: p2 = oh*12 + ow, pad->128
K2 = T2 * C1           # 1600 = conv2 contraction length (taps x in-channels)
FLAT = C2 * P2P        # 8192 = padded flatten width fed to dense1
NCLS = 10              # real classes
NCLSP = 128            # lane-dense padded class axis


def _tap_base(kh2, kw2):
    """Start (in parity-major p1 units) of the lane slice conv2 tap (kh2,kw2) reads."""
    par = (kh2 % 2) * 2 + (kw2 % 2)
    return par * (A * A) + (kh2 // 2) * A + (kw2 // 2)


# ---------------------------------------------------------------------------
# Kernel 1: fused conv1 + ReLU + conv2 + ReLU  (nb images per grid step)
# ---------------------------------------------------------------------------
def _make_fused_conv_kernel(nb):
    wy1 = P1P * nb   # y1 lane width  (column = p1*nb + image)
    wy2 = P2P * nb   # conv2 operand / output lane width (column = p2*nb + image)

    def kernel(p1_ref, w1_ref, b1_ref, w2_ref, b2_ref, y2_ref, y1_ref, stk_ref):
        # conv1: ONE matmul over every conv1 position of every image in the
        # block (N = 640*nb lanes, K = 32 padded patch taps).
        pre1 = jnp.dot(w1_ref[...], p1_ref[0], preferred_element_type=jnp.float32)
        y1_ref[...] = jnp.maximum(pre1 + b1_ref[...], 0.0).astype(jnp.bfloat16)

        # Build the (1600, 128*nb) conv2 operand: thanks to the parity-major
        # position order each tap is ONE contiguous (unaligned) lane slice of
        # y1 — copy/XLU work that overlaps with the MXU matmuls.
        for kh2 in range(5):
            for kw2 in range(5):
                t = kh2 * 5 + kw2
                off = _tap_base(kh2, kw2) * nb
                stk_ref[t * C1:(t + 1) * C1, :] = y1_ref[:, off:off + wy2]

        # conv2: ONE K=1600 matmul (no per-tap MXU fill/drain, no serialized
        # f32 accumulator through the MRF/VALU).
        pre2 = jnp.dot(w2_ref[...], stk_ref[...], preferred_element_type=jnp.float32)
        y2_ref[0] = jnp.maximum(pre2 + b2_ref[...], 0.0).astype(jnp.bfloat16)

    return kernel


def fused_conv_pallas(patches, w1, b1, w2f, b2, nb):
    nblk = patches.shape[0]
    wy1 = P1P * nb
    wy2 = P2P * nb
    return pl.pallas_call(
        _make_fused_conv_kernel(nb),
        out_shape=jax.ShapeDtypeStruct((nblk, C2, wy2), jnp.bfloat16),
        grid=(nblk,),
        in_specs=[
            pl.BlockSpec((1, K1P, wy1), lambda g: (g, 0, 0)),
            pl.BlockSpec((C1, K1P), lambda g: (0, 0)),
            pl.BlockSpec((C1, 1), lambda g: (0, 0)),
            pl.BlockSpec((C2, K2), lambda g: (0, 0)),
            pl.BlockSpec((C2, 1), lambda g: (0, 0)),
        ],
        out_specs=pl.BlockSpec((1, C2, wy2), lambda g: (g, 0, 0)),
        scratch_shapes=[
            pltpu.VMEM((C1, wy1), jnp.bfloat16),   # y1, VMEM-resident
            pltpu.VMEM((K2, wy2), jnp.bfloat16),   # stacked conv2 operand
        ],
        compiler_params=pltpu.CompilerParams(
            dimension_semantics=("parallel",),
            vmem_limit_bytes=32 * 1024 * 1024),
    )(patches, w1, b1, w2f, b2)


# ---------------------------------------------------------------------------
# Kernel 2: Linear(6400->128)+ReLU+Linear(128->10 padded to 128)+Softmax
# ---------------------------------------------------------------------------
def _dense_softmax_kernel(x_ref, w3_ref, b3_ref, w4_ref, b4_ref, o_ref):
    h = jnp.dot(x_ref[...], w3_ref[...], preferred_element_type=jnp.float32)
    h = jnp.maximum(h + b3_ref[...], 0.0)
    # TODO(synk): Dropout(0.25) / Dropout(0.5) are identity in inference mode.
    logits = jnp.dot(h.astype(jnp.bfloat16), w4_ref[...],
                     preferred_element_type=jnp.float32) + b4_ref[...]
    m = jnp.max(logits, axis=1, keepdims=True)
    e = jnp.exp(logits - m)                       # pad cols: exp(-1e30 - m) = 0
    s = jnp.sum(e, axis=1, keepdims=True)
    o_ref[...] = e * pl.reciprocal(s, approx=True)


def dense_softmax_pallas(x, w3p, b3, w4p, b4p, tb):
    bp, f = x.shape
    return pl.pallas_call(
        _dense_softmax_kernel,
        out_shape=jax.ShapeDtypeStruct((bp, NCLSP), jnp.float32),
        grid=(bp // tb,),
        in_specs=[
            pl.BlockSpec((tb, f), lambda g: (g, 0)),
            pl.BlockSpec((f, 128), lambda g: (0, 0)),
            pl.BlockSpec((1, 128), lambda g: (0, 0)),
            pl.BlockSpec((128, NCLSP), lambda g: (0, 0)),
            pl.BlockSpec((1, NCLSP), lambda g: (0, 0)),
        ],
        out_specs=pl.BlockSpec((tb, NCLSP), lambda g: (g, 0)),
        compiler_params=pltpu.CompilerParams(
            dimension_semantics=("parallel",),
            vmem_limit_bytes=32 * 1024 * 1024),
    )(x, w3p, b3, w4p, b4p)


# ---------------------------------------------------------------------------
# Host-side prep
# ---------------------------------------------------------------------------
def _pick_nb(batch):
    # images per conv grid step: big lane-N for the MXU while keeping >= 2
    # grid steps so both v7x TensorCores get work.  B=2 demo -> nb=1.
    for nb in (8, 4, 2):
        if batch >= 2 * nb:
            return nb
    return 1


def build_conv1_patches(x, nb):
    """conv1 im2col, parity-major position order, images interleaved on lanes.

    Returns (nblk, 32, 640*nb) bf16 where column = p1*nb + image and
    p1 = ((h1%2)*2 + (w1%2))*144 + (h1//2)*12 + (w1//2).
    """
    batch = x.shape[0]
    kh1 = jnp.arange(5).reshape(5, 1, 1, 1, 1, 1)
    kw1 = jnp.arange(5).reshape(1, 5, 1, 1, 1, 1)
    rh = jnp.arange(2).reshape(1, 1, 2, 1, 1, 1)
    rw = jnp.arange(2).reshape(1, 1, 1, 2, 1, 1)
    a = jnp.arange(A).reshape(1, 1, 1, 1, A, 1)
    b = jnp.arange(A).reshape(1, 1, 1, 1, 1, A)
    full = (5, 5, 2, 2, A, A)
    rows = jnp.broadcast_to(2 * a + rh + kh1, full).reshape(K1, P1)
    cols = jnp.broadcast_to(2 * b + rw + kw1, full).reshape(K1, P1)
    p = x[:, 0][:, rows, cols]                                  # (B, 25, 576)
    nblk = -(-batch // nb)
    bpad = nblk * nb
    p = jnp.pad(p, ((0, bpad - batch), (0, K1P - K1), (0, P1P - P1)))
    p = p.reshape(nblk, nb, K1P, P1P).transpose(0, 2, 3, 1).reshape(
        nblk, K1P, P1P * nb)
    return p.astype(jnp.bfloat16)


@jax.jit
def mnist_cnn_forward(x, params):
    w1, b1, w2f, b2, w3p, b3, w4p, b4p = params
    batch = x.shape[0]
    nb = _pick_nb(batch)
    patches = build_conv1_patches(x, nb)                   # (nblk, 32, 640*nb)
    y2 = fused_conv_pallas(patches, w1, b1, w2f, b2, nb)   # (nblk, 64, 128*nb)
    nblk = y2.shape[0]
    # de-interleave images off the lane axis and flatten (tiny XLA transpose;
    # for nb=1 it is a no-op); row layout matches w3p (c*128 + oh*12 + ow).
    flat = (y2.reshape(nblk, C2, P2P, nb)
              .transpose(0, 3, 1, 2)
              .reshape(nblk * nb, FLAT))                    # (Bp, 8192) bf16
    bp = flat.shape[0]
    tb = min(256, bp)
    bp2 = -(-bp // tb) * tb
    if bp2 > bp:
        flat = jnp.pad(flat, ((0, bp2 - bp), (0, 0)))
    probs = dense_softmax_pallas(flat, w3p, b3, w4p, b4p, tb)   # (bp2, 128)
    return probs[:batch, :NCLS]


# ---------------------------------------------------------------------------
# Parameters: torch-layout f32 source of truth -> kernel layouts (bf16 weights)
# ---------------------------------------------------------------------------
def init_torch_params(key):
    def uni(k, shape, fan_in):
        bound = float(fan_in) ** -0.5
        return jax.random.uniform(k, shape, jnp.float32, -bound, bound)

    ks = jax.random.split(key, 8)
    return {
        "w1": uni(ks[0], (C1, 1, 5, 5), 25),
        "b1": uni(ks[1], (C1,), 25),
        "w2": uni(ks[2], (C2, C1, 5, 5), 1600),
        "b2": uni(ks[3], (C2,), 1600),
        "w3": uni(ks[4], (128, 6400), 6400),
        "b3": uni(ks[5], (128,), 6400),
        "w4": uni(ks[6], (NCLS, 128), 128),
        "b4": uni(ks[7], (NCLS,), 128),
    }


def to_kernel_params(tp):
    w1 = jnp.zeros((C1, K1P), jnp.float32).at[:, :K1].set(tp["w1"].reshape(C1, K1))
    b1 = tp["b1"].reshape(C1, 1)
    # conv2 weight flattened per tap: column t*64 + c1, t = kh2*5 + kw2
    w2f = jnp.transpose(tp["w2"], (0, 2, 3, 1)).reshape(C2, K2)
    b2 = tp["b2"].reshape(C2, 1)
    # dense1: torch row c*100 + oh*10 + ow  ->  padded row c*128 + oh*12 + ow
    # (rows at padded positions are exactly zero: cancels the pad-lane garbage)
    w3t = tp["w3"].T.reshape(C2, H2, W2, 128)
    w3p = jnp.zeros((C2, H2, A, 128), jnp.float32).at[:, :, :W2, :].set(w3t)
    w3p = w3p.reshape(C2, H2 * A, 128)
    w3p = jnp.pad(w3p, ((0, 0), (0, P2P - H2 * A), (0, 0))).reshape(FLAT, 128)
    b3 = tp["b3"].reshape(1, 128)
    # dense2: lane-dense padded head; pad logits forced to -1e30 (softmax -> 0)
    w4p = jnp.zeros((128, NCLSP), jnp.float32).at[:, :NCLS].set(tp["w4"].T)
    b4p = jnp.full((1, NCLSP), -1e30, jnp.float32).at[0, :NCLS].set(tp["b4"])
    return (w1.astype(jnp.bfloat16), b1,
            w2f.astype(jnp.bfloat16), b2,
            w3p.astype(jnp.bfloat16), b3,
            w4p.astype(jnp.bfloat16), b4p)


def reference_forward(x, tp):
    """Pure-XLA reference of the PyTorch forward (for a correctness check)."""
    dn = ("NCHW", "OIHW", "NCHW")
    y1 = jax.lax.conv_general_dilated(x, tp["w1"], (1, 1), "VALID",
                                      dimension_numbers=dn)
    y1 = jax.nn.relu(y1 + tp["b1"][None, :, None, None])
    y2 = jax.lax.conv_general_dilated(y1, tp["w2"], (2, 2), "VALID",
                                      dimension_numbers=dn)
    y2 = jax.nn.relu(y2 + tp["b2"][None, :, None, None])
    flat = y2.reshape(x.shape[0], -1)
    h = jax.nn.relu(flat @ tp["w3"].T + tp["b3"])
    logits = h @ tp["w4"].T + tp["b4"]
    return jax.nn.softmax(logits, axis=1)


if __name__ == "__main__":
    key = jax.random.PRNGKey(0)
    kx, kp = jax.random.split(key)

    # MNIST-shaped input: 28x28 is forced by Linear(6400,128) (64*10*10=6400).
    x = jax.random.normal(kx, (2, 1, 28, 28), dtype=jnp.float32)
    tp = init_torch_params(kp)
    params = to_kernel_params(tp)

    out = jax.block_until_ready(mnist_cnn_forward(x, params))
    assert out.shape == (2, NCLS)
    # softmax rows sum to 1 (approx-reciprocal => loose tolerance)
    assert bool(jnp.all(jnp.abs(jnp.sum(out, axis=1) - 1.0) < 2e-3))
    # compare against the pure-XLA reference (bf16 weights/activations in the
    # kernel path => do not expect 1e-5 agreement)
    ref = reference_forward(x, tp)
    err = float(jnp.max(jnp.abs(out - ref)))
    assert err < 1e-2, f"max |kernel - reference| = {err}"
    print("KERNEL_OK")
</pallas_src>

<mosaic_0001>
module attributes {stable_mosaic.version = 11 : i64} {
  func.func @_dense_softmax_kernel(%arg0: i32, %arg1: memref<2x8192xbf16, #tpu.memory_space<vmem>>, %arg2: memref<8192x128xbf16, #tpu.memory_space<vmem>>, %arg3: memref<1x128xf32, #tpu.memory_space<vmem>>, %arg4: memref<128x128xbf16, #tpu.memory_space<vmem>>, %arg5: memref<1x128xf32, #tpu.memory_space<vmem>>, %arg6: memref<2x128xf32, #tpu.memory_space<vmem>>) attributes {dimension_semantics = [#tpu.dimension_semantics<parallel>], iteration_bounds = array<i64: 1>, scalar_prefetch = 0 : i64, scratch_operands = 0 : i64, tpu.core_type = #tpu.core_type<tc>, window_params = [{transform_indices = @transform_0, window_bounds = array<i64: 2, 8192>}, {pipeline_mode = #tpu.pipeline_mode<synchronous>, transform_indices = @transform_1, window_bounds = array<i64: 8192, 128>}, {pipeline_mode = #tpu.pipeline_mode<synchronous>, transform_indices = @transform_2, window_bounds = array<i64: 1, 128>}, {pipeline_mode = #tpu.pipeline_mode<synchronous>, transform_indices = @transform_3, window_bounds = array<i64: 128, 128>}, {pipeline_mode = #tpu.pipeline_mode<synchronous>, transform_indices = @transform_4, window_bounds = array<i64: 1, 128>}, {transform_indices = @transform_5, window_bounds = array<i64: 2, 128>}]} {
    %c0 = arith.constant 0 : index
    %c0_0 = arith.constant 0 : index
    %0 = vector.load %arg1[%c0, %c0_0] : memref<2x8192xbf16, #tpu.memory_space<vmem>>, vector<2x8192xbf16>
    %c0_1 = arith.constant 0 : index
    %c0_2 = arith.constant 0 : index
    %1 = vector.load %arg2[%c0_1, %c0_2] : memref<8192x128xbf16, #tpu.memory_space<vmem>>, vector<8192x128xbf16>
    %cst = arith.constant dense<0.000000e+00> : vector<2x128xf32>
    %2 = tpu.matmul %0, %1, %cst {dimension_numbers = #tpu.dot_dimension_numbers<[1], [0], [0], [1], [0, 0, 1, 1], [], []>} : vector<2x8192xbf16>, vector<8192x128xbf16>, vector<2x128xf32> -> vector<2x128xf32>
    %c0_3 = arith.constant 0 : index
    %c0_4 = arith.constant 0 : index
    %3 = vector.load %arg3[%c0_3, %c0_4] : memref<1x128xf32, #tpu.memory_space<vmem>>, vector<1x128xf32>
    %4 = vector.broadcast %3 : vector<1x128xf32> to vector<2x128xf32>
    %5 = arith.addf %2, %4 : vector<2x128xf32>
    %cst_5 = arith.constant 0.000000e+00 : f32
    %6 = vector.broadcast %cst_5 : f32 to vector<2x128xf32>
    %7 = arith.maximumf %5, %6 : vector<2x128xf32>
    %8 = arith.truncf %7 : vector<2x128xf32> to vector<2x128xbf16>
    %c0_6 = arith.constant 0 : index
    %c0_7 = arith.constant 0 : index
    %9 = vector.load %arg4[%c0_6, %c0_7] : memref<128x128xbf16, #tpu.memory_space<vmem>>, vector<128x128xbf16>
    %cst_8 = arith.constant dense<0.000000e+00> : vector<2x128xf32>
    %10 = tpu.matmul %8, %9, %cst_8 {dimension_numbers = #tpu.dot_dimension_numbers<[1], [0], [0], [1], [0, 0, 1, 1], [], []>} : vector<2x128xbf16>, vector<128x128xbf16>, vector<2x128xf32> -> vector<2x128xf32>
    %c0_9 = arith.constant 0 : index
    %c0_10 = arith.constant 0 : index
    %11 = vector.load %arg5[%c0_9, %c0_10] : memref<1x128xf32, #tpu.memory_space<vmem>>, vector<1x128xf32>
    %12 = vector.broadcast %11 : vector<1x128xf32> to vector<2x128xf32>
    %13 = arith.addf %10, %12 : vector<2x128xf32>
    %cst_11 = arith.constant dense<0xFF800000> : vector<2xf32>
    %14 = vector.multi_reduction <maximumf>, %13, %cst_11 [1] : vector<2x128xf32> to vector<2xf32>
    %15 = vector.shape_cast %14 : vector<2xf32> to vector<2x1xf32>
    %16 = vector.broadcast %15 : vector<2x1xf32> to vector<2x128xf32>
    %17 = arith.subf %13, %16 : vector<2x128xf32>
    %18 = math.exp %17 : vector<2x128xf32>
    %cst_12 = arith.constant dense<0.000000e+00> : vector<2xf32>
    %19 = vector.multi_reduction <add>, %18, %cst_12 [1] : vector<2x128xf32> to vector<2xf32>
    %20 = vector.shape_cast %19 : vector<2xf32> to vector<2x1xf32>
    %21 = tpu.reciprocal %20 {approx = true} : vector<2x1xf32> -> vector<2x1xf32>
    %22 = vector.broadcast %21 : vector<2x1xf32> to vector<2x128xf32>
    %23 = arith.mulf %18, %22 : vector<2x128xf32>
    %c0_13 = arith.constant 0 : index
    %c0_14 = arith.constant 0 : index
    %24 = vector.load %arg6[%c0_13, %c0_14] : memref<2x128xf32, #tpu.memory_space<vmem>>, vector<2x128xf32>
    tpu.vector_store %arg6[%c0_13, %c0_14], %23 {strides = array<i32>} : memref<2x128xf32, #tpu.memory_space<vmem>>, vector<2x128xf32>,
    return
  }
  func.func @transform_0(%arg0: i32) -> (i32, i32) {
    %c0_i32 = arith.constant 0 : i32
    %c0_i32_0 = arith.constant 0 : i32
    return %arg0, %c0_i32 : i32, i32
  }
  func.func @transform_1(%arg0: i32) -> (i32, i32) {
    %c0_i32 = arith.constant 0 : i32
    %c0_i32_0 = arith.constant 0 : i32
    %c0_i32_1 = arith.constant 0 : i32
    return %c0_i32, %c0_i32_0 : i32, i32
  }
  func.func @transform_2(%arg0: i32) -> (i32, i32) {
    %c0_i32 = arith.constant 0 : i32
    %c0_i32_0 = arith.constant 0 : i32
    %c0_i32_1 = arith.constant 0 : i32
    return %c0_i32, %c0_i32_0 : i32, i32
  }
  func.func @transform_3(%arg0: i32) -> (i32, i32) {
    %c0_i32 = arith.constant 0 : i32
    %c0_i32_0 = arith.constant 0 : i32
    %c0_i32_1 = arith.constant 0 : i32
    return %c0_i32, %c0_i32_0 : i32, i32
  }
  func.func @transform_4(%arg0: i32) -> (i32, i32) {
    %c0_i32 = arith.constant 0 : i32
    %c0_i32_0 = arith.constant 0 : i32
    %c0_i32_1 = arith.constant 0 : i32
    return %c0_i32, %c0_i32_0 : i32, i32
  }
  func.func @transform_5(%arg0: i32) -> (i32, i32) {
    %c0_i32 = arith.constant 0 : i32
    %c0_i32_0 = arith.constant 0 : i32
    return %arg0, %c0_i32 : i32, i32
  }
}

module attributes {stable_mosaic.version = 11 : i64} {
  func.func @kernel(%arg0: i32, %arg1: memref<1x32x640xbf16, #tpu.memory_space<vmem>>, %arg2: memref<64x32xbf16, #tpu.memory_space<vmem>>, %arg3: memref<64x1xf32, #tpu.memory_space<vmem>>, %arg4: memref<64x1600xbf16, #tpu.memory_space<vmem>>, %arg5: memref<64x1xf32, #tpu.memory_space<vmem>>, %arg6: memref<1x64x128xbf16, #tpu.memory_space<vmem>>, %arg7: memref<64x640xbf16, #tpu.memory_space<vmem>>, %arg8: memref<1600x128xbf16, #tpu.memory_space<vmem>>) attributes {dimension_semantics = [#tpu.dimension_semantics<parallel>], iteration_bounds = array<i64: 2>, scalar_prefetch = 0 : i64, scratch_operands = 2 : i64, tpu.core_type = #tpu.core_type<tc>, window_params = [{transform_indices = @transform_0, window_bounds = array<i64: 1, 32, 640>}, {pipeline_mode = #tpu.pipeline_mode<synchronous>, transform_indices = @transform_1, window_bounds = array<i64: 64, 32>}, {pipeline_mode = #tpu.pipeline_mode<synchronous>, transform_indices = @transform_2, window_bounds = array<i64: 64, 1>}, {pipeline_mode = #tpu.pipeline_mode<synchronous>, transform_indices = @transform_3, window_bounds = array<i64: 64, 1600>}, {pipeline_mode = #tpu.pipeline_mode<synchronous>, transform_indices = @transform_4, window_bounds = array<i64: 64, 1>}, {transform_indices = @transform_5, window_bounds = array<i64: 1, 64, 128>}]} {
    %c0 = arith.constant 0 : index
    %c0_0 = arith.constant 0 : index
    %0 = vector.load %arg2[%c0, %c0_0] : memref<64x32xbf16, #tpu.memory_space<vmem>>, vector<64x32xbf16>
    %c0_1 = arith.constant 0 : index
    %c0_2 = arith.constant 0 : index
    %c0_3 = arith.constant 0 : index
    %1 = vector.load %arg1[%c0_1, %c0_2, %c0_3] : memref<1x32x640xbf16, #tpu.memory_space<vmem>>, vector<1x32x640xbf16>
    %2 = vector.shape_cast %1 : vector<1x32x640xbf16> to vector<32x640xbf16>
    %cst = arith.constant dense<0.000000e+00> : vector<64x640xf32>
    %3 = tpu.matmul %0, %2, %cst {dimension_numbers = #tpu.dot_dimension_numbers<[1], [0], [0], [1], [0, 0, 1, 1], [], []>} : vector<64x32xbf16>, vector<32x640xbf16>, vector<64x640xf32> -> vector<64x640xf32>
    %c0_4 = arith.constant 0 : index
    %c0_5 = arith.constant 0 : index
    %4 = vector.load %arg3[%c0_4, %c0_5] : memref<64x1xf32, #tpu.memory_space<vmem>>, vector<64x1xf32>
    %5 = vector.broadcast %4 : vector<64x1xf32> to vector<64x640xf32>
    %6 = arith.addf %3, %5 : vector<64x640xf32>
    %cst_6 = arith.constant 0.000000e+00 : f32
    %7 = vector.broadcast %cst_6 : f32 to vector<64x640xf32>
    %8 = arith.maximumf %6, %7 : vector<64x640xf32>
    %9 = arith.truncf %8 : vector<64x640xf32> to vector<64x640xbf16>
    %c0_7 = arith.constant 0 : index
    %c0_8 = arith.constant 0 : index
    %10 = vector.load %arg7[%c0_7, %c0_8] : memref<64x640xbf16, #tpu.memory_space<vmem>>, vector<64x640xbf16>
    tpu.vector_store %arg7[%c0_7, %c0_8], %9 {strides = array<i32>} : memref<64x640xbf16, #tpu.memory_space<vmem>>, vector<64x640xbf16>,
    %c0_9 = arith.constant 0 : index
    %c0_10 = arith.constant 0 : index
    %11 = vector.load %arg7[%c0_9, %c0_10] : memref<64x640xbf16, #tpu.memory_space<vmem>>, vector<64x128xbf16>
    %c0_11 = arith.constant 0 : index
    %c0_12 = arith.constant 0 : index
    %12 = vector.load %arg8[%c0_11, %c0_12] : memref<1600x128xbf16, #tpu.memory_space<vmem>>, vector<64x128xbf16>
    tpu.vector_store %arg8[%c0_11, %c0_12], %11 {strides = array<i32>} : memref<1600x128xbf16, #tpu.memory_space<vmem>>, vector<64x128xbf16>,
    %c0_13 = arith.constant 0 : index
    %c144 = arith.constant 144 : index
    %13 = vector.load %arg7[%c0_13, %c144] : memref<64x640xbf16, #tpu.memory_space<vmem>>, vector<64x128xbf16>
    %c64 = arith.constant 64 : index
    %c0_14 = arith.constant 0 : index
    %14 = vector.load %arg8[%c64, %c0_14] : memref<1600x128xbf16, #tpu.memory_space<vmem>>, vector<64x128xbf16>
    tpu.vector_store %arg8[%c64, %c0_14], %13 {strides = array<i32>} : memref<1600x128xbf16, #tpu.memory_space<vmem>>, vector<64x128xbf16>,
    %c0_15 = arith.constant 0 : index
    %c1 = arith.constant 1 : index
    %15 = vector.load %arg7[%c0_15, %c1] : memref<64x640xbf16, #tpu.memory_space<vmem>>, vector<64x128xbf16>
    %c128 = arith.constant 128 : index
    %c0_16 = arith.constant 0 : index
    %16 = vector.load %arg8[%c128, %c0_16] : memref<1600x128xbf16, #tpu.memory_space<vmem>>, vector<64x128xbf16>
    tpu.vector_store %arg8[%c128, %c0_16], %15 {strides = array<i32>} : memref<1600x128xbf16, #tpu.memory_space<vmem>>, vector<64x128xbf16>,
    %c0_17 = arith.constant 0 : index
    %c145 = arith.constant 145 : index
    %17 = vector.load %arg7[%c0_17, %c145] : memref<64x640xbf16, #tpu.memory_space<vmem>>, vector<64x128xbf16>
    %c192 = arith.constant 192 : index
    %c0_18 = arith.constant 0 : index
    %18 = vector.load %arg8[%c192, %c0_18] : memref<1600x128xbf16, #tpu.memory_space<vmem>>, vector<64x128xbf16>
    tpu.vector_store %arg8[%c192, %c0_18], %17 {strides = array<i32>} : memref<1600x128xbf16, #tpu.memory_space<vmem>>, vector<64x128xbf16>,
    %c0_19 = arith.constant 0 : index
    %c2 = arith.constant 2 : index
    %19 = vector.load %arg7[%c0_19, %c2] : memref<64x640xbf16, #tpu.memory_space<vmem>>, vector<64x128xbf16>
    %c256 = arith.constant 256 : index
    %c0_20 = arith.constant 0 : index
    %20 = vector.load %arg8[%c256, %c0_20] : memref<1600x128xbf16, #tpu.memory_space<vmem>>, vector<64x128xbf16>
    tpu.vector_store %arg8[%c256, %c0_20], %19 {strides = array<i32>} : memref<1600x128xbf16, #tpu.memory_space<vmem>>, vector<64x128xbf16>,
    %c0_21 = arith.constant 0 : index
    %c288 = arith.constant 288 : index
    %21 = vector.load %arg7[%c0_21, %c288] : memref<64x640xbf16, #tpu.memory_space<vmem>>, vector<64x128xbf16>
    %c320 = arith.constant 320 : index
    %c0_22 = arith.constant 0 : index
    %22 = vector.load %arg8[%c320, %c0_22] : memref<1600x128xbf16, #tpu.memory_space<vmem>>, vector<64x128xbf16>
    tpu.vector_store %arg8[%c320, %c0_22], %21 {strides = array<i32>} : memref<1600x128xbf16, #tpu.memory_space<vmem>>, vector<64x128xbf16>,
    %c0_23 = arith.constant 0 : index
    %c432 = arith.constant 432 : index
    %23 = vector.load %arg7[%c0_23, %c432] : memref<64x640xbf16, #tpu.memory_space<vmem>>, vector<64x128xbf16>
    %c384 = arith.constant 384 : index
    %c0_24 = arith.constant 0 : index
    %24 = vector.load %arg8[%c384, %c0_24] : memref<1600x128xbf16, #tpu.memory_space<vmem>>, vector<64x128xbf16>
    tpu.vector_store %arg8[%c384, %c0_24], %23 {strides = array<i32>} : memref<1600x128xbf16, #tpu.memory_space<vmem>>, vector<64x128xbf16>,
    %c0_25 = arith.constant 0 : index
    %c289 = arith.constant 289 : index
    %25 = vector.load %arg7[%c0_25, %c289] : memref<64x640xbf16, #tpu.memory_space<vmem>>, vector<64x128xbf16>
    %c448 = arith.constant 448 : index
    %c0_26 = arith.constant 0 : index
    %26 = vector.load %arg8[%c448, %c0_26] : memref<1600x128xbf16, #tpu.memory_space<vmem>>, vector<64x128xbf16>
    tpu.vector_store %arg8[%c448, %c0_26], %25 {strides = array<i32>} : memref<1600x128xbf16, #tpu.memory_space<vmem>>, vector<64x128xbf16>,
    %c0_27 = arith.constant 0 : index
    %c433 = arith.constant 433 : index
    %27 = vector.load %arg7[%c0_27, %c433] : memref<64x640xbf16, #tpu.memory_space<vmem>>, vector<64x128xbf16>
    %c512 = arith.constant 512 : index
    %c0_28 = arith.constant 0 : index
    %28 = vector.load %arg8[%c512, %c0_28] : memref<1600x128xbf16, #tpu.memory_space<vmem>>, vector<64x128xbf16>
    tpu.vector_store %arg8[%c512, %c0_28], %27 {strides = array<i32>} : memref<1600x128xbf16, #tpu.memory_space<vmem>>, vector<64x128xbf16>,
    %c0_29 = arith.constant 0 : index
    %c290 = arith.constant 290 : index
    %29 = vector.load %arg7[%c0_29, %c290] : memref<64x640xbf16, #tpu.memory_space<vmem>>, vector<64x128xbf16>
    %c576 = arith.constant 576 : index
    %c0_30 = arith.constant 0 : index
    %30 = vector.load %arg8[%c576, %c0_30] : memref<1600x128xbf16, #tpu.memory_space<vmem>>, vector<64x128xbf16>
    tpu.vector_store %arg8[%c576, %c0_30], %29 {strides = array<i32>} : memref<1600x128xbf16, #tpu.memory_space<vmem>>, vector<64x128xbf16>,
    %c0_31 = arith.constant 0 : index
    %c12 = arith.constant 12 : index
    %31 = vector.load %arg7[%c0_31, %c12] : memref<64x640xbf16, #tpu.memory_space<vmem>>, vector<64x128xbf16>
    %c640 = arith.constant 640 : index
    %c0_32 = arith.constant 0 : index
    %32 = vector.load %arg8[%c640, %c0_32] : memref<1600x128xbf16, #tpu.memory_space<vmem>>, vector<64x128xbf16>
    tpu.vector_store %arg8[%c640, %c0_32], %31 {strides = array<i32>} : memref<1600x128xbf16, #tpu.memory_space<vmem>>, vector<64x128xbf16>,
    %c0_33 = arith.constant 0 : index
    %c156 = arith.constant 156 : index
    %33 = vector.load %arg7[%c0_33, %c156] : memref<64x640xbf16, #tpu.memory_space<vmem>>, vector<64x128xbf16>
    %c704 = arith.constant 704 : index
    %c0_34 = arith.constant 0 : index
    %34 = vector.load %arg8[%c704, %c0_34] : memref<1600x128xbf16, #tpu.memory_space<vmem>>, vector<64x128xbf16>
    tpu.vector_store %arg8[%c704, %c0_34], %33 {strides = array<i32>} : memref<1600x128xbf16, #tpu.memory_space<vmem>>, vector<64x128xbf16>,
    %c0_35 = arith.constant 0 : index
    %c13 = arith.constant 13 : index
    %35 = vector.load %arg7[%c0_35, %c13] : memref<64x640xbf16, #tpu.memory_space<vmem>>, vector<64x128xbf16>
    %c768 = arith.constant 768 : index
    %c0_36 = arith.constant 0 : index
    %36 = vector.load %arg8[%c768, %c0_36] : memref<1600x128xbf16, #tpu.memory_space<vmem>>, vector<64x128xbf16>
    tpu.vector_store %arg8[%c768, %c0_36], %35 {strides = array<i32>} : memref<1600x128xbf16, #tpu.memory_space<vmem>>, vector<64x128xbf16>,
    %c0_37 = arith.constant 0 : index
    %c157 = arith.constant 157 : index
    %37 = vector.load %arg7[%c0_37, %c157] : memref<64x640xbf16, #tpu.memory_space<vmem>>, vector<64x128xbf16>
    %c832 = arith.constant 832 : index
    %c0_38 = arith.constant 0 : index
    %38 = vector.load %arg8[%c832, %c0_38] : memref<1600x128xbf16, #tpu.memory_space<vmem>>, vector<64x128xbf16>
    tpu.vector_store %arg8[%c832, %c0_38], %37 {strides = array<i32>} : memref<1600x128xbf16, #tpu.memory_space<vmem>>, vector<64x128xbf16>,
    %c0_39 = arith.constant 0 : index
    %c14 = arith.constant 14 : index
    %39 = vector.load %arg7[%c0_39, %c14] : memref<64x640xbf16, #tpu.memory_space<vmem>>, vector<64x128xbf16>
    %c896 = arith.constant 896 : index
    %c0_40 = arith.constant 0 : index
    %40 = vector.load %arg8[%c896, %c0_40] : memref<1600x128xbf16, #tpu.memory_space<vmem>>, vector<64x128xbf16>
    tpu.vector_store %arg8[%c896, %c0_40], %39 {strides = array<i32>} : memref<1600x128xbf16, #tpu.memory_space<vmem>>, vector<64x128xbf16>,
    %c0_41 = arith.constant 0 : index
    %c300 = arith.constant 300 : index
    %41 = vector.load %arg7[%c0_41, %c300] : memref<64x640xbf16, #tpu.memory_space<vmem>>, vector<64x128xbf16>
    %c960 = arith.constant 960 : index
    %c0_42 = arith.constant 0 : index
    %42 = vector.load %arg8[%c960, %c0_42] : memref<1600x128xbf16, #tpu.memory_space<vmem>>, vector<64x128xbf16>
    tpu.vector_store %arg8[%c960, %c0_42], %41 {strides = array<i32>} : memref<1600x128xbf16, #tpu.memory_space<vmem>>, vector<64x128xbf16>,
    %c0_43 = arith.constant 0 : index
    %c444 = arith.constant 444 : index
    %43 = vector.load %arg7[%c0_43, %c444] : memref<64x640xbf16, #tpu.memory_space<vmem>>, vector<64x128xbf16>
    %c1024 = arith.constant 1024 : index
    %c0_44 = arith.constant 0 : index
    %44 = vector.load %arg8[%c1024, %c0_44] : memref<1600x128xbf16, #tpu.memory_space<vmem>>, vector<64x128xbf16>
    tpu.vector_store %arg8[%c1024, %c0_44], %43 {strides = array<i32>} : memref<1600x128xbf16, #tpu.memory_space<vmem>>, vector<64x128xbf16>,
    %c0_45 = arith.constant 0 : index
    %c301 = arith.constant 301 : index
    %45 = vector.load %arg7[%c0_45, %c301] : memref<64x640xbf16, #tpu.memory_space<vmem>>, vector<64x128xbf16>
    %c1088 = arith.constant 1088 : index
    %c0_46 = arith.constant 0 : index
    %46 = vector.load %arg8[%c1088, %c0_46] : memref<1600x128xbf16, #tpu.memory_space<vmem>>, vector<64x128xbf16>
    tpu.vector_store %arg8[%c1088, %c0_46], %45 {strides = array<i32>} : memref<1600x128xbf16, #tpu.memory_space<vmem>>, vector<64x128xbf16>,
    %c0_47 = arith.constant 0 : index
    %c445 = arith.constant 445 : index
    %47 = vector.load %arg7[%c0_47, %c445] : memref<64x640xbf16, #tpu.memory_space<vmem>>, vector<64x128xbf16>
    %c1152 = arith.constant 1152 : index
    %c0_48 = arith.constant 0 : index
    %48 = vector.load %arg8[%c1152, %c0_48] : memref<1600x128xbf16, #tpu.memory_space<vmem>>, vector<64x128xbf16>
    tpu.vector_store %arg8[%c1152, %c0_48], %47 {strides = array<i32>} : memref<1600x128xbf16, #tpu.memory_space<vmem>>, vector<64x128xbf16>,
    %c0_49 = arith.constant 0 : index
    %c302 = arith.constant 302 : index
    %49 = vector.load %arg7[%c0_49, %c302] : memref<64x640xbf16, #tpu.memory_space<vmem>>, vector<64x128xbf16>
    %c1216 = arith.constant 1216 : index
    %c0_50 = arith.constant 0 : index
    %50 = vector.load %arg8[%c1216, %c0_50] : memref<1600x128xbf16, #tpu.memory_space<vmem>>, vector<64x128xbf16>
    tpu.vector_store %arg8[%c1216, %c0_50], %49 {strides = array<i32>} : memref<1600x128xbf16, #tpu.memory_space<vmem>>, vector<64x128xbf16>,
    %c0_51 = arith.constant 0 : index
    %c24 = arith.constant 24 : index
    %51 = vector.load %arg7[%c0_51, %c24] : memref<64x640xbf16, #tpu.memory_space<vmem>>, vector<64x128xbf16>
    %c1280 = arith.constant 1280 : index
    %c0_52 = arith.constant 0 : index
    %52 = vector.load %arg8[%c1280, %c0_52] : memref<1600x128xbf16, #tpu.memory_space<vmem>>, vector<64x128xbf16>
    tpu.vector_store %arg8[%c1280, %c0_52], %51 {strides = array<i32>} : memref<1600x128xbf16, #tpu.memory_space<vmem>>, vector<64x128xbf16>,
    %c0_53 = arith.constant 0 : index
    %c168 = arith.constant 168 : index
    %53 = vector.load %arg7[%c0_53, %c168] : memref<64x640xbf16, #tpu.memory_space<vmem>>, vector<64x128xbf16>
    %c1344 = arith.constant 1344 : index
    %c0_54 = arith.constant 0 : index
    %54 = vector.load %arg8[%c1344, %c0_54] : memref<1600x128xbf16, #tpu.memory_space<vmem>>, vector<64x128xbf16>
    tpu.vector_store %arg8[%c1344, %c0_54], %53 {strides = array<i32>} : memref<1600x128xbf16, #tpu.memory_space<vmem>>, vector<64x128xbf16>,
    %c0_55 = arith.constant 0 : index
    %c25 = arith.constant 25 : index
    %55 = vector.load %arg7[%c0_55, %c25] : memref<64x640xbf16, #tpu.memory_space<vmem>>, vector<64x128xbf16>
    %c1408 = arith.constant 1408 : index
    %c0_56 = arith.constant 0 : index
    %56 = vector.load %arg8[%c1408, %c0_56] : memref<1600x128xbf16, #tpu.memory_space<vmem>>, vector<64x128xbf16>
    tpu.vector_store %arg8[%c1408, %c0_56], %55 {strides = array<i32>} : memref<1600x128xbf16, #tpu.memory_space<vmem>>, vector<64x128xbf16>,
    %c0_57 = arith.constant 0 : index
    %c169 = arith.constant 169 : index
    %57 = vector.load %arg7[%c0_57, %c169] : memref<64x640xbf16, #tpu.memory_space<vmem>>, vector<64x128xbf16>
    %c1472 = arith.constant 1472 : index
    %c0_58 = arith.constant 0 : index
    %58 = vector.load %arg8[%c1472, %c0_58] : memref<1600x128xbf16, #tpu.memory_space<vmem>>, vector<64x128xbf16>
    tpu.vector_store %arg8[%c1472, %c0_58], %57 {strides = array<i32>} : memref<1600x128xbf16, #tpu.memory_space<vmem>>, vector<64x128xbf16>,
    %c0_59 = arith.constant 0 : index
    %c26 = arith.constant 26 : index
    %59 = vector.load %arg7[%c0_59, %c26] : memref<64x640xbf16, #tpu.memory_space<vmem>>, vector<64x128xbf16>
    %c1536 = arith.constant 1536 : index
    %c0_60 = arith.constant 0 : index
    %60 = vector.load %arg8[%c1536, %c0_60] : memref<1600x128xbf16, #tpu.memory_space<vmem>>, vector<64x128xbf16>
    tpu.vector_store %arg8[%c1536, %c0_60], %59 {strides = array<i32>} : memref<1600x128xbf16, #tpu.memory_space<vmem>>, vector<64x128xbf16>,
    %c0_61 = arith.constant 0 : index
    %c0_62 = arith.constant 0 : index
    %61 = vector.load %arg4[%c0_61, %c0_62] : memref<64x1600xbf16, #tpu.memory_space<vmem>>, vector<64x1600xbf16>
    %c0_63 = arith.constant 0 : index
    %c0_64 = arith.constant 0 : index
    %62 = vector.load %arg8[%c0_63, %c0_64] : memref<1600x128xbf16, #tpu.memory_space<vmem>>, vector<1600x128xbf16>
    %cst_65 = arith.constant dense<0.000000e+00> : vector<64x128xf32>
    %63 = tpu.matmul %61, %62, %cst_65 {dimension_numbers = #tpu.dot_dimension_numbers<[1], [0], [0], [1], [0, 0, 1, 1], [], []>} : vector<64x1600xbf16>, vector<1600x128xbf16>, vector<64x128xf32> -> vector<64x128xf32>
    %c0_66 = arith.constant 0 : index
    %c0_67 = arith.constant 0 : index
    %64 = vector.load %arg5[%c0_66, %c0_67] : memref<64x1xf32, #tpu.memory_space<vmem>>, vector<64x1xf32>
    %65 = vector.broadcast %64 : vector<64x1xf32> to vector<64x128xf32>
    %66 = arith.addf %63, %65 : vector<64x128xf32>
    %cst_68 = arith.constant 0.000000e+00 : f32
    %67 = vector.broadcast %cst_68 : f32 to vector<64x128xf32>
    %68 = arith.maximumf %66, %67 : vector<64x128xf32>
    %69 = arith.truncf %68 : vector<64x128xf32> to vector<64x128xbf16>
    %c0_69 = arith.constant 0 : index
    %c0_70 = arith.constant 0 : index
    %c0_71 = arith.constant 0 : index
    %70 = vector.load %arg6[%c0_69, %c0_70, %c0_71] : memref<1x64x128xbf16, #tpu.memory_space<vmem>>, vector<1x64x128xbf16>
    %71 = vector.shape_cast %70 : vector<1x64x128xbf16> to vector<64x128xbf16>
    %72 = vector.shape_cast %69 : vector<64x128xbf16> to vector<1x64x128xbf16>
    tpu.vector_store %arg6[%c0_69, %c0_70, %c0_71], %72 {strides = array<i32>} : memref<1x64x128xbf16, #tpu.memory_space<vmem>>, vector<1x64x128xbf16>,
    return
  }
  func.func @transform_0(%arg0: i32) -> (i32, i32, i32) {
    %c0_i32 = arith.constant 0 : i32
    %c0_i32_0 = arith.constant 0 : i32
    %c0_i32_1 = arith.constant 0 : i32
    return %arg0, %c0_i32, %c0_i32_0 : i32, i32, i32
  }
  func.func @transform_1(%arg0: i32) -> (i32, i32) {
    %c0_i32 = arith.constant 0 : i32
    %c0_i32_0 = arith.constant 0 : i32
    %c0_i32_1 = arith.constant 0 : i32
    return %c0_i32, %c0_i32_0 : i32, i32
  }
  func.func @transform_2(%arg0: i32) -> (i32, i32) {
    %c0_i32 = arith.constant 0 : i32
    %c0_i32_0 = arith.constant 0 : i32
    %c0_i32_1 = arith.constant 0 : i32
    return %c0_i32, %c0_i32_0 : i32, i32
  }
  func.func @transform_3(%arg0: i32) -> (i32, i32) {
    %c0_i32 = arith.constant 0 : i32
    %c0_i32_0 = arith.constant 0 : i32
    %c0_i32_1 = arith.constant 0 : i32
    return %c0_i32, %c0_i32_0 : i32, i32
  }
  func.func @transform_4(%arg0: i32) -> (i32, i32) {
    %c0_i32 = arith.constant 0 : i32
    %c0_i32_0 = arith.constant 0 : i32
    %c0_i32_1 = arith.constant 0 : i32
    return %c0_i32, %c0_i32_0 : i32, i32
  }
  func.func @transform_5(%arg0: i32) -> (i32, i32, i32) {
    %c0_i32 = arith.constant 0 : i32
    %c0_i32_0 = arith.constant 0 : i32
    %c0_i32_1 = arith.constant 0 : i32
    return %arg0, %c0_i32, %c0_i32_0 : i32, i32, i32
  }
}

</mosaic_0001>

<llo_original>
// kernel: mnist_cnn_forward.2
$region0: #{mnist_cnn_forward.2}
  #allocation0 [shape = 'u32[]', space=smem, size = 0x4, offset = 0x4, fixed_abs, tag = 'smem constant byte address 0x4 - core index']
  #allocation1 [shape = 'u32[72,128]{1,0:T(1,128)}', space=vmem, size = 0x9000, scoped, tag = 'internal scratch']
  #allocation2 [shape = 'bf16[64,640]{1,0:T(8,128)(2,1)}', space=vmem, size = 0x14000, scoped, tag = 'scratch operand']
  #allocation3 [shape = 'bf16[1600,128]{1,0:T(8,128)(2,1)}', space=vmem, size = 0x64000, scoped, tag = 'scratch operand']
  %s0 = inlined_call_operand.vmem [shape: bf16[2,32,640], index: 0, kind: input, shape index: {}]
  %s1 = inlined_call_operand.vmem [shape: bf16[64,32], index: 1, kind: input, shape index: {}]
  %s2 = inlined_call_operand.vmem [shape: f32[64,1], index: 2, kind: input, shape index: {}]
  %s3 = inlined_call_operand.vmem [shape: bf16[64,1600], index: 3, kind: input, shape index: {}]
  %s4 = inlined_call_operand.vmem [shape: f32[64,1], index: 4, kind: input, shape index: {}]
  %s5 = inlined_call_operand.vmem [shape: bf16[2,64,128], index: 5, kind: output, shape index: {}]
  %s6 = sld [smem:[#allocation0]]
  $region53: #{mnist_cnn_forward.2} parent=0
    _
  %s8 = ssub.s32 1, %s6
  %s9 = scalar_select 0, %s8, %s6
  loop: start=0, step=1, limit=4
  $region2: #{mnist_cnn_forward.2} parent=0 // loop_pre_header
    _
  $region3: #{mnist_cnn_forward.2} parent=0 // loop_header
    %s11 = sphi 0, %s15
    %p12 = scmp.ge.s32.totalorder %s11, 4
    %s21 = sphi 0, %s23
    %s24 = sphi 0, %s21
    %s25 = sphi 0, %s24
    %s41 = sphi 0, %s25
    %s45 = sphi 0, %s45
    %s47 = sphi 0, %s45
    %s48 = sphi 0, %s47
    %s62 = sphi 0, %s48
    %s66 = sphi 0, %s66
    %s68 = sphi 0, %s66
    %s69 = sphi 0, %s68
    %s83 = sphi 0, %s69
    %s87 = sphi 0, %s87
    %s89 = sphi 0, %s87
    %s90 = sphi 0, %s89
    %s104 = sphi 0, %s90
    %s108 = sphi 0, %s108
    %s110 = sphi 0, %s108
    %s111 = sphi 0, %s110
    %s125 = sphi 0, %s111
    %s131 = sphi 0, %s133
    %s134 = sphi 0, %s131
    %s135 = sphi 0, %s134
    %s151 = sphi 0, %s135
  $region4: #{mnist_cnn_forward.2} parent=0 // loop_header_branch
    %14 = sbr.rel (%p12) target = $region8
  $region5: #{mnist_cnn_forward.2} parent=0 // loop_body
    %s16 = ssub.s32 %s11, 1
    %s17 = ssub.s32 %s11, 2
    %s18 = sadd.s32 %s11, 1
    %s19 = ssub.s32 %s11, %s18
    %p20 = scmp.eq.s32.totalorder %s19, 0
    %s22 = sadd.s32 %s21, 1
    %s23 = scalar_select %p20, %s21, %s22
    %p26 = pneg %p20
    %p27 = scmp.eq.s32.totalorder %s11, 1
    %p28 = por %p26, %p27
    %p29 = scmp.ne.s32.totalorder %s21, %s24
    %p30 = scmp.eq.s32.totalorder %s11, 0
    %p31 = por %p29, %p30
    %p32 = scmp.ne.s32.totalorder %s21, %s24
    %p33 = scmp.eq.s32.totalorder %s16, 1
    %p34 = por %p32, %p33
    %p35 = scmp.ne.s32.totalorder %s24, %s25
    %p36 = scmp.eq.s32.totalorder %s16, 0
    %p37 = por %p35, %p36
    %p38 = scmp.ne.s32.totalorder %s24, %s25
    %p39 = scmp.eq.s32.totalorder %s17, 1
    %p40 = por %p38, %p39
    %p42 = scmp.ne.s32.totalorder %s25, %s41
    %p43 = scmp.eq.s32.totalorder %s17, 0
    %p44 = por %p42, %p43
    %s46 = sadd.s32 %s45, 1
    %p49 = scmp.eq.s32.totalorder %s11, 1
    %p50 = scmp.ne.s32.totalorder %s45, %s47
    %p51 = scmp.eq.s32.totalorder %s11, 0
    %p52 = por %p50, %p51
    %p53 = scmp.ne.s32.totalorder %s45, %s47
    %p54 = scmp.eq.s32.totalorder %s16, 1
    %p55 = por %p53, %p54
    %p56 = scmp.ne.s32.totalorder %s47, %s48
    %p57 = scmp.eq.s32.totalorder %s16, 0
    %p58 = por %p56, %p57
    %p59 = scmp.ne.s32.totalorder %s47, %s48
    %p60 = scmp.eq.s32.totalorder %s17, 1
    %p61 = por %p59, %p60
    %p63 = scmp.ne.s32.totalorder %s48, %s62
    %p64 = scmp.eq.s32.totalorder %s17, 0
    %p65 = por %p63, %p64
    %s67 = sadd.s32 %s66, 1
    %p70 = scmp.eq.s32.totalorder %s11, 1
    %p71 = scmp.ne.s32.totalorder %s66, %s68
    %p72 = scmp.eq.s32.totalorder %s11, 0
    %p73 = por %p71, %p72
    %p74 = scmp.ne.s32.totalorder %s66, %s68
    %p75 = scmp.eq.s32.totalorder %s16, 1
    %p76 = por %p74, %p75
    %p77 = scmp.ne.s32.totalorder %s68, %s69
    %p78 = scmp.eq.s32.totalorder %s16, 0
    %p79 = por %p77, %p78
    %p80 = scmp.ne.s32.totalorder %s68, %s69
    %p81 = scmp.eq.s32.totalorder %s17, 1
    %p82 = por %p80, %p81
    %p84 = scmp.ne.s32.totalorder %s69, %s83
    %p85 = scmp.eq.s32.totalorder %s17, 0
    %p86 = por %p84, %p85
    %s88 = sadd.s32 %s87, 1
    %p91 = scmp.eq.s32.totalorder %s11, 1
    %p92 = scmp.ne.s32.totalorder %s87, %s89
    %p93 = scmp.eq.s32.totalorder %s11, 0
    %p94 = por %p92, %p93
    %p95 = scmp.ne.s32.totalorder %s87, %s89
    %p96 = scmp.eq.s32.totalorder %s16, 1
    %p97 = por %p95, %p96
    %p98 = scmp.ne.s32.totalorder %s89, %s90
    %p99 = scmp.eq.s32.totalorder %s16, 0
    %p100 = por %p98, %p99
    %p101 = scmp.ne.s32.totalorder %s89, %s90
    %p102 = scmp.eq.s32.totalorder %s17, 1
    %p103 = por %p101, %p102
    %p105 = scmp.ne.s32.totalorder %s90, %s104
    %p106 = scmp.eq.s32.totalorder %s17, 0
    %p107 = por %p105, %p106
    %s109 = sadd.s32 %s108, 1
    %p112 = scmp.eq.s32.totalorder %s11, 1
    %p113 = scmp.ne.s32.totalorder %s108, %s110
    %p114 = scmp.eq.s32.totalorder %s11, 0
    %p115 = por %p113, %p114
    %p116 = scmp.ne.s32.totalorder %s108, %s110
    %p117 = scmp.eq.s32.totalorder %s16, 1
    %p118 = por %p116, %p117
    %p119 = scmp.ne.s32.totalorder %s110, %s111
    %p120 = scmp.eq.s32.totalorder %s16, 0
    %p121 = por %p119, %p120
    %p122 = scmp.ne.s32.totalorder %s110, %s111
    %p123 = scmp.eq.s32.totalorder %s17, 1
    %p124 = por %p122, %p123
    %p126 = scmp.ne.s32.totalorder %s111, %s125
    %p127 = scmp.eq.s32.totalorder %s17, 0
    %p128 = por %p126, %p127
    %s129 = ssub.s32 %s11, %s18
    %p130 = scmp.eq.s32.totalorder %s129, 0
    %s132 = sadd.s32 %s131, 1
    %s133 = scalar_select %p130, %s131, %s132
    %p136 = pneg %p130
    %p137 = scmp.eq.s32.totalorder %s11, 1
    %p138 = por %p136, %p137
    %p139 = scmp.ne.s32.totalorder %s131, %s134
    %p140 = scmp.eq.s32.totalorder %s11, 0
    %p141 = por %p139, %p140
    %p142 = scmp.ne.s32.totalorder %s131, %s134
    %p143 = scmp.eq.s32.totalorder %s16, 1
    %p144 = por %p142, %p143
    %p145 = scmp.ne.s32.totalorder %s134, %s135
    %p146 = scmp.eq.s32.totalorder %s16, 0
    %p147 = por %p145, %p146
    %p148 = scmp.ne.s32.totalorder %s134, %s135
    %p149 = scmp.eq.s32.totalorder %s17, 1
    %p150 = por %p148, %p149
    %p152 = scmp.ne.s32.totalorder %s135, %s151
    %p153 = scmp.eq.s32.totalorder %s17, 0
    %p154 = por %p152, %p153
    %p155 = scmp.le.s32.totalorder 1, %s11
    %p156 = scmp.lt.s32.totalorder %s11, 3
    %p157 = pnand %p155, %p156
    %p158 = pneg %p157
    // Predicated region
    $region9: #{mnist_cnn_forward.2} parent=5 // pred_check
      _
    $region10: #{mnist_cnn_forward.2} parent=5 // pred_check_branch
      %160 = sbr.rel (%p157) target = $region12
    $region11: #{mnist_cnn_forward.2} parent=5 // pred_region
      %s161 = ssub.s32 %s11, 1
      // Predicated region
      $region13: #{mnist_cnn_forward.2} parent=11 // pred_check
        %p162 = pneg %p58
      $region14: #{mnist_cnn_forward.2} parent=11 // pred_check_branch
        %164 = sbr.rel (%p162) target = $region16
      $region15: #{mnist_cnn_forward.2} parent=11 // pred_region
        _
      $region16: #{mnist_cnn_forward.2} parent=11 // pred_fallthru
        _
      // Predicated region
      $region17: #{mnist_cnn_forward.2} parent=11 // pred_check
        %p165 = pneg %p79
      $region18: #{mnist_cnn_forward.2} parent=11 // pred_check_branch
        %167 = sbr.rel (%p165) target = $region20
      $region19: #{mnist_cnn_forward.2} parent=11 // pred_region
        _
      $region20: #{mnist_cnn_forward.2} parent=11 // pred_fallthru
        _
      // Predicated region
      $region21: #{mnist_cnn_forward.2} parent=11 // pred_check
        %p168 = pneg %p100
      $region22: #{mnist_cnn_forward.2} parent=11 // pred_check_branch
        %170 = sbr.rel (%p168) target = $region24
      $region23: #{mnist_cnn_forward.2} parent=11 // pred_region
        _
      $region24: #{mnist_cnn_forward.2} parent=11 // pred_fallthru
        _
      // Predicated region
      $region25: #{mnist_cnn_forward.2} parent=11 // pred_check
        %p171 = pneg %p121
      $region26: #{mnist_cnn_forward.2} parent=11 // pred_check_branch
        %173 = sbr.rel (%p171) target = $region28
      $region27: #{mnist_cnn_forward.2} parent=11 // pred_region
        _
      $region28: #{mnist_cnn_forward.2} parent=11 // pred_fallthru
        _
    $region12: #{mnist_cnn_forward.2} parent=5 // pred_fallthru
      _
    %p174 = scmp.lt.s32.totalorder %s11, 2
    // Predicated region
    $region29: #{mnist_cnn_forward.2} parent=5 // pred_check
      %p175 = pneg %p174
    $region30: #{mnist_cnn_forward.2} parent=5 // pred_check_branch
      %177 = sbr.rel (%p175) target = $region32
    $region31: #{mnist_cnn_forward.2} parent=5 // pred_region
      // Predicated region
      $region33: #{mnist_cnn_forward.2} parent=31 // pred_check
        %p178 = pneg %p31
      $region34: #{mnist_cnn_forward.2} parent=31 // pred_check_branch
        %180 = sbr.rel (%p178) target = $region36
      $region35: #{mnist_cnn_forward.2} parent=31 // pred_region
        %p181 = scmp.lt.s32.totalorder %s11, 1
        %s182 = scalar_select %p181, %s11, 1
        %s183 = smul.addr %s182, 20
        %s184 = smul.addr %s183, 4
        %s185 = scalar_lea.vmem %s0, %s184
      $region36: #{mnist_cnn_forward.2} parent=31 // pred_fallthru
        _
    $region32: #{mnist_cnn_forward.2} parent=5 // pred_fallthru
      _
    %p186 = scmp.le.s32.totalorder 1, %s11
    %p187 = scmp.lt.s32.totalorder %s11, 3
    %p188 = pnand %p186, %p187
    %p189 = pneg %p188
    // Predicated region
    $region37: #{mnist_cnn_forward.2} parent=5 // pred_check
      _
    $region38: #{mnist_cnn_forward.2} parent=5 // pred_check_branch
      %191 = sbr.rel (%p188) target = $region40
    $region39: #{mnist_cnn_forward.2} parent=5 // pred_region
      %s192 = ssub.s32 %s11, 1
      %p193 = scmp.lt.s32.totalorder %s16, 1
      %s194 = scalar_select %p193, %s16, 1
      %s195 = smul.addr %s194, 20
      %s196 = smul.addr %s195, 4
      %s197 = scalar_lea.vmem %s0, %s196
      %p198 = pneg %p37
      %p199 = pneg %p34
      %p200 = pneg %p58
      %p201 = pneg %p55
      %p202 = pneg %p79
      %p203 = pneg %p76
      %p204 = pneg %p100
      %p205 = pneg %p97
      %p206 = pneg %p121
      %p207 = pneg %p118
      %p208 = pneg %p147
      %p209 = pneg %p144
      %p210 = scmp.lt.s32.totalorder %s16, 1
      %s211 = scalar_select %p210, %s16, 1
      %s212 = smul.addr %s211, 8
      %s213 = smul.addr %s212, 4
      %s214 = scalar_lea.vmem %s5, %s213
      %p215 = scmp.lt.s32.totalorder %s16, 1
      %s216 = scalar_select %p215, %s16, 1
      %s217 = smul.addr %s216, 20
      %s218 = smul.addr %s217, 4
      %s219 = scalar_lea.vmem %s0, %s218
      %p220 = scmp.lt.s32.totalorder %s16, 1
      %s221 = scalar_select %p220, %s16, 1
      %s222 = smul.addr %s221, 8
      %s223 = smul.addr %s222, 4
      %s224 = scalar_lea.vmem %s5, %s223
      %v226 = vld [vmem:[%s1] sm:$0xf]
      %v227 = vld [vmem:[%s1 + $0x4] sm:$0xf]
      %v228 = vld [vmem:[%s1 + $0x8] sm:$0xf]
      %v229 = vld [vmem:[%s1 + $0xc] sm:$0xf]
      %v230 = vld [vmem:[%s1 + $0x10] sm:$0xf]
      %v231 = vld [vmem:[%s1 + $0x14] sm:$0xf]
      %v232 = vld [vmem:[%s1 + $0x18] sm:$0xf]
      %v233 = vld [vmem:[%s1 + $0x1c] sm:$0xf]
      %v234 = vld [vmem:[%s219] sm:$0xff]
      %v235 = vld [vmem:[%s219 + $0x8] sm:$0xff]
      %v236 = vld [vmem:[%s219 + $0x10] sm:$0xf]
      %v237 = vld [vmem:[%s219 + $0x14] sm:$0xff]
      %v238 = vld [vmem:[%s219 + $0x1c] sm:$0xff]
      %v239 = vld [vmem:[%s219 + $0x24] sm:$0xf]
      %v240 = vld [vmem:[%s219 + $0x28] sm:$0xff]
      %v241 = vld [vmem:[%s219 + $0x30] sm:$0xff]
      %v242 = vld [vmem:[%s219 + $0x38] sm:$0xf]
      %v243 = vld [vmem:[%s219 + $0x3c] sm:$0xff]
      %v244 = vld [vmem:[%s219 + $0x44] sm:$0xff]
      %v245 = vld [vmem:[%s219 + $0x4c] sm:$0xf]
      %v246 = vld [vmem:[%s2] sm:$0xff]
      %v247 = vld [vmem:[%s2 + $0x8] sm:$0xff]
      %v248 = vld [vmem:[%s2 + $0x10] sm:$0xff]
      %v249 = vld [vmem:[%s2 + $0x18] sm:$0xff]
      %v250 = vld [vmem:[%s2 + $0x20] sm:$0xff]
      %v251 = vld [vmem:[%s2 + $0x28] sm:$0xff]
      %v252 = vld [vmem:[%s2 + $0x30] sm:$0xff]
      %v253 = vld [vmem:[%s2 + $0x38] sm:$0xff]
      %255 = vset.pattern.permute.xlu0 0
      %256 = vperm.xlu0 %255, %v246
      %v257 = vpop.permute.xlu0 %256
      %260 = vset.pattern.permute.xlu0 0
      %261 = vperm.xlu0 %260, %v247
      %v262 = vpop.permute.xlu0 %261
      %265 = vset.pattern.permute.xlu0 0
      %266 = vperm.xlu0 %265, %v248
      %v267 = vpop.permute.xlu0 %266
      %270 = vset.pattern.permute.xlu0 0
      %271 = vperm.xlu0 %270, %v249
      %v272 = vpop.permute.xlu0 %271
      %275 = vset.pattern.permute.xlu0 0
      %276 = vperm.xlu0 %275, %v250
      %v277 = vpop.permute.xlu0 %276
      %280 = vset.pattern.permute.xlu0 0
      %281 = vperm.xlu0 %280, %v251
      %v282 = vpop.permute.xlu0 %281
      %285 = vset.pattern.permute.xlu0 0
      %286 = vperm.xlu0 %285, %v252
      %v287 = vpop.permute.xlu0 %286
      %290 = vset.pattern.permute.xlu0 0
      %291 = vperm.xlu0 %290, %v253
      %v292 = vpop.permute.xlu0 %291
      %v302 = vunpack.c.l.b16 %v226
      %v303 = vunpack.c.l.b16 %v227
      %v304 = vunpack.c.l.b16 %v228
      %v305 = vunpack.c.l.b16 %v229
      %v306 = vunpack.c.l.b16 %v230
      %v307 = vunpack.c.l.b16 %v231
      %v308 = vunpack.c.l.b16 %v232
      %v309 = vunpack.c.l.b16 %v233
      %v310 = vpack.c.b16 %v303, %v302
      %v311 = vpack.c.b16 %v305, %v304
      %v312 = vpack.c.b16 %v307, %v306
      %v313 = vpack.c.b16 %v309, %v308
      %v326 = vunpack.c.l.b16 %v234
      %v327 = vunpack.c.h.b16 %v234
      %v328 = vunpack.c.l.b16 %v235
      %v329 = vunpack.c.h.b16 %v235
      %v330 = vunpack.c.l.b16 %v236
      %v331 = vunpack.c.l.b16 %v237
      %v332 = vunpack.c.h.b16 %v237
      %v333 = vunpack.c.l.b16 %v238
      %v334 = vunpack.c.h.b16 %v238
      %v335 = vunpack.c.l.b16 %v239
      %v336 = vunpack.c.l.b16 %v240
      %v337 = vunpack.c.h.b16 %v240
      %v338 = vunpack.c.l.b16 %v241
      %v339 = vunpack.c.h.b16 %v241
      %v340 = vunpack.c.l.b16 %v242
      %v341 = vunpack.c.l.b16 %v243
      %v342 = vunpack.c.h.b16 %v243
      %v343 = vunpack.c.l.b16 %v244
      %v344 = vunpack.c.h.b16 %v244
      %v345 = vunpack.c.l.b16 %v245
      %v346 = vpack.c.b16 %v331, %v326
      %v347 = vpack.c.b16 %v332, %v327
      %v348 = vpack.c.b16 %v333, %v328
      %v349 = vpack.c.b16 %v334, %v329
      %v350 = vpack.c.b16 %v335, %v330
      %v351 = vpack.c.b16 %v341, %v336
      %v352 = vpack.c.b16 %v342, %v337
      %v353 = vpack.c.b16 %v343, %v338
      %v354 = vpack.c.b16 %v344, %v339
      %v355 = vpack.c.b16 %v345, %v340
      %vm366 = vcmask 261120
      %v368 = vsel %vm366, %v310, 0
      %v371 = vsel %vm366, %v311, 0
      %v374 = vsel %vm366, %v312, 0
      %v377 = vsel %vm366, %v313, 0
      %379 = vmatpush.bf16.msra.mxu0 0
      %380 = vmatpush.bf16.msra.mxu0 0
      %381 = vmatpush.bf16.msra.mxu0 0
      %382 = vmatpush.bf16.msra.mxu0 0
      %383 = vmatpush.bf16.msra.mxu0 0
      %384 = vmatpush.bf16.msra.mxu0 0
      %385 = vmatpush.bf16.msra.mxu0 %v351
      %386 = vmatpush.bf16.msra.mxu0 %v346
      %387 = vmatmul.bf16.gmra.mxu0 %v368
      %v388 = vpop.f32.mrf.mxu0
      %v389 = vadd.f32 %v257, %v388
      %v390 = vpop.f32.mrf.mxu0
      %v391 = vadd.f32 %v262, %v390
      %392 = vmatmul.bf16.gmra.mxu0 %v371
      %v393 = vpop.f32.mrf.mxu0
      %v394 = vadd.f32 %v267, %v393
      %v395 = vpop.f32.mrf.mxu0
      %v396 = vadd.f32 %v272, %v395
      %397 = vmatmul.bf16.gmra.mxu0 %v374
      %v398 = vpop.f32.mrf.mxu0
      %v399 = vadd.f32 %v277, %v398
      %v400 = vpop.f32.mrf.mxu0
      %v401 = vadd.f32 %v282, %v400
      %402 = vmatmul.bf16.gmra.mxu0 %v377
      %v403 = vpop.f32.mrf.mxu0
      %v404 = vadd.f32 %v287, %v403
      %v405 = vpop.f32.mrf.mxu0
      %v406 = vadd.f32 %v292, %v405
      %407 = vdwg.mxu0
      %408 = vmatpush.bf16.msra.mxu0 0
      %409 = vmatpush.bf16.msra.mxu0 0
      %410 = vmatpush.bf16.msra.mxu0 0
      %411 = vmatpush.bf16.msra.mxu0 0
      %412 = vmatpush.bf16.msra.mxu0 0
      %413 = vmatpush.bf16.msra.mxu0 0
      %414 = vmatpush.bf16.msra.mxu0 %v352
      %415 = vmatpush.bf16.msra.mxu0 %v347
      %416 = vmatmul.bf16.gmra.mxu0 %v368
      %v417 = vpop.f32.mrf.mxu0
      %v418 = vadd.f32 %v257, %v417
      %v419 = vpop.f32.mrf.mxu0
      %v420 = vadd.f32 %v262, %v419
      %421 = vmatmul.bf16.gmra.mxu0 %v371
      %v422 = vpop.f32.mrf.mxu0
      %v423 = vadd.f32 %v267, %v422
      %v424 = vpop.f32.mrf.mxu0
      %v425 = vadd.f32 %v272, %v424
      %426 = vmatmul.bf16.gmra.mxu0 %v374
      %v427 = vpop.f32.mrf.mxu0
      %v428 = vadd.f32 %v277, %v427
      %v429 = vpop.f32.mrf.mxu0
      %v430 = vadd.f32 %v282, %v429
      %431 = vmatmul.bf16.gmra.mxu0 %v377
      %v432 = vpop.f32.mrf.mxu0
      %v433 = vadd.f32 %v287, %v432
      %v434 = vpop.f32.mrf.mxu0
      %v435 = vadd.f32 %v292, %v434
      %436 = vdwg.mxu0
      %437 = vmatpush.bf16.msra.mxu0 0
      %438 = vmatpush.bf16.msra.mxu0 0
      %439 = vmatpush.bf16.msra.mxu0 0
      %440 = vmatpush.bf16.msra.mxu0 0
      %441 = vmatpush.bf16.msra.mxu0 0
      %442 = vmatpush.bf16.msra.mxu0 0
      %443 = vmatpush.bf16.msra.mxu0 %v353
      %444 = vmatpush.bf16.msra.mxu0 %v348
      %445 = vmatmul.bf16.gmra.mxu0 %v368
      %v446 = vpop.f32.mrf.mxu0
      %v447 = vadd.f32 %v257, %v446
      %v448 = vpop.f32.mrf.mxu0
      %v449 = vadd.f32 %v262, %v448
      %450 = vmatmul.bf16.gmra.mxu0 %v371
      %v451 = vpop.f32.mrf.mxu0
      %v452 = vadd.f32 %v267, %v451
      %v453 = vpop.f32.mrf.mxu0
      %v454 = vadd.f32 %v272, %v453
      %455 = vmatmul.bf16.gmra.mxu0 %v374
      %v456 = vpop.f32.mrf.mxu0
      %v457 = vadd.f32 %v277, %v456
      %v458 = vpop.f32.mrf.mxu0
      %v459 = vadd.f32 %v282, %v458
      %460 = vmatmul.bf16.gmra.mxu0 %v377
      %v461 = vpop.f32.mrf.mxu0
      %v462 = vadd.f32 %v287, %v461
      %v463 = vpop.f32.mrf.mxu0
      %v464 = vadd.f32 %v292, %v463
      %465 = vdwg.mxu0
      %466 = vmatpush.bf16.msra.mxu0 0
      %467 = vmatpush.bf16.msra.mxu0 0
      %468 = vmatpush.bf16.msra.mxu0 0
      %469 = vmatpush.bf16.msra.mxu0 0
      %470 = vmatpush.bf16.msra.mxu0 0
      %471 = vmatpush.bf16.msra.mxu0 0
      %472 = vmatpush.bf16.msra.mxu0 %v354
      %473 = vmatpush.bf16.msra.mxu0 %v349
      %474 = vmatmul.bf16.gmra.mxu0 %v368
      %v475 = vpop.f32.mrf.mxu0
      %v476 = vadd.f32 %v257, %v475
      %v477 = vpop.f32.mrf.mxu0
      %v478 = vadd.f32 %v262, %v477
      %479 = vmatmul.bf16.gmra.mxu0 %v371
      %v480 = vpop.f32.mrf.mxu0
      %v481 = vadd.f32 %v267, %v480
      %v482 = vpop.f32.mrf.mxu0
      %v483 = vadd.f32 %v272, %v482
      %484 = vmatmul.bf16.gmra.mxu0 %v374
      %v485 = vpop.f32.mrf.mxu0
      %v486 = vadd.f32 %v277, %v485
      %v487 = vpop.f32.mrf.mxu0
      %v488 = vadd.f32 %v282, %v487
      %489 = vmatmul.bf16.gmra.mxu0 %v377
      %v490 = vpop.f32.mrf.mxu0
      %v491 = vadd.f32 %v287, %v490
      %v492 = vpop.f32.mrf.mxu0
      %v493 = vadd.f32 %v292, %v492
      %494 = vdwg.mxu0
      %495 = vmatpush.bf16.msra.mxu0 0
      %496 = vmatpush.bf16.msra.mxu0 0
      %497 = vmatpush.bf16.msra.mxu0 0
      %498 = vmatpush.bf16.msra.mxu0 0
      %499 = vmatpush.bf16.msra.mxu0 0
      %500 = vmatpush.bf16.msra.mxu0 0
      %501 = vmatpush.bf16.msra.mxu0 %v355
      %502 = vmatpush.bf16.msra.mxu0 %v350
      %503 = vmatmul.bf16.gmra.mxu0 %v368
      %v504 = vpop.f32.mrf.mxu0
      %v505 = vadd.f32 %v257, %v504
      %v506 = vpop.f32.mrf.mxu0
      %v507 = vadd.f32 %v262, %v506
      %508 = vmatmul.bf16.gmra.mxu0 %v371
      %v509 = vpop.f32.mrf.mxu0
      %v510 = vadd.f32 %v267, %v509
      %v511 = vpop.f32.mrf.mxu0
      %v512 = vadd.f32 %v272, %v511
      %513 = vmatmul.bf16.gmra.mxu0 %v374
      %v514 = vpop.f32.mrf.mxu0
      %v515 = vadd.f32 %v277, %v514
      %v516 = vpop.f32.mrf.mxu0
      %v517 = vadd.f32 %v282, %v516
      %518 = vmatmul.bf16.gmra.mxu0 %v377
      %v519 = vpop.f32.mrf.mxu0
      %v520 = vadd.f32 %v287, %v519
      %v521 = vpop.f32.mrf.mxu0
      %v522 = vadd.f32 %v292, %v521
      %523 = vdwg.mxu0
      %v524 = vmax.f32 %v389, 0.0
      %v525 = vmax.f32 %v418, 0.0
      %v526 = vmax.f32 %v447, 0.0
      %v527 = vmax.f32 %v476, 0.0
      %v528 = vmax.f32 %v505, 0.0
      %v529 = vmax.f32 %v391, 0.0
      %v530 = vmax.f32 %v420, 0.0
      %v531 = vmax.f32 %v449, 0.0
      %v532 = vmax.f32 %v478, 0.0
      %v533 = vmax.f32 %v507, 0.0
      %v534 = vmax.f32 %v394, 0.0
      %v535 = vmax.f32 %v423, 0.0
      %v536 = vmax.f32 %v452, 0.0
      %v537 = vmax.f32 %v481, 0.0
      %v538 = vmax.f32 %v510, 0.0
      %v539 = vmax.f32 %v396, 0.0
      %v540 = vmax.f32 %v425, 0.0
      %v541 = vmax.f32 %v454, 0.0
      %v542 = vmax.f32 %v483, 0.0
      %v543 = vmax.f32 %v512, 0.0
      %v544 = vmax.f32 %v399, 0.0
      %v545 = vmax.f32 %v428, 0.0
      %v546 = vmax.f32 %v457, 0.0
      %v547 = vmax.f32 %v486, 0.0
      %v548 = vmax.f32 %v515, 0.0
      %v549 = vmax.f32 %v401, 0.0
      %v550 = vmax.f32 %v430, 0.0
      %v551 = vmax.f32 %v459, 0.0
      %v552 = vmax.f32 %v488, 0.0
      %v553 = vmax.f32 %v517, 0.0
      %v554 = vmax.f32 %v404, 0.0
      %v555 = vmax.f32 %v433, 0.0
      %v556 = vmax.f32 %v462, 0.0
      %v557 = vmax.f32 %v491, 0.0
      %v558 = vmax.f32 %v520, 0.0
      %v559 = vmax.f32 %v406, 0.0
      %v560 = vmax.f32 %v435, 0.0
      %v561 = vmax.f32 %v464, 0.0
      %v562 = vmax.f32 %v493, 0.0
      %v563 = vmax.f32 %v522, 0.0
      %v564 = vpack.c.bf16 %v525, %v524
      %v565 = vpack.c.bf16 %v527, %v526
      %v566 = vpack.c.bf16 %v528, %v528
      %v567 = vpack.c.bf16 %v530, %v529
      %v568 = vpack.c.bf16 %v532, %v531
      %v569 = vpack.c.bf16 %v533, %v533
      %v570 = vpack.c.bf16 %v535, %v534
      %v571 = vpack.c.bf16 %v537, %v536
      %v572 = vpack.c.bf16 %v538, %v538
      %v573 = vpack.c.bf16 %v540, %v539
      %v574 = vpack.c.bf16 %v542, %v541
      %v575 = vpack.c.bf16 %v543, %v543
      %v576 = vpack.c.bf16 %v545, %v544
      %v577 = vpack.c.bf16 %v547, %v546
      %v578 = vpack.c.bf16 %v548, %v548
      %v579 = vpack.c.bf16 %v550, %v549
      %v580 = vpack.c.bf16 %v552, %v551
      %v581 = vpack.c.bf16 %v553, %v553
      %v582 = vpack.c.bf16 %v555, %v554
      %v583 = vpack.c.bf16 %v557, %v556
      %v584 = vpack.c.bf16 %v558, %v558
      %v585 = vpack.c.bf16 %v560, %v559
      %v586 = vpack.c.bf16 %v562, %v561
      %v587 = vpack.c.bf16 %v563, %v563
      %588 = vst [vmem:[#allocation2] sm:$0xff] %v564
      %589 = vst [vmem:[#allocation2 + $0x8] sm:$0xff] %v565
      %590 = vst [vmem:[#allocation2 + $0x10] sm:$0xf] %v566
      %591 = vst [vmem:[#allocation2 + $0x14] sm:$0xff] %v567
      %592 = vst [vmem:[#allocation2 + $0x1c] sm:$0xff] %v568
      %593 = vst [vmem:[#allocation2 + $0x24] sm:$0xf] %v569
      %594 = vst [vmem:[#allocation2 + $0x28] sm:$0xff] %v570
      %595 = vst [vmem:[#allocation2 + $0x30] sm:$0xff] %v571
      %596 = vst [vmem:[#allocation2 + $0x38] sm:$0xf] %v572
      %597 = vst [vmem:[#allocation2 + $0x3c] sm:$0xff] %v573
      %598 = vst [vmem:[#allocation2 + $0x44] sm:$0xff] %v574
      %599 = vst [vmem:[#allocation2 + $0x4c] sm:$0xf] %v575
      %600 = vst [vmem:[#allocation2 + $0x50] sm:$0xff] %v576
      %601 = vst [vmem:[#allocation2 + $0x58] sm:$0xff] %v577
      %602 = vst [vmem:[#allocation2 + $0x60] sm:$0xf] %v578
      %603 = vst [vmem:[#allocation2 + $0x64] sm:$0xff] %v579
      %604 = vst [vmem:[#allocation2 + $0x6c] sm:$0xff] %v580
      %605 = vst [vmem:[#allocation2 + $0x74] sm:$0xf] %v581
      %606 = vst [vmem:[#allocation2 + $0x78] sm:$0xff] %v582
      %607 = vst [vmem:[#allocation2 + $0x80] sm:$0xff] %v583
      %608 = vst [vmem:[#allocation2 + $0x88] sm:$0xf] %v584
      %609 = vst [vmem:[#allocation2 + $0x8c] sm:$0xff] %v585
      %610 = vst [vmem:[#allocation2 + $0x94] sm:$0xff] %v586
      %611 = vst [vmem:[#allocation2 + $0x9c] sm:$0xf] %v587
      %v612 = vld [vmem:[#allocation2] sm:$0xf]
      %v613 = vld [vmem:[#allocation2 + $0x14] sm:$0xf]
      %v614 = vld [vmem:[#allocation2 + $0x28] sm:$0xf]
      %v615 = vld [vmem:[#allocation2 + $0x3c] sm:$0xf]
      %v616 = vld [vmem:[#allocation2 + $0x50] sm:$0xf]
      %v617 = vld [vmem:[#allocation2 + $0x64] sm:$0xf]
      %v618 = vld [vmem:[#allocation2 + $0x78] sm:$0xf]
      %v619 = vld [vmem:[#allocation2 + $0x8c] sm:$0xf]
      %620 = vst [vmem:[#allocation3] sm:$0xf] %v612
      %621 = vst [vmem:[#allocation3 + $0x4] sm:$0xf] %v613
      %622 = vst [vmem:[#allocation3 + $0x8] sm:$0xf] %v614
      %623 = vst [vmem:[#allocation3 + $0xc] sm:$0xf] %v615
      %624 = vst [vmem:[#allocation3 + $0x10] sm:$0xf] %v616
      %625 = vst [vmem:[#allocation3 + $0x14] sm:$0xf] %v617
      %626 = vst [vmem:[#allocation3 + $0x18] sm:$0xf] %v618
      %627 = vst [vmem:[#allocation3 + $0x1c] sm:$0xf] %v619
      %v628 = vld [vmem:[#allocation2 + $0x4] sm:$0xff]
      %v629 = vld [vmem:[#allocation2 + $0x18] sm:$0xff]
      %v630 = vld [vmem:[#allocation2 + $0x2c] sm:$0xff]
      %v631 = vld [vmem:[#allocation2 + $0x40] sm:$0xff]
      %v632 = vld [vmem:[#allocation2 + $0x54] sm:$0xff]
      %v633 = vld [vmem:[#allocation2 + $0x68] sm:$0xff]
      %v634 = vld [vmem:[#allocation2 + $0x7c] sm:$0xff]
      %v635 = vld [vmem:[#allocation2 + $0x90] sm:$0xff]
      %644 = vrot.lane.b32.xlu0 %v628, 112
      %v645 = vpop.permute.xlu0 %644
      %646 = vrot.lane.b32.xlu0 %v629, 112
      %v647 = vpop.permute.xlu0 %646
      %648 = vrot.lane.b32.xlu0 %v630, 112
      %v649 = vpop.permute.xlu0 %648
      %650 = vrot.lane.b32.xlu0 %v631, 112
      %v651 = vpop.permute.xlu0 %650
      %652 = vrot.lane.b32.xlu0 %v632, 112
      %v653 = vpop.permute.xlu0 %652
      %654 = vrot.lane.b32.xlu0 %v633, 112
      %v655 = vpop.permute.xlu0 %654
      %656 = vrot.lane.b32.xlu0 %v634, 112
      %v657 = vpop.permute.xlu0 %656
      %658 = vrot.lane.b32.xlu0 %v635, 112
      %v659 = vpop.permute.xlu0 %658
      %v660 = vrot.slane %v645, 4
      %v661 = vrot.slane %v647, 4
      %v662 = vrot.slane %v649, 4
      %v663 = vrot.slane %v651, 4
      %v664 = vrot.slane %v653, 4
      %v665 = vrot.slane %v655, 4
      %v666 = vrot.slane %v657, 4
      %v667 = vrot.slane %v659, 4
      %vm668 = vcmask 916480
      %v669 = vsel %vm668, %v645, %v660
      %v670 = vsel %vm668, %v647, %v661
      %v671 = vsel %vm668, %v649, %v662
      %v672 = vsel %vm668, %v651, %v663
      %v673 = vsel %vm668, %v653, %v664
      %v674 = vsel %vm668, %v655, %v665
      %v675 = vsel %vm668, %v657, %v666
      %v676 = vsel %vm668, %v659, %v667
      %685 = vst [vmem:[#allocation3 + $0x20] sm:$0xf] %v669
      %686 = vst [vmem:[#allocation3 + $0x24] sm:$0xf] %v670
      %687 = vst [vmem:[#allocation3 + $0x28] sm:$0xf] %v671
      %688 = vst [vmem:[#allocation3 + $0x2c] sm:$0xf] %v672
      %689 = vst [vmem:[#allocation3 + $0x30] sm:$0xf] %v673
      %690 = vst [vmem:[#allocation3 + $0x34] sm:$0xf] %v674
      %691 = vst [vmem:[#allocation3 + $0x38] sm:$0xf] %v675
      %692 = vst [vmem:[#allocation3 + $0x3c] sm:$0xf] %v676
      %v693 = vld [vmem:[#allocation2] sm:$0xff]
      %v694 = vld [vmem:[#allocation2 + $0x14] sm:$0xff]
      %v695 = vld [vmem:[#allocation2 + $0x28] sm:$0xff]
      %v696 = vld [vmem:[#allocation2 + $0x3c] sm:$0xff]
      %v697 = vld [vmem:[#allocation2 + $0x50] sm:$0xff]
      %v698 = vld [vmem:[#allocation2 + $0x64] sm:$0xff]
      %v699 = vld [vmem:[#allocation2 + $0x78] sm:$0xff]
      %v700 = vld [vmem:[#allocation2 + $0x8c] sm:$0xff]
      %709 = vrot.lane.b32.xlu0 %v693, 127
      %v710 = vpop.permute.xlu0 %709
      %711 = vrot.lane.b32.xlu0 %v694, 127
      %v712 = vpop.permute.xlu0 %711
      %713 = vrot.lane.b32.xlu0 %v695, 127
      %v714 = vpop.permute.xlu0 %713
      %715 = vrot.lane.b32.xlu0 %v696, 127
      %v716 = vpop.permute.xlu0 %715
      %717 = vrot.lane.b32.xlu0 %v697, 127
      %v718 = vpop.permute.xlu0 %717
      %719 = vrot.lane.b32.xlu0 %v698, 127
      %v720 = vpop.permute.xlu0 %719
      %721 = vrot.lane.b32.xlu0 %v699, 127
      %v722 = vpop.permute.xlu0 %721
      %723 = vrot.lane.b32.xlu0 %v700, 127
      %v724 = vpop.permute.xlu0 %723
      %v725 = vrot.slane %v710, 4
      %v726 = vrot.slane %v712, 4
      %v727 = vrot.slane %v714, 4
      %v728 = vrot.slane %v716, 4
      %v729 = vrot.slane %v718, 4
      %v730 = vrot.slane %v720, 4
      %v731 = vrot.slane %v722, 4
      %v732 = vrot.slane %v724, 4
      %vm733 = vcmask 1039360
      %v734 = vsel %vm733, %v710, %v725
      %v735 = vsel %vm733, %v712, %v726
      %v736 = vsel %vm733, %v714, %v727
      %v737 = vsel %vm733, %v716, %v728
      %v738 = vsel %vm733, %v718, %v729
      %v739 = vsel %vm733, %v720, %v730
      %v740 = vsel %vm733, %v722, %v731
      %v741 = vsel %vm733, %v724, %v732
      %750 = vst [vmem:[#allocation3 + $0x40] sm:$0xf] %v734
      %751 = vst [vmem:[#allocation3 + $0x44] sm:$0xf] %v735
      %752 = vst [vmem:[#allocation3 + $0x48] sm:$0xf] %v736
      %753 = vst [vmem:[#allocation3 + $0x4c] sm:$0xf] %v737
      %754 = vst [vmem:[#allocation3 + $0x50] sm:$0xf] %v738
      %755 = vst [vmem:[#allocation3 + $0x54] sm:$0xf] %v739
      %756 = vst [vmem:[#allocation3 + $0x58] sm:$0xf] %v740
      %757 = vst [vmem:[#allocation3 + $0x5c] sm:$0xf] %v741
      %v758 = vld [vmem:[#allocation2 + $0x4] sm:$0xff]
      %v759 = vld [vmem:[#allocation2 + $0x18] sm:$0xff]
      %v760 = vld [vmem:[#allocation2 + $0x2c] sm:$0xff]
      %v761 = vld [vmem:[#allocation2 + $0x40] sm:$0xff]
      %v762 = vld [vmem:[#allocation2 + $0x54] sm:$0xff]
      %v763 = vld [vmem:[#allocation2 + $0x68] sm:$0xff]
      %v764 = vld [vmem:[#allocation2 + $0x7c] sm:$0xff]
      %v765 = vld [vmem:[#allocation2 + $0x90] sm:$0xff]
      %774 = vrot.lane.b32.xlu0 %v758, 111
      %v775 = vpop.permute.xlu0 %774
      %776 = vrot.lane.b32.xlu0 %v759, 111
      %v777 = vpop.permute.xlu0 %776
      %778 = vrot.lane.b32.xlu0 %v760, 111
      %v779 = vpop.permute.xlu0 %778
      %780 = vrot.lane.b32.xlu0 %v761, 111
      %v781 = vpop.permute.xlu0 %780
      %782 = vrot.lane.b32.xlu0 %v762, 111
      %v783 = vpop.permute.xlu0 %782
      %784 = vrot.lane.b32.xlu0 %v763, 111
      %v785 = vpop.permute.xlu0 %784
      %786 = vrot.lane.b32.xlu0 %v764, 111
      %v787 = vpop.permute.xlu0 %786
      %788 = vrot.lane.b32.xlu0 %v765, 111
      %v789 = vpop.permute.xlu0 %788
      %v790 = vrot.slane %v775, 4
      %v791 = vrot.slane %v777, 4
      %v792 = vrot.slane %v779, 4
      %v793 = vrot.slane %v781, 4
      %v794 = vrot.slane %v783, 4
      %v795 = vrot.slane %v785, 4
      %v796 = vrot.slane %v787, 4
      %v797 = vrot.slane %v789, 4
      %vm798 = vcmask 908288
      %v799 = vsel %vm798, %v775, %v790
      %v800 = vsel %vm798, %v777, %v791
      %v801 = vsel %vm798, %v779, %v792
      %v802 = vsel %vm798, %v781, %v793
      %v803 = vsel %vm798, %v783, %v794
      %v804 = vsel %vm798, %v785, %v795
      %v805 = vsel %vm798, %v787, %v796
      %v806 = vsel %vm798, %v789, %v797
      %815 = vst [vmem:[#allocation3 + $0x60] sm:$0xf] %v799
      %816 = vst [vmem:[#allocation3 + $0x64] sm:$0xf] %v800
      %817 = vst [vmem:[#allocation3 + $0x68] sm:$0xf] %v801
      %818 = vst [vmem:[#allocation3 + $0x6c] sm:$0xf] %v802
      %819 = vst [vmem:[#allocation3 + $0x70] sm:$0xf] %v803
      %820 = vst [vmem:[#allocation3 + $0x74] sm:$0xf] %v804
      %821 = vst [vmem:[#allocation3 + $0x78] sm:$0xf] %v805
      %822 = vst [vmem:[#allocation3 + $0x7c] sm:$0xf] %v806
      %v823 = vld [vmem:[#allocation2] sm:$0xff]
      %v824 = vld [vmem:[#allocation2 + $0x14] sm:$0xff]
      %v825 = vld [vmem:[#allocation2 + $0x28] sm:$0xff]
      %v826 = vld [vmem:[#allocation2 + $0x3c] sm:$0xff]
      %v827 = vld [vmem:[#allocation2 + $0x50] sm:$0xff]
      %v828 = vld [vmem:[#allocation2 + $0x64] sm:$0xff]
      %v829 = vld [vmem:[#allocation2 + $0x78] sm:$0xff]
      %v830 = vld [vmem:[#allocation2 + $0x8c] sm:$0xff]
      %839 = vrot.lane.b32.xlu0 %v823, 126
      %v840 = vpop.permute.xlu0 %839
      %841 = vrot.lane.b32.xlu0 %v824, 126
      %v842 = vpop.permute.xlu0 %841
      %843 = vrot.lane.b32.xlu0 %v825, 126
      %v844 = vpop.permute.xlu0 %843
      %845 = vrot.lane.b32.xlu0 %v826, 126
      %v846 = vpop.permute.xlu0 %845
      %847 = vrot.lane.b32.xlu0 %v827, 126
      %v848 = vpop.permute.xlu0 %847
      %849 = vrot.lane.b32.xlu0 %v828, 126
      %v850 = vpop.permute.xlu0 %849
      %851 = vrot.lane.b32.xlu0 %v829, 126
      %v852 = vpop.permute.xlu0 %851
      %853 = vrot.lane.b32.xlu0 %v830, 126
      %v854 = vpop.permute.xlu0 %853
      %v855 = vrot.slane %v840, 4
      %v856 = vrot.slane %v842, 4
      %v857 = vrot.slane %v844, 4
      %v858 = vrot.slane %v846, 4
      %v859 = vrot.slane %v848, 4
      %v860 = vrot.slane %v850, 4
      %v861 = vrot.slane %v852, 4
      %v862 = vrot.slane %v854, 4
      %vm863 = vcmask 1031168
      %v864 = vsel %vm863, %v840, %v855
      %v865 = vsel %vm863, %v842, %v856
      %v866 = vsel %vm863, %v844, %v857
      %v867 = vsel %vm863, %v846, %v858
      %v868 = vsel %vm863, %v848, %v859
      %v869 = vsel %vm863, %v850, %v860
      %v870 = vsel %vm863, %v852, %v861
      %v871 = vsel %vm863, %v854, %v862
      %880 = vst [vmem:[#allocation3 + $0x80] sm:$0xf] %v864
      %881 = vst [vmem:[#allocation3 + $0x84] sm:$0xf] %v865
      %882 = vst [vmem:[#allocation3 + $0x88] sm:$0xf] %v866
      %883 = vst [vmem:[#allocation3 + $0x8c] sm:$0xf] %v867
      %884 = vst [vmem:[#allocation3 + $0x90] sm:$0xf] %v868
      %885 = vst [vmem:[#allocation3 + $0x94] sm:$0xf] %v869
      %886 = vst [vmem:[#allocation3 + $0x98] sm:$0xf] %v870
      %887 = vst [vmem:[#allocation3 + $0x9c] sm:$0xf] %v871
      %v888 = vld [vmem:[#allocation2 + $0x8] sm:$0xff]
      %v889 = vld [vmem:[#allocation2 + $0x1c] sm:$0xff]
      %v890 = vld [vmem:[#allocation2 + $0x30] sm:$0xff]
      %v891 = vld [vmem:[#allocation2 + $0x44] sm:$0xff]
      %v892 = vld [vmem:[#allocation2 + $0x58] sm:$0xff]
      %v893 = vld [vmem:[#allocation2 + $0x6c] sm:$0xff]
      %v894 = vld [vmem:[#allocation2 + $0x80] sm:$0xff]
      %v895 = vld [vmem:[#allocation2 + $0x94] sm:$0xff]
      %904 = vrot.lane.b32.xlu0 %v888, 96
      %v905 = vpop.permute.xlu0 %904
      %906 = vrot.lane.b32.xlu0 %v889, 96
      %v907 = vpop.permute.xlu0 %906
      %908 = vrot.lane.b32.xlu0 %v890, 96
      %v909 = vpop.permute.xlu0 %908
      %910 = vrot.lane.b32.xlu0 %v891, 96
      %v911 = vpop.permute.xlu0 %910
      %912 = vrot.lane.b32.xlu0 %v892, 96
      %v913 = vpop.permute.xlu0 %912
      %914 = vrot.lane.b32.xlu0 %v893, 96
      %v915 = vpop.permute.xlu0 %914
      %916 = vrot.lane.b32.xlu0 %v894, 96
      %v917 = vpop.permute.xlu0 %916
      %918 = vrot.lane.b32.xlu0 %v895, 96
      %v919 = vpop.permute.xlu0 %918
      %v920 = vrot.slane %v905, 4
      %v921 = vrot.slane %v907, 4
      %v922 = vrot.slane %v909, 4
      %v923 = vrot.slane %v911, 4
      %v924 = vrot.slane %v913, 4
      %v925 = vrot.slane %v915, 4
      %v926 = vrot.slane %v917, 4
      %v927 = vrot.slane %v919, 4
      %vm928 = vcmask 785408
      %v929 = vsel %vm928, %v905, %v920
      %v930 = vsel %vm928, %v907, %v921
      %v931 = vsel %vm928, %v909, %v922
      %v932 = vsel %vm928, %v911, %v923
      %v933 = vsel %vm928, %v913, %v924
      %v934 = vsel %vm928, %v915, %v925
      %v935 = vsel %vm928, %v917, %v926
      %v936 = vsel %vm928, %v919, %v927
      %945 = vst [vmem:[#allocation3 + $0xa0] sm:$0xf] %v929
      %946 = vst [vmem:[#allocation3 + $0xa4] sm:$0xf] %v930
      %947 = vst [vmem:[#allocation3 + $0xa8] sm:$0xf] %v931
      %948 = vst [vmem:[#allocation3 + $0xac] sm:$0xf] %v932
      %949 = vst [vmem:[#allocation3 + $0xb0] sm:$0xf] %v933
      %950 = vst [vmem:[#allocation3 + $0xb4] sm:$0xf] %v934
      %951 = vst [vmem:[#allocation3 + $0xb8] sm:$0xf] %v935
      %952 = vst [vmem:[#allocation3 + $0xbc] sm:$0xf] %v936
      %v953 = vld [vmem:[#allocation2 + $0xc] sm:$0xff]
      %v954 = vld [vmem:[#allocation2 + $0x20] sm:$0xff]
      %v955 = vld [vmem:[#allocation2 + $0x34] sm:$0xff]
      %v956 = vld [vmem:[#allocation2 + $0x48] sm:$0xff]
      %v957 = vld [vmem:[#allocation2 + $0x5c] sm:$0xff]
      %v958 = vld [vmem:[#allocation2 + $0x70] sm:$0xff]
      %v959 = vld [vmem:[#allocation2 + $0x84] sm:$0xff]
      %v960 = vld [vmem:[#allocation2 + $0x98] sm:$0xff]
      %969 = vrot.lane.b32.xlu0 %v953, 80
      %v970 = vpop.permute.xlu0 %969
      %971 = vrot.lane.b32.xlu0 %v954, 80
      %v972 = vpop.permute.xlu0 %971
      %973 = vrot.lane.b32.xlu0 %v955, 80
      %v974 = vpop.permute.xlu0 %973
      %975 = vrot.lane.b32.xlu0 %v956, 80
      %v976 = vpop.permute.xlu0 %975
      %977 = vrot.lane.b32.xlu0 %v957, 80
      %v978 = vpop.permute.xlu0 %977
      %979 = vrot.lane.b32.xlu0 %v958, 80
      %v980 = vpop.permute.xlu0 %979
      %981 = vrot.lane.b32.xlu0 %v959, 80
      %v982 = vpop.permute.xlu0 %981
      %983 = vrot.lane.b32.xlu0 %v960, 80
      %v984 = vpop.permute.xlu0 %983
      %v985 = vrot.slane %v970, 4
      %v986 = vrot.slane %v972, 4
      %v987 = vrot.slane %v974, 4
      %v988 = vrot.slane %v976, 4
      %v989 = vrot.slane %v978, 4
      %v990 = vrot.slane %v980, 4
      %v991 = vrot.slane %v982, 4
      %v992 = vrot.slane %v984, 4
      %vm993 = vcmask 654336
      %v994 = vsel %vm993, %v970, %v985
      %v995 = vsel %vm993, %v972, %v986
      %v996 = vsel %vm993, %v974, %v987
      %v997 = vsel %vm993, %v976, %v988
      %v998 = vsel %vm993, %v978, %v989
      %v999 = vsel %vm993, %v980, %v990
      %v1000 = vsel %vm993, %v982, %v991
      %v1001 = vsel %vm993, %v984, %v992
      %1010 = vst [vmem:[#allocation3 + $0xc0] sm:$0xf] %v994
      %1011 = vst [vmem:[#allocation3 + $0xc4] sm:$0xf] %v995
      %1012 = vst [vmem:[#allocation3 + $0xc8] sm:$0xf] %v996
      %1013 = vst [vmem:[#allocation3 + $0xcc] sm:$0xf] %v997
      %1014 = vst [vmem:[#allocation3 + $0xd0] sm:$0xf] %v998
      %1015 = vst [vmem:[#allocation3 + $0xd4] sm:$0xf] %v999
      %1016 = vst [vmem:[#allocation3 + $0xd8] sm:$0xf] %v1000
      %1017 = vst [vmem:[#allocation3 + $0xdc] sm:$0xf] %v1001
      %v1018 = vld [vmem:[#allocation2 + $0x8] sm:$0xff]
      %v1019 = vld [vmem:[#allocation2 + $0x1c] sm:$0xff]
      %v1020 = vld [vmem:[#allocation2 + $0x30] sm:$0xff]
      %v1021 = vld [vmem:[#allocation2 + $0x44] sm:$0xff]
      %v1022 = vld [vmem:[#allocation2 + $0x58] sm:$0xff]
      %v1023 = vld [vmem:[#allocation2 + $0x6c] sm:$0xff]
      %v1024 = vld [vmem:[#allocation2 + $0x80] sm:$0xff]
      %v1025 = vld [vmem:[#allocation2 + $0x94] sm:$0xff]
      %1034 = vrot.lane.b32.xlu0 %v1018, 95
      %v1035 = vpop.permute.xlu0 %1034
      %1036 = vrot.lane.b32.xlu0 %v1019, 95
      %v1037 = vpop.permute.xlu0 %1036
      %1038 = vrot.lane.b32.xlu0 %v1020, 95
      %v1039 = vpop.permute.xlu0 %1038
      %1040 = vrot.lane.b32.xlu0 %v1021, 95
      %v1041 = vpop.permute.xlu0 %1040
      %1042 = vrot.lane.b32.xlu0 %v1022, 95
      %v1043 = vpop.permute.xlu0 %1042
      %1044 = vrot.lane.b32.xlu0 %v1023, 95
      %v1045 = vpop.permute.xlu0 %1044
      %1046 = vrot.lane.b32.xlu0 %v1024, 95
      %v1047 = vpop.permute.xlu0 %1046
      %1048 = vrot.lane.b32.xlu0 %v1025, 95
      %v1049 = vpop.permute.xlu0 %1048
      %v1050 = vrot.slane %v1035, 4
      %v1051 = vrot.slane %v1037, 4
      %v1052 = vrot.slane %v1039, 4
      %v1053 = vrot.slane %v1041, 4
      %v1054 = vrot.slane %v1043, 4
      %v1055 = vrot.slane %v1045, 4
      %v1056 = vrot.slane %v1047, 4
      %v1057 = vrot.slane %v1049, 4
      %vm1058 = vcmask 777216
      %v1059 = vsel %vm1058, %v1035, %v1050
      %v1060 = vsel %vm1058, %v1037, %v1051
      %v1061 = vsel %vm1058, %v1039, %v1052
      %v1062 = vsel %vm1058, %v1041, %v1053
      %v1063 = vsel %vm1058, %v1043, %v1054
      %v1064 = vsel %vm1058, %v1045, %v1055
      %v1065 = vsel %vm1058, %v1047, %v1056
      %v1066 = vsel %vm1058, %v1049, %v1057
      %1075 = vst [vmem:[#allocation3 + $0xe0] sm:$0xf] %v1059
      %1076 = vst [vmem:[#allocation3 + $0xe4] sm:$0xf] %v1060
      %1077 = vst [vmem:[#allocation3 + $0xe8] sm:$0xf] %v1061
      %1078 = vst [vmem:[#allocation3 + $0xec] sm:$0xf] %v1062
      %1079 = vst [vmem:[#allocation3 + $0xf0] sm:$0xf] %v1063
      %1080 = vst [vmem:[#allocation3 + $0xf4] sm:$0xf] %v1064
      %1081 = vst [vmem:[#allocation3 + $0xf8] sm:$0xf] %v1065
      %1082 = vst [vmem:[#allocation3 + $0xfc] sm:$0xf] %v1066
      %v1083 = vld [vmem:[#allocation2 + $0xc] sm:$0xff]
      %v1084 = vld [vmem:[#allocation2 + $0x20] sm:$0xff]
      %v1085 = vld [vmem:[#allocation2 + $0x34] sm:$0xff]
      %v1086 = vld [vmem:[#allocation2 + $0x48] sm:$0xff]
      %v1087 = vld [vmem:[#allocation2 + $0x5c] sm:$0xff]
      %v1088 = vld [vmem:[#allocation2 + $0x70] sm:$0xff]
      %v1089 = vld [vmem:[#allocation2 + $0x84] sm:$0xff]
      %v1090 = vld [vmem:[#allocation2 + $0x98] sm:$0xff]
      %1099 = vrot.lane.b32.xlu0 %v1083, 79
      %v1100 = vpop.permute.xlu0 %1099
      %1101 = vrot.lane.b32.xlu0 %v1084, 79
      %v1102 = vpop.permute.xlu0 %1101
      %1103 = vrot.lane.b32.xlu0 %v1085, 79
      %v1104 = vpop.permute.xlu0 %1103
      %1105 = vrot.lane.b32.xlu0 %v1086, 79
      %v1106 = vpop.permute.xlu0 %1105
      %1107 = vrot.lane.b32.xlu0 %v1087, 79
      %v1108 = vpop.permute.xlu0 %1107
      %1109 = vrot.lane.b32.xlu0 %v1088, 79
      %v1110 = vpop.permute.xlu0 %1109
      %1111 = vrot.lane.b32.xlu0 %v1089, 79
      %v1112 = vpop.permute.xlu0 %1111
      %1113 = vrot.lane.b32.xlu0 %v1090, 79
      %v1114 = vpop.permute.xlu0 %1113
      %v1115 = vrot.slane %v1100, 4
      %v1116 = vrot.slane %v1102, 4
      %v1117 = vrot.slane %v1104, 4
      %v1118 = vrot.slane %v1106, 4
      %v1119 = vrot.slane %v1108, 4
      %v1120 = vrot.slane %v1110, 4
      %v1121 = vrot.slane %v1112, 4
      %v1122 = vrot.slane %v1114, 4
      %vm1123 = vcmask 646144
      %v1124 = vsel %vm1123, %v1100, %v1115
      %v1125 = vsel %vm1123, %v1102, %v1116
      %v1126 = vsel %vm1123, %v1104, %v1117
      %v1127 = vsel %vm1123, %v1106, %v1118
      %v1128 = vsel %vm1123, %v1108, %v1119
      %v1129 = vsel %vm1123, %v1110, %v1120
      %v1130 = vsel %vm1123, %v1112, %v1121
      %v1131 = vsel %vm1123, %v1114, %v1122
      %1140 = vst [vmem:[#allocation3 + $0x100] sm:$0xf] %v1124
      %1141 = vst [vmem:[#allocation3 + $0x104] sm:$0xf] %v1125
      %1142 = vst [vmem:[#allocation3 + $0x108] sm:$0xf] %v1126
      %1143 = vst [vmem:[#allocation3 + $0x10c] sm:$0xf] %v1127
      %1144 = vst [vmem:[#allocation3 + $0x110] sm:$0xf] %v1128
      %1145 = vst [vmem:[#allocation3 + $0x114] sm:$0xf] %v1129
      %1146 = vst [vmem:[#allocation3 + $0x118] sm:$0xf] %v1130
      %1147 = vst [vmem:[#allocation3 + $0x11c] sm:$0xf] %v1131
      %v1148 = vld [vmem:[#allocation2 + $0x8] sm:$0xff]
      %v1149 = vld [vmem:[#allocation2 + $0x1c] sm:$0xff]
      %v1150 = vld [vmem:[#allocation2 + $0x30] sm:$0xff]
      %v1151 = vld [vmem:[#allocation2 + $0x44] sm:$0xff]
      %v1152 = vld [vmem:[#allocation2 + $0x58] sm:$0xff]
      %v1153 = vld [vmem:[#allocation2 + $0x6c] sm:$0xff]
      %v1154 = vld [vmem:[#allocation2 + $0x80] sm:$0xff]
      %v1155 = vld [vmem:[#allocation2 + $0x94] sm:$0xff]
      %1164 = vrot.lane.b32.xlu0 %v1148, 94
      %v1165 = vpop.permute.xlu0 %1164
      %1166 = vrot.lane.b32.xlu0 %v1149, 94
      %v1167 = vpop.permute.xlu0 %1166
      %1168 = vrot.lane.b32.xlu0 %v1150, 94
      %v1169 = vpop.permute.xlu0 %1168
      %1170 = vrot.lane.b32.xlu0 %v1151, 94
      %v1171 = vpop.permute.xlu0 %1170
      %1172 = vrot.lane.b32.xlu0 %v1152, 94
      %v1173 = vpop.permute.xlu0 %1172
      %1174 = vrot.lane.b32.xlu0 %v1153, 94
      %v1175 = vpop.permute.xlu0 %1174
      %1176 = vrot.lane.b32.xlu0 %v1154, 94
      %v1177 = vpop.permute.xlu0 %1176
      %1178 = vrot.lane.b32.xlu0 %v1155, 94
      %v1179 = vpop.permute.xlu0 %1178
      %v1180 = vrot.slane %v1165, 4
      %v1181 = vrot.slane %v1167, 4
      %v1182 = vrot.slane %v1169, 4
      %v1183 = vrot.slane %v1171, 4
      %v1184 = vrot.slane %v1173, 4
      %v1185 = vrot.slane %v1175, 4
      %v1186 = vrot.slane %v1177, 4
      %v1187 = vrot.slane %v1179, 4
      %vm1188 = vcmask 769024
      %v1189 = vsel %vm1188, %v1165, %v1180
      %v1190 = vsel %vm1188, %v1167, %v1181
      %v1191 = vsel %vm1188, %v1169, %v1182
      %v1192 = vsel %vm1188, %v1171, %v1183
      %v1193 = vsel %vm1188, %v1173, %v1184
      %v1194 = vsel %vm1188, %v1175, %v1185
      %v1195 = vsel %vm1188, %v1177, %v1186
      %v1196 = vsel %vm1188, %v1179, %v1187
      %1205 = vst [vmem:[#allocation3 + $0x120] sm:$0xf] %v1189
      %1206 = vst [vmem:[#allocation3 + $0x124] sm:$0xf] %v1190
      %1207 = vst [vmem:[#allocation3 + $0x128] sm:$0xf] %v1191
      %1208 = vst [vmem:[#allocation3 + $0x12c] sm:$0xf] %v1192
      %1209 = vst [vmem:[#allocation3 + $0x130] sm:$0xf] %v1193
      %1210 = vst [vmem:[#allocation3 + $0x134] sm:$0xf] %v1194
      %1211 = vst [vmem:[#allocation3 + $0x138] sm:$0xf] %v1195
      %1212 = vst [vmem:[#allocation3 + $0x13c] sm:$0xf] %v1196
      %v1213 = vld [vmem:[#allocation2] sm:$0xff]
      %v1214 = vld [vmem:[#allocation2 + $0x14] sm:$0xff]
      %v1215 = vld [vmem:[#allocation2 + $0x28] sm:$0xff]
      %v1216 = vld [vmem:[#allocation2 + $0x3c] sm:$0xff]
      %v1217 = vld [vmem:[#allocation2 + $0x50] sm:$0xff]
      %v1218 = vld [vmem:[#allocation2 + $0x64] sm:$0xff]
      %v1219 = vld [vmem:[#allocation2 + $0x78] sm:$0xff]
      %v1220 = vld [vmem:[#allocation2 + $0x8c] sm:$0xff]
      %1229 = vrot.lane.b32.xlu0 %v1213, 116
      %v1230 = vpop.permute.xlu0 %1229
      %1231 = vrot.lane.b32.xlu0 %v1214, 116
      %v1232 = vpop.permute.xlu0 %1231
      %1233 = vrot.lane.b32.xlu0 %v1215, 116
      %v1234 = vpop.permute.xlu0 %1233
      %1235 = vrot.lane.b32.xlu0 %v1216, 116
      %v1236 = vpop.permute.xlu0 %1235
      %1237 = vrot.lane.b32.xlu0 %v1217, 116
      %v1238 = vpop.permute.xlu0 %1237
      %1239 = vrot.lane.b32.xlu0 %v1218, 116
      %v1240 = vpop.permute.xlu0 %1239
      %1241 = vrot.lane.b32.xlu0 %v1219, 116
      %v1242 = vpop.permute.xlu0 %1241
      %1243 = vrot.lane.b32.xlu0 %v1220, 116
      %v1244 = vpop.permute.xlu0 %1243
      %v1245 = vrot.slane %v1230, 4
      %v1246 = vrot.slane %v1232, 4
      %v1247 = vrot.slane %v1234, 4
      %v1248 = vrot.slane %v1236, 4
      %v1249 = vrot.slane %v1238, 4
      %v1250 = vrot.slane %v1240, 4
      %v1251 = vrot.slane %v1242, 4
      %v1252 = vrot.slane %v1244, 4
      %vm1253 = vcmask 949248
      %v1254 = vsel %vm1253, %v1230, %v1245
      %v1255 = vsel %vm1253, %v1232, %v1246
      %v1256 = vsel %vm1253, %v1234, %v1247
      %v1257 = vsel %vm1253, %v1236, %v1248
      %v1258 = vsel %vm1253, %v1238, %v1249
      %v1259 = vsel %vm1253, %v1240, %v1250
      %v1260 = vsel %vm1253, %v1242, %v1251
      %v1261 = vsel %vm1253, %v1244, %v1252
      %1270 = vst [vmem:[#allocation3 + $0x140] sm:$0xf] %v1254
      %1271 = vst [vmem:[#allocation3 + $0x144] sm:$0xf] %v1255
      %1272 = vst [vmem:[#allocation3 + $0x148] sm:$0xf] %v1256
      %1273 = vst [vmem:[#allocation3 + $0x14c] sm:$0xf] %v1257
      %1274 = vst [vmem:[#allocation3 + $0x150] sm:$0xf] %v1258
      %1275 = vst [vmem:[#allocation3 + $0x154] sm:$0xf] %v1259
      %1276 = vst [vmem:[#allocation3 + $0x158] sm:$0xf] %v1260
      %1277 = vst [vmem:[#allocation3 + $0x15c] sm:$0xf] %v1261
      %v1278 = vld [vmem:[#allocation2 + $0x4] sm:$0xff]
      %v1279 = vld [vmem:[#allocation2 + $0x18] sm:$0xff]
      %v1280 = vld [vmem:[#allocation2 + $0x2c] sm:$0xff]
      %v1281 = vld [vmem:[#allocation2 + $0x40] sm:$0xff]
      %v1282 = vld [vmem:[#allocation2 + $0x54] sm:$0xff]
      %v1283 = vld [vmem:[#allocation2 + $0x68] sm:$0xff]
      %v1284 = vld [vmem:[#allocation2 + $0x7c] sm:$0xff]
      %v1285 = vld [vmem:[#allocation2 + $0x90] sm:$0xff]
      %1294 = vrot.lane.b32.xlu0 %v1278, 100
      %v1295 = vpop.permute.xlu0 %1294
      %1296 = vrot.lane.b32.xlu0 %v1279, 100
      %v1297 = vpop.permute.xlu0 %1296
      %1298 = vrot.lane.b32.xlu0 %v1280, 100
      %v1299 = vpop.permute.xlu0 %1298
      %1300 = vrot.lane.b32.xlu0 %v1281, 100
      %v1301 = vpop.permute.xlu0 %1300
      %1302 = vrot.lane.b32.xlu0 %v1282, 100
      %v1303 = vpop.permute.xlu0 %1302
      %1304 = vrot.lane.b32.xlu0 %v1283, 100
      %v1305 = vpop.permute.xlu0 %1304
      %1306 = vrot.lane.b32.xlu0 %v1284, 100
      %v1307 = vpop.permute.xlu0 %1306
      %1308 = vrot.lane.b32.xlu0 %v1285, 100
      %v1309 = vpop.permute.xlu0 %1308
      %v1310 = vrot.slane %v1295, 4
      %v1311 = vrot.slane %v1297, 4
      %v1312 = vrot.slane %v1299, 4
      %v1313 = vrot.slane %v1301, 4
      %v1314 = vrot.slane %v1303, 4
      %v1315 = vrot.slane %v1305, 4
      %v1316 = vrot.slane %v1307, 4
      %v1317 = vrot.slane %v1309, 4
      %vm1318 = vcmask 818176
      %v1319 = vsel %vm1318, %v1295, %v1310
      %v1320 = vsel %vm1318, %v1297, %v1311
      %v1321 = vsel %vm1318, %v1299, %v1312
      %v1322 = vsel %vm1318, %v1301, %v1313
      %v1323 = vsel %vm1318, %v1303, %v1314
      %v1324 = vsel %vm1318, %v1305, %v1315
      %v1325 = vsel %vm1318, %v1307, %v1316
      %v1326 = vsel %vm1318, %v1309, %v1317
      %1335 = vst [vmem:[#allocation3 + $0x160] sm:$0xf] %v1319
      %1336 = vst [vmem:[#allocation3 + $0x164] sm:$0xf] %v1320
      %1337 = vst [vmem:[#allocation3 + $0x168] sm:$0xf] %v1321
      %1338 = vst [vmem:[#allocation3 + $0x16c] sm:$0xf] %v1322
      %1339 = vst [vmem:[#allocation3 + $0x170] sm:$0xf] %v1323
      %1340 = vst [vmem:[#allocation3 + $0x174] sm:$0xf] %v1324
      %1341 = vst [vmem:[#allocation3 + $0x178] sm:$0xf] %v1325
      %1342 = vst [vmem:[#allocation3 + $0x17c] sm:$0xf] %v1326
      %v1343 = vld [vmem:[#allocation2] sm:$0xff]
      %v1344 = vld [vmem:[#allocation2 + $0x14] sm:$0xff]
      %v1345 = vld [vmem:[#allocation2 + $0x28] sm:$0xff]
      %v1346 = vld [vmem:[#allocation2 + $0x3c] sm:$0xff]
      %v1347 = vld [vmem:[#allocation2 + $0x50] sm:$0xff]
      %v1348 = vld [vmem:[#allocation2 + $0x64] sm:$0xff]
      %v1349 = vld [vmem:[#allocation2 + $0x78] sm:$0xff]
      %v1350 = vld [vmem:[#allocation2 + $0x8c] sm:$0xff]
      %1359 = vrot.lane.b32.xlu0 %v1343, 115
      %v1360 = vpop.permute.xlu0 %1359
      %1361 = vrot.lane.b32.xlu0 %v1344, 115
      %v1362 = vpop.permute.xlu0 %1361
      %1363 = vrot.lane.b32.xlu0 %v1345, 115
      %v1364 = vpop.permute.xlu0 %1363
      %1365 = vrot.lane.b32.xlu0 %v1346, 115
      %v1366 = vpop.permute.xlu0 %1365
      %1367 = vrot.lane.b32.xlu0 %v1347, 115
      %v1368 = vpop.permute.xlu0 %1367
      %1369 = vrot.lane.b32.xlu0 %v1348, 115
      %v1370 = vpop.permute.xlu0 %1369
      %1371 = vrot.lane.b32.xlu0 %v1349, 115
      %v1372 = vpop.permute.xlu0 %1371
      %1373 = vrot.lane.b32.xlu0 %v1350, 115
      %v1374 = vpop.permute.xlu0 %1373
      %v1375 = vrot.slane %v1360, 4
      %v1376 = vrot.slane %v1362, 4
      %v1377 = vrot.slane %v1364, 4
      %v1378 = vrot.slane %v1366, 4
      %v1379 = vrot.slane %v1368, 4
      %v1380 = vrot.slane %v1370, 4
      %v1381 = vrot.slane %v1372, 4
      %v1382 = vrot.slane %v1374, 4
      %vm1383 = vcmask 941056
      %v1384 = vsel %vm1383, %v1360, %v1375
      %v1385 = vsel %vm1383, %v1362, %v1376
      %v1386 = vsel %vm1383, %v1364, %v1377
      %v1387 = vsel %vm1383, %v1366, %v1378
      %v1388 = vsel %vm1383, %v1368, %v1379
      %v1389 = vsel %vm1383, %v1370, %v1380
      %v1390 = vsel %vm1383, %v1372, %v1381
      %v1391 = vsel %vm1383, %v1374, %v1382
      %1400 = vst [vmem:[#allocation3 + $0x180] sm:$0xf] %v1384
      %1401 = vst [vmem:[#allocation3 + $0x184] sm:$0xf] %v1385
      %1402 = vst [vmem:[#allocation3 + $0x188] sm:$0xf] %v1386
      %1403 = vst [vmem:[#allocation3 + $0x18c] sm:$0xf] %v1387
      %1404 = vst [vmem:[#allocation3 + $0x190] sm:$0xf] %v1388
      %1405 = vst [vmem:[#allocation3 + $0x194] sm:$0xf] %v1389
      %1406 = vst [vmem:[#allocation3 + $0x198] sm:$0xf] %v1390
      %1407 = vst [vmem:[#allocation3 + $0x19c] sm:$0xf] %v1391
      %v1408 = vld [vmem:[#allocation2 + $0x4] sm:$0xff]
      %v1409 = vld [vmem:[#allocation2 + $0x18] sm:$0xff]
      %v1410 = vld [vmem:[#allocation2 + $0x2c] sm:$0xff]
      %v1411 = vld [vmem:[#allocation2 + $0x40] sm:$0xff]
      %v1412 = vld [vmem:[#allocation2 + $0x54] sm:$0xff]
      %v1413 = vld [vmem:[#allocation2 + $0x68] sm:$0xff]
      %v1414 = vld [vmem:[#allocation2 + $0x7c] sm:$0xff]
      %v1415 = vld [vmem:[#allocation2 + $0x90] sm:$0xff]
      %1424 = vrot.lane.b32.xlu0 %v1408, 99
      %v1425 = vpop.permute.xlu0 %1424
      %1426 = vrot.lane.b32.xlu0 %v1409, 99
      %v1427 = vpop.permute.xlu0 %1426
      %1428 = vrot.lane.b32.xlu0 %v1410, 99
      %v1429 = vpop.permute.xlu0 %1428
      %1430 = vrot.lane.b32.xlu0 %v1411, 99
      %v1431 = vpop.permute.xlu0 %1430
      %1432 = vrot.lane.b32.xlu0 %v1412, 99
      %v1433 = vpop.permute.xlu0 %1432
      %1434 = vrot.lane.b32.xlu0 %v1413, 99
      %v1435 = vpop.permute.xlu0 %1434
      %1436 = vrot.lane.b32.xlu0 %v1414, 99
      %v1437 = vpop.permute.xlu0 %1436
      %1438 = vrot.lane.b32.xlu0 %v1415, 99
      %v1439 = vpop.permute.xlu0 %1438
      %v1440 = vrot.slane %v1425, 4
      %v1441 = vrot.slane %v1427, 4
      %v1442 = vrot.slane %v1429, 4
      %v1443 = vrot.slane %v1431, 4
      %v1444 = vrot.slane %v1433, 4
      %v1445 = vrot.slane %v1435, 4
      %v1446 = vrot.slane %v1437, 4
      %v1447 = vrot.slane %v1439, 4
      %vm1448 = vcmask 809984
      %v1449 = vsel %vm1448, %v1425, %v1440
      %v1450 = vsel %vm1448, %v1427, %v1441
      %v1451 = vsel %vm1448, %v1429, %v1442
      %v1452 = vsel %vm1448, %v1431, %v1443
      %v1453 = vsel %vm1448, %v1433, %v1444
      %v1454 = vsel %vm1448, %v1435, %v1445
      %v1455 = vsel %vm1448, %v1437, %v1446
      %v1456 = vsel %vm1448, %v1439, %v1447
      %1465 = vst [vmem:[#allocation3 + $0x1a0] sm:$0xf] %v1449
      %1466 = vst [vmem:[#allocation3 + $0x1a4] sm:$0xf] %v1450
      %1467 = vst [vmem:[#allocation3 + $0x1a8] sm:$0xf] %v1451
      %1468 = vst [vmem:[#allocation3 + $0x1ac] sm:$0xf] %v1452
      %1469 = vst [vmem:[#allocation3 + $0x1b0] sm:$0xf] %v1453
      %1470 = vst [vmem:[#allocation3 + $0x1b4] sm:$0xf] %v1454
      %1471 = vst [vmem:[#allocation3 + $0x1b8] sm:$0xf] %v1455
      %1472 = vst [vmem:[#allocation3 + $0x1bc] sm:$0xf] %v1456
      %v1473 = vld [vmem:[#allocation2] sm:$0xff]
      %v1474 = vld [vmem:[#allocation2 + $0x14] sm:$0xff]
      %v1475 = vld [vmem:[#allocation2 + $0x28] sm:$0xff]
      %v1476 = vld [vmem:[#allocation2 + $0x3c] sm:$0xff]
      %v1477 = vld [vmem:[#allocation2 + $0x50] sm:$0xff]
      %v1478 = vld [vmem:[#allocation2 + $0x64] sm:$0xff]
      %v1479 = vld [vmem:[#allocation2 + $0x78] sm:$0xff]
      %v1480 = vld [vmem:[#allocation2 + $0x8c] sm:$0xff]
      %1489 = vrot.lane.b32.xlu0 %v1473, 114
      %v1490 = vpop.permute.xlu0 %1489
      %1491 = vrot.lane.b32.xlu0 %v1474, 114
      %v1492 = vpop.permute.xlu0 %1491
      %1493 = vrot.lane.b32.xlu0 %v1475, 114
      %v1494 = vpop.permute.xlu0 %1493
      %1495 = vrot.lane.b32.xlu0 %v1476, 114
      %v1496 = vpop.permute.xlu0 %1495
      %1497 = vrot.lane.b32.xlu0 %v1477, 114
      %v1498 = vpop.permute.xlu0 %1497
      %1499 = vrot.lane.b32.xlu0 %v1478, 114
      %v1500 = vpop.permute.xlu0 %1499
      %1501 = vrot.lane.b32.xlu0 %v1479, 114
      %v1502 = vpop.permute.xlu0 %1501
      %1503 = vrot.lane.b32.xlu0 %v1480, 114
      %v1504 = vpop.permute.xlu0 %1503
      %v1505 = vrot.slane %v1490, 4
      %v1506 = vrot.slane %v1492, 4
      %v1507 = vrot.slane %v1494, 4
      %v1508 = vrot.slane %v1496, 4
      %v1509 = vrot.slane %v1498, 4
      %v1510 = vrot.slane %v1500, 4
      %v1511 = vrot.slane %v1502, 4
      %v1512 = vrot.slane %v1504, 4
      %vm1513 = vcmask 932864
      %v1514 = vsel %vm1513, %v1490, %v1505
      %v1515 = vsel %vm1513, %v1492, %v1506
      %v1516 = vsel %vm1513, %v1494, %v1507
      %v1517 = vsel %vm1513, %v1496, %v1508
      %v1518 = vsel %vm1513, %v1498, %v1509
      %v1519 = vsel %vm1513, %v1500, %v1510
      %v1520 = vsel %vm1513, %v1502, %v1511
      %v1521 = vsel %vm1513, %v1504, %v1512
      %1530 = vst [vmem:[#allocation3 + $0x1c0] sm:$0xf] %v1514
      %1531 = vst [vmem:[#allocation3 + $0x1c4] sm:$0xf] %v1515
      %1532 = vst [vmem:[#allocation3 + $0x1c8] sm:$0xf] %v1516
      %1533 = vst [vmem:[#allocation3 + $0x1cc] sm:$0xf] %v1517
      %1534 = vst [vmem:[#allocation3 + $0x1d0] sm:$0xf] %v1518
      %1535 = vst [vmem:[#allocation3 + $0x1d4] sm:$0xf] %v1519
      %1536 = vst [vmem:[#allocation3 + $0x1d8] sm:$0xf] %v1520
      %1537 = vst [vmem:[#allocation3 + $0x1dc] sm:$0xf] %v1521
      %v1538 = vld [vmem:[#allocation2 + $0x8] sm:$0xff]
      %v1539 = vld [vmem:[#allocation2 + $0x1c] sm:$0xff]
      %v1540 = vld [vmem:[#allocation2 + $0x30] sm:$0xff]
      %v1541 = vld [vmem:[#allocation2 + $0x44] sm:$0xff]
      %v1542 = vld [vmem:[#allocation2 + $0x58] sm:$0xff]
      %v1543 = vld [vmem:[#allocation2 + $0x6c] sm:$0xff]
      %v1544 = vld [vmem:[#allocation2 + $0x80] sm:$0xff]
      %v1545 = vld [vmem:[#allocation2 + $0x94] sm:$0xff]
      %1554 = vrot.lane.b32.xlu0 %v1538, 84
      %v1555 = vpop.permute.xlu0 %1554
      %1556 = vrot.lane.b32.xlu0 %v1539, 84
      %v1557 = vpop.permute.xlu0 %1556
      %1558 = vrot.lane.b32.xlu0 %v1540, 84
      %v1559 = vpop.permute.xlu0 %1558
      %1560 = vrot.lane.b32.xlu0 %v1541, 84
      %v1561 = vpop.permute.xlu0 %1560
      %1562 = vrot.lane.b32.xlu0 %v1542, 84
      %v1563 = vpop.permute.xlu0 %1562
      %1564 = vrot.lane.b32.xlu0 %v1543, 84
      %v1565 = vpop.permute.xlu0 %1564
      %1566 = vrot.lane.b32.xlu0 %v1544, 84
      %v1567 = vpop.permute.xlu0 %1566
      %1568 = vrot.lane.b32.xlu0 %v1545, 84
      %v1569 = vpop.permute.xlu0 %1568
      %v1570 = vrot.slane %v1555, 4
      %v1571 = vrot.slane %v1557, 4
      %v1572 = vrot.slane %v1559, 4
      %v1573 = vrot.slane %v1561, 4
      %v1574 = vrot.slane %v1563, 4
      %v1575 = vrot.slane %v1565, 4
      %v1576 = vrot.slane %v1567, 4
      %v1577 = vrot.slane %v1569, 4
      %vm1578 = vcmask 687104
      %v1579 = vsel %vm1578, %v1555, %v1570
      %v1580 = vsel %vm1578, %v1557, %v1571
      %v1581 = vsel %vm1578, %v1559, %v1572
      %v1582 = vsel %vm1578, %v1561, %v1573
      %v1583 = vsel %vm1578, %v1563, %v1574
      %v1584 = vsel %vm1578, %v1565, %v1575
      %v1585 = vsel %vm1578, %v1567, %v1576
      %v1586 = vsel %vm1578, %v1569, %v1577
      %1595 = vst [vmem:[#allocation3 + $0x1e0] sm:$0xf] %v1579
      %1596 = vst [vmem:[#allocation3 + $0x1e4] sm:$0xf] %v1580
      %1597 = vst [vmem:[#allocation3 + $0x1e8] sm:$0xf] %v1581
      %1598 = vst [vmem:[#allocation3 + $0x1ec] sm:$0xf] %v1582
      %1599 = vst [vmem:[#allocation3 + $0x1f0] sm:$0xf] %v1583
      %1600 = vst [vmem:[#allocation3 + $0x1f4] sm:$0xf] %v1584
      %1601 = vst [vmem:[#allocation3 + $0x1f8] sm:$0xf] %v1585
      %1602 = vst [vmem:[#allocation3 + $0x1fc] sm:$0xf] %v1586
      %v1603 = vld [vmem:[#allocation2 + $0xc] sm:$0xff]
      %v1604 = vld [vmem:[#allocation2 + $0x20] sm:$0xff]
      %v1605 = vld [vmem:[#allocation2 + $0x34] sm:$0xff]
      %v1606 = vld [vmem:[#allocation2 + $0x48] sm:$0xff]
      %v1607 = vld [vmem:[#allocation2 + $0x5c] sm:$0xff]
      %v1608 = vld [vmem:[#allocation2 + $0x70] sm:$0xff]
      %v1609 = vld [vmem:[#allocation2 + $0x84] sm:$0xff]
      %v1610 = vld [vmem:[#allocation2 + $0x98] sm:$0xff]
      %1619 = vrot.lane.b32.xlu0 %v1603, 68
      %v1620 = vpop.permute.xlu0 %1619
      %1621 = vrot.lane.b32.xlu0 %v1604, 68
      %v1622 = vpop.permute.xlu0 %1621
      %1623 = vrot.lane.b32.xlu0 %v1605, 68
      %v1624 = vpop.permute.xlu0 %1623
      %1625 = vrot.lane.b32.xlu0 %v1606, 68
      %v1626 = vpop.permute.xlu0 %1625
      %1627 = vrot.lane.b32.xlu0 %v1607, 68
      %v1628 = vpop.permute.xlu0 %1627
      %1629 = vrot.lane.b32.xlu0 %v1608, 68
      %v1630 = vpop.permute.xlu0 %1629
      %1631 = vrot.lane.b32.xlu0 %v1609, 68
      %v1632 = vpop.permute.xlu0 %1631
      %1633 = vrot.lane.b32.xlu0 %v1610, 68
      %v1634 = vpop.permute.xlu0 %1633
      %v1635 = vrot.slane %v1620, 4
      %v1636 = vrot.slane %v1622, 4
      %v1637 = vrot.slane %v1624, 4
      %v1638 = vrot.slane %v1626, 4
      %v1639 = vrot.slane %v1628, 4
      %v1640 = vrot.slane %v1630, 4
      %v1641 = vrot.slane %v1632, 4
      %v1642 = vrot.slane %v1634, 4
      %vm1643 = vcmask 556032
      %v1644 = vsel %vm1643, %v1620, %v1635
      %v1645 = vsel %vm1643, %v1622, %v1636
      %v1646 = vsel %vm1643, %v1624, %v1637
      %v1647 = vsel %vm1643, %v1626, %v1638
      %v1648 = vsel %vm1643, %v1628, %v1639
      %v1649 = vsel %vm1643, %v1630, %v1640
      %v1650 = vsel %vm1643, %v1632, %v1641
      %v1651 = vsel %vm1643, %v1634, %v1642
      %1660 = vst [vmem:[#allocation3 + $0x200] sm:$0xf] %v1644
      %1661 = vst [vmem:[#allocation3 + $0x204] sm:$0xf] %v1645
      %1662 = vst [vmem:[#allocation3 + $0x208] sm:$0xf] %v1646
      %1663 = vst [vmem:[#allocation3 + $0x20c] sm:$0xf] %v1647
      %1664 = vst [vmem:[#allocation3 + $0x210] sm:$0xf] %v1648
      %1665 = vst [vmem:[#allocation3 + $0x214] sm:$0xf] %v1649
      %1666 = vst [vmem:[#allocation3 + $0x218] sm:$0xf] %v1650
      %1667 = vst [vmem:[#allocation3 + $0x21c] sm:$0xf] %v1651
      %v1668 = vld [vmem:[#allocation2 + $0x8] sm:$0xff]
      %v1669 = vld [vmem:[#allocation2 + $0x1c] sm:$0xff]
      %v1670 = vld [vmem:[#allocation2 + $0x30] sm:$0xff]
      %v1671 = vld [vmem:[#allocation2 + $0x44] sm:$0xff]
      %v1672 = vld [vmem:[#allocation2 + $0x58] sm:$0xff]
      %v1673 = vld [vmem:[#allocation2 + $0x6c] sm:$0xff]
      %v1674 = vld [vmem:[#allocation2 + $0x80] sm:$0xff]
      %v1675 = vld [vmem:[#allocation2 + $0x94] sm:$0xff]
      %1684 = vrot.lane.b32.xlu0 %v1668, 83
      %v1685 = vpop.permute.xlu0 %1684
      %1686 = vrot.lane.b32.xlu0 %v1669, 83
      %v1687 = vpop.permute.xlu0 %1686
      %1688 = vrot.lane.b32.xlu0 %v1670, 83
      %v1689 = vpop.permute.xlu0 %1688
      %1690 = vrot.lane.b32.xlu0 %v1671, 83
      %v1691 = vpop.permute.xlu0 %1690
      %1692 = vrot.lane.b32.xlu0 %v1672, 83
      %v1693 = vpop.permute.xlu0 %1692
      %1694 = vrot.lane.b32.xlu0 %v1673, 83
      %v1695 = vpop.permute.xlu0 %1694
      %1696 = vrot.lane.b32.xlu0 %v1674, 83
      %v1697 = vpop.permute.xlu0 %1696
      %1698 = vrot.lane.b32.xlu0 %v1675, 83
      %v1699 = vpop.permute.xlu0 %1698
      %v1700 = vrot.slane %v1685, 4
      %v1701 = vrot.slane %v1687, 4
      %v1702 = vrot.slane %v1689, 4
      %v1703 = vrot.slane %v1691, 4
      %v1704 = vrot.slane %v1693, 4
      %v1705 = vrot.slane %v1695, 4
      %v1706 = vrot.slane %v1697, 4
      %v1707 = vrot.slane %v1699, 4
      %vm1708 = vcmask 678912
      %v1709 = vsel %vm1708, %v1685, %v1700
      %v1710 = vsel %vm1708, %v1687, %v1701
      %v1711 = vsel %vm1708, %v1689, %v1702
      %v1712 = vsel %vm1708, %v1691, %v1703
      %v1713 = vsel %vm1708, %v1693, %v1704
      %v1714 = vsel %vm1708, %v1695, %v1705
      %v1715 = vsel %vm1708, %v1697, %v1706
      %v1716 = vsel %vm1708, %v1699, %v1707
      %1725 = vst [vmem:[#allocation3 + $0x220] sm:$0xf] %v1709
      %1726 = vst [vmem:[#allocation3 + $0x224] sm:$0xf] %v1710
      %1727 = vst [vmem:[#allocation3 + $0x228] sm:$0xf] %v1711
      %1728 = vst [vmem:[#allocation3 + $0x22c] sm:$0xf] %v1712
      %1729 = vst [vmem:[#allocation3 + $0x230] sm:$0xf] %v1713
      %1730 = vst [vmem:[#allocation3 + $0x234] sm:$0xf] %v1714
      %1731 = vst [vmem:[#allocation3 + $0x238] sm:$0xf] %v1715
      %1732 = vst [vmem:[#allocation3 + $0x23c] sm:$0xf] %v1716
      %v1733 = vld [vmem:[#allocation2 + $0xc] sm:$0xff]
      %v1734 = vld [vmem:[#allocation2 + $0x20] sm:$0xff]
      %v1735 = vld [vmem:[#allocation2 + $0x34] sm:$0xff]
      %v1736 = vld [vmem:[#allocation2 + $0x48] sm:$0xff]
      %v1737 = vld [vmem:[#allocation2 + $0x5c] sm:$0xff]
      %v1738 = vld [vmem:[#allocation2 + $0x70] sm:$0xff]
      %v1739 = vld [vmem:[#allocation2 + $0x84] sm:$0xff]
      %v1740 = vld [vmem:[#allocation2 + $0x98] sm:$0xff]
      %1749 = vrot.lane.b32.xlu0 %v1733, 67
      %v1750 = vpop.permute.xlu0 %1749
      %1751 = vrot.lane.b32.xlu0 %v1734, 67
      %v1752 = vpop.permute.xlu0 %1751
      %1753 = vrot.lane.b32.xlu0 %v1735, 67
      %v1754 = vpop.permute.xlu0 %1753
      %1755 = vrot.lane.b32.xlu0 %v1736, 67
      %v1756 = vpop.permute.xlu0 %1755
      %1757 = vrot.lane.b32.xlu0 %v1737, 67
      %v1758 = vpop.permute.xlu0 %1757
      %1759 = vrot.lane.b32.xlu0 %v1738, 67
      %v1760 = vpop.permute.xlu0 %1759
      %1761 = vrot.lane.b32.xlu0 %v1739, 67
      %v1762 = vpop.permute.xlu0 %1761
      %1763 = vrot.lane.b32.xlu0 %v1740, 67
      %v1764 = vpop.permute.xlu0 %1763
      %v1765 = vrot.slane %v1750, 4
      %v1766 = vrot.slane %v1752, 4
      %v1767 = vrot.slane %v1754, 4
      %v1768 = vrot.slane %v1756, 4
      %v1769 = vrot.slane %v1758, 4
      %v1770 = vrot.slane %v1760, 4
      %v1771 = vrot.slane %v1762, 4
      %v1772 = vrot.slane %v1764, 4
      %vm1773 = vcmask 547840
      %v1774 = vsel %vm1773, %v1750, %v1765
      %v1775 = vsel %vm1773, %v1752, %v1766
      %v1776 = vsel %vm1773, %v1754, %v1767
      %v1777 = vsel %vm1773, %v1756, %v1768
      %v1778 = vsel %vm1773, %v1758, %v1769
      %v1779 = vsel %vm1773, %v1760, %v1770
      %v1780 = vsel %vm1773, %v1762, %v1771
      %v1781 = vsel %vm1773, %v1764, %v1772
      %1790 = vst [vmem:[#allocation3 + $0x240] sm:$0xf] %v1774
      %1791 = vst [vmem:[#allocation3 + $0x244] sm:$0xf] %v1775
      %1792 = vst [vmem:[#allocation3 + $0x248] sm:$0xf] %v1776
      %1793 = vst [vmem:[#allocation3 + $0x24c] sm:$0xf] %v1777
      %1794 = vst [vmem:[#allocation3 + $0x250] sm:$0xf] %v1778
      %1795 = vst [vmem:[#allocation3 + $0x254] sm:$0xf] %v1779
      %1796 = vst [vmem:[#allocation3 + $0x258] sm:$0xf] %v1780
      %1797 = vst [vmem:[#allocation3 + $0x25c] sm:$0xf] %v1781
      %v1798 = vld [vmem:[#allocation2 + $0x8] sm:$0xff]
      %v1799 = vld [vmem:[#allocation2 + $0x1c] sm:$0xff]
      %v1800 = vld [vmem:[#allocation2 + $0x30] sm:$0xff]
      %v1801 = vld [vmem:[#allocation2 + $0x44] sm:$0xff]
      %v1802 = vld [vmem:[#allocation2 + $0x58] sm:$0xff]
      %v1803 = vld [vmem:[#allocation2 + $0x6c] sm:$0xff]
      %v1804 = vld [vmem:[#allocation2 + $0x80] sm:$0xff]
      %v1805 = vld [vmem:[#allocation2 + $0x94] sm:$0xff]
      %1814 = vrot.lane.b32.xlu0 %v1798, 82
      %v1815 = vpop.permute.xlu0 %1814
      %1816 = vrot.lane.b32.xlu0 %v1799, 82
      %v1817 = vpop.permute.xlu0 %1816
      %1818 = vrot.lane.b32.xlu0 %v1800, 82
      %v1819 = vpop.permute.xlu0 %1818
      %1820 = vrot.lane.b32.xlu0 %v1801, 82
      %v1821 = vpop.permute.xlu0 %1820
      %1822 = vrot.lane.b32.xlu0 %v1802, 82
      %v1823 = vpop.permute.xlu0 %1822
      %1824 = vrot.lane.b32.xlu0 %v1803, 82
      %v1825 = vpop.permute.xlu0 %1824
      %1826 = vrot.lane.b32.xlu0 %v1804, 82
      %v1827 = vpop.permute.xlu0 %1826
      %1828 = vrot.lane.b32.xlu0 %v1805, 82
      %v1829 = vpop.permute.xlu0 %1828
      %v1830 = vrot.slane %v1815, 4
      %v1831 = vrot.slane %v1817, 4
      %v1832 = vrot.slane %v1819, 4
      %v1833 = vrot.slane %v1821, 4
      %v1834 = vrot.slane %v1823, 4
      %v1835 = vrot.slane %v1825, 4
      %v1836 = vrot.slane %v1827, 4
      %v1837 = vrot.slane %v1829, 4
      %vm1838 = vcmask 670720
      %v1839 = vsel %vm1838, %v1815, %v1830
      %v1840 = vsel %vm1838, %v1817, %v1831
      %v1841 = vsel %vm1838, %v1819, %v1832
      %v1842 = vsel %vm1838, %v1821, %v1833
      %v1843 = vsel %vm1838, %v1823, %v1834
      %v1844 = vsel %vm1838, %v1825, %v1835
      %v1845 = vsel %vm1838, %v1827, %v1836
      %v1846 = vsel %vm1838, %v1829, %v1837
      %1855 = vst [vmem:[#allocation3 + $0x260] sm:$0xf] %v1839
      %1856 = vst [vmem:[#allocation3 + $0x264] sm:$0xf] %v1840
      %1857 = vst [vmem:[#allocation3 + $0x268] sm:$0xf] %v1841
      %1858 = vst [vmem:[#allocation3 + $0x26c] sm:$0xf] %v1842
      %1859 = vst [vmem:[#allocation3 + $0x270] sm:$0xf] %v1843
      %1860 = vst [vmem:[#allocation3 + $0x274] sm:$0xf] %v1844
      %1861 = vst [vmem:[#allocation3 + $0x278] sm:$0xf] %v1845
      %1862 = vst [vmem:[#allocation3 + $0x27c] sm:$0xf] %v1846
      %v1863 = vld [vmem:[#allocation2] sm:$0xff]
      %v1864 = vld [vmem:[#allocation2 + $0x14] sm:$0xff]
      %v1865 = vld [vmem:[#allocation2 + $0x28] sm:$0xff]
      %v1866 = vld [vmem:[#allocation2 + $0x3c] sm:$0xff]
      %v1867 = vld [vmem:[#allocation2 + $0x50] sm:$0xff]
      %v1868 = vld [vmem:[#allocation2 + $0x64] sm:$0xff]
      %v1869 = vld [vmem:[#allocation2 + $0x78] sm:$0xff]
      %v1870 = vld [vmem:[#allocation2 + $0x8c] sm:$0xff]
      %1879 = vrot.lane.b32.xlu0 %v1863, 104
      %v1880 = vpop.permute.xlu0 %1879
      %1881 = vrot.lane.b32.xlu0 %v1864, 104
      %v1882 = vpop.permute.xlu0 %1881
      %1883 = vrot.lane.b32.xlu0 %v1865, 104
      %v1884 = vpop.permute.xlu0 %1883
      %1885 = vrot.lane.b32.xlu0 %v1866, 104
      %v1886 = vpop.permute.xlu0 %1885
      %1887 = vrot.lane.b32.xlu0 %v1867, 104
      %v1888 = vpop.permute.xlu0 %1887
      %1889 = vrot.lane.b32.xlu0 %v1868, 104
      %v1890 = vpop.permute.xlu0 %1889
      %1891 = vrot.lane.b32.xlu0 %v1869, 104
      %v1892 = vpop.permute.xlu0 %1891
      %1893 = vrot.lane.b32.xlu0 %v1870, 104
      %v1894 = vpop.permute.xlu0 %1893
      %v1895 = vrot.slane %v1880, 4
      %v1896 = vrot.slane %v1882, 4
      %v1897 = vrot.slane %v1884, 4
      %v1898 = vrot.slane %v1886, 4
      %v1899 = vrot.slane %v1888, 4
      %v1900 = vrot.slane %v1890, 4
      %v1901 = vrot.slane %v1892, 4
      %v1902 = vrot.slane %v1894, 4
      %vm1903 = vcmask 850944
      %v1904 = vsel %vm1903, %v1880, %v1895
      %v1905 = vsel %vm1903, %v1882, %v1896
      %v1906 = vsel %vm1903, %v1884, %v1897
      %v1907 = vsel %vm1903, %v1886, %v1898
      %v1908 = vsel %vm1903, %v1888, %v1899
      %v1909 = vsel %vm1903, %v1890, %v1900
      %v1910 = vsel %vm1903, %v1892, %v1901
      %v1911 = vsel %vm1903, %v1894, %v1902
      %1920 = vst [vmem:[#allocation3 + $0x280] sm:$0xf] %v1904
      %1921 = vst [vmem:[#allocation3 + $0x284] sm:$0xf] %v1905
      %1922 = vst [vmem:[#allocation3 + $0x288] sm:$0xf] %v1906
      %1923 = vst [vmem:[#allocation3 + $0x28c] sm:$0xf] %v1907
      %1924 = vst [vmem:[#allocation3 + $0x290] sm:$0xf] %v1908
      %1925 = vst [vmem:[#allocation3 + $0x294] sm:$0xf] %v1909
      %1926 = vst [vmem:[#allocation3 + $0x298] sm:$0xf] %v1910
      %1927 = vst [vmem:[#allocation3 + $0x29c] sm:$0xf] %v1911
      %v1928 = vld [vmem:[#allocation2 + $0x4] sm:$0xff]
      %v1929 = vld [vmem:[#allocation2 + $0x18] sm:$0xff]
      %v1930 = vld [vmem:[#allocation2 + $0x2c] sm:$0xff]
      %v1931 = vld [vmem:[#allocation2 + $0x40] sm:$0xff]
      %v1932 = vld [vmem:[#allocation2 + $0x54] sm:$0xff]
      %v1933 = vld [vmem:[#allocation2 + $0x68] sm:$0xff]
      %v1934 = vld [vmem:[#allocation2 + $0x7c] sm:$0xff]
      %v1935 = vld [vmem:[#allocation2 + $0x90] sm:$0xff]
      %1944 = vrot.lane.b32.xlu0 %v1928, 88
      %v1945 = vpop.permute.xlu0 %1944
      %1946 = vrot.lane.b32.xlu0 %v1929, 88
      %v1947 = vpop.permute.xlu0 %1946
      %1948 = vrot.lane.b32.xlu0 %v1930, 88
      %v1949 = vpop.permute.xlu0 %1948
      %1950 = vrot.lane.b32.xlu0 %v1931, 88
      %v1951 = vpop.permute.xlu0 %1950
      %1952 = vrot.lane.b32.xlu0 %v1932, 88
      %v1953 = vpop.permute.xlu0 %1952
      %1954 = vrot.lane.b32.xlu0 %v1933, 88
      %v1955 = vpop.permute.xlu0 %1954
      %1956 = vrot.lane.b32.xlu0 %v1934, 88
      %v1957 = vpop.permute.xlu0 %1956
      %1958 = vrot.lane.b32.xlu0 %v1935, 88
      %v1959 = vpop.permute.xlu0 %1958
      %v1960 = vrot.slane %v1945, 4
      %v1961 = vrot.slane %v1947, 4
      %v1962 = vrot.slane %v1949, 4
      %v1963 = vrot.slane %v1951, 4
      %v1964 = vrot.slane %v1953, 4
      %v1965 = vrot.slane %v1955, 4
      %v1966 = vrot.slane %v1957, 4
      %v1967 = vrot.slane %v1959, 4
      %vm1968 = vcmask 719872
      %v1969 = vsel %vm1968, %v1945, %v1960
      %v1970 = vsel %vm1968, %v1947, %v1961
      %v1971 = vsel %vm1968, %v1949, %v1962
      %v1972 = vsel %vm1968, %v1951, %v1963
      %v1973 = vsel %vm1968, %v1953, %v1964
      %v1974 = vsel %vm1968, %v1955, %v1965
      %v1975 = vsel %vm1968, %v1957, %v1966
      %v1976 = vsel %vm1968, %v1959, %v1967
      %1985 = vst [vmem:[#allocation3 + $0x2a0] sm:$0xf] %v1969
      %1986 = vst [vmem:[#allocation3 + $0x2a4] sm:$0xf] %v1970
      %1987 = vst [vmem:[#allocation3 + $0x2a8] sm:$0xf] %v1971
      %1988 = vst [vmem:[#allocation3 + $0x2ac] sm:$0xf] %v1972
      %1989 = vst [vmem:[#allocation3 + $0x2b0] sm:$0xf] %v1973
      %1990 = vst [vmem:[#allocation3 + $0x2b4] sm:$0xf] %v1974
      %1991 = vst [vmem:[#allocation3 + $0x2b8] sm:$0xf] %v1975
      %1992 = vst [vmem:[#allocation3 + $0x2bc] sm:$0xf] %v1976
      %v1993 = vld [vmem:[#allocation2] sm:$0xff]
      %v1994 = vld [vmem:[#allocation2 + $0x14] sm:$0xff]
      %v1995 = vld [vmem:[#allocation2 + $0x28] sm:$0xff]
      %v1996 = vld [vmem:[#allocation2 + $0x3c] sm:$0xff]
      %v1997 = vld [vmem:[#allocation2 + $0x50] sm:$0xff]
      %v1998 = vld [vmem:[#allocation2 + $0x64] sm:$0xff]
      %v1999 = vld [vmem:[#allocation2 + $0x78] sm:$0xff]
      %v2000 = vld [vmem:[#allocation2 + $0x8c] sm:$0xff]
      %2009 = vrot.lane.b32.xlu0 %v1993, 103
      %v2010 = vpop.permute.xlu0 %2009
      %2011 = vrot.lane.b32.xlu0 %v1994, 103
      %v2012 = vpop.permute.xlu0 %2011
      %2013 = vrot.lane.b32.xlu0 %v1995, 103
      %v2014 = vpop.permute.xlu0 %2013
      %2015 = vrot.lane.b32.xlu0 %v1996, 103
      %v2016 = vpop.permute.xlu0 %2015
      %2017 = vrot.lane.b32.xlu0 %v1997, 103
      %v2018 = vpop.permute.xlu0 %2017
      %2019 = vrot.lane.b32.xlu0 %v1998, 103
      %v2020 = vpop.permute.xlu0 %2019
      %2021 = vrot.lane.b32.xlu0 %v1999, 103
      %v2022 = vpop.permute.xlu0 %2021
      %2023 = vrot.lane.b32.xlu0 %v2000, 103
      %v2024 = vpop.permute.xlu0 %2023
      %v2025 = vrot.slane %v2010, 4
      %v2026 = vrot.slane %v2012, 4
      %v2027 = vrot.slane %v2014, 4
      %v2028 = vrot.slane %v2016, 4
      %v2029 = vrot.slane %v2018, 4
      %v2030 = vrot.slane %v2020, 4
      %v2031 = vrot.slane %v2022, 4
      %v2032 = vrot.slane %v2024, 4
      %vm2033 = vcmask 842752
      %v2034 = vsel %vm2033, %v2010, %v2025
      %v2035 = vsel %vm2033, %v2012, %v2026
      %v2036 = vsel %vm2033, %v2014, %v2027
      %v2037 = vsel %vm2033, %v2016, %v2028
      %v2038 = vsel %vm2033, %v2018, %v2029
      %v2039 = vsel %vm2033, %v2020, %v2030
      %v2040 = vsel %vm2033, %v2022, %v2031
      %v2041 = vsel %vm2033, %v2024, %v2032
      %2050 = vst [vmem:[#allocation3 + $0x2c0] sm:$0xf] %v2034
      %2051 = vst [vmem:[#allocation3 + $0x2c4] sm:$0xf] %v2035
      %2052 = vst [vmem:[#allocation3 + $0x2c8] sm:$0xf] %v2036
      %2053 = vst [vmem:[#allocation3 + $0x2cc] sm:$0xf] %v2037
      %2054 = vst [vmem:[#allocation3 + $0x2d0] sm:$0xf] %v2038
      %2055 = vst [vmem:[#allocation3 + $0x2d4] sm:$0xf] %v2039
      %2056 = vst [vmem:[#allocation3 + $0x2d8] sm:$0xf] %v2040
      %2057 = vst [vmem:[#allocation3 + $0x2dc] sm:$0xf] %v2041
      %v2058 = vld [vmem:[#allocation2 + $0x4] sm:$0xff]
      %v2059 = vld [vmem:[#allocation2 + $0x18] sm:$0xff]
      %v2060 = vld [vmem:[#allocation2 + $0x2c] sm:$0xff]
      %v2061 = vld [vmem:[#allocation2 + $0x40] sm:$0xff]
      %v2062 = vld [vmem:[#allocation2 + $0x54] sm:$0xff]
      %v2063 = vld [vmem:[#allocation2 + $0x68] sm:$0xff]
      %v2064 = vld [vmem:[#allocation2 + $0x7c] sm:$0xff]
      %v2065 = vld [vmem:[#allocation2 + $0x90] sm:$0xff]
      %2074 = vrot.lane.b32.xlu0 %v2058, 87
      %v2075 = vpop.permute.xlu0 %2074
      %2076 = vrot.lane.b32.xlu0 %v2059, 87
      %v2077 = vpop.permute.xlu0 %2076
      %2078 = vrot.lane.b32.xlu0 %v2060, 87
      %v2079 = vpop.permute.xlu0 %2078
      %2080 = vrot.lane.b32.xlu0 %v2061, 87
      %v2081 = vpop.permute.xlu0 %2080
      %2082 = vrot.lane.b32.xlu0 %v2062, 87
      %v2083 = vpop.permute.xlu0 %2082
      %2084 = vrot.lane.b32.xlu0 %v2063, 87
      %v2085 = vpop.permute.xlu0 %2084
      %2086 = vrot.lane.b32.xlu0 %v2064, 87
      %v2087 = vpop.permute.xlu0 %2086
      %2088 = vrot.lane.b32.xlu0 %v2065, 87
      %v2089 = vpop.permute.xlu0 %2088
      %v2090 = vrot.slane %v2075, 4
      %v2091 = vrot.slane %v2077, 4
      %v2092 = vrot.slane %v2079, 4
      %v2093 = vrot.slane %v2081, 4
      %v2094 = vrot.slane %v2083, 4
      %v2095 = vrot.slane %v2085, 4
      %v2096 = vrot.slane %v2087, 4
      %v2097 = vrot.slane %v2089, 4
      %vm2098 = vcmask 711680
      %v2099 = vsel %vm2098, %v2075, %v2090
      %v2100 = vsel %vm2098, %v2077, %v2091
      %v2101 = vsel %vm2098, %v2079, %v2092
      %v2102 = vsel %vm2098, %v2081, %v2093
      %v2103 = vsel %vm2098, %v2083, %v2094
      %v2104 = vsel %vm2098, %v2085, %v2095
      %v2105 = vsel %vm2098, %v2087, %v2096
      %v2106 = vsel %vm2098, %v2089, %v2097
      %2115 = vst [vmem:[#allocation3 + $0x2e0] sm:$0xf] %v2099
      %2116 = vst [vmem:[#allocation3 + $0x2e4] sm:$0xf] %v2100
      %2117 = vst [vmem:[#allocation3 + $0x2e8] sm:$0xf] %v2101
      %2118 = vst [vmem:[#allocation3 + $0x2ec] sm:$0xf] %v2102
      %2119 = vst [vmem:[#allocation3 + $0x2f0] sm:$0xf] %v2103
      %2120 = vst [vmem:[#allocation3 + $0x2f4] sm:$0xf] %v2104
      %2121 = vst [vmem:[#allocation3 + $0x2f8] sm:$0xf] %v2105
      %2122 = vst [vmem:[#allocation3 + $0x2fc] sm:$0xf] %v2106
      %v2123 = vld [vmem:[#allocation2] sm:$0xff]
      %v2124 = vld [vmem:[#allocation2 + $0x14] sm:$0xff]
      %v2125 = vld [vmem:[#allocation2 + $0x28] sm:$0xff]
      %v2126 = vld [vmem:[#allocation2 + $0x3c] sm:$0xff]
      %v2127 = vld [vmem:[#allocation2 + $0x50] sm:$0xff]
      %v2128 = vld [vmem:[#allocation2 + $0x64] sm:$0xff]
      %v2129 = vld [vmem:[#allocation2 + $0x78] sm:$0xff]
      %v2130 = vld [vmem:[#allocation2 + $0x8c] sm:$0xff]
      %2139 = vrot.lane.b32.xlu0 %v2123, 102
      %v2140 = vpop.permute.xlu0 %2139
      %2141 = vrot.lane.b32.xlu0 %v2124, 102
      %v2142 = vpop.permute.xlu0 %2141
      %2143 = vrot.lane.b32.xlu0 %v2125, 102
      %v2144 = vpop.permute.xlu0 %2143
      %2145 = vrot.lane.b32.xlu0 %v2126, 102
      %v2146 = vpop.permute.xlu0 %2145
      %2147 = vrot.lane.b32.xlu0 %v2127, 102
      %v2148 = vpop.permute.xlu0 %2147
      %2149 = vrot.lane.b32.xlu0 %v2128, 102
      %v2150 = vpop.permute.xlu0 %2149
      %2151 = vrot.lane.b32.xlu0 %v2129, 102
      %v2152 = vpop.permute.xlu0 %2151
      %2153 = vrot.lane.b32.xlu0 %v2130, 102
      %v2154 = vpop.permute.xlu0 %2153
      %v2155 = vrot.slane %v2140, 4
      %v2156 = vrot.slane %v2142, 4
      %v2157 = vrot.slane %v2144, 4
      %v2158 = vrot.slane %v2146, 4
      %v2159 = vrot.slane %v2148, 4
      %v2160 = vrot.slane %v2150, 4
      %v2161 = vrot.slane %v2152, 4
      %v2162 = vrot.slane %v2154, 4
      %vm2163 = vcmask 834560
      %v2164 = vsel %vm2163, %v2140, %v2155
      %v2165 = vsel %vm2163, %v2142, %v2156
      %v2166 = vsel %vm2163, %v2144, %v2157
      %v2167 = vsel %vm2163, %v2146, %v2158
      %v2168 = vsel %vm2163, %v2148, %v2159
      %v2169 = vsel %vm2163, %v2150, %v2160
      %v2170 = vsel %vm2163, %v2152, %v2161
      %v2171 = vsel %vm2163, %v2154, %v2162
      %2180 = vst [vmem:[#allocation3 + $0x300] sm:$0xf] %v2164
      %2181 = vst [vmem:[#allocation3 + $0x304] sm:$0xf] %v2165
      %2182 = vst [vmem:[#allocation3 + $0x308] sm:$0xf] %v2166
      %2183 = vst [vmem:[#allocation3 + $0x30c] sm:$0xf] %v2167
      %2184 = vst [vmem:[#allocation3 + $0x310] sm:$0xf] %v2168
      %2185 = vst [vmem:[#allocation3 + $0x314] sm:$0xf] %v2169
      %2186 = vst [vmem:[#allocation3 + $0x318] sm:$0xf] %v2170
      %2187 = vst [vmem:[#allocation3 + $0x31c] sm:$0xf] %v2171
      %v2188 = vld [vmem:[%s3] sm:$0xff]
      %v2189 = vld [vmem:[%s3 + $0x8] sm:$0xff]
      %v2190 = vld [vmem:[%s3 + $0x10] sm:$0xff]
      %v2191 = vld [vmem:[%s3 + $0x18] sm:$0xff]
      %v2192 = vld [vmem:[%s3 + $0x20] sm:$0xff]
      %v2193 = vld [vmem:[%s3 + $0x28] sm:$0xff]
      %v2194 = vld [vmem:[%s3 + $0x30] sm:$0xf]
      %v2195 = vld [vmem:[%s3 + $0x34] sm:$0xff]
      %v2196 = vld [vmem:[%s3 + $0x3c] sm:$0xff]
      %v2197 = vld [vmem:[%s3 + $0x44] sm:$0xff]
      %v2198 = vld [vmem:[%s3 + $0x4c] sm:$0xff]
      %v2199 = vld [vmem:[%s3 + $0x54] sm:$0xff]
      %v2200 = vld [vmem:[%s3 + $0x5c] sm:$0xff]
      %v2201 = vld [vmem:[%s3 + $0x64] sm:$0xf]
      %v2202 = vld [vmem:[%s3 + $0x68] sm:$0xff]
      %v2203 = vld [vmem:[%s3 + $0x70] sm:$0xff]
      %v2204 = vld [vmem:[%s3 + $0x78] sm:$0xff]
      %v2205 = vld [vmem:[%s3 + $0x80] sm:$0xff]
      %v2206 = vld [vmem:[%s3 + $0x88] sm:$0xff]
      %v2207 = vld [vmem:[%s3 + $0x90] sm:$0xff]
      %v2208 = vld [vmem:[%s3 + $0x98] sm:$0xf]
      %v2209 = vld [vmem:[%s3 + $0x9c] sm:$0xff]
      %v2210 = vld [vmem:[%s3 + $0xa4] sm:$0xff]
      %v2211 = vld [vmem:[%s3 + $0xac] sm:$0xff]
      %v2212 = vld [vmem:[%s3 + $0xb4] sm:$0xff]
      %v2213 = vld [vmem:[%s3 + $0xbc] sm:$0xff]
      %v2214 = vld [vmem:[%s3 + $0xc4] sm:$0xff]
      %v2215 = vld [vmem:[%s3 + $0xcc] sm:$0xf]
      %v2216 = vld [vmem:[%s3 + $0xd0] sm:$0xff]
      %v2217 = vld [vmem:[%s3 + $0xd8] sm:$0xff]
      %v2218 = vld [vmem:[%s3 + $0xe0] sm:$0xff]
      %v2219 = vld [vmem:[%s3 + $0xe8] sm:$0xff]
      %v2220 = vld [vmem:[%s3 + $0xf0] sm:$0xff]
      %v2221 = vld [vmem:[%s3 + $0xf8] sm:$0xff]
      %v2222 = vld [vmem:[%s3 + $0x100] sm:$0xf]
      %v2223 = vld [vmem:[%s3 + $0x104] sm:$0xff]
      %v2224 = vld [vmem:[%s3 + $0x10c] sm:$0xff]
      %v2225 = vld [vmem:[%s3 + $0x114] sm:$0xff]
      %v2226 = vld [vmem:[%s3 + $0x11c] sm:$0xff]
      %v2227 = vld [vmem:[%s3 + $0x124] sm:$0xff]
      %v2228 = vld [vmem:[%s3 + $0x12c] sm:$0xff]
      %v2229 = vld [vmem:[%s3 + $0x134] sm:$0xf]
      %v2230 = vld [vmem:[%s3 + $0x138] sm:$0xff]
      %v2231 = vld [vmem:[%s3 + $0x140] sm:$0xff]
      %v2232 = vld [vmem:[%s3 + $0x148] sm:$0xff]
      %v2233 = vld [vmem:[%s3 + $0x150] sm:$0xff]
      %v2234 = vld [vmem:[%s3 + $0x158] sm:$0xff]
      %v2235 = vld [vmem:[%s3 + $0x160] sm:$0xff]
      %v2236 = vld [vmem:[%s3 + $0x168] sm:$0xf]
      %v2237 = vld [vmem:[%s3 + $0x16c] sm:$0xff]
      %v2238 = vld [vmem:[%s3 + $0x174] sm:$0xff]
      %v2239 = vld [vmem:[%s3 + $0x17c] sm:$0xff]
      %v2240 = vld [vmem:[%s3 + $0x184] sm:$0xff]
      %v2241 = vld [vmem:[%s3 + $0x18c] sm:$0xff]
      %v2242 = vld [vmem:[%s3 + $0x194] sm:$0xff]
      %v2243 = vld [vmem:[%s3 + $0x19c] sm:$0xf]
      %v2244 = vld [vmem:[#allocation3] sm:$0xf]
      %v2245 = vld [vmem:[#allocation3 + $0x4] sm:$0xf]
      %v2246 = vld [vmem:[#allocation3 + $0x8] sm:$0xf]
      %v2247 = vld [vmem:[#allocation3 + $0xc] sm:$0xf]
      %v2248 = vld [vmem:[#allocation3 + $0x10] sm:$0xf]
      %v2249 = vld [vmem:[#allocation3 + $0x14] sm:$0xf]
      %v2250 = vld [vmem:[#allocation3 + $0x18] sm:$0xf]
      %v2251 = vld [vmem:[#allocation3 + $0x1c] sm:$0xf]
      %v2252 = vld [vmem:[#allocation3 + $0x20] sm:$0xf]
      %v2253 = vld [vmem:[#allocation3 + $0x24] sm:$0xf]
      %v2254 = vld [vmem:[#allocation3 + $0x28] sm:$0xf]
      %v2255 = vld [vmem:[#allocation3 + $0x2c] sm:$0xf]
      %v2256 = vld [vmem:[#allocation3 + $0x30] sm:$0xf]
      %v2257 = vld [vmem:[#allocation3 + $0x34] sm:$0xf]
      %v2258 = vld [vmem:[#allocation3 + $0x38] sm:$0xf]
      %v2259 = vld [vmem:[#allocation3 + $0x3c] sm:$0xf]
      %v2260 = vld [vmem:[#allocation3 + $0x40] sm:$0xf]
      %v2261 = vld [vmem:[#allocation3 + $0x44] sm:$0xf]
      %v2262 = vld [vmem:[#allocation3 + $0x48] sm:$0xf]
      %v2263 = vld [vmem:[#allocation3 + $0x4c] sm:$0xf]
      %v2264 = vld [vmem:[#allocation3 + $0x50] sm:$0xf]
      %v2265 = vld [vmem:[#allocation3 + $0x54] sm:$0xf]
      %v2266 = vld [vmem:[#allocation3 + $0x58] sm:$0xf]
      %v2267 = vld [vmem:[#allocation3 + $0x5c] sm:$0xf]
      %v2268 = vld [vmem:[#allocation3 + $0x60] sm:$0xf]
      %v2269 = vld [vmem:[#allocation3 + $0x64] sm:$0xf]
      %v2270 = vld [vmem:[#allocation3 + $0x68] sm:$0xf]
      %v2271 = vld [vmem:[#allocation3 + $0x6c] sm:$0xf]
      %v2272 = vld [vmem:[#allocation3 + $0x70] sm:$0xf]
      %v2273 = vld [vmem:[#allocation3 + $0x74] sm:$0xf]
      %v2274 = vld [vmem:[#allocation3 + $0x78] sm:$0xf]
      %v2275 = vld [vmem:[#allocation3 + $0x7c] sm:$0xf]
      %v2276 = vld [vmem:[#allocation3 + $0x80] sm:$0xf]
      %v2277 = vld [vmem:[#allocation3 + $0x84] sm:$0xf]
      %v2278 = vld [vmem:[#allocation3 + $0x88] sm:$0xf]
      %v2279 = vld [vmem:[#allocation3 + $0x8c] sm:$0xf]
      %v2280 = vld [vmem:[#allocation3 + $0x90] sm:$0xf]
      %v2281 = vld [vmem:[#allocation3 + $0x94] sm:$0xf]
      %v2282 = vld [vmem:[#allocation3 + $0x98] sm:$0xf]
      %v2283 = vld [vmem:[#allocation3 + $0x9c] sm:$0xf]
      %v2284 = vld [vmem:[#allocation3 + $0xa0] sm:$0xf]
      %v2285 = vld [vmem:[#allocation3 + $0xa4] sm:$0xf]
      %v2286 = vld [vmem:[#allocation3 + $0xa8] sm:$0xf]
      %v2287 = vld [vmem:[#allocation3 + $0xac] sm:$0xf]
      %v2288 = vld [vmem:[#allocation3 + $0xb0] sm:$0xf]
      %v2289 = vld [vmem:[#allocation3 + $0xb4] sm:$0xf]
      %v2290 = vld [vmem:[#allocation3 + $0xb8] sm:$0xf]
      %v2291 = vld [vmem:[#allocation3 + $0xbc] sm:$0xf]
      %v2292 = vld [vmem:[#allocation3 + $0xc0] sm:$0xf]
      %v2293 = vld [vmem:[#allocation3 + $0xc4] sm:$0xf]
      %v2294 = vld [vmem:[#allocation3 + $0xc8] sm:$0xf]
      %v2295 = vld [vmem:[#allocation3 + $0xcc] sm:$0xf]
      %v2296 = vld [vmem:[#allocation3 + $0xd0] sm:$0xf]
      %v2297 = vld [vmem:[#allocation3 + $0xd4] sm:$0xf]
      %v2298 = vld [vmem:[#allocation3 + $0xd8] sm:$0xf]
      %v2299 = vld [vmem:[#allocation3 + $0xdc] sm:$0xf]
      %v2300 = vld [vmem:[#allocation3 + $0xe0] sm:$0xf]
      %v2301 = vld [vmem:[#allocation3 + $0xe4] sm:$0xf]
      %v2302 = vld [vmem:[#allocation3 + $0xe8] sm:$0xf]
      %v2303 = vld [vmem:[#allocation3 + $0xec] sm:$0xf]
      %v2304 = vld [vmem:[#allocation3 + $0xf0] sm:$0xf]
      %v2305 = vld [vmem:[#allocation3 + $0xf4] sm:$0xf]
      %v2306 = vld [vmem:[#allocation3 + $0xf8] sm:$0xf]
      %v2307 = vld [vmem:[#allocation3 + $0xfc] sm:$0xf]
      %v2308 = vld [vmem:[#allocation3 + $0x100] sm:$0xf]
      %v2309 = vld [vmem:[#allocation3 + $0x104] sm:$0xf]
      %v2310 = vld [vmem:[#allocation3 + $0x108] sm:$0xf]
      %v2311 = vld [vmem:[#allocation3 + $0x10c] sm:$0xf]
      %v2312 = vld [vmem:[#allocation3 + $0x110] sm:$0xf]
      %v2313 = vld [vmem:[#allocation3 + $0x114] sm:$0xf]
      %v2314 = vld [vmem:[#allocation3 + $0x118] sm:$0xf]
      %v2315 = vld [vmem:[#allocation3 + $0x11c] sm:$0xf]
      %v2316 = vld [vmem:[#allocation3 + $0x120] sm:$0xf]
      %v2317 = vld [vmem:[#allocation3 + $0x124] sm:$0xf]
      %v2318 = vld [vmem:[#allocation3 + $0x128] sm:$0xf]
      %v2319 = vld [vmem:[#allocation3 + $0x12c] sm:$0xf]
      %v2320 = vld [vmem:[#allocation3 + $0x130] sm:$0xf]
      %v2321 = vld [vmem:[#allocation3 + $0x134] sm:$0xf]
      %v2322 = vld [vmem:[#allocation3 + $0x138] sm:$0xf]
      %v2323 = vld [vmem:[#allocation3 + $0x13c] sm:$0xf]
      %v2324 = vld [vmem:[#allocation3 + $0x140] sm:$0xf]
      %v2325 = vld [vmem:[#allocation3 + $0x144] sm:$0xf]
      %v2326 = vld [vmem:[#allocation3 + $0x148] sm:$0xf]
      %v2327 = vld [vmem:[#allocation3 + $0x14c] sm:$0xf]
      %v2328 = vld [vmem:[#allocation3 + $0x150] sm:$0xf]
      %v2329 = vld [vmem:[#allocation3 + $0x154] sm:$0xf]
      %v2330 = vld [vmem:[#allocation3 + $0x158] sm:$0xf]
      %v2331 = vld [vmem:[#allocation3 + $0x15c] sm:$0xf]
      %v2332 = vld [vmem:[#allocation3 + $0x160] sm:$0xf]
      %v2333 = vld [vmem:[#allocation3 + $0x164] sm:$0xf]
      %v2334 = vld [vmem:[#allocation3 + $0x168] sm:$0xf]
      %v2335 = vld [vmem:[#allocation3 + $0x16c] sm:$0xf]
      %v2336 = vld [vmem:[#allocation3 + $0x170] sm:$0xf]
      %v2337 = vld [vmem:[#allocation3 + $0x174] sm:$0xf]
      %v2338 = vld [vmem:[#allocation3 + $0x178] sm:$0xf]
      %v2339 = vld [vmem:[#allocation3 + $0x17c] sm:$0xf]
      %v2340 = vld [vmem:[#allocation3 + $0x180] sm:$0xf]
      %v2341 = vld [vmem:[#allocation3 + $0x184] sm:$0xf]
      %v2342 = vld [vmem:[#allocation3 + $0x188] sm:$0xf]
      %v2343 = vld [vmem:[#allocation3 + $0x18c] sm:$0xf]
      %v2344 = vld [vmem:[#allocation3 + $0x190] sm:$0xf]
      %v2345 = vld [vmem:[#allocation3 + $0x194] sm:$0xf]
      %v2346 = vld [vmem:[#allocation3 + $0x198] sm:$0xf]
      %v2347 = vld [vmem:[#allocation3 + $0x19c] sm:$0xf]
      %v2348 = vld [vmem:[#allocation3 + $0x1a0] sm:$0xf]
      %v2349 = vld [vmem:[#allocation3 + $0x1a4] sm:$0xf]
      %v2350 = vld [vmem:[#allocation3 + $0x1a8] sm:$0xf]
      %v2351 = vld [vmem:[#allocation3 + $0x1ac] sm:$0xf]
      %v2352 = vld [vmem:[#allocation3 + $0x1b0] sm:$0xf]
      %v2353 = vld [vmem:[#allocation3 + $0x1b4] sm:$0xf]
      %v2354 = vld [vmem:[#allocation3 + $0x1b8] sm:$0xf]
      %v2355 = vld [vmem:[#allocation3 + $0x1bc] sm:$0xf]
      %v2356 = vld [vmem:[#allocation3 + $0x1c0] sm:$0xf]
      %v2357 = vld [vmem:[#allocation3 + $0x1c4] sm:$0xf]
      %v2358 = vld [vmem:[#allocation3 + $0x1c8] sm:$0xf]
      %v2359 = vld [vmem:[#allocation3 + $0x1cc] sm:$0xf]
      %v2360 = vld [vmem:[#allocation3 + $0x1d0] sm:$0xf]
      %v2361 = vld [vmem:[#allocation3 + $0x1d4] sm:$0xf]
      %v2362 = vld [vmem:[#allocation3 + $0x1d8] sm:$0xf]
      %v2363 = vld [vmem:[#allocation3 + $0x1dc] sm:$0xf]
      %v2364 = vld [vmem:[#allocation3 + $0x1e0] sm:$0xf]
      %v2365 = vld [vmem:[#allocation3 + $0x1e4] sm:$0xf]
      %v2366 = vld [vmem:[#allocation3 + $0x1e8] sm:$0xf]
      %v2367 = vld [vmem:[#allocation3 + $0x1ec] sm:$0xf]
      %v2368 = vld [vmem:[#allocation3 + $0x1f0] sm:$0xf]
      %v2369 = vld [vmem:[#allocation3 + $0x1f4] sm:$0xf]
      %v2370 = vld [vmem:[#allocation3 + $0x1f8] sm:$0xf]
      %v2371 = vld [vmem:[#allocation3 + $0x1fc] sm:$0xf]
      %v2372 = vld [vmem:[#allocation3 + $0x200] sm:$0xf]
      %v2373 = vld [vmem:[#allocation3 + $0x204] sm:$0xf]
      %v2374 = vld [vmem:[#allocation3 + $0x208] sm:$0xf]
      %v2375 = vld [vmem:[#allocation3 + $0x20c] sm:$0xf]
      %v2376 = vld [vmem:[#allocation3 + $0x210] sm:$0xf]
      %v2377 = vld [vmem:[#allocation3 + $0x214] sm:$0xf]
      %v2378 = vld [vmem:[#allocation3 + $0x218] sm:$0xf]
      %v2379 = vld [vmem:[#allocation3 + $0x21c] sm:$0xf]
      %v2380 = vld [vmem:[#allocation3 + $0x220] sm:$0xf]
      %v2381 = vld [vmem:[#allocation3 + $0x224] sm:$0xf]
      %v2382 = vld [vmem:[#allocation3 + $0x228] sm:$0xf]
      %v2383 = vld [vmem:[#allocation3 + $0x22c] sm:$0xf]
      %v2384 = vld [vmem:[#allocation3 + $0x230] sm:$0xf]
      %v2385 = vld [vmem:[#allocation3 + $0x234] sm:$0xf]
      %v2386 = vld [vmem:[#allocation3 + $0x238] sm:$0xf]
      %v2387 = vld [vmem:[#allocation3 + $0x23c] sm:$0xf]
      %v2388 = vld [vmem:[#allocation3 + $0x240] sm:$0xf]
      %v2389 = vld [vmem:[#allocation3 + $0x244] sm:$0xf]
      %v2390 = vld [vmem:[#allocation3 + $0x248] sm:$0xf]
      %v2391 = vld [vmem:[#allocation3 + $0x24c] sm:$0xf]
      %v2392 = vld [vmem:[#allocation3 + $0x250] sm:$0xf]
      %v2393 = vld [vmem:[#allocation3 + $0x254] sm:$0xf]
      %v2394 = vld [vmem:[#allocation3 + $0x258] sm:$0xf]
      %v2395 = vld [vmem:[#allocation3 + $0x25c] sm:$0xf]
      %v2396 = vld [vmem:[#allocation3 + $0x260] sm:$0xf]
      %v2397 = vld [vmem:[#allocation3 + $0x264] sm:$0xf]
      %v2398 = vld [vmem:[#allocation3 + $0x268] sm:$0xf]
      %v2399 = vld [vmem:[#allocation3 + $0x26c] sm:$0xf]
      %v2400 = vld [vmem:[#allocation3 + $0x270] sm:$0xf]
      %v2401 = vld [vmem:[#allocation3 + $0x274] sm:$0xf]
      %v2402 = vld [vmem:[#allocation3 + $0x278] sm:$0xf]
      %v2403 = vld [vmem:[#allocation3 + $0x27c] sm:$0xf]
      %v2404 = vld [vmem:[#allocation3 + $0x280] sm:$0xf]
      %v2405 = vld [vmem:[#allocation3 + $0x284] sm:$0xf]
      %v2406 = vld [vmem:[#allocation3 + $0x288] sm:$0xf]
      %v2407 = vld [vmem:[#allocation3 + $0x28c] sm:$0xf]
      %v2408 = vld [vmem:[#allocation3 + $0x290] sm:$0xf]
      %v2409 = vld [vmem:[#allocation3 + $0x294] sm:$0xf]
      %v2410 = vld [vmem:[#allocation3 + $0x298] sm:$0xf]
      %v2411 = vld [vmem:[#allocation3 + $0x29c] sm:$0xf]
      %v2412 = vld [vmem:[#allocation3 + $0x2a0] sm:$0xf]
      %v2413 = vld [vmem:[#allocation3 + $0x2a4] sm:$0xf]
      %v2414 = vld [vmem:[#allocation3 + $0x2a8] sm:$0xf]
      %v2415 = vld [vmem:[#allocation3 + $0x2ac] sm:$0xf]
      %v2416 = vld [vmem:[#allocation3 + $0x2b0] sm:$0xf]
      %v2417 = vld [vmem:[#allocation3 + $0x2b4] sm:$0xf]
      %v2418 = vld [vmem:[#allocation3 + $0x2b8] sm:$0xf]
      %v2419 = vld [vmem:[#allocation3 + $0x2bc] sm:$0xf]
      %v2420 = vld [vmem:[#allocation3 + $0x2c0] sm:$0xf]
      %v2421 = vld [vmem:[#allocation3 + $0x2c4] sm:$0xf]
      %v2422 = vld [vmem:[#allocation3 + $0x2c8] sm:$0xf]
      %v2423 = vld [vmem:[#allocation3 + $0x2cc] sm:$0xf]
      %v2424 = vld [vmem:[#allocation3 + $0x2d0] sm:$0xf]
      %v2425 = vld [vmem:[#allocation3 + $0x2d4] sm:$0xf]
      %v2426 = vld [vmem:[#allocation3 + $0x2d8] sm:$0xf]
      %v2427 = vld [vmem:[#allocation3 + $0x2dc] sm:$0xf]
      %v2428 = vld [vmem:[#allocation3 + $0x2e0] sm:$0xf]
      %v2429 = vld [vmem:[#allocation3 + $0x2e4] sm:$0xf]
      %v2430 = vld [vmem:[#allocation3 + $0x2e8] sm:$0xf]
      %v2431 = vld [vmem:[#allocation3 + $0x2ec] sm:$0xf]
      %v2432 = vld [vmem:[#allocation3 + $0x2f0] sm:$0xf]
      %v2433 = vld [vmem:[#allocation3 + $0x2f4] sm:$0xf]
      %v2434 = vld [vmem:[#allocation3 + $0x2f8] sm:$0xf]
      %v2435 = vld [vmem:[#allocation3 + $0x2fc] sm:$0xf]
      %v2436 = vld [vmem:[#allocation3 + $0x300] sm:$0xf]
      %v2437 = vld [vmem:[#allocation3 + $0x304] sm:$0xf]
      %v2438 = vld [vmem:[#allocation3 + $0x308] sm:$0xf]
      %v2439 = vld [vmem:[#allocation3 + $0x30c] sm:$0xf]
      %v2440 = vld [vmem:[#allocation3 + $0x310] sm:$0xf]
      %v2441 = vld [vmem:[#allocation3 + $0x314] sm:$0xf]
      %v2442 = vld [vmem:[#allocation3 + $0x318] sm:$0xf]
      %v2443 = vld [vmem:[#allocation3 + $0x31c] sm:$0xf]
      %v2444 = vld [vmem:[%s4] sm:$0xff]
      %v2445 = vld [vmem:[%s4 + $0x8] sm:$0xff]
      %v2446 = vld [vmem:[%s4 + $0x10] sm:$0xff]
      %v2447 = vld [vmem:[%s4 + $0x18] sm:$0xff]
      %v2448 = vld [vmem:[%s4 + $0x20] sm:$0xff]
      %v2449 = vld [vmem:[%s4 + $0x28] sm:$0xff]
      %v2450 = vld [vmem:[%s4 + $0x30] sm:$0xff]
      %v2451 = vld [vmem:[%s4 + $0x38] sm:$0xff]
      %2453 = vset.pattern.permute.xlu0 0
      %2454 = vperm.xlu0 %2453, %v2444
      %v2455 = vpop.permute.xlu0 %2454
      %2458 = vset.pattern.permute.xlu0 0
      %2459 = vperm.xlu0 %2458, %v2445
      %v2460 = vpop.permute.xlu0 %2459
      %2463 = vset.pattern.permute.xlu0 0
      %2464 = vperm.xlu0 %2463, %v2446
      %v2465 = vpop.permute.xlu0 %2464
      %2468 = vset.pattern.permute.xlu0 0
      %2469 = vperm.xlu0 %2468, %v2447
      %v2470 = vpop.permute.xlu0 %2469
      %2473 = vset.pattern.permute.xlu0 0
      %2474 = vperm.xlu0 %2473, %v2448
      %v2475 = vpop.permute.xlu0 %2474
      %2478 = vset.pattern.permute.xlu0 0
      %2479 = vperm.xlu0 %2478, %v2449
      %v2480 = vpop.permute.xlu0 %2479
      %2483 = vset.pattern.permute.xlu0 0
      %2484 = vperm.xlu0 %2483, %v2450
      %v2485 = vpop.permute.xlu0 %2484
      %2488 = vset.pattern.permute.xlu0 0
      %2489 = vperm.xlu0 %2488, %v2451
      %v2490 = vpop.permute.xlu0 %2489
      %v2548 = vunpack.c.l.b16 %v2188
      %v2549 = vunpack.c.h.b16 %v2188
      %v2550 = vunpack.c.l.b16 %v2189
      %v2551 = vunpack.c.h.b16 %v2189
      %v2552 = vunpack.c.l.b16 %v2190
      %v2553 = vunpack.c.h.b16 %v2190
      %v2554 = vunpack.c.l.b16 %v2191
      %v2555 = vunpack.c.h.b16 %v2191
      %v2556 = vunpack.c.l.b16 %v2192
      %v2557 = vunpack.c.h.b16 %v2192
      %v2558 = vunpack.c.l.b16 %v2193
      %v2559 = vunpack.c.h.b16 %v2193
      %v2560 = vunpack.c.l.b16 %v2194
      %v2561 = vunpack.c.l.b16 %v2195
      %v2562 = vunpack.c.h.b16 %v2195
      %v2563 = vunpack.c.l.b16 %v2196
      %v2564 = vunpack.c.h.b16 %v2196
      %v2565 = vunpack.c.l.b16 %v2197
      %v2566 = vunpack.c.h.b16 %v2197
      %v2567 = vunpack.c.l.b16 %v2198
      %v2568 = vunpack.c.h.b16 %v2198
      %v2569 = vunpack.c.l.b16 %v2199
      %v2570 = vunpack.c.h.b16 %v2199
      %v2571 = vunpack.c.l.b16 %v2200
      %v2572 = vunpack.c.h.b16 %v2200
      %v2573 = vunpack.c.l.b16 %v2201
      %v2574 = vunpack.c.l.b16 %v2202
      %v2575 = vunpack.c.h.b16 %v2202
      %v2576 = vunpack.c.l.b16 %v2203
      %v2577 = vunpack.c.h.b16 %v2203
      %v2578 = vunpack.c.l.b16 %v2204
      %v2579 = vunpack.c.h.b16 %v2204
      %v2580 = vunpack.c.l.b16 %v2205
      %v2581 = vunpack.c.h.b16 %v2205
      %v2582 = vunpack.c.l.b16 %v2206
      %v2583 = vunpack.c.h.b16 %v2206
      %v2584 = vunpack.c.l.b16 %v2207
      %v2585 = vunpack.c.h.b16 %v2207
      %v2586 = vunpack.c.l.b16 %v2208
      %v2587 = vunpack.c.l.b16 %v2209
      %v2588 = vunpack.c.h.b16 %v2209
      %v2589 = vunpack.c.l.b16 %v2210
      %v2590 = vunpack.c.h.b16 %v2210
      %v2591 = vunpack.c.l.b16 %v2211
      %v2592 = vunpack.c.h.b16 %v2211
      %v2593 = vunpack.c.l.b16 %v2212
      %v2594 = vunpack.c.h.b16 %v2212
      %v2595 = vunpack.c.l.b16 %v2213
      %v2596 = vunpack.c.h.b16 %v2213
      %v2597 = vunpack.c.l.b16 %v2214
      %v2598 = vunpack.c.h.b16 %v2214
      %v2599 = vunpack.c.l.b16 %v2215
      %v2600 = vunpack.c.l.b16 %v2216
      %v2601 = vunpack.c.h.b16 %v2216
      %v2602 = vunpack.c.l.b16 %v2217
      %v2603 = vunpack.c.h.b16 %v2217
      %v2604 = vunpack.c.l.b16 %v2218
      %v2605 = vunpack.c.h.b16 %v2218
      %v2606 = vunpack.c.l.b16 %v2219
      %v2607 = vunpack.c.h.b16 %v2219
      %v2608 = vunpack.c.l.b16 %v2220
      %v2609 = vunpack.c.h.b16 %v2220
      %v2610 = vunpack.c.l.b16 %v2221
      %v2611 = vunpack.c.h.b16 %v2221
      %v2612 = vunpack.c.l.b16 %v2222
      %v2613 = vunpack.c.l.b16 %v2223
      %v2614 = vunpack.c.h.b16 %v2223
      %v2615 = vunpack.c.l.b16 %v2224
      %v2616 = vunpack.c.h.b16 %v2224
      %v2617 = vunpack.c.l.b16 %v2225
      %v2618 = vunpack.c.h.b16 %v2225
      %v2619 = vunpack.c.l.b16 %v2226
      %v2620 = vunpack.c.h.b16 %v2226
      %v2621 = vunpack.c.l.b16 %v2227
      %v2622 = vunpack.c.h.b16 %v2227
      %v2623 = vunpack.c.l.b16 %v2228
      %v2624 = vunpack.c.h.b16 %v2228
      %v2625 = vunpack.c.l.b16 %v2229
      %v2626 = vunpack.c.l.b16 %v2230
      %v2627 = vunpack.c.h.b16 %v2230
      %v2628 = vunpack.c.l.b16 %v2231
      %v2629 = vunpack.c.h.b16 %v2231
      %v2630 = vunpack.c.l.b16 %v2232
      %v2631 = vunpack.c.h.b16 %v2232
      %v2632 = vunpack.c.l.b16 %v2233
      %v2633 = vunpack.c.h.b16 %v2233
      %v2634 = vunpack.c.l.b16 %v2234
      %v2635 = vunpack.c.h.b16 %v2234
      %v2636 = vunpack.c.l.b16 %v2235
      %v2637 = vunpack.c.h.b16 %v2235
      %v2638 = vunpack.c.l.b16 %v2236
      %v2639 = vunpack.c.l.b16 %v2237
      %v2640 = vunpack.c.h.b16 %v2237
      %v2641 = vunpack.c.l.b16 %v2238
      %v2642 = vunpack.c.h.b16 %v2238
      %v2643 = vunpack.c.l.b16 %v2239
      %v2644 = vunpack.c.h.b16 %v2239
      %v2645 = vunpack.c.l.b16 %v2240
      %v2646 = vunpack.c.h.b16 %v2240
      %v2647 = vunpack.c.l.b16 %v2241
      %v2648 = vunpack.c.h.b16 %v2241
      %v2649 = vunpack.c.l.b16 %v2242
      %v2650 = vunpack.c.h.b16 %v2242
      %v2651 = vunpack.c.l.b16 %v2243
      %v2652 = vpack.c.b16 %v2561, %v2548
      %v2653 = vpack.c.b16 %v2562, %v2549
      %v2654 = vpack.c.b16 %v2563, %v2550
      %v2655 = vpack.c.b16 %v2564, %v2551
      %v2656 = vpack.c.b16 %v2565, %v2552
      %v2657 = vpack.c.b16 %v2566, %v2553
      %v2658 = vpack.c.b16 %v2567, %v2554
      %v2659 = vpack.c.b16 %v2568, %v2555
      %v2660 = vpack.c.b16 %v2569, %v2556
      %v2661 = vpack.c.b16 %v2570, %v2557
      %v2662 = vpack.c.b16 %v2571, %v2558
      %v2663 = vpack.c.b16 %v2572, %v2559
      %v2664 = vpack.c.b16 %v2573, %v2560
      %v2665 = vpack.c.b16 %v2587, %v2574
      %v2666 = vpack.c.b16 %v2588, %v2575
      %v2667 = vpack.c.b16 %v2589, %v2576
      %v2668 = vpack.c.b16 %v2590, %v2577
      %v2669 = vpack.c.b16 %v2591, %v2578
      %v2670 = vpack.c.b16 %v2592, %v2579
      %v2671 = vpack.c.b16 %v2593, %v2580
      %v2672 = vpack.c.b16 %v2594, %v2581
      %v2673 = vpack.c.b16 %v2595, %v2582
      %v2674 = vpack.c.b16 %v2596, %v2583
      %v2675 = vpack.c.b16 %v2597, %v2584
      %v2676 = vpack.c.b16 %v2598, %v2585
      %v2677 = vpack.c.b16 %v2599, %v2586
      %v2678 = vpack.c.b16 %v2613, %v2600
      %v2679 = vpack.c.b16 %v2614, %v2601
      %v2680 = vpack.c.b16 %v2615, %v2602
      %v2681 = vpack.c.b16 %v2616, %v2603
      %v2682 = vpack.c.b16 %v2617, %v2604
      %v2683 = vpack.c.b16 %v2618, %v2605
      %v2684 = vpack.c.b16 %v2619, %v2606
      %v2685 = vpack.c.b16 %v2620, %v2607
      %v2686 = vpack.c.b16 %v2621, %v2608
      %v2687 = vpack.c.b16 %v2622, %v2609
      %v2688 = vpack.c.b16 %v2623, %v2610
      %v2689 = vpack.c.b16 %v2624, %v2611
      %v2690 = vpack.c.b16 %v2625, %v2612
      %v2691 = vpack.c.b16 %v2639, %v2626
      %v2692 = vpack.c.b16 %v2640, %v2627
      %v2693 = vpack.c.b16 %v2641, %v2628
      %v2694 = vpack.c.b16 %v2642, %v2629
      %v2695 = vpack.c.b16 %v2643, %v2630
      %v2696 = vpack.c.b16 %v2644, %v2631
      %v2697 = vpack.c.b16 %v2645, %v2632
      %v2698 = vpack.c.b16 %v2646, %v2633
      %v2699 = vpack.c.b16 %v2647, %v2634
      %v2700 = vpack.c.b16 %v2648, %v2635
      %v2701 = vpack.c.b16 %v2649, %v2636
      %v2702 = vpack.c.b16 %v2650, %v2637
      %v2703 = vpack.c.b16 %v2651, %v2638
      %v2952 = vunpack.c.l.b16 %v2244
      %v2953 = vunpack.c.l.b16 %v2245
      %v2954 = vunpack.c.l.b16 %v2246
      %v2955 = vunpack.c.l.b16 %v2247
      %v2956 = vunpack.c.l.b16 %v2248
      %v2957 = vunpack.c.l.b16 %v2249
      %v2958 = vunpack.c.l.b16 %v2250
      %v2959 = vunpack.c.l.b16 %v2251
      %v2960 = vunpack.c.l.b16 %v2252
      %v2961 = vunpack.c.l.b16 %v2253
      %v2962 = vunpack.c.l.b16 %v2254
      %v2963 = vunpack.c.l.b16 %v2255
      %v2964 = vunpack.c.l.b16 %v2256
      %v2965 = vunpack.c.l.b16 %v2257
      %v2966 = vunpack.c.l.b16 %v2258
      %v2967 = vunpack.c.l.b16 %v2259
      %v2968 = vunpack.c.l.b16 %v2260
      %v2969 = vunpack.c.l.b16 %v2261
      %v2970 = vunpack.c.l.b16 %v2262
      %v2971 = vunpack.c.l.b16 %v2263
      %v2972 = vunpack.c.l.b16 %v2264
      %v2973 = vunpack.c.l.b16 %v2265
      %v2974 = vunpack.c.l.b16 %v2266
      %v2975 = vunpack.c.l.b16 %v2267
      %v2976 = vunpack.c.l.b16 %v2268
      %v2977 = vunpack.c.l.b16 %v2269
      %v2978 = vunpack.c.l.b16 %v2270
      %v2979 = vunpack.c.l.b16 %v2271
      %v2980 = vunpack.c.l.b16 %v2272
      %v2981 = vunpack.c.l.b16 %v2273
      %v2982 = vunpack.c.l.b16 %v2274
      %v2983 = vunpack.c.l.b16 %v2275
      %v2984 = vunpack.c.l.b16 %v2276
      %v2985 = vunpack.c.l.b16 %v2277
      %v2986 = vunpack.c.l.b16 %v2278
      %v2987 = vunpack.c.l.b16 %v2279
      %v2988 = vunpack.c.l.b16 %v2280
      %v2989 = vunpack.c.l.b16 %v2281
      %v2990 = vunpack.c.l.b16 %v2282
      %v2991 = vunpack.c.l.b16 %v2283
      %v2992 = vunpack.c.l.b16 %v2284
      %v2993 = vunpack.c.l.b16 %v2285
      %v2994 = vunpack.c.l.b16 %v2286
      %v2995 = vunpack.c.l.b16 %v2287
      %v2996 = vunpack.c.l.b16 %v2288
      %v2997 = vunpack.c.l.b16 %v2289
      %v2998 = vunpack.c.l.b16 %v2290
      %v2999 = vunpack.c.l.b16 %v2291
      %v3000 = vunpack.c.l.b16 %v2292
      %v3001 = vunpack.c.l.b16 %v2293
      %v3002 = vunpack.c.l.b16 %v2294
      %v3003 = vunpack.c.l.b16 %v2295
      %v3004 = vunpack.c.l.b16 %v2296
      %v3005 = vunpack.c.l.b16 %v2297
      %v3006 = vunpack.c.l.b16 %v2298
      %v3007 = vunpack.c.l.b16 %v2299
      %v3008 = vunpack.c.l.b16 %v2300
      %v3009 = vunpack.c.l.b16 %v2301
      %v3010 = vunpack.c.l.b16 %v2302
      %v3011 = vunpack.c.l.b16 %v2303
      %v3012 = vunpack.c.l.b16 %v2304
      %v3013 = vunpack.c.l.b16 %v2305
      %v3014 = vunpack.c.l.b16 %v2306
      %v3015 = vunpack.c.l.b16 %v2307
      %v3016 = vunpack.c.l.b16 %v2308
      %v3017 = vunpack.c.l.b16 %v2309
      %v3018 = vunpack.c.l.b16 %v2310
      %v3019 = vunpack.c.l.b16 %v2311
      %v3020 = vunpack.c.l.b16 %v2312
      %v3021 = vunpack.c.l.b16 %v2313
      %v3022 = vunpack.c.l.b16 %v2314
      %v3023 = vunpack.c.l.b16 %v2315
      %v3024 = vunpack.c.l.b16 %v2316
      %v3025 = vunpack.c.l.b16 %v2317
      %v3026 = vunpack.c.l.b16 %v2318
      %v3027 = vunpack.c.l.b16 %v2319
      %v3028 = vunpack.c.l.b16 %v2320
      %v3029 = vunpack.c.l.b16 %v2321
      %v3030 = vunpack.c.l.b16 %v2322
      %v3031 = vunpack.c.l.b16 %v2323
      %v3032 = vunpack.c.l.b16 %v2324
      %v3033 = vunpack.c.l.b16 %v2325
      %v3034 = vunpack.c.l.b16 %v2326
      %v3035 = vunpack.c.l.b16 %v2327
      %v3036 = vunpack.c.l.b16 %v2328
      %v3037 = vunpack.c.l.b16 %v2329
      %v3038 = vunpack.c.l.b16 %v2330
      %v3039 = vunpack.c.l.b16 %v2331
      %v3040 = vunpack.c.l.b16 %v2332
      %v3041 = vunpack.c.l.b16 %v2333
      %v3042 = vunpack.c.l.b16 %v2334
      %v3043 = vunpack.c.l.b16 %v2335
      %v3044 = vunpack.c.l.b16 %v2336
      %v3045 = vunpack.c.l.b16 %v2337
      %v3046 = vunpack.c.l.b16 %v2338
      %v3047 = vunpack.c.l.b16 %v2339
      %v3048 = vunpack.c.l.b16 %v2340
      %v3049 = vunpack.c.l.b16 %v2341
      %v3050 = vunpack.c.l.b16 %v2342
      %v3051 = vunpack.c.l.b16 %v2343
      %v3052 = vunpack.c.l.b16 %v2344
      %v3053 = vunpack.c.l.b16 %v2345
      %v3054 = vunpack.c.l.b16 %v2346
      %v3055 = vunpack.c.l.b16 %v2347
      %v3056 = vunpack.c.l.b16 %v2348
      %v3057 = vunpack.c.l.b16 %v2349
      %v3058 = vunpack.c.l.b16 %v2350
      %v3059 = vunpack.c.l.b16 %v2351
      %v3060 = vunpack.c.l.b16 %v2352
      %v3061 = vunpack.c.l.b16 %v2353
      %v3062 = vunpack.c.l.b16 %v2354
      %v3063 = vunpack.c.l.b16 %v2355
      %v3064 = vunpack.c.l.b16 %v2356
      %v3065 = vunpack.c.l.b16 %v2357
      %v3066 = vunpack.c.l.b16 %v2358
      %v3067 = vunpack.c.l.b16 %v2359
      %v3068 = vunpack.c.l.b16 %v2360
      %v3069 = vunpack.c.l.b16 %v2361
      %v3070 = vunpack.c.l.b16 %v2362
      %v3071 = vunpack.c.l.b16 %v2363
      %v3072 = vunpack.c.l.b16 %v2364
      %v3073 = vunpack.c.l.b16 %v2365
      %v3074 = vunpack.c.l.b16 %v2366
      %v3075 = vunpack.c.l.b16 %v2367
      %v3076 = vunpack.c.l.b16 %v2368
      %v3077 = vunpack.c.l.b16 %v2369
      %v3078 = vunpack.c.l.b16 %v2370
      %v3079 = vunpack.c.l.b16 %v2371
      %v3080 = vunpack.c.l.b16 %v2372
      %v3081 = vunpack.c.l.b16 %v2373
      %v3082 = vunpack.c.l.b16 %v2374
      %v3083 = vunpack.c.l.b16 %v2375
      %v3084 = vunpack.c.l.b16 %v2376
      %v3085 = vunpack.c.l.b16 %v2377
      %v3086 = vunpack.c.l.b16 %v2378
      %v3087 = vunpack.c.l.b16 %v2379
      %v3088 = vunpack.c.l.b16 %v2380
      %v3089 = vunpack.c.l.b16 %v2381
      %v3090 = vunpack.c.l.b16 %v2382
      %v3091 = vunpack.c.l.b16 %v2383
      %v3092 = vunpack.c.l.b16 %v2384
      %v3093 = vunpack.c.l.b16 %v2385
      %v3094 = vunpack.c.l.b16 %v2386
      %v3095 = vunpack.c.l.b16 %v2387
      %v3096 = vunpack.c.l.b16 %v2388
      %v3097 = vunpack.c.l.b16 %v2389
      %v3098 = vunpack.c.l.b16 %v2390
      %v3099 = vunpack.c.l.b16 %v2391
      %v3100 = vunpack.c.l.b16 %v2392
      %v3101 = vunpack.c.l.b16 %v2393
      %v3102 = vunpack.c.l.b16 %v2394
      %v3103 = vunpack.c.l.b16 %v2395
      %v3104 = vunpack.c.l.b16 %v2396
      %v3105 = vunpack.c.l.b16 %v2397
      %v3106 = vunpack.c.l.b16 %v2398
      %v3107 = vunpack.c.l.b16 %v2399
      %v3108 = vunpack.c.l.b16 %v2400
      %v3109 = vunpack.c.l.b16 %v2401
      %v3110 = vunpack.c.l.b16 %v2402
      %v3111 = vunpack.c.l.b16 %v2403
      %v3112 = vunpack.c.l.b16 %v2404
      %v3113 = vunpack.c.l.b16 %v2405
      %v3114 = vunpack.c.l.b16 %v2406
      %v3115 = vunpack.c.l.b16 %v2407
      %v3116 = vunpack.c.l.b16 %v2408
      %v3117 = vunpack.c.l.b16 %v2409
      %v3118 = vunpack.c.l.b16 %v2410
      %v3119 = vunpack.c.l.b16 %v2411
      %v3120 = vunpack.c.l.b16 %v2412
      %v3121 = vunpack.c.l.b16 %v2413
      %v3122 = vunpack.c.l.b16 %v2414
      %v3123 = vunpack.c.l.b16 %v2415
      %v3124 = vunpack.c.l.b16 %v2416
      %v3125 = vunpack.c.l.b16 %v2417
      %v3126 = vunpack.c.l.b16 %v2418
      %v3127 = vunpack.c.l.b16 %v2419
      %v3128 = vunpack.c.l.b16 %v2420
      %v3129 = vunpack.c.l.b16 %v2421
      %v3130 = vunpack.c.l.b16 %v2422
      %v3131 = vunpack.c.l.b16 %v2423
      %v3132 = vunpack.c.l.b16 %v2424
      %v3133 = vunpack.c.l.b16 %v2425
      %v3134 = vunpack.c.l.b16 %v2426
      %v3135 = vunpack.c.l.b16 %v2427
      %v3136 = vunpack.c.l.b16 %v2428
      %v3137 = vunpack.c.l.b16 %v2429
      %v3138 = vunpack.c.l.b16 %v2430
      %v3139 = vunpack.c.l.b16 %v2431
      %v3140 = vunpack.c.l.b16 %v2432
      %v3141 = vunpack.c.l.b16 %v2433
      %v3142 = vunpack.c.l.b16 %v2434
      %v3143 = vunpack.c.l.b16 %v2435
      %v3144 = vunpack.c.l.b16 %v2436
      %v3145 = vunpack.c.l.b16 %v2437
      %v3146 = vunpack.c.l.b16 %v2438
      %v3147 = vunpack.c.l.b16 %v2439
      %v3148 = vunpack.c.l.b16 %v2440
      %v3149 = vunpack.c.l.b16 %v2441
      %v3150 = vunpack.c.l.b16 %v2442
      %v3151 = vunpack.c.l.b16 %v2443
      %v3152 = vpack.c.b16 %v2953, %v2952
      %v3153 = vpack.c.b16 %v2955, %v2954
      %v3154 = vpack.c.b16 %v2957, %v2956
      %v3155 = vpack.c.b16 %v2959, %v2958
      %v3156 = vpack.c.b16 %v2961, %v2960
      %v3157 = vpack.c.b16 %v2963, %v2962
      %v3158 = vpack.c.b16 %v2965, %v2964
      %v3159 = vpack.c.b16 %v2967, %v2966
      %v3160 = vpack.c.b16 %v2969, %v2968
      %v3161 = vpack.c.b16 %v2971, %v2970
      %v3162 = vpack.c.b16 %v2973, %v2972
      %v3163 = vpack.c.b16 %v2975, %v2974
      %v3164 = vpack.c.b16 %v2977, %v2976
      %v3165 = vpack.c.b16 %v2979, %v2978
      %v3166 = vpack.c.b16 %v2981, %v2980
      %v3167 = vpack.c.b16 %v2983, %v2982
      %v3168 = vpack.c.b16 %v2985, %v2984
      %v3169 = vpack.c.b16 %v2987, %v2986
      %v3170 = vpack.c.b16 %v2989, %v2988
      %v3171 = vpack.c.b16 %v2991, %v2990
      %v3172 = vpack.c.b16 %v2993, %v2992
      %v3173 = vpack.c.b16 %v2995, %v2994
      %v3174 = vpack.c.b16 %v2997, %v2996
      %v3175 = vpack.c.b16 %v2999, %v2998
      %v3176 = vpack.c.b16 %v3001, %v3000
      %v3177 = vpack.c.b16 %v3003, %v3002
      %v3178 = vpack.c.b16 %v3005, %v3004
      %v3179 = vpack.c.b16 %v3007, %v3006
      %v3180 = vpack.c.b16 %v3009, %v3008
      %v3181 = vpack.c.b16 %v3011, %v3010
      %v3182 = vpack.c.b16 %v3013, %v3012
      %v3183 = vpack.c.b16 %v3015, %v3014
      %v3184 = vpack.c.b16 %v3017, %v3016
      %v3185 = vpack.c.b16 %v3019, %v3018
      %v3186 = vpack.c.b16 %v3021, %v3020
      %v3187 = vpack.c.b16 %v3023, %v3022
      %v3188 = vpack.c.b16 %v3025, %v3024
      %v3189 = vpack.c.b16 %v3027, %v3026
      %v3190 = vpack.c.b16 %v3029, %v3028
      %v3191 = vpack.c.b16 %v3031, %v3030
      %v3192 = vpack.c.b16 %v3033, %v3032
      %v3193 = vpack.c.b16 %v3035, %v3034
      %v3194 = vpack.c.b16 %v3037, %v3036
      %v3195 = vpack.c.b16 %v3039, %v3038
      %v3196 = vpack.c.b16 %v3041, %v3040
      %v3197 = vpack.c.b16 %v3043, %v3042
      %v3198 = vpack.c.b16 %v3045, %v3044
      %v3199 = vpack.c.b16 %v3047, %v3046
      %v3200 = vpack.c.b16 %v3049, %v3048
      %v3201 = vpack.c.b16 %v3051, %v3050
      %v3202 = vpack.c.b16 %v3053, %v3052
      %v3203 = vpack.c.b16 %v3055, %v3054
      %v3204 = vpack.c.b16 %v3057, %v3056
      %v3205 = vpack.c.b16 %v3059, %v3058
      %v3206 = vpack.c.b16 %v3061, %v3060
      %v3207 = vpack.c.b16 %v3063, %v3062
      %v3208 = vpack.c.b16 %v3065, %v3064
      %v3209 = vpack.c.b16 %v3067, %v3066
      %v3210 = vpack.c.b16 %v3069, %v3068
      %v3211 = vpack.c.b16 %v3071, %v3070
      %v3212 = vpack.c.b16 %v3073, %v3072
      %v3213 = vpack.c.b16 %v3075, %v3074
      %v3214 = vpack.c.b16 %v3077, %v3076
      %v3215 = vpack.c.b16 %v3079, %v3078
      %v3216 = vpack.c.b16 %v3081, %v3080
      %v3217 = vpack.c.b16 %v3083, %v3082
      %v3218 = vpack.c.b16 %v3085, %v3084
      %v3219 = vpack.c.b16 %v3087, %v3086
      %v3220 = vpack.c.b16 %v3089, %v3088
      %v3221 = vpack.c.b16 %v3091, %v3090
      %v3222 = vpack.c.b16 %v3093, %v3092
      %v3223 = vpack.c.b16 %v3095, %v3094
      %v3224 = vpack.c.b16 %v3097, %v3096
      %v3225 = vpack.c.b16 %v3099, %v3098
      %v3226 = vpack.c.b16 %v3101, %v3100
      %v3227 = vpack.c.b16 %v3103, %v3102
      %v3228 = vpack.c.b16 %v3105, %v3104
      %v3229 = vpack.c.b16 %v3107, %v3106
      %v3230 = vpack.c.b16 %v3109, %v3108
      %v3231 = vpack.c.b16 %v3111, %v3110
      %v3232 = vpack.c.b16 %v3113, %v3112
      %v3233 = vpack.c.b16 %v3115, %v3114
      %v3234 = vpack.c.b16 %v3117, %v3116
      %v3235 = vpack.c.b16 %v3119, %v3118
      %v3236 = vpack.c.b16 %v3121, %v3120
      %v3237 = vpack.c.b16 %v3123, %v3122
      %v3238 = vpack.c.b16 %v3125, %v3124
      %v3239 = vpack.c.b16 %v3127, %v3126
      %v3240 = vpack.c.b16 %v3129, %v3128
      %v3241 = vpack.c.b16 %v3131, %v3130
      %v3242 = vpack.c.b16 %v3133, %v3132
      %v3243 = vpack.c.b16 %v3135, %v3134
      %v3244 = vpack.c.b16 %v3137, %v3136
      %v3245 = vpack.c.b16 %v3139, %v3138
      %v3246 = vpack.c.b16 %v3141, %v3140
      %v3247 = vpack.c.b16 %v3143, %v3142
      %v3248 = vpack.c.b16 %v3145, %v3144
      %v3249 = vpack.c.b16 %v3147, %v3146
      %v3250 = vpack.c.b16 %v3149, %v3148
      %v3251 = vpack.c.b16 %v3151, %v3150
      %vm3352 = vcmask 523264
      %v3354 = vsel %vm3352, %v2664, 0
      %v3357 = vsel %vm3352, %v2677, 0
      %v3360 = vsel %vm3352, %v2690, 0
      %v3363 = vsel %vm3352, %v2703, 0
      %3365 = vmatpush.bf16.msra.mxu0 %v3159
      %3366 = vmatpush.bf16.msra.mxu0 %v3158
      %3367 = vmatpush.bf16.msra.mxu0 %v3157
      %3368 = vmatpush.bf16.msra.mxu0 %v3156
      %3369 = vmatpush.bf16.msra.mxu0 %v3155
      %3370 = vmatpush.bf16.msra.mxu0 %v3154
      %3371 = vmatpush.bf16.msra.mxu0 %v3153
      %3372 = vmatpush.bf16.msra.mxu0 %v3152
      %3373 = vmatmul.bf16.gmra.mxu0 %v2652
      %v3374 = vpop.f32.mrf.mxu0
      %v3375 = vadd.f32 %v2455, %v3374
      %v3376 = vpop.f32.mrf.mxu0
      %v3377 = vadd.f32 %v2460, %v3376
      %3378 = vmatmul.bf16.gmra.mxu0 %v2665
      %v3379 = vpop.f32.mrf.mxu0
      %v3380 = vadd.f32 %v2465, %v3379
      %v3381 = vpop.f32.mrf.mxu0
      %v3382 = vadd.f32 %v2470, %v3381
      %3383 = vmatmul.bf16.gmra.mxu0 %v2678
      %v3384 = vpop.f32.mrf.mxu0
      %v3385 = vadd.f32 %v2475, %v3384
      %v3386 = vpop.f32.mrf.mxu0
      %v3387 = vadd.f32 %v2480, %v3386
      %3388 = vmatmul.bf16.gmra.mxu0 %v2691
      %v3389 = vpop.f32.mrf.mxu0
      %v3390 = vadd.f32 %v2485, %v3389
      %v3391 = vpop.f32.mrf.mxu0
      %v3392 = vadd.f32 %v2490, %v3391
      %3393 = vdwg.mxu0
      %3394 = vmatpush.bf16.msra.mxu0 %v3167
      %3395 = vmatpush.bf16.msra.mxu0 %v3166
      %3396 = vmatpush.bf16.msra.mxu0 %v3165
      %3397 = vmatpush.bf16.msra.mxu0 %v3164
      %3398 = vmatpush.bf16.msra.mxu0 %v3163
      %3399 = vmatpush.bf16.msra.mxu0 %v3162
      %3400 = vmatpush.bf16.msra.mxu0 %v3161
      %3401 = vmatpush.bf16.msra.mxu0 %v3160
      %3402 = vmatmul.bf16.gmra.mxu0 %v2653
      %v3403 = vpop.f32.mrf.mxu0
      %v3404 = vadd.f32 %v3375, %v3403
      %v3405 = vpop.f32.mrf.mxu0
      %v3406 = vadd.f32 %v3377, %v3405
      %3407 = vmatmul.bf16.gmra.mxu0 %v2666
      %v3408 = vpop.f32.mrf.mxu0
      %v3409 = vadd.f32 %v3380, %v3408
      %v3410 = vpop.f32.mrf.mxu0
      %v3411 = vadd.f32 %v3382, %v3410
      %3412 = vmatmul.bf16.gmra.mxu0 %v2679
      %v3413 = vpop.f32.mrf.mxu0
      %v3414 = vadd.f32 %v3385, %v3413
      %v3415 = vpop.f32.mrf.mxu0
      %v3416 = vadd.f32 %v3387, %v3415
      %3417 = vmatmul.bf16.gmra.mxu0 %v2692
      %v3418 = vpop.f32.mrf.mxu0
      %v3419 = vadd.f32 %v3390, %v3418
      %v3420 = vpop.f32.mrf.mxu0
      %v3421 = vadd.f32 %v3392, %v3420
      %3422 = vdwg.mxu0
      %3423 = vmatpush.bf16.msra.mxu0 %v3175
      %3424 = vmatpush.bf16.msra.mxu0 %v3174
      %3425 = vmatpush.bf16.msra.mxu0 %v3173
      %3426 = vmatpush.bf16.msra.mxu0 %v3172
      %3427 = vmatpush.bf16.msra.mxu0 %v3171
      %3428 = vmatpush.bf16.msra.mxu0 %v3170
      %3429 = vmatpush.bf16.msra.mxu0 %v3169
      %3430 = vmatpush.bf16.msra.mxu0 %v3168
      %3431 = vmatmul.bf16.gmra.mxu0 %v2654
      %v3432 = vpop.f32.mrf.mxu0
      %v3433 = vadd.f32 %v3404, %v3432
      %v3434 = vpop.f32.mrf.mxu0
      %v3435 = vadd.f32 %v3406, %v3434
      %3436 = vmatmul.bf16.gmra.mxu0 %v2667
      %v3437 = vpop.f32.mrf.mxu0
      %v3438 = vadd.f32 %v3409, %v3437
      %v3439 = vpop.f32.mrf.mxu0
      %v3440 = vadd.f32 %v3411, %v3439
      %3441 = vmatmul.bf16.gmra.mxu0 %v2680
      %v3442 = vpop.f32.mrf.mxu0
      %v3443 = vadd.f32 %v3414, %v3442
      %v3444 = vpop.f32.mrf.mxu0
      %v3445 = vadd.f32 %v3416, %v3444
      %3446 = vmatmul.bf16.gmra.mxu0 %v2693
      %v3447 = vpop.f32.mrf.mxu0
      %v3448 = vadd.f32 %v3419, %v3447
      %v3449 = vpop.f32.mrf.mxu0
      %v3450 = vadd.f32 %v3421, %v3449
      %3451 = vdwg.mxu0
      %3452 = vmatpush.bf16.msra.mxu0 %v3183
      %3453 = vmatpush.bf16.msra.mxu0 %v3182
      %3454 = vmatpush.bf16.msra.mxu0 %v3181
      %3455 = vmatpush.bf16.msra.mxu0 %v3180
      %3456 = vmatpush.bf16.msra.mxu0 %v3179
      %3457 = vmatpush.bf16.msra.mxu0 %v3178
      %3458 = vmatpush.bf16.msra.mxu0 %v3177
      %3459 = vmatpush.bf16.msra.mxu0 %v3176
      %3460 = vmatmul.bf16.gmra.mxu0 %v2655
      %v3461 = vpop.f32.mrf.mxu0
      %v3462 = vadd.f32 %v3433, %v3461
      %v3463 = vpop.f32.mrf.mxu0
      %v3464 = vadd.f32 %v3435, %v3463
      %3465 = vmatmul.bf16.gmra.mxu0 %v2668
      %v3466 = vpop.f32.mrf.mxu0
      %v3467 = vadd.f32 %v3438, %v3466
      %v3468 = vpop.f32.mrf.mxu0
      %v3469 = vadd.f32 %v3440, %v3468
      %3470 = vmatmul.bf16.gmra.mxu0 %v2681
      %v3471 = vpop.f32.mrf.mxu0
      %v3472 = vadd.f32 %v3443, %v3471
      %v3473 = vpop.f32.mrf.mxu0
      %v3474 = vadd.f32 %v3445, %v3473
      %3475 = vmatmul.bf16.gmra.mxu0 %v2694
      %v3476 = vpop.f32.mrf.mxu0
      %v3477 = vadd.f32 %v3448, %v3476
      %v3478 = vpop.f32.mrf.mxu0
      %v3479 = vadd.f32 %v3450, %v3478
      %3480 = vdwg.mxu0
      %3481 = vmatpush.bf16.msra.mxu0 %v3191
      %3482 = vmatpush.bf16.msra.mxu0 %v3190
      %3483 = vmatpush.bf16.msra.mxu0 %v3189
      %3484 = vmatpush.bf16.msra.mxu0 %v3188
      %3485 = vmatpush.bf16.msra.mxu0 %v3187
      %3486 = vmatpush.bf16.msra.mxu0 %v3186
      %3487 = vmatpush.bf16.msra.mxu0 %v3185
      %3488 = vmatpush.bf16.msra.mxu0 %v3184
      %3489 = vmatmul.bf16.gmra.mxu0 %v2656
      %v3490 = vpop.f32.mrf.mxu0
      %v3491 = vadd.f32 %v3462, %v3490
      %v3492 = vpop.f32.mrf.mxu0
      %v3493 = vadd.f32 %v3464, %v3492
      %3494 = vmatmul.bf16.gmra.mxu0 %v2669
      %v3495 = vpop.f32.mrf.mxu0
      %v3496 = vadd.f32 %v3467, %v3495
      %v3497 = vpop.f32.mrf.mxu0
      %v3498 = vadd.f32 %v3469, %v3497
      %3499 = vmatmul.bf16.gmra.mxu0 %v2682
      %v3500 = vpop.f32.mrf.mxu0
      %v3501 = vadd.f32 %v3472, %v3500
      %v3502 = vpop.f32.mrf.mxu0
      %v3503 = vadd.f32 %v3474, %v3502
      %3504 = vmatmul.bf16.gmra.mxu0 %v2695
      %v3505 = vpop.f32.mrf.mxu0
      %v3506 = vadd.f32 %v3477, %v3505
      %v3507 = vpop.f32.mrf.mxu0
      %v3508 = vadd.f32 %v3479, %v3507
      %3509 = vdwg.mxu0
      %3510 = vmatpush.bf16.msra.mxu0 %v3199
      %3511 = vmatpush.bf16.msra.mxu0 %v3198
      %3512 = vmatpush.bf16.msra.mxu0 %v3197
      %3513 = vmatpush.bf16.msra.mxu0 %v3196
      %3514 = vmatpush.bf16.msra.mxu0 %v3195
      %3515 = vmatpush.bf16.msra.mxu0 %v3194
      %3516 = vmatpush.bf16.msra.mxu0 %v3193
      %3517 = vmatpush.bf16.msra.mxu0 %v3192
      %3518 = vmatmul.bf16.gmra.mxu0 %v2657
      %v3519 = vpop.f32.mrf.mxu0
      %v3520 = vadd.f32 %v3491, %v3519
      %v3521 = vpop.f32.mrf.mxu0
      %v3522 = vadd.f32 %v3493, %v3521
      %3523 = vmatmul.bf16.gmra.mxu0 %v2670
      %v3524 = vpop.f32.mrf.mxu0
      %v3525 = vadd.f32 %v3496, %v3524
      %v3526 = vpop.f32.mrf.mxu0
      %v3527 = vadd.f32 %v3498, %v3526
      %3528 = vmatmul.bf16.gmra.mxu0 %v2683
      %v3529 = vpop.f32.mrf.mxu0
      %v3530 = vadd.f32 %v3501, %v3529
      %v3531 = vpop.f32.mrf.mxu0
      %v3532 = vadd.f32 %v3503, %v3531
      %3533 = vmatmul.bf16.gmra.mxu0 %v2696
      %v3534 = vpop.f32.mrf.mxu0
      %v3535 = vadd.f32 %v3506, %v3534
      %v3536 = vpop.f32.mrf.mxu0
      %v3537 = vadd.f32 %v3508, %v3536
      %3538 = vdwg.mxu0
      %3539 = vmatpush.bf16.msra.mxu0 %v3207
      %3540 = vmatpush.bf16.msra.mxu0 %v3206
      %3541 = vmatpush.bf16.msra.mxu0 %v3205
      %3542 = vmatpush.bf16.msra.mxu0 %v3204
      %3543 = vmatpush.bf16.msra.mxu0 %v3203
      %3544 = vmatpush.bf16.msra.mxu0 %v3202
      %3545 = vmatpush.bf16.msra.mxu0 %v3201
      %3546 = vmatpush.bf16.msra.mxu0 %v3200
      %3547 = vmatmul.bf16.gmra.mxu0 %v2658
      %v3548 = vpop.f32.mrf.mxu0
      %v3549 = vadd.f32 %v3520, %v3548
      %v3550 = vpop.f32.mrf.mxu0
      %v3551 = vadd.f32 %v3522, %v3550
      %3552 = vmatmul.bf16.gmra.mxu0 %v2671
      %v3553 = vpop.f32.mrf.mxu0
      %v3554 = vadd.f32 %v3525, %v3553
      %v3555 = vpop.f32.mrf.mxu0
      %v3556 = vadd.f32 %v3527, %v3555
      %3557 = vmatmul.bf16.gmra.mxu0 %v2684
      %v3558 = vpop.f32.mrf.mxu0
      %v3559 = vadd.f32 %v3530, %v3558
      %v3560 = vpop.f32.mrf.mxu0
      %v3561 = vadd.f32 %v3532, %v3560
      %3562 = vmatmul.bf16.gmra.mxu0 %v2697
      %v3563 = vpop.f32.mrf.mxu0
      %v3564 = vadd.f32 %v3535, %v3563
      %v3565 = vpop.f32.mrf.mxu0
      %v3566 = vadd.f32 %v3537, %v3565
      %3567 = vdwg.mxu0
      %3568 = vmatpush.bf16.msra.mxu0 %v3215
      %3569 = vmatpush.bf16.msra.mxu0 %v3214
      %3570 = vmatpush.bf16.msra.mxu0 %v3213
      %3571 = vmatpush.bf16.msra.mxu0 %v3212
      %3572 = vmatpush.bf16.msra.mxu0 %v3211
      %3573 = vmatpush.bf16.msra.mxu0 %v3210
      %3574 = vmatpush.bf16.msra.mxu0 %v3209
      %3575 = vmatpush.bf16.msra.mxu0 %v3208
      %3576 = vmatmul.bf16.gmra.mxu0 %v2659
      %v3577 = vpop.f32.mrf.mxu0
      %v3578 = vadd.f32 %v3549, %v3577
      %v3579 = vpop.f32.mrf.mxu0
      %v3580 = vadd.f32 %v3551, %v3579
      %3581 = vmatmul.bf16.gmra.mxu0 %v2672
      %v3582 = vpop.f32.mrf.mxu0
      %v3583 = vadd.f32 %v3554, %v3582
      %v3584 = vpop.f32.mrf.mxu0
      %v3585 = vadd.f32 %v3556, %v3584
      %3586 = vmatmul.bf16.gmra.mxu0 %v2685
      %v3587 = vpop.f32.mrf.mxu0
      %v3588 = vadd.f32 %v3559, %v3587
      %v3589 = vpop.f32.mrf.mxu0
      %v3590 = vadd.f32 %v3561, %v3589
      %3591 = vmatmul.bf16.gmra.mxu0 %v2698
      %v3592 = vpop.f32.mrf.mxu0
      %v3593 = vadd.f32 %v3564, %v3592
      %v3594 = vpop.f32.mrf.mxu0
      %v3595 = vadd.f32 %v3566, %v3594
      %3596 = vdwg.mxu0
      %3597 = vmatpush.bf16.msra.mxu0 %v3223
      %3598 = vmatpush.bf16.msra.mxu0 %v3222
      %3599 = vmatpush.bf16.msra.mxu0 %v3221
      %3600 = vmatpush.bf16.msra.mxu0 %v3220
      %3601 = vmatpush.bf16.msra.mxu0 %v3219
      %3602 = vmatpush.bf16.msra.mxu0 %v3218
      %3603 = vmatpush.bf16.msra.mxu0 %v3217
      %3604 = vmatpush.bf16.msra.mxu0 %v3216
      %3605 = vmatmul.bf16.gmra.mxu0 %v2660
      %v3606 = vpop.f32.mrf.mxu0
      %v3607 = vadd.f32 %v3578, %v3606
      %v3608 = vpop.f32.mrf.mxu0
      %v3609 = vadd.f32 %v3580, %v3608
      %3610 = vmatmul.bf16.gmra.mxu0 %v2673
      %v3611 = vpop.f32.mrf.mxu0
      %v3612 = vadd.f32 %v3583, %v3611
      %v3613 = vpop.f32.mrf.mxu0
      %v3614 = vadd.f32 %v3585, %v3613
      %3615 = vmatmul.bf16.gmra.mxu0 %v2686
      %v3616 = vpop.f32.mrf.mxu0
      %v3617 = vadd.f32 %v3588, %v3616
      %v3618 = vpop.f32.mrf.mxu0
      %v3619 = vadd.f32 %v3590, %v3618
      %3620 = vmatmul.bf16.gmra.mxu0 %v2699
      %v3621 = vpop.f32.mrf.mxu0
      %v3622 = vadd.f32 %v3593, %v3621
      %v3623 = vpop.f32.mrf.mxu0
      %v3624 = vadd.f32 %v3595, %v3623
      %3625 = vdwg.mxu0
      %3626 = vmatpush.bf16.msra.mxu0 %v3231
      %3627 = vmatpush.bf16.msra.mxu0 %v3230
      %3628 = vmatpush.bf16.msra.mxu0 %v3229
      %3629 = vmatpush.bf16.msra.mxu0 %v3228
      %3630 = vmatpush.bf16.msra.mxu0 %v3227
      %3631 = vmatpush.bf16.msra.mxu0 %v3226
      %3632 = vmatpush.bf16.msra.mxu0 %v3225
      %3633 = vmatpush.bf16.msra.mxu0 %v3224
      %3634 = vmatmul.bf16.gmra.mxu0 %v2661
      %v3635 = vpop.f32.mrf.mxu0
      %v3636 = vadd.f32 %v3607, %v3635
      %v3637 = vpop.f32.mrf.mxu0
      %v3638 = vadd.f32 %v3609, %v3637
      %3639 = vmatmul.bf16.gmra.mxu0 %v2674
      %v3640 = vpop.f32.mrf.mxu0
      %v3641 = vadd.f32 %v3612, %v3640
      %v3642 = vpop.f32.mrf.mxu0
      %v3643 = vadd.f32 %v3614, %v3642
      %3644 = vmatmul.bf16.gmra.mxu0 %v2687
      %v3645 = vpop.f32.mrf.mxu0
      %v3646 = vadd.f32 %v3617, %v3645
      %v3647 = vpop.f32.mrf.mxu0
      %v3648 = vadd.f32 %v3619, %v3647
      %3649 = vmatmul.bf16.gmra.mxu0 %v2700
      %v3650 = vpop.f32.mrf.mxu0
      %v3651 = vadd.f32 %v3622, %v3650
      %v3652 = vpop.f32.mrf.mxu0
      %v3653 = vadd.f32 %v3624, %v3652
      %3654 = vdwg.mxu0
      %3655 = vmatpush.bf16.msra.mxu0 %v3239
      %3656 = vmatpush.bf16.msra.mxu0 %v3238
      %3657 = vmatpush.bf16.msra.mxu0 %v3237
      %3658 = vmatpush.bf16.msra.mxu0 %v3236
      %3659 = vmatpush.bf16.msra.mxu0 %v3235
      %3660 = vmatpush.bf16.msra.mxu0 %v3234
      %3661 = vmatpush.bf16.msra.mxu0 %v3233
      %3662 = vmatpush.bf16.msra.mxu0 %v3232
      %3663 = vmatmul.bf16.gmra.mxu0 %v2662
      %v3664 = vpop.f32.mrf.mxu0
      %v3665 = vadd.f32 %v3636, %v3664
      %v3666 = vpop.f32.mrf.mxu0
      %v3667 = vadd.f32 %v3638, %v3666
      %3668 = vmatmul.bf16.gmra.mxu0 %v2675
      %v3669 = vpop.f32.mrf.mxu0
      %v3670 = vadd.f32 %v3641, %v3669
      %v3671 = vpop.f32.mrf.mxu0
      %v3672 = vadd.f32 %v3643, %v3671
      %3673 = vmatmul.bf16.gmra.mxu0 %v2688
      %v3674 = vpop.f32.mrf.mxu0
      %v3675 = vadd.f32 %v3646, %v3674
      %v3676 = vpop.f32.mrf.mxu0
      %v3677 = vadd.f32 %v3648, %v3676
      %3678 = vmatmul.bf16.gmra.mxu0 %v2701
      %v3679 = vpop.f32.mrf.mxu0
      %v3680 = vadd.f32 %v3651, %v3679
      %v3681 = vpop.f32.mrf.mxu0
      %v3682 = vadd.f32 %v3653, %v3681
      %3683 = vdwg.mxu0
      %3684 = vmatpush.bf16.msra.mxu0 %v3247
      %3685 = vmatpush.bf16.msra.mxu0 %v3246
      %3686 = vmatpush.bf16.msra.mxu0 %v3245
      %3687 = vmatpush.bf16.msra.mxu0 %v3244
      %3688 = vmatpush.bf16.msra.mxu0 %v3243
      %3689 = vmatpush.bf16.msra.mxu0 %v3242
      %3690 = vmatpush.bf16.msra.mxu0 %v3241
      %3691 = vmatpush.bf16.msra.mxu0 %v3240
      %3692 = vmatmul.bf16.gmra.mxu0 %v2663
      %v3693 = vpop.f32.mrf.mxu0
      %v3694 = vadd.f32 %v3665, %v3693
      %v3695 = vpop.f32.mrf.mxu0
      %v3696 = vadd.f32 %v3667, %v3695
      %3697 = vmatmul.bf16.gmra.mxu0 %v2676
      %v3698 = vpop.f32.mrf.mxu0
      %v3699 = vadd.f32 %v3670, %v3698
      %v3700 = vpop.f32.mrf.mxu0
      %v3701 = vadd.f32 %v3672, %v3700
      %3702 = vmatmul.bf16.gmra.mxu0 %v2689
      %v3703 = vpop.f32.mrf.mxu0
      %v3704 = vadd.f32 %v3675, %v3703
      %v3705 = vpop.f32.mrf.mxu0
      %v3706 = vadd.f32 %v3677, %v3705
      %3707 = vmatmul.bf16.gmra.mxu0 %v2702
      %v3708 = vpop.f32.mrf.mxu0
      %v3709 = vadd.f32 %v3680, %v3708
      %v3710 = vpop.f32.mrf.mxu0
      %v3711 = vadd.f32 %v3682, %v3710
      %3712 = vdwg.mxu0
      %3713 = vmatpush.bf16.msra.mxu0 0
      %3714 = vmatpush.bf16.msra.mxu0 0
      %3715 = vmatpush.bf16.msra.mxu0 0
      %3716 = vmatpush.bf16.msra.mxu0 0
      %3717 = vmatpush.bf16.msra.mxu0 %v3251
      %3718 = vmatpush.bf16.msra.mxu0 %v3250
      %3719 = vmatpush.bf16.msra.mxu0 %v3249
      %3720 = vmatpush.bf16.msra.mxu0 %v3248
      %3721 = vmatmul.bf16.gmra.mxu0 %v3354
      %v3722 = vpop.f32.mrf.mxu0
      %v3723 = vadd.f32 %v3694, %v3722
      %v3724 = vpop.f32.mrf.mxu0
      %v3725 = vadd.f32 %v3696, %v3724
      %3726 = vmatmul.bf16.gmra.mxu0 %v3357
      %v3727 = vpop.f32.mrf.mxu0
      %v3728 = vadd.f32 %v3699, %v3727
      %v3729 = vpop.f32.mrf.mxu0
      %v3730 = vadd.f32 %v3701, %v3729
      %3731 = vmatmul.bf16.gmra.mxu0 %v3360
      %v3732 = vpop.f32.mrf.mxu0
      %v3733 = vadd.f32 %v3704, %v3732
      %v3734 = vpop.f32.mrf.mxu0
      %v3735 = vadd.f32 %v3706, %v3734
      %3736 = vmatmul.bf16.gmra.mxu0 %v3363
      %v3737 = vpop.f32.mrf.mxu0
      %v3738 = vadd.f32 %v3709, %v3737
      %v3739 = vpop.f32.mrf.mxu0
      %v3740 = vadd.f32 %v3711, %v3739
      %3741 = vdwg.mxu0
      %v3742 = vmax.f32 %v3723, 0.0
      %v3743 = vmax.f32 %v3725, 0.0
      %v3744 = vmax.f32 %v3728, 0.0
      %v3745 = vmax.f32 %v3730, 0.0
      %v3746 = vmax.f32 %v3733, 0.0
      %v3747 = vmax.f32 %v3735, 0.0
      %v3748 = vmax.f32 %v3738, 0.0
      %v3749 = vmax.f32 %v3740, 0.0
      %v3750 = vpack.c.bf16 %v3742, %v3742
      %v3751 = vpack.c.bf16 %v3743, %v3743
      %v3752 = vpack.c.bf16 %v3744, %v3744
      %v3753 = vpack.c.bf16 %v3745, %v3745
      %v3754 = vpack.c.bf16 %v3746, %v3746
      %v3755 = vpack.c.bf16 %v3747, %v3747
      %v3756 = vpack.c.bf16 %v3748, %v3748
      %v3757 = vpack.c.bf16 %v3749, %v3749
      %3758 = vst [vmem:[%s224] sm:$0xf] %v3750
      %3759 = vst [vmem:[%s224 + $0x4] sm:$0xf] %v3751
      %3760 = vst [vmem:[%s224 + $0x8] sm:$0xf] %v3752
      %3761 = vst [vmem:[%s224 + $0xc] sm:$0xf] %v3753
      %3762 = vst [vmem:[%s224 + $0x10] sm:$0xf] %v3754
      %3763 = vst [vmem:[%s224 + $0x14] sm:$0xf] %v3755
      %3764 = vst [vmem:[%s224 + $0x18] sm:$0xf] %v3756
      %3765 = vst [vmem:[%s224 + $0x1c] sm:$0xf] %v3757
      %p3766 = scmp.lt.s32.totalorder %s16, 1
      %s3767 = scalar_select %p3766, %s16, 1
      %s3768 = smul.addr %s3767, 8
      %s3769 = smul.addr %s3768, 4
      %s3770 = scalar_lea.vmem %s5, %s3769
      // Predicated region
      $region41: #{mnist_cnn_forward.2} parent=39 // pred_check
        %p3771 = pneg %p144
      $region42: #{mnist_cnn_forward.2} parent=39 // pred_check_branch
        %3773 = sbr.rel (%p3771) target = $region44
      $region43: #{mnist_cnn_forward.2} parent=39 // pred_region
        _
      $region44: #{mnist_cnn_forward.2} parent=39 // pred_fallthru
        _
    $region40: #{mnist_cnn_forward.2} parent=5 // pred_fallthru
      _
    %p3774 = scmp.le.s32.totalorder 2, %s11
    // Predicated region
    $region45: #{mnist_cnn_forward.2} parent=5 // pred_check
      %p3775 = pneg %p3774
    $region46: #{mnist_cnn_forward.2} parent=5 // pred_check_branch
      %3777 = sbr.rel (%p3775) target = $region48
    $region47: #{mnist_cnn_forward.2} parent=5 // pred_region
      %s3778 = ssub.s32 %s11, 2
      // Predicated region
      $region49: #{mnist_cnn_forward.2} parent=47 // pred_check
        %p3779 = pneg %p150
      $region50: #{mnist_cnn_forward.2} parent=47 // pred_check_branch
        %3781 = sbr.rel (%p3779) target = $region52
      $region51: #{mnist_cnn_forward.2} parent=47 // pred_region
        %p3782 = scmp.lt.s32.totalorder %s17, 1
        %s3783 = scalar_select %p3782, %s17, 1
        %s3784 = smul.addr %s3783, 8
        %s3785 = smul.addr %s3784, 4
        %s3786 = scalar_lea.vmem %s5, %s3785
      $region52: #{mnist_cnn_forward.2} parent=47 // pred_fallthru
        _
    $region48: #{mnist_cnn_forward.2} parent=5 // pred_fallthru
      _
  $region6: #{mnist_cnn_forward.2} parent=0 // loop_footer
    %s15 = sadd.s32 1, %s11
  $region7: #{mnist_cnn_forward.2} parent=0 // loop_footer_branch
    %10 = sbr.rel target = $region3
  $region8: #{mnist_cnn_forward.2} parent=0 // loop_exit
    _

// kernel: mnist_cnn_forward.3
$region0: #{mnist_cnn_forward.3}
  #allocation0 [shape = 'u32[]', space=smem, size = 0x4, offset = 0x4, fixed_abs, tag = 'smem constant byte address 0x4 - core index']
  #allocation1 [shape = 'u32[72,128]{1,0:T(1,128)}', space=vmem, size = 0x9000, scoped, tag = 'internal scratch']
  %s0 = inlined_call_operand.vmem [shape: bf16[2,8192], index: 0, kind: input, shape index: {}]
  %s1 = inlined_call_operand.vmem [shape: bf16[8192,128], index: 1, kind: input, shape index: {}]
  %s2 = inlined_call_operand.vmem [shape: f32[1,128], index: 2, kind: input, shape index: {}]
  %s3 = inlined_call_operand.vmem [shape: bf16[128,128], index: 3, kind: input, shape index: {}]
  %s4 = inlined_call_operand.vmem [shape: f32[1,128], index: 4, kind: input, shape index: {}]
  %s5 = inlined_call_operand.hbm [shape: f32[2,128], index: 5, kind: output, shape index: {}]
  %s6 = sld [smem:[#allocation0]]
  $region30: #{mnist_cnn_forward.3} parent=0
    _
  %s8 = ssub.s32 1, %s6
  %s9 = scalar_select 0, %s8, %s6
  $region1: #{mnist_cnn_forward.3} parent=0
    #allocation2 [shape = 'u8[1024]{0}', space=vmem, size = 0x400, scoped, tag = 'output window, operand 0, single buffered']
    #allocation3 [shape = 's32[1]{0}', space=sflag, size = 0x4, scoped, tag = 'scoped memory for mnist_cnn_forward.3']
    %10 = vsyncpa [#allocation3], 0
    // Predicated region
    $region2: #{mnist_cnn_forward.3} parent=1 // pred_check
      _
    $region3: #{mnist_cnn_forward.3} parent=1 // pred_check_branch
      %12 = sbr.rel (0) target = $region5
    $region4: #{mnist_cnn_forward.3} parent=1 // pred_region
      _
    $region5: #{mnist_cnn_forward.3} parent=1 // pred_fallthru
      _
    // Predicated region
    $region6: #{mnist_cnn_forward.3} parent=1 // pred_check
      _
    $region7: #{mnist_cnn_forward.3} parent=1 // pred_check_branch
      %14 = sbr.rel (0) target = $region9
    $region8: #{mnist_cnn_forward.3} parent=1 // pred_region
      _
    $region9: #{mnist_cnn_forward.3} parent=1 // pred_fallthru
      _
    // Predicated region
    $region10: #{mnist_cnn_forward.3} parent=1 // pred_check
      _
    $region11: #{mnist_cnn_forward.3} parent=1 // pred_check_branch
      %16 = sbr.rel (0) target = $region13
    $region12: #{mnist_cnn_forward.3} parent=1 // pred_region
      _
    $region13: #{mnist_cnn_forward.3} parent=1 // pred_fallthru
      _
    // Predicated region
    $region14: #{mnist_cnn_forward.3} parent=1 // pred_check
      _
    $region15: #{mnist_cnn_forward.3} parent=1 // pred_check_branch
      %18 = sbr.rel (0) target = $region17
    $region16: #{mnist_cnn_forward.3} parent=1 // pred_region
      _
    $region17: #{mnist_cnn_forward.3} parent=1 // pred_fallthru
      _
    // Predicated region
    $region18: #{mnist_cnn_forward.3} parent=1 // pred_check
      _
    $region19: #{mnist_cnn_forward.3} parent=1 // pred_check_branch
      %20 = sbr.rel (0) target = $region21
    $region20: #{mnist_cnn_forward.3} parent=1 // pred_region
      _
    $region21: #{mnist_cnn_forward.3} parent=1 // pred_fallthru
      _
    %v21 = vld [vmem:[%s0] sm:$0xff]
    %v22 = vld [vmem:[%s0 + $0x8] sm:$0xff]
    %v23 = vld [vmem:[%s0 + $0x10] sm:$0xff]
    %v24 = vld [vmem:[%s0 + $0x18] sm:$0xff]
    %v25 = vld [vmem:[%s0 + $0x20] sm:$0xff]
    %v26 = vld [vmem:[%s0 + $0x28] sm:$0xff]
    %v27 = vld [vmem:[%s0 + $0x30] sm:$0xff]
    %v28 = vld [vmem:[%s0 + $0x38] sm:$0xff]
    %v29 = vld [vmem:[%s1] sm:$0xf]
    %v30 = vld [vmem:[%s1 + $0x4] sm:$0xf]
    %v31 = vld [vmem:[%s1 + $0x8] sm:$0xf]
    %v32 = vld [vmem:[%s1 + $0xc] sm:$0xf]
    %v33 = vld [vmem:[%s1 + $0x10] sm:$0xf]
    %v34 = vld [vmem:[%s1 + $0x14] sm:$0xf]
    %v35 = vld [vmem:[%s1 + $0x18] sm:$0xf]
    %v36 = vld [vmem:[%s1 + $0x1c] sm:$0xf]
    %v37 = vld [vmem:[%s1 + $0x20] sm:$0xf]
    %v38 = vld [vmem:[%s1 + $0x24] sm:$0xf]
    %v39 = vld [vmem:[%s1 + $0x28] sm:$0xf]
    %v40 = vld [vmem:[%s1 + $0x2c] sm:$0xf]
    %v41 = vld [vmem:[%s1 + $0x30] sm:$0xf]
    %v42 = vld [vmem:[%s1 + $0x34] sm:$0xf]
    %v43 = vld [vmem:[%s1 + $0x38] sm:$0xf]
    %v44 = vld [vmem:[%s1 + $0x3c] sm:$0xf]
    %v45 = vld [vmem:[%s1 + $0x40] sm:$0xf]
    %v46 = vld [vmem:[%s1 + $0x44] sm:$0xf]
    %v47 = vld [vmem:[%s1 + $0x48] sm:$0xf]
    %v48 = vld [vmem:[%s1 + $0x4c] sm:$0xf]
    %v49 = vld [vmem:[%s1 + $0x50] sm:$0xf]
    %v50 = vld [vmem:[%s1 + $0x54] sm:$0xf]
    %v51 = vld [vmem:[%s1 + $0x58] sm:$0xf]
    %v52 = vld [vmem:[%s1 + $0x5c] sm:$0xf]
    %v53 = vld [vmem:[%s1 + $0x60] sm:$0xf]
    %v54 = vld [vmem:[%s1 + $0x64] sm:$0xf]
    %v55 = vld [vmem:[%s1 + $0x68] sm:$0xf]
    %v56 = vld [vmem:[%s1 + $0x6c] sm:$0xf]
    %v57 = vld [vmem:[%s1 + $0x70] sm:$0xf]
    %v58 = vld [vmem:[%s1 + $0x74] sm:$0xf]
    %v59 = vld [vmem:[%s1 + $0x78] sm:$0xf]
    %v60 = vld [vmem:[%s1 + $0x7c] sm:$0xf]
    %v61 = vld [vmem:[%s1 + $0x80] sm:$0xf]
    %v62 = vld [vmem:[%s1 + $0x84] sm:$0xf]
    %v63 = vld [vmem:[%s1 + $0x88] sm:$0xf]
    %v64 = vld [vmem:[%s1 + $0x8c] sm:$0xf]
    %v65 = vld [vmem:[%s1 + $0x90] sm:$0xf]
    %v66 = vld [vmem:[%s1 + $0x94] sm:$0xf]
    %v67 = vld [vmem:[%s1 + $0x98] sm:$0xf]
    %v68 = vld [vmem:[%s1 + $0x9c] sm:$0xf]
    %v69 = vld [vmem:[%s1 + $0xa0] sm:$0xf]
    %v70 = vld [vmem:[%s1 + $0xa4] sm:$0xf]
    %v71 = vld [vmem:[%s1 + $0xa8] sm:$0xf]
    %v72 = vld [vmem:[%s1 + $0xac] sm:$0xf]
    %v73 = vld [vmem:[%s1 + $0xb0] sm:$0xf]
    %v74 = vld [vmem:[%s1 + $0xb4] sm:$0xf]
    %v75 = vld [vmem:[%s1 + $0xb8] sm:$0xf]
    %v76 = vld [vmem:[%s1 + $0xbc] sm:$0xf]
    %v77 = vld [vmem:[%s1 + $0xc0] sm:$0xf]
    %v78 = vld [vmem:[%s1 + $0xc4] sm:$0xf]
    %v79 = vld [vmem:[%s1 + $0xc8] sm:$0xf]
    %v80 = vld [vmem:[%s1 + $0xcc] sm:$0xf]
    %v81 = vld [vmem:[%s1 + $0xd0] sm:$0xf]
    %v82 = vld [vmem:[%s1 + $0xd4] sm:$0xf]
    %v83 = vld [vmem:[%s1 + $0xd8] sm:$0xf]
    %v84 = vld [vmem:[%s1 + $0xdc] sm:$0xf]
    %v85 = vld [vmem:[%s1 + $0xe0] sm:$0xf]
    %v86 = vld [vmem:[%s1 + $0xe4] sm:$0xf]
    %v87 = vld [vmem:[%s1 + $0xe8] sm:$0xf]
    %v88 = vld [vmem:[%s1 + $0xec] sm:$0xf]
    %v89 = vld [vmem:[%s1 + $0xf0] sm:$0xf]
    %v90 = vld [vmem:[%s1 + $0xf4] sm:$0xf]
    %v91 = vld [vmem:[%s1 + $0xf8] sm:$0xf]
    %v92 = vld [vmem:[%s1 + $0xfc] sm:$0xf]
    %v93 = vld [vmem:[%s1 + $0x100] sm:$0xf]
    %v94 = vld [vmem:[%s1 + $0x104] sm:$0xf]
    %v95 = vld [vmem:[%s1 + $0x108] sm:$0xf]
    %v96 = vld [vmem:[%s1 + $0x10c] sm:$0xf]
    %v97 = vld [vmem:[%s1 + $0x110] sm:$0xf]
    %v98 = vld [vmem:[%s1 + $0x114] sm:$0xf]
    %v99 = vld [vmem:[%s1 + $0x118] sm:$0xf]
    %v100 = vld [vmem:[%s1 + $0x11c] sm:$0xf]
    %v101 = vld [vmem:[%s1 + $0x120] sm:$0xf]
    %v102 = vld [vmem:[%s1 + $0x124] sm:$0xf]
    %v103 = vld [vmem:[%s1 + $0x128] sm:$0xf]
    %v104 = vld [vmem:[%s1 + $0x12c] sm:$0xf]
    %v105 = vld [vmem:[%s1 + $0x130] sm:$0xf]
    %v106 = vld [vmem:[%s1 + $0x134] sm:$0xf]
    %v107 = vld [vmem:[%s1 + $0x138] sm:$0xf]
    %v108 = vld [vmem:[%s1 + $0x13c] sm:$0xf]
    %v109 = vld [vmem:[%s1 + $0x140] sm:$0xf]
    %v110 = vld [vmem:[%s1 + $0x144] sm:$0xf]
    %v111 = vld [vmem:[%s1 + $0x148] sm:$0xf]
    %v112 = vld [vmem:[%s1 + $0x14c] sm:$0xf]
    %v113 = vld [vmem:[%s1 + $0x150] sm:$0xf]
    %v114 = vld [vmem:[%s1 + $0x154] sm:$0xf]
    %v115 = vld [vmem:[%s1 + $0x158] sm:$0xf]
    %v116 = vld [vmem:[%s1 + $0x15c] sm:$0xf]
    %v117 = vld [vmem:[%s1 + $0x160] sm:$0xf]
    %v118 = vld [vmem:[%s1 + $0x164] sm:$0xf]
    %v119 = vld [vmem:[%s1 + $0x168] sm:$0xf]
    %v120 = vld [vmem:[%s1 + $0x16c] sm:$0xf]
    %v121 = vld [vmem:[%s1 + $0x170] sm:$0xf]
    %v122 = vld [vmem:[%s1 + $0x174] sm:$0xf]
    %v123 = vld [vmem:[%s1 + $0x178] sm:$0xf]
    %v124 = vld [vmem:[%s1 + $0x17c] sm:$0xf]
    %v125 = vld [vmem:[%s1 + $0x180] sm:$0xf]
    %v126 = vld [vmem:[%s1 + $0x184] sm:$0xf]
    %v127 = vld [vmem:[%s1 + $0x188] sm:$0xf]
    %v128 = vld [vmem:[%s1 + $0x18c] sm:$0xf]
    %v129 = vld [vmem:[%s1 + $0x190] sm:$0xf]
    %v130 = vld [vmem:[%s1 + $0x194] sm:$0xf]
    %v131 = vld [vmem:[%s1 + $0x198] sm:$0xf]
    %v132 = vld [vmem:[%s1 + $0x19c] sm:$0xf]
    %v133 = vld [vmem:[%s1 + $0x1a0] sm:$0xf]
    %v134 = vld [vmem:[%s1 + $0x1a4] sm:$0xf]
    %v135 = vld [vmem:[%s1 + $0x1a8] sm:$0xf]
    %v136 = vld [vmem:[%s1 + $0x1ac] sm:$0xf]
    %v137 = vld [vmem:[%s1 + $0x1b0] sm:$0xf]
    %v138 = vld [vmem:[%s1 + $0x1b4] sm:$0xf]
    %v139 = vld [vmem:[%s1 + $0x1b8] sm:$0xf]
    %v140 = vld [vmem:[%s1 + $0x1bc] sm:$0xf]
    %v141 = vld [vmem:[%s1 + $0x1c0] sm:$0xf]
    %v142 = vld [vmem:[%s1 + $0x1c4] sm:$0xf]
    %v143 = vld [vmem:[%s1 + $0x1c8] sm:$0xf]
    %v144 = vld [vmem:[%s1 + $0x1cc] sm:$0xf]
    %v145 = vld [vmem:[%s1 + $0x1d0] sm:$0xf]
    %v146 = vld [vmem:[%s1 + $0x1d4] sm:$0xf]
    %v147 = vld [vmem:[%s1 + $0x1d8] sm:$0xf]
    %v148 = vld [vmem:[%s1 + $0x1dc] sm:$0xf]
    %v149 = vld [vmem:[%s1 + $0x1e0] sm:$0xf]
    %v150 = vld [vmem:[%s1 + $0x1e4] sm:$0xf]
    %v151 = vld [vmem:[%s1 + $0x1e8] sm:$0xf]
    %v152 = vld [vmem:[%s1 + $0x1ec] sm:$0xf]
    %v153 = vld [vmem:[%s1 + $0x1f0] sm:$0xf]
    %v154 = vld [vmem:[%s1 + $0x1f4] sm:$0xf]
    %v155 = vld [vmem:[%s1 + $0x1f8] sm:$0xf]
    %v156 = vld [vmem:[%s1 + $0x1fc] sm:$0xf]
    %v157 = vld [vmem:[%s1 + $0x200] sm:$0xf]
    %v158 = vld [vmem:[%s1 + $0x204] sm:$0xf]
    %v159 = vld [vmem:[%s1 + $0x208] sm:$0xf]
    %v160 = vld [vmem:[%s1 + $0x20c] sm:$0xf]
    %v161 = vld [vmem:[%s1 + $0x210] sm:$0xf]
    %v162 = vld [vmem:[%s1 + $0x214] sm:$0xf]
    %v163 = vld [vmem:[%s1 + $0x218] sm:$0xf]
    %v164 = vld [vmem:[%s1 + $0x21c] sm:$0xf]
    %v165 = vld [vmem:[%s1 + $0x220] sm:$0xf]
    %v166 = vld [vmem:[%s1 + $0x224] sm:$0xf]
    %v167 = vld [vmem:[%s1 + $0x228] sm:$0xf]
    %v168 = vld [vmem:[%s1 + $0x22c] sm:$0xf]
    %v169 = vld [vmem:[%s1 + $0x230] sm:$0xf]
    %v170 = vld [vmem:[%s1 + $0x234] sm:$0xf]
    %v171 = vld [vmem:[%s1 + $0x238] sm:$0xf]
    %v172 = vld [vmem:[%s1 + $0x23c] sm:$0xf]
    %v173 = vld [vmem:[%s1 + $0x240] sm:$0xf]
    %v174 = vld [vmem:[%s1 + $0x244] sm:$0xf]
    %v175 = vld [vmem:[%s1 + $0x248] sm:$0xf]
    %v176 = vld [vmem:[%s1 + $0x24c] sm:$0xf]
    %v177 = vld [vmem:[%s1 + $0x250] sm:$0xf]
    %v178 = vld [vmem:[%s1 + $0x254] sm:$0xf]
    %v179 = vld [vmem:[%s1 + $0x258] sm:$0xf]
    %v180 = vld [vmem:[%s1 + $0x25c] sm:$0xf]
    %v181 = vld [vmem:[%s1 + $0x260] sm:$0xf]
    %v182 = vld [vmem:[%s1 + $0x264] sm:$0xf]
    %v183 = vld [vmem:[%s1 + $0x268] sm:$0xf]
    %v184 = vld [vmem:[%s1 + $0x26c] sm:$0xf]
    %v185 = vld [vmem:[%s1 + $0x270] sm:$0xf]
    %v186 = vld [vmem:[%s1 + $0x274] sm:$0xf]
    %v187 = vld [vmem:[%s1 + $0x278] sm:$0xf]
    %v188 = vld [vmem:[%s1 + $0x27c] sm:$0xf]
    %v189 = vld [vmem:[%s1 + $0x280] sm:$0xf]
    %v190 = vld [vmem:[%s1 + $0x284] sm:$0xf]
    %v191 = vld [vmem:[%s1 + $0x288] sm:$0xf]
    %v192 = vld [vmem:[%s1 + $0x28c] sm:$0xf]
    %v193 = vld [vmem:[%s1 + $0x290] sm:$0xf]
    %v194 = vld [vmem:[%s1 + $0x294] sm:$0xf]
    %v195 = vld [vmem:[%s1 + $0x298] sm:$0xf]
    %v196 = vld [vmem:[%s1 + $0x29c] sm:$0xf]
    %v197 = vld [vmem:[%s1 + $0x2a0] sm:$0xf]
    %v198 = vld [vmem:[%s1 + $0x2a4] sm:$0xf]
    %v199 = vld [vmem:[%s1 + $0x2a8] sm:$0xf]
    %v200 = vld [vmem:[%s1 + $0x2ac] sm:$0xf]
    %v201 = vld [vmem:[%s1 + $0x2b0] sm:$0xf]
    %v202 = vld [vmem:[%s1 + $0x2b4] sm:$0xf]
    %v203 = vld [vmem:[%s1 + $0x2b8] sm:$0xf]
    %v204 = vld [vmem:[%s1 + $0x2bc] sm:$0xf]
    %v205 = vld [vmem:[%s1 + $0x2c0] sm:$0xf]
    %v206 = vld [vmem:[%s1 + $0x2c4] sm:$0xf]
    %v207 = vld [vmem:[%s1 + $0x2c8] sm:$0xf]
    %v208 = vld [vmem:[%s1 + $0x2cc] sm:$0xf]
    %v209 = vld [vmem:[%s1 + $0x2d0] sm:$0xf]
    %v210 = vld [vmem:[%s1 + $0x2d4] sm:$0xf]
    %v211 = vld [vmem:[%s1 + $0x2d8] sm:$0xf]
    %v212 = vld [vmem:[%s1 + $0x2dc] sm:$0xf]
    %v213 = vld [vmem:[%s1 + $0x2e0] sm:$0xf]
    %v214 = vld [vmem:[%s1 + $0x2e4] sm:$0xf]
    %v215 = vld [vmem:[%s1 + $0x2e8] sm:$0xf]
    %v216 = vld [vmem:[%s1 + $0x2ec] sm:$0xf]
    %v217 = vld [vmem:[%s1 + $0x2f0] sm:$0xf]
    %v218 = vld [vmem:[%s1 + $0x2f4] sm:$0xf]
    %v219 = vld [vmem:[%s1 + $0x2f8] sm:$0xf]
    %v220 = vld [vmem:[%s1 + $0x2fc] sm:$0xf]
    %v221 = vld [vmem:[%s1 + $0x300] sm:$0xf]
    %v222 = vld [vmem:[%s1 + $0x304] sm:$0xf]
    %v223 = vld [vmem:[%s1 + $0x308] sm:$0xf]
    %v224 = vld [vmem:[%s1 + $0x30c] sm:$0xf]
    %v225 = vld [vmem:[%s1 + $0x310] sm:$0xf]
    %v226 = vld [vmem:[%s1 + $0x314] sm:$0xf]
    %v227 = vld [vmem:[%s1 + $0x318] sm:$0xf]
    %v228 = vld [vmem:[%s1 + $0x31c] sm:$0xf]
    %v229 = vld [vmem:[%s1 + $0x320] sm:$0xf]
    %v230 = vld [vmem:[%s1 + $0x324] sm:$0xf]
    %v231 = vld [vmem:[%s1 + $0x328] sm:$0xf]
    %v232 = vld [vmem:[%s1 + $0x32c] sm:$0xf]
    %v233 = vld [vmem:[%s1 + $0x330] sm:$0xf]
    %v234 = vld [vmem:[%s1 + $0x334] sm:$0xf]
    %v235 = vld [vmem:[%s1 + $0x338] sm:$0xf]
    %v236 = vld [vmem:[%s1 + $0x33c] sm:$0xf]
    %v237 = vld [vmem:[%s1 + $0x340] sm:$0xf]
    %v238 = vld [vmem:[%s1 + $0x344] sm:$0xf]
    %v239 = vld [vmem:[%s1 + $0x348] sm:$0xf]
    %v240 = vld [vmem:[%s1 + $0x34c] sm:$0xf]
    %v241 = vld [vmem:[%s1 + $0x350] sm:$0xf]
    %v242 = vld [vmem:[%s1 + $0x354] sm:$0xf]
    %v243 = vld [vmem:[%s1 + $0x358] sm:$0xf]
    %v244 = vld [vmem:[%s1 + $0x35c] sm:$0xf]
    %v245 = vld [vmem:[%s1 + $0x360] sm:$0xf]
    %v246 = vld [vmem:[%s1 + $0x364] sm:$0xf]
    %v247 = vld [vmem:[%s1 + $0x368] sm:$0xf]
    %v248 = vld [vmem:[%s1 + $0x36c] sm:$0xf]
    %v249 = vld [vmem:[%s1 + $0x370] sm:$0xf]
    %v250 = vld [vmem:[%s1 + $0x374] sm:$0xf]
    %v251 = vld [vmem:[%s1 + $0x378] sm:$0xf]
    %v252 = vld [vmem:[%s1 + $0x37c] sm:$0xf]
    %v253 = vld [vmem:[%s1 + $0x380] sm:$0xf]
    %v254 = vld [vmem:[%s1 + $0x384] sm:$0xf]
    %v255 = vld [vmem:[%s1 + $0x388] sm:$0xf]
    %v256 = vld [vmem:[%s1 + $0x38c] sm:$0xf]
    %v257 = vld [vmem:[%s1 + $0x390] sm:$0xf]
    %v258 = vld [vmem:[%s1 + $0x394] sm:$0xf]
    %v259 = vld [vmem:[%s1 + $0x398] sm:$0xf]
    %v260 = vld [vmem:[%s1 + $0x39c] sm:$0xf]
    %v261 = vld [vmem:[%s1 + $0x3a0] sm:$0xf]
    %v262 = vld [vmem:[%s1 + $0x3a4] sm:$0xf]
    %v263 = vld [vmem:[%s1 + $0x3a8] sm:$0xf]
    %v264 = vld [vmem:[%s1 + $0x3ac] sm:$0xf]
    %v265 = vld [vmem:[%s1 + $0x3b0] sm:$0xf]
    %v266 = vld [vmem:[%s1 + $0x3b4] sm:$0xf]
    %v267 = vld [vmem:[%s1 + $0x3b8] sm:$0xf]
    %v268 = vld [vmem:[%s1 + $0x3bc] sm:$0xf]
    %v269 = vld [vmem:[%s1 + $0x3c0] sm:$0xf]
    %v270 = vld [vmem:[%s1 + $0x3c4] sm:$0xf]
    %v271 = vld [vmem:[%s1 + $0x3c8] sm:$0xf]
    %v272 = vld [vmem:[%s1 + $0x3cc] sm:$0xf]
    %v273 = vld [vmem:[%s1 + $0x3d0] sm:$0xf]
    %v274 = vld [vmem:[%s1 + $0x3d4] sm:$0xf]
    %v275 = vld [vmem:[%s1 + $0x3d8] sm:$0xf]
    %v276 = vld [vmem:[%s1 + $0x3dc] sm:$0xf]
    %v277 = vld [vmem:[%s1 + $0x3e0] sm:$0xf]
    %v278 = vld [vmem:[%s1 + $0x3e4] sm:$0xf]
    %v279 = vld [vmem:[%s1 + $0x3e8] sm:$0xf]
    %v280 = vld [vmem:[%s1 + $0x3ec] sm:$0xf]
    %v281 = vld [vmem:[%s1 + $0x3f0] sm:$0xf]
    %v282 = vld [vmem:[%s1 + $0x3f4] sm:$0xf]
    %v283 = vld [vmem:[%s1 + $0x3f8] sm:$0xf]
    %v284 = vld [vmem:[%s1 + $0x3fc] sm:$0xf]
    %v285 = vld [vmem:[%s1 + $0x400] sm:$0xf]
    %v286 = vld [vmem:[%s1 + $0x404] sm:$0xf]
    %v287 = vld [vmem:[%s1 + $0x408] sm:$0xf]
    %v288 = vld [vmem:[%s1 + $0x40c] sm:$0xf]
    %v289 = vld [vmem:[%s1 + $0x410] sm:$0xf]
    %v290 = vld [vmem:[%s1 + $0x414] sm:$0xf]
    %v291 = vld [vmem:[%s1 + $0x418] sm:$0xf]
    %v292 = vld [vmem:[%s1 + $0x41c] sm:$0xf]
    %v293 = vld [vmem:[%s1 + $0x420] sm:$0xf]
    %v294 = vld [vmem:[%s1 + $0x424] sm:$0xf]
    %v295 = vld [vmem:[%s1 + $0x428] sm:$0xf]
    %v296 = vld [vmem:[%s1 + $0x42c] sm:$0xf]
    %v297 = vld [vmem:[%s1 + $0x430] sm:$0xf]
    %v298 = vld [vmem:[%s1 + $0x434] sm:$0xf]
    %v299 = vld [vmem:[%s1 + $0x438] sm:$0xf]
    %v300 = vld [vmem:[%s1 + $0x43c] sm:$0xf]
    %v301 = vld [vmem:[%s1 + $0x440] sm:$0xf]
    %v302 = vld [vmem:[%s1 + $0x444] sm:$0xf]
    %v303 = vld [vmem:[%s1 + $0x448] sm:$0xf]
    %v304 = vld [vmem:[%s1 + $0x44c] sm:$0xf]
    %v305 = vld [vmem:[%s1 + $0x450] sm:$0xf]
    %v306 = vld [vmem:[%s1 + $0x454] sm:$0xf]
    %v307 = vld [vmem:[%s1 + $0x458] sm:$0xf]
    %v308 = vld [vmem:[%s1 + $0x45c] sm:$0xf]
    %v309 = vld [vmem:[%s1 + $0x460] sm:$0xf]
    %v310 = vld [vmem:[%s1 + $0x464] sm:$0xf]
    %v311 = vld [vmem:[%s1 + $0x468] sm:$0xf]
    %v312 = vld [vmem:[%s1 + $0x46c] sm:$0xf]
    %v313 = vld [vmem:[%s1 + $0x470] sm:$0xf]
    %v314 = vld [vmem:[%s1 + $0x474] sm:$0xf]
    %v315 = vld [vmem:[%s1 + $0x478] sm:$0xf]
    %v316 = vld [vmem:[%s1 + $0x47c] sm:$0xf]
    %v317 = vld [vmem:[%s1 + $0x480] sm:$0xf]
    %v318 = vld [vmem:[%s1 + $0x484] sm:$0xf]
    %v319 = vld [vmem:[%s1 + $0x488] sm:$0xf]
    %v320 = vld [vmem:[%s1 + $0x48c] sm:$0xf]
    %v321 = vld [vmem:[%s1 + $0x490] sm:$0xf]
    %v322 = vld [vmem:[%s1 + $0x494] sm:$0xf]
    %v323 = vld [vmem:[%s1 + $0x498] sm:$0xf]
    %v324 = vld [vmem:[%s1 + $0x49c] sm:$0xf]
    %v325 = vld [vmem:[%s1 + $0x4a0] sm:$0xf]
    %v326 = vld [vmem:[%s1 + $0x4a4] sm:$0xf]
    %v327 = vld [vmem:[%s1 + $0x4a8] sm:$0xf]
    %v328 = vld [vmem:[%s1 + $0x4ac] sm:$0xf]
    %v329 = vld [vmem:[%s1 + $0x4b0] sm:$0xf]
    %v330 = vld [vmem:[%s1 + $0x4b4] sm:$0xf]
    %v331 = vld [vmem:[%s1 + $0x4b8] sm:$0xf]
    %v332 = vld [vmem:[%s1 + $0x4bc] sm:$0xf]
    %v333 = vld [vmem:[%s1 + $0x4c0] sm:$0xf]
    %v334 = vld [vmem:[%s1 + $0x4c4] sm:$0xf]
    %v335 = vld [vmem:[%s1 + $0x4c8] sm:$0xf]
    %v336 = vld [vmem:[%s1 + $0x4cc] sm:$0xf]
    %v337 = vld [vmem:[%s1 + $0x4d0] sm:$0xf]
    %v338 = vld [vmem:[%s1 + $0x4d4] sm:$0xf]
    %v339 = vld [vmem:[%s1 + $0x4d8] sm:$0xf]
    %v340 = vld [vmem:[%s1 + $0x4dc] sm:$0xf]
    %v341 = vld [vmem:[%s1 + $0x4e0] sm:$0xf]
    %v342 = vld [vmem:[%s1 + $0x4e4] sm:$0xf]
    %v343 = vld [vmem:[%s1 + $0x4e8] sm:$0xf]
    %v344 = vld [vmem:[%s1 + $0x4ec] sm:$0xf]
    %v345 = vld [vmem:[%s1 + $0x4f0] sm:$0xf]
    %v346 = vld [vmem:[%s1 + $0x4f4] sm:$0xf]
    %v347 = vld [vmem:[%s1 + $0x4f8] sm:$0xf]
    %v348 = vld [vmem:[%s1 + $0x4fc] sm:$0xf]
    %v349 = vld [vmem:[%s1 + $0x500] sm:$0xf]
    %v350 = vld [vmem:[%s1 + $0x504] sm:$0xf]
    %v351 = vld [vmem:[%s1 + $0x508] sm:$0xf]
    %v352 = vld [vmem:[%s1 + $0x50c] sm:$0xf]
    %v353 = vld [vmem:[%s1 + $0x510] sm:$0xf]
    %v354 = vld [vmem:[%s1 + $0x514] sm:$0xf]
    %v355 = vld [vmem:[%s1 + $0x518] sm:$0xf]
    %v356 = vld [vmem:[%s1 + $0x51c] sm:$0xf]
    %v357 = vld [vmem:[%s1 + $0x520] sm:$0xf]
    %v358 = vld [vmem:[%s1 + $0x524] sm:$0xf]
    %v359 = vld [vmem:[%s1 + $0x528] sm:$0xf]
    %v360 = vld [vmem:[%s1 + $0x52c] sm:$0xf]
    %v361 = vld [vmem:[%s1 + $0x530] sm:$0xf]
    %v362 = vld [vmem:[%s1 + $0x534] sm:$0xf]
    %v363 = vld [vmem:[%s1 + $0x538] sm:$0xf]
    %v364 = vld [vmem:[%s1 + $0x53c] sm:$0xf]
    %v365 = vld [vmem:[%s1 + $0x540] sm:$0xf]
    %v366 = vld [vmem:[%s1 + $0x544] sm:$0xf]
    %v367 = vld [vmem:[%s1 + $0x548] sm:$0xf]
    %v368 = vld [vmem:[%s1 + $0x54c] sm:$0xf]
    %v369 = vld [vmem:[%s1 + $0x550] sm:$0xf]
    %v370 = vld [vmem:[%s1 + $0x554] sm:$0xf]
    %v371 = vld [vmem:[%s1 + $0x558] sm:$0xf]
    %v372 = vld [vmem:[%s1 + $0x55c] sm:$0xf]
    %v373 = vld [vmem:[%s1 + $0x560] sm:$0xf]
    %v374 = vld [vmem:[%s1 + $0x564] sm:$0xf]
    %v375 = vld [vmem:[%s1 + $0x568] sm:$0xf]
    %v376 = vld [vmem:[%s1 + $0x56c] sm:$0xf]
    %v377 = vld [vmem:[%s1 + $0x570] sm:$0xf]
    %v378 = vld [vmem:[%s1 + $0x574] sm:$0xf]
    %v379 = vld [vmem:[%s1 + $0x578] sm:$0xf]
    %v380 = vld [vmem:[%s1 + $0x57c] sm:$0xf]
    %v381 = vld [vmem:[%s1 + $0x580] sm:$0xf]
    %v382 = vld [vmem:[%s1 + $0x584] sm:$0xf]
    %v383 = vld [vmem:[%s1 + $0x588] sm:$0xf]
    %v384 = vld [vmem:[%s1 + $0x58c] sm:$0xf]
    %v385 = vld [vmem:[%s1 + $0x590] sm:$0xf]
    %v386 = vld [vmem:[%s1 + $0x594] sm:$0xf]
    %v387 = vld [vmem:[%s1 + $0x598] sm:$0xf]
    %v388 = vld [vmem:[%s1 + $0x59c] sm:$0xf]
    %v389 = vld [vmem:[%s1 + $0x5a0] sm:$0xf]
    %v390 = vld [vmem:[%s1 + $0x5a4] sm:$0xf]
    %v391 = vld [vmem:[%s1 + $0x5a8] sm:$0xf]
    %v392 = vld [vmem:[%s1 + $0x5ac] sm:$0xf]
    %v393 = vld [vmem:[%s1 + $0x5b0] sm:$0xf]
    %v394 = vld [vmem:[%s1 + $0x5b4] sm:$0xf]
    %v395 = vld [vmem:[%s1 + $0x5b8] sm:$0xf]
    %v396 = vld [vmem:[%s1 + $0x5bc] sm:$0xf]
    %v397 = vld [vmem:[%s1 + $0x5c0] sm:$0xf]
    %v398 = vld [vmem:[%s1 + $0x5c4] sm:$0xf]
    %v399 = vld [vmem:[%s1 + $0x5c8] sm:$0xf]
    %v400 = vld [vmem:[%s1 + $0x5cc] sm:$0xf]
    %v401 = vld [vmem:[%s1 + $0x5d0] sm:$0xf]
    %v402 = vld [vmem:[%s1 + $0x5d4] sm:$0xf]
    %v403 = vld [vmem:[%s1 + $0x5d8] sm:$0xf]
    %v404 = vld [vmem:[%s1 + $0x5dc] sm:$0xf]
    %v405 = vld [vmem:[%s1 + $0x5e0] sm:$0xf]
    %v406 = vld [vmem:[%s1 + $0x5e4] sm:$0xf]
    %v407 = vld [vmem:[%s1 + $0x5e8] sm:$0xf]
    %v408 = vld [vmem:[%s1 + $0x5ec] sm:$0xf]
    %v409 = vld [vmem:[%s1 + $0x5f0] sm:$0xf]
    %v410 = vld [vmem:[%s1 + $0x5f4] sm:$0xf]
    %v411 = vld [vmem:[%s1 + $0x5f8] sm:$0xf]
    %v412 = vld [vmem:[%s1 + $0x5fc] sm:$0xf]
    %v413 = vld [vmem:[%s1 + $0x600] sm:$0xf]
    %v414 = vld [vmem:[%s1 + $0x604] sm:$0xf]
    %v415 = vld [vmem:[%s1 + $0x608] sm:$0xf]
    %v416 = vld [vmem:[%s1 + $0x60c] sm:$0xf]
    %v417 = vld [vmem:[%s1 + $0x610] sm:$0xf]
    %v418 = vld [vmem:[%s1 + $0x614] sm:$0xf]
    %v419 = vld [vmem:[%s1 + $0x618] sm:$0xf]
    %v420 = vld [vmem:[%s1 + $0x61c] sm:$0xf]
    %v421 = vld [vmem:[%s1 + $0x620] sm:$0xf]
    %v422 = vld [vmem:[%s1 + $0x624] sm:$0xf]
    %v423 = vld [vmem:[%s1 + $0x628] sm:$0xf]
    %v424 = vld [vmem:[%s1 + $0x62c] sm:$0xf]
    %v425 = vld [vmem:[%s1 + $0x630] sm:$0xf]
    %v426 = vld [vmem:[%s1 + $0x634] sm:$0xf]
    %v427 = vld [vmem:[%s1 + $0x638] sm:$0xf]
    %v428 = vld [vmem:[%s1 + $0x63c] sm:$0xf]
    %v429 = vld [vmem:[%s1 + $0x640] sm:$0xf]
    %v430 = vld [vmem:[%s1 + $0x644] sm:$0xf]
    %v431 = vld [vmem:[%s1 + $0x648] sm:$0xf]
    %v432 = vld [vmem:[%s1 + $0x64c] sm:$0xf]
    %v433 = vld [vmem:[%s1 + $0x650] sm:$0xf]
    %v434 = vld [vmem:[%s1 + $0x654] sm:$0xf]
    %v435 = vld [vmem:[%s1 + $0x658] sm:$0xf]
    %v436 = vld [vmem:[%s1 + $0x65c] sm:$0xf]
    %v437 = vld [vmem:[%s1 + $0x660] sm:$0xf]
    %v438 = vld [vmem:[%s1 + $0x664] sm:$0xf]
    %v439 = vld [vmem:[%s1 + $0x668] sm:$0xf]
    %v440 = vld [vmem:[%s1 + $0x66c] sm:$0xf]
    %v441 = vld [vmem:[%s1 + $0x670] sm:$0xf]
    %v442 = vld [vmem:[%s1 + $0x674] sm:$0xf]
    %v443 = vld [vmem:[%s1 + $0x678] sm:$0xf]
    %v444 = vld [vmem:[%s1 + $0x67c] sm:$0xf]
    %v445 = vld [vmem:[%s1 + $0x680] sm:$0xf]
    %v446 = vld [vmem:[%s1 + $0x684] sm:$0xf]
    %v447 = vld [vmem:[%s1 + $0x688] sm:$0xf]
    %v448 = vld [vmem:[%s1 + $0x68c] sm:$0xf]
    %v449 = vld [vmem:[%s1 + $0x690] sm:$0xf]
    %v450 = vld [vmem:[%s1 + $0x694] sm:$0xf]
    %v451 = vld [vmem:[%s1 + $0x698] sm:$0xf]
    %v452 = vld [vmem:[%s1 + $0x69c] sm:$0xf]
    %v453 = vld [vmem:[%s1 + $0x6a0] sm:$0xf]
    %v454 = vld [vmem:[%s1 + $0x6a4] sm:$0xf]
    %v455 = vld [vmem:[%s1 + $0x6a8] sm:$0xf]
    %v456 = vld [vmem:[%s1 + $0x6ac] sm:$0xf]
    %v457 = vld [vmem:[%s1 + $0x6b0] sm:$0xf]
    %v458 = vld [vmem:[%s1 + $0x6b4] sm:$0xf]
    %v459 = vld [vmem:[%s1 + $0x6b8] sm:$0xf]
    %v460 = vld [vmem:[%s1 + $0x6bc] sm:$0xf]
    %v461 = vld [vmem:[%s1 + $0x6c0] sm:$0xf]
    %v462 = vld [vmem:[%s1 + $0x6c4] sm:$0xf]
    %v463 = vld [vmem:[%s1 + $0x6c8] sm:$0xf]
    %v464 = vld [vmem:[%s1 + $0x6cc] sm:$0xf]
    %v465 = vld [vmem:[%s1 + $0x6d0] sm:$0xf]
    %v466 = vld [vmem:[%s1 + $0x6d4] sm:$0xf]
    %v467 = vld [vmem:[%s1 + $0x6d8] sm:$0xf]
    %v468 = vld [vmem:[%s1 + $0x6dc] sm:$0xf]
    %v469 = vld [vmem:[%s1 + $0x6e0] sm:$0xf]
    %v470 = vld [vmem:[%s1 + $0x6e4] sm:$0xf]
    %v471 = vld [vmem:[%s1 + $0x6e8] sm:$0xf]
    %v472 = vld [vmem:[%s1 + $0x6ec] sm:$0xf]
    %v473 = vld [vmem:[%s1 + $0x6f0] sm:$0xf]
    %v474 = vld [vmem:[%s1 + $0x6f4] sm:$0xf]
    %v475 = vld [vmem:[%s1 + $0x6f8] sm:$0xf]
    %v476 = vld [vmem:[%s1 + $0x6fc] sm:$0xf]
    %v477 = vld [vmem:[%s1 + $0x700] sm:$0xf]
    %v478 = vld [vmem:[%s1 + $0x704] sm:$0xf]
    %v479 = vld [vmem:[%s1 + $0x708] sm:$0xf]
    %v480 = vld [vmem:[%s1 + $0x70c] sm:$0xf]
    %v481 = vld [vmem:[%s1 + $0x710] sm:$0xf]
    %v482 = vld [vmem:[%s1 + $0x714] sm:$0xf]
    %v483 = vld [vmem:[%s1 + $0x718] sm:$0xf]
    %v484 = vld [vmem:[%s1 + $0x71c] sm:$0xf]
    %v485 = vld [vmem:[%s1 + $0x720] sm:$0xf]
    %v486 = vld [vmem:[%s1 + $0x724] sm:$0xf]
    %v487 = vld [vmem:[%s1 + $0x728] sm:$0xf]
    %v488 = vld [vmem:[%s1 + $0x72c] sm:$0xf]
    %v489 = vld [vmem:[%s1 + $0x730] sm:$0xf]
    %v490 = vld [vmem:[%s1 + $0x734] sm:$0xf]
    %v491 = vld [vmem:[%s1 + $0x738] sm:$0xf]
    %v492 = vld [vmem:[%s1 + $0x73c] sm:$0xf]
    %v493 = vld [vmem:[%s1 + $0x740] sm:$0xf]
    %v494 = vld [vmem:[%s1 + $0x744] sm:$0xf]
    %v495 = vld [vmem:[%s1 + $0x748] sm:$0xf]
    %v496 = vld [vmem:[%s1 + $0x74c] sm:$0xf]
    %v497 = vld [vmem:[%s1 + $0x750] sm:$0xf]
    %v498 = vld [vmem:[%s1 + $0x754] sm:$0xf]
    %v499 = vld [vmem:[%s1 + $0x758] sm:$0xf]
    %v500 = vld [vmem:[%s1 + $0x75c] sm:$0xf]
    %v501 = vld [vmem:[%s1 + $0x760] sm:$0xf]
    %v502 = vld [vmem:[%s1 + $0x764] sm:$0xf]
    %v503 = vld [vmem:[%s1 + $0x768] sm:$0xf]
    %v504 = vld [vmem:[%s1 + $0x76c] sm:$0xf]
    %v505 = vld [vmem:[%s1 + $0x770] sm:$0xf]
    %v506 = vld [vmem:[%s1 + $0x774] sm:$0xf]
    %v507 = vld [vmem:[%s1 + $0x778] sm:$0xf]
    %v508 = vld [vmem:[%s1 + $0x77c] sm:$0xf]
    %v509 = vld [vmem:[%s1 + $0x780] sm:$0xf]
    %v510 = vld [vmem:[%s1 + $0x784] sm:$0xf]
    %v511 = vld [vmem:[%s1 + $0x788] sm:$0xf]
    %v512 = vld [vmem:[%s1 + $0x78c] sm:$0xf]
    %v513 = vld [vmem:[%s1 + $0x790] sm:$0xf]
    %v514 = vld [vmem:[%s1 + $0x794] sm:$0xf]
    %v515 = vld [vmem:[%s1 + $0x798] sm:$0xf]
    %v516 = vld [vmem:[%s1 + $0x79c] sm:$0xf]
    %v517 = vld [vmem:[%s1 + $0x7a0] sm:$0xf]
    %v518 = vld [vmem:[%s1 + $0x7a4] sm:$0xf]
    %v519 = vld [vmem:[%s1 + $0x7a8] sm:$0xf]
    %v520 = vld [vmem:[%s1 + $0x7ac] sm:$0xf]
    %v521 = vld [vmem:[%s1 + $0x7b0] sm:$0xf]
    %v522 = vld [vmem:[%s1 + $0x7b4] sm:$0xf]
    %v523 = vld [vmem:[%s1 + $0x7b8] sm:$0xf]
    %v524 = vld [vmem:[%s1 + $0x7bc] sm:$0xf]
    %v525 = vld [vmem:[%s1 + $0x7c0] sm:$0xf]
    %v526 = vld [vmem:[%s1 + $0x7c4] sm:$0xf]
    %v527 = vld [vmem:[%s1 + $0x7c8] sm:$0xf]
    %v528 = vld [vmem:[%s1 + $0x7cc] sm:$0xf]
    %v529 = vld [vmem:[%s1 + $0x7d0] sm:$0xf]
    %v530 = vld [vmem:[%s1 + $0x7d4] sm:$0xf]
    %v531 = vld [vmem:[%s1 + $0x7d8] sm:$0xf]
    %v532 = vld [vmem:[%s1 + $0x7dc] sm:$0xf]
    %v533 = vld [vmem:[%s1 + $0x7e0] sm:$0xf]
    %v534 = vld [vmem:[%s1 + $0x7e4] sm:$0xf]
    %v535 = vld [vmem:[%s1 + $0x7e8] sm:$0xf]
    %v536 = vld [vmem:[%s1 + $0x7ec] sm:$0xf]
    %v537 = vld [vmem:[%s1 + $0x7f0] sm:$0xf]
    %v538 = vld [vmem:[%s1 + $0x7f4] sm:$0xf]
    %v539 = vld [vmem:[%s1 + $0x7f8] sm:$0xf]
    %v540 = vld [vmem:[%s1 + $0x7fc] sm:$0xf]
    %v541 = vld [vmem:[%s1 + $0x800] sm:$0xf]
    %v542 = vld [vmem:[%s1 + $0x804] sm:$0xf]
    %v543 = vld [vmem:[%s1 + $0x808] sm:$0xf]
    %v544 = vld [vmem:[%s1 + $0x80c] sm:$0xf]
    %v545 = vld [vmem:[%s1 + $0x810] sm:$0xf]
    %v546 = vld [vmem:[%s1 + $0x814] sm:$0xf]
    %v547 = vld [vmem:[%s1 + $0x818] sm:$0xf]
    %v548 = vld [vmem:[%s1 + $0x81c] sm:$0xf]
    %v549 = vld [vmem:[%s1 + $0x820] sm:$0xf]
    %v550 = vld [vmem:[%s1 + $0x824] sm:$0xf]
    %v551 = vld [vmem:[%s1 + $0x828] sm:$0xf]
    %v552 = vld [vmem:[%s1 + $0x82c] sm:$0xf]
    %v553 = vld [vmem:[%s1 + $0x830] sm:$0xf]
    %v554 = vld [vmem:[%s1 + $0x834] sm:$0xf]
    %v555 = vld [vmem:[%s1 + $0x838] sm:$0xf]
    %v556 = vld [vmem:[%s1 + $0x83c] sm:$0xf]
    %v557 = vld [vmem:[%s1 + $0x840] sm:$0xf]
    %v558 = vld [vmem:[%s1 + $0x844] sm:$0xf]
    %v559 = vld [vmem:[%s1 + $0x848] sm:$0xf]
    %v560 = vld [vmem:[%s1 + $0x84c] sm:$0xf]
    %v561 = vld [vmem:[%s1 + $0x850] sm:$0xf]
    %v562 = vld [vmem:[%s1 + $0x854] sm:$0xf]
    %v563 = vld [vmem:[%s1 + $0x858] sm:$0xf]
    %v564 = vld [vmem:[%s1 + $0x85c] sm:$0xf]
    %v565 = vld [vmem:[%s1 + $0x860] sm:$0xf]
    %v566 = vld [vmem:[%s1 + $0x864] sm:$0xf]
    %v567 = vld [vmem:[%s1 + $0x868] sm:$0xf]
    %v568 = vld [vmem:[%s1 + $0x86c] sm:$0xf]
    %v569 = vld [vmem:[%s1 + $0x870] sm:$0xf]
    %v570 = vld [vmem:[%s1 + $0x874] sm:$0xf]
    %v571 = vld [vmem:[%s1 + $0x878] sm:$0xf]
    %v572 = vld [vmem:[%s1 + $0x87c] sm:$0xf]
    %v573 = vld [vmem:[%s1 + $0x880] sm:$0xf]
    %v574 = vld [vmem:[%s1 + $0x884] sm:$0xf]
    %v575 = vld [vmem:[%s1 + $0x888] sm:$0xf]
    %v576 = vld [vmem:[%s1 + $0x88c] sm:$0xf]
    %v577 = vld [vmem:[%s1 + $0x890] sm:$0xf]
    %v578 = vld [vmem:[%s1 + $0x894] sm:$0xf]
    %v579 = vld [vmem:[%s1 + $0x898] sm:$0xf]
    %v580 = vld [vmem:[%s1 + $0x89c] sm:$0xf]
    %v581 = vld [vmem:[%s1 + $0x8a0] sm:$0xf]
    %v582 = vld [vmem:[%s1 + $0x8a4] sm:$0xf]
    %v583 = vld [vmem:[%s1 + $0x8a8] sm:$0xf]
    %v584 = vld [vmem:[%s1 + $0x8ac] sm:$0xf]
    %v585 = vld [vmem:[%s1 + $0x8b0] sm:$0xf]
    %v586 = vld [vmem:[%s1 + $0x8b4] sm:$0xf]
    %v587 = vld [vmem:[%s1 + $0x8b8] sm:$0xf]
    %v588 = vld [vmem:[%s1 + $0x8bc] sm:$0xf]
    %v589 = vld [vmem:[%s1 + $0x8c0] sm:$0xf]
    %v590 = vld [vmem:[%s1 + $0x8c4] sm:$0xf]
    %v591 = vld [vmem:[%s1 + $0x8c8] sm:$0xf]
    %v592 = vld [vmem:[%s1 + $0x8cc] sm:$0xf]
    %v593 = vld [vmem:[%s1 + $0x8d0] sm:$0xf]
    %v594 = vld [vmem:[%s1 + $0x8d4] sm:$0xf]
    %v595 = vld [vmem:[%s1 + $0x8d8] sm:$0xf]
    %v596 = vld [vmem:[%s1 + $0x8dc] sm:$0xf]
    %v597 = vld [vmem:[%s1 + $0x8e0] sm:$0xf]
    %v598 = vld [vmem:[%s1 + $0x8e4] sm:$0xf]
    %v599 = vld [vmem:[%s1 + $0x8e8] sm:$0xf]
    %v600 = vld [vmem:[%s1 + $0x8ec] sm:$0xf]
    %v601 = vld [vmem:[%s1 + $0x8f0] sm:$0xf]
    %v602 = vld [vmem:[%s1 + $0x8f4] sm:$0xf]
    %v603 = vld [vmem:[%s1 + $0x8f8] sm:$0xf]
    %v604 = vld [vmem:[%s1 + $0x8fc] sm:$0xf]
    %v605 = vld [vmem:[%s1 + $0x900] sm:$0xf]
    %v606 = vld [vmem:[%s1 + $0x904] sm:$0xf]
    %v607 = vld [vmem:[%s1 + $0x908] sm:$0xf]
    %v608 = vld [vmem:[%s1 + $0x90c] sm:$0xf]
    %v609 = vld [vmem:[%s1 + $0x910] sm:$0xf]
    %v610 = vld [vmem:[%s1 + $0x914] sm:$0xf]
    %v611 = vld [vmem:[%s1 + $0x918] sm:$0xf]
    %v612 = vld [vmem:[%s1 + $0x91c] sm:$0xf]
    %v613 = vld [vmem:[%s1 + $0x920] sm:$0xf]
    %v614 = vld [vmem:[%s1 + $0x924] sm:$0xf]
    %v615 = vld [vmem:[%s1 + $0x928] sm:$0xf]
    %v616 = vld [vmem:[%s1 + $0x92c] sm:$0xf]
    %v617 = vld [vmem:[%s1 + $0x930] sm:$0xf]
    %v618 = vld [vmem:[%s1 + $0x934] sm:$0xf]
    %v619 = vld [vmem:[%s1 + $0x938] sm:$0xf]
    %v620 = vld [vmem:[%s1 + $0x93c] sm:$0xf]
    %v621 = vld [vmem:[%s1 + $0x940] sm:$0xf]
    %v622 = vld [vmem:[%s1 + $0x944] sm:$0xf]
    %v623 = vld [vmem:[%s1 + $0x948] sm:$0xf]
    %v624 = vld [vmem:[%s1 + $0x94c] sm:$0xf]
    %v625 = vld [vmem:[%s1 + $0x950] sm:$0xf]
    %v626 = vld [vmem:[%s1 + $0x954] sm:$0xf]
    %v627 = vld [vmem:[%s1 + $0x958] sm:$0xf]
    %v628 = vld [vmem:[%s1 + $0x95c] sm:$0xf]
    %v629 = vld [vmem:[%s1 + $0x960] sm:$0xf]
    %v630 = vld [vmem:[%s1 + $0x964] sm:$0xf]
    %v631 = vld [vmem:[%s1 + $0x968] sm:$0xf]
    %v632 = vld [vmem:[%s1 + $0x96c] sm:$0xf]
    %v633 = vld [vmem:[%s1 + $0x970] sm:$0xf]
    %v634 = vld [vmem:[%s1 + $0x974] sm:$0xf]
    %v635 = vld [vmem:[%s1 + $0x978] sm:$0xf]
    %v636 = vld [vmem:[%s1 + $0x97c] sm:$0xf]
    %v637 = vld [vmem:[%s1 + $0x980] sm:$0xf]
    %v638 = vld [vmem:[%s1 + $0x984] sm:$0xf]
    %v639 = vld [vmem:[%s1 + $0x988] sm:$0xf]
    %v640 = vld [vmem:[%s1 + $0x98c] sm:$0xf]
    %v641 = vld [vmem:[%s1 + $0x990] sm:$0xf]
    %v642 = vld [vmem:[%s1 + $0x994] sm:$0xf]
    %v643 = vld [vmem:[%s1 + $0x998] sm:$0xf]
    %v644 = vld [vmem:[%s1 + $0x99c] sm:$0xf]
    %v645 = vld [vmem:[%s1 + $0x9a0] sm:$0xf]
    %v646 = vld [vmem:[%s1 + $0x9a4] sm:$0xf]
    %v647 = vld [vmem:[%s1 + $0x9a8] sm:$0xf]
    %v648 = vld [vmem:[%s1 + $0x9ac] sm:$0xf]
    %v649 = vld [vmem:[%s1 + $0x9b0] sm:$0xf]
    %v650 = vld [vmem:[%s1 + $0x9b4] sm:$0xf]
    %v651 = vld [vmem:[%s1 + $0x9b8] sm:$0xf]
    %v652 = vld [vmem:[%s1 + $0x9bc] sm:$0xf]
    %v653 = vld [vmem:[%s1 + $0x9c0] sm:$0xf]
    %v654 = vld [vmem:[%s1 + $0x9c4] sm:$0xf]
    %v655 = vld [vmem:[%s1 + $0x9c8] sm:$0xf]
    %v656 = vld [vmem:[%s1 + $0x9cc] sm:$0xf]
    %v657 = vld [vmem:[%s1 + $0x9d0] sm:$0xf]
    %v658 = vld [vmem:[%s1 + $0x9d4] sm:$0xf]
    %v659 = vld [vmem:[%s1 + $0x9d8] sm:$0xf]
    %v660 = vld [vmem:[%s1 + $0x9dc] sm:$0xf]
    %v661 = vld [vmem:[%s1 + $0x9e0] sm:$0xf]
    %v662 = vld [vmem:[%s1 + $0x9e4] sm:$0xf]
    %v663 = vld [vmem:[%s1 + $0x9e8] sm:$0xf]
    %v664 = vld [vmem:[%s1 + $0x9ec] sm:$0xf]
    %v665 = vld [vmem:[%s1 + $0x9f0] sm:$0xf]
    %v666 = vld [vmem:[%s1 + $0x9f4] sm:$0xf]
    %v667 = vld [vmem:[%s1 + $0x9f8] sm:$0xf]
    %v668 = vld [vmem:[%s1 + $0x9fc] sm:$0xf]
    %v669 = vld [vmem:[%s1 + $0xa00] sm:$0xf]
    %v670 = vld [vmem:[%s1 + $0xa04] sm:$0xf]
    %v671 = vld [vmem:[%s1 + $0xa08] sm:$0xf]
    %v672 = vld [vmem:[%s1 + $0xa0c] sm:$0xf]
    %v673 = vld [vmem:[%s1 + $0xa10] sm:$0xf]
    %v674 = vld [vmem:[%s1 + $0xa14] sm:$0xf]
    %v675 = vld [vmem:[%s1 + $0xa18] sm:$0xf]
    %v676 = vld [vmem:[%s1 + $0xa1c] sm:$0xf]
    %v677 = vld [vmem:[%s1 + $0xa20] sm:$0xf]
    %v678 = vld [vmem:[%s1 + $0xa24] sm:$0xf]
    %v679 = vld [vmem:[%s1 + $0xa28] sm:$0xf]
    %v680 = vld [vmem:[%s1 + $0xa2c] sm:$0xf]
    %v681 = vld [vmem:[%s1 + $0xa30] sm:$0xf]
    %v682 = vld [vmem:[%s1 + $0xa34] sm:$0xf]
    %v683 = vld [vmem:[%s1 + $0xa38] sm:$0xf]
    %v684 = vld [vmem:[%s1 + $0xa3c] sm:$0xf]
    %v685 = vld [vmem:[%s1 + $0xa40] sm:$0xf]
    %v686 = vld [vmem:[%s1 + $0xa44] sm:$0xf]
    %v687 = vld [vmem:[%s1 + $0xa48] sm:$0xf]
    %v688 = vld [vmem:[%s1 + $0xa4c] sm:$0xf]
    %v689 = vld [vmem:[%s1 + $0xa50] sm:$0xf]
    %v690 = vld [vmem:[%s1 + $0xa54] sm:$0xf]
    %v691 = vld [vmem:[%s1 + $0xa58] sm:$0xf]
    %v692 = vld [vmem:[%s1 + $0xa5c] sm:$0xf]
    %v693 = vld [vmem:[%s1 + $0xa60] sm:$0xf]
    %v694 = vld [vmem:[%s1 + $0xa64] sm:$0xf]
    %v695 = vld [vmem:[%s1 + $0xa68] sm:$0xf]
    %v696 = vld [vmem:[%s1 + $0xa6c] sm:$0xf]
    %v697 = vld [vmem:[%s1 + $0xa70] sm:$0xf]
    %v698 = vld [vmem:[%s1 + $0xa74] sm:$0xf]
    %v699 = vld [vmem:[%s1 + $0xa78] sm:$0xf]
    %v700 = vld [vmem:[%s1 + $0xa7c] sm:$0xf]
    %v701 = vld [vmem:[%s1 + $0xa80] sm:$0xf]
    %v702 = vld [vmem:[%s1 + $0xa84] sm:$0xf]
    %v703 = vld [vmem:[%s1 + $0xa88] sm:$0xf]
    %v704 = vld [vmem:[%s1 + $0xa8c] sm:$0xf]
    %v705 = vld [vmem:[%s1 + $0xa90] sm:$0xf]
    %v706 = vld [vmem:[%s1 + $0xa94] sm:$0xf]
    %v707 = vld [vmem:[%s1 + $0xa98] sm:$0xf]
    %v708 = vld [vmem:[%s1 + $0xa9c] sm:$0xf]
    %v709 = vld [vmem:[%s1 + $0xaa0] sm:$0xf]
    %v710 = vld [vmem:[%s1 + $0xaa4] sm:$0xf]
    %v711 = vld [vmem:[%s1 + $0xaa8] sm:$0xf]
    %v712 = vld [vmem:[%s1 + $0xaac] sm:$0xf]
    %v713 = vld [vmem:[%s1 + $0xab0] sm:$0xf]
    %v714 = vld [vmem:[%s1 + $0xab4] sm:$0xf]
    %v715 = vld [vmem:[%s1 + $0xab8] sm:$0xf]
    %v716 = vld [vmem:[%s1 + $0xabc] sm:$0xf]
    %v717 = vld [vmem:[%s1 + $0xac0] sm:$0xf]
    %v718 = vld [vmem:[%s1 + $0xac4] sm:$0xf]
    %v719 = vld [vmem:[%s1 + $0xac8] sm:$0xf]
    %v720 = vld [vmem:[%s1 + $0xacc] sm:$0xf]
    %v721 = vld [vmem:[%s1 + $0xad0] sm:$0xf]
    %v722 = vld [vmem:[%s1 + $0xad4] sm:$0xf]
    %v723 = vld [vmem:[%s1 + $0xad8] sm:$0xf]
    %v724 = vld [vmem:[%s1 + $0xadc] sm:$0xf]
    %v725 = vld [vmem:[%s1 + $0xae0] sm:$0xf]
    %v726 = vld [vmem:[%s1 + $0xae4] sm:$0xf]
    %v727 = vld [vmem:[%s1 + $0xae8] sm:$0xf]
    %v728 = vld [vmem:[%s1 + $0xaec] sm:$0xf]
    %v729 = vld [vmem:[%s1 + $0xaf0] sm:$0xf]
    %v730 = vld [vmem:[%s1 + $0xaf4] sm:$0xf]
    %v731 = vld [vmem:[%s1 + $0xaf8] sm:$0xf]
    %v732 = vld [vmem:[%s1 + $0xafc] sm:$0xf]
    %v733 = vld [vmem:[%s1 + $0xb00] sm:$0xf]
    %v734 = vld [vmem:[%s1 + $0xb04] sm:$0xf]
    %v735 = vld [vmem:[%s1 + $0xb08] sm:$0xf]
    %v736 = vld [vmem:[%s1 + $0xb0c] sm:$0xf]
    %v737 = vld [vmem:[%s1 + $0xb10] sm:$0xf]
    %v738 = vld [vmem:[%s1 + $0xb14] sm:$0xf]
    %v739 = vld [vmem:[%s1 + $0xb18] sm:$0xf]
    %v740 = vld [vmem:[%s1 + $0xb1c] sm:$0xf]
    %v741 = vld [vmem:[%s1 + $0xb20] sm:$0xf]
    %v742 = vld [vmem:[%s1 + $0xb24] sm:$0xf]
    %v743 = vld [vmem:[%s1 + $0xb28] sm:$0xf]
    %v744 = vld [vmem:[%s1 + $0xb2c] sm:$0xf]
    %v745 = vld [vmem:[%s1 + $0xb30] sm:$0xf]
    %v746 = vld [vmem:[%s1 + $0xb34] sm:$0xf]
    %v747 = vld [vmem:[%s1 + $0xb38] sm:$0xf]
    %v748 = vld [vmem:[%s1 + $0xb3c] sm:$0xf]
    %v749 = vld [vmem:[%s1 + $0xb40] sm:$0xf]
    %v750 = vld [vmem:[%s1 + $0xb44] sm:$0xf]
    %v751 = vld [vmem:[%s1 + $0xb48] sm:$0xf]
    %v752 = vld [vmem:[%s1 + $0xb4c] sm:$0xf]
    %v753 = vld [vmem:[%s1 + $0xb50] sm:$0xf]
    %v754 = vld [vmem:[%s1 + $0xb54] sm:$0xf]
    %v755 = vld [vmem:[%s1 + $0xb58] sm:$0xf]
    %v756 = vld [vmem:[%s1 + $0xb5c] sm:$0xf]
    %v757 = vld [vmem:[%s1 + $0xb60] sm:$0xf]
    %v758 = vld [vmem:[%s1 + $0xb64] sm:$0xf]
    %v759 = vld [vmem:[%s1 + $0xb68] sm:$0xf]
    %v760 = vld [vmem:[%s1 + $0xb6c] sm:$0xf]
    %v761 = vld [vmem:[%s1 + $0xb70] sm:$0xf]
    %v762 = vld [vmem:[%s1 + $0xb74] sm:$0xf]
    %v763 = vld [vmem:[%s1 + $0xb78] sm:$0xf]
    %v764 = vld [vmem:[%s1 + $0xb7c] sm:$0xf]
    %v765 = vld [vmem:[%s1 + $0xb80] sm:$0xf]
    %v766 = vld [vmem:[%s1 + $0xb84] sm:$0xf]
    %v767 = vld [vmem:[%s1 + $0xb88] sm:$0xf]
    %v768 = vld [vmem:[%s1 + $0xb8c] sm:$0xf]
    %v769 = vld [vmem:[%s1 + $0xb90] sm:$0xf]
    %v770 = vld [vmem:[%s1 + $0xb94] sm:$0xf]
    %v771 = vld [vmem:[%s1 + $0xb98] sm:$0xf]
    %v772 = vld [vmem:[%s1 + $0xb9c] sm:$0xf]
    %v773 = vld [vmem:[%s1 + $0xba0] sm:$0xf]
    %v774 = vld [vmem:[%s1 + $0xba4] sm:$0xf]
    %v775 = vld [vmem:[%s1 + $0xba8] sm:$0xf]
    %v776 = vld [vmem:[%s1 + $0xbac] sm:$0xf]
    %v777 = vld [vmem:[%s1 + $0xbb0] sm:$0xf]
    %v778 = vld [vmem:[%s1 + $0xbb4] sm:$0xf]
    %v779 = vld [vmem:[%s1 + $0xbb8] sm:$0xf]
    %v780 = vld [vmem:[%s1 + $0xbbc] sm:$0xf]
    %v781 = vld [vmem:[%s1 + $0xbc0] sm:$0xf]
    %v782 = vld [vmem:[%s1 + $0xbc4] sm:$0xf]
    %v783 = vld [vmem:[%s1 + $0xbc8] sm:$0xf]
    %v784 = vld [vmem:[%s1 + $0xbcc] sm:$0xf]
    %v785 = vld [vmem:[%s1 + $0xbd0] sm:$0xf]
    %v786 = vld [vmem:[%s1 + $0xbd4] sm:$0xf]
    %v787 = vld [vmem:[%s1 + $0xbd8] sm:$0xf]
    %v788 = vld [vmem:[%s1 + $0xbdc] sm:$0xf]
    %v789 = vld [vmem:[%s1 + $0xbe0] sm:$0xf]
    %v790 = vld [vmem:[%s1 + $0xbe4] sm:$0xf]
    %v791 = vld [vmem:[%s1 + $0xbe8] sm:$0xf]
    %v792 = vld [vmem:[%s1 + $0xbec] sm:$0xf]
    %v793 = vld [vmem:[%s1 + $0xbf0] sm:$0xf]
    %v794 = vld [vmem:[%s1 + $0xbf4] sm:$0xf]
    %v795 = vld [vmem:[%s1 + $0xbf8] sm:$0xf]
    %v796 = vld [vmem:[%s1 + $0xbfc] sm:$0xf]
    %v797 = vld [vmem:[%s1 + $0xc00] sm:$0xf]
    %v798 = vld [vmem:[%s1 + $0xc04] sm:$0xf]
    %v799 = vld [vmem:[%s1 + $0xc08] sm:$0xf]
    %v800 = vld [vmem:[%s1 + $0xc0c] sm:$0xf]
    %v801 = vld [vmem:[%s1 + $0xc10] sm:$0xf]
    %v802 = vld [vmem:[%s1 + $0xc14] sm:$0xf]
    %v803 = vld [vmem:[%s1 + $0xc18] sm:$0xf]
    %v804 = vld [vmem:[%s1 + $0xc1c] sm:$0xf]
    %v805 = vld [vmem:[%s1 + $0xc20] sm:$0xf]
    %v806 = vld [vmem:[%s1 + $0xc24] sm:$0xf]
    %v807 = vld [vmem:[%s1 + $0xc28] sm:$0xf]
    %v808 = vld [vmem:[%s1 + $0xc2c] sm:$0xf]
    %v809 = vld [vmem:[%s1 + $0xc30] sm:$0xf]
    %v810 = vld [vmem:[%s1 + $0xc34] sm:$0xf]
    %v811 = vld [vmem:[%s1 + $0xc38] sm:$0xf]
    %v812 = vld [vmem:[%s1 + $0xc3c] sm:$0xf]
    %v813 = vld [vmem:[%s1 + $0xc40] sm:$0xf]
    %v814 = vld [vmem:[%s1 + $0xc44] sm:$0xf]
    %v815 = vld [vmem:[%s1 + $0xc48] sm:$0xf]
    %v816 = vld [vmem:[%s1 + $0xc4c] sm:$0xf]
    %v817 = vld [vmem:[%s1 + $0xc50] sm:$0xf]
    %v818 = vld [vmem:[%s1 + $0xc54] sm:$0xf]
    %v819 = vld [vmem:[%s1 + $0xc58] sm:$0xf]
    %v820 = vld [vmem:[%s1 + $0xc5c] sm:$0xf]
    %v821 = vld [vmem:[%s1 + $0xc60] sm:$0xf]
    %v822 = vld [vmem:[%s1 + $0xc64] sm:$0xf]
    %v823 = vld [vmem:[%s1 + $0xc68] sm:$0xf]
    %v824 = vld [vmem:[%s1 + $0xc6c] sm:$0xf]
    %v825 = vld [vmem:[%s1 + $0xc70] sm:$0xf]
    %v826 = vld [vmem:[%s1 + $0xc74] sm:$0xf]
    %v827 = vld [vmem:[%s1 + $0xc78] sm:$0xf]
    %v828 = vld [vmem:[%s1 + $0xc7c] sm:$0xf]
    %v829 = vld [vmem:[%s1 + $0xc80] sm:$0xf]
    %v830 = vld [vmem:[%s1 + $0xc84] sm:$0xf]
    %v831 = vld [vmem:[%s1 + $0xc88] sm:$0xf]
    %v832 = vld [vmem:[%s1 + $0xc8c] sm:$0xf]
    %v833 = vld [vmem:[%s1 + $0xc90] sm:$0xf]
    %v834 = vld [vmem:[%s1 + $0xc94] sm:$0xf]
    %v835 = vld [vmem:[%s1 + $0xc98] sm:$0xf]
    %v836 = vld [vmem:[%s1 + $0xc9c] sm:$0xf]
    %v837 = vld [vmem:[%s1 + $0xca0] sm:$0xf]
    %v838 = vld [vmem:[%s1 + $0xca4] sm:$0xf]
    %v839 = vld [vmem:[%s1 + $0xca8] sm:$0xf]
    %v840 = vld [vmem:[%s1 + $0xcac] sm:$0xf]
    %v841 = vld [vmem:[%s1 + $0xcb0] sm:$0xf]
    %v842 = vld [vmem:[%s1 + $0xcb4] sm:$0xf]
    %v843 = vld [vmem:[%s1 + $0xcb8] sm:$0xf]
    %v844 = vld [vmem:[%s1 + $0xcbc] sm:$0xf]
    %v845 = vld [vmem:[%s1 + $0xcc0] sm:$0xf]
    %v846 = vld [vmem:[%s1 + $0xcc4] sm:$0xf]
    %v847 = vld [vmem:[%s1 + $0xcc8] sm:$0xf]
    %v848 = vld [vmem:[%s1 + $0xccc] sm:$0xf]
    %v849 = vld [vmem:[%s1 + $0xcd0] sm:$0xf]
    %v850 = vld [vmem:[%s1 + $0xcd4] sm:$0xf]
    %v851 = vld [vmem:[%s1 + $0xcd8] sm:$0xf]
    %v852 = vld [vmem:[%s1 + $0xcdc] sm:$0xf]
    %v853 = vld [vmem:[%s1 + $0xce0] sm:$0xf]
    %v854 = vld [vmem:[%s1 + $0xce4] sm:$0xf]
    %v855 = vld [vmem:[%s1 + $0xce8] sm:$0xf]
    %v856 = vld [vmem:[%s1 + $0xcec] sm:$0xf]
    %v857 = vld [vmem:[%s1 + $0xcf0] sm:$0xf]
    %v858 = vld [vmem:[%s1 + $0xcf4] sm:$0xf]
    %v859 = vld [vmem:[%s1 + $0xcf8] sm:$0xf]
    %v860 = vld [vmem:[%s1 + $0xcfc] sm:$0xf]
    %v861 = vld [vmem:[%s1 + $0xd00] sm:$0xf]
    %v862 = vld [vmem:[%s1 + $0xd04] sm:$0xf]
    %v863 = vld [vmem:[%s1 + $0xd08] sm:$0xf]
    %v864 = vld [vmem:[%s1 + $0xd0c] sm:$0xf]
    %v865 = vld [vmem:[%s1 + $0xd10] sm:$0xf]
    %v866 = vld [vmem:[%s1 + $0xd14] sm:$0xf]
    %v867 = vld [vmem:[%s1 + $0xd18] sm:$0xf]
    %v868 = vld [vmem:[%s1 + $0xd1c] sm:$0xf]
    %v869 = vld [vmem:[%s1 + $0xd20] sm:$0xf]
    %v870 = vld [vmem:[%s1 + $0xd24] sm:$0xf]
    %v871 = vld [vmem:[%s1 + $0xd28] sm:$0xf]
    %v872 = vld [vmem:[%s1 + $0xd2c] sm:$0xf]
    %v873 = vld [vmem:[%s1 + $0xd30] sm:$0xf]
    %v874 = vld [vmem:[%s1 + $0xd34] sm:$0xf]
    %v875 = vld [vmem:[%s1 + $0xd38] sm:$0xf]
    %v876 = vld [vmem:[%s1 + $0xd3c] sm:$0xf]
    %v877 = vld [vmem:[%s1 + $0xd40] sm:$0xf]
    %v878 = vld [vmem:[%s1 + $0xd44] sm:$0xf]
    %v879 = vld [vmem:[%s1 + $0xd48] sm:$0xf]
    %v880 = vld [vmem:[%s1 + $0xd4c] sm:$0xf]
    %v881 = vld [vmem:[%s1 + $0xd50] sm:$0xf]
    %v882 = vld [vmem:[%s1 + $0xd54] sm:$0xf]
    %v883 = vld [vmem:[%s1 + $0xd58] sm:$0xf]
    %v884 = vld [vmem:[%s1 + $0xd5c] sm:$0xf]
    %v885 = vld [vmem:[%s1 + $0xd60] sm:$0xf]
    %v886 = vld [vmem:[%s1 + $0xd64] sm:$0xf]
    %v887 = vld [vmem:[%s1 + $0xd68] sm:$0xf]
    %v888 = vld [vmem:[%s1 + $0xd6c] sm:$0xf]
    %v889 = vld [vmem:[%s1 + $0xd70] sm:$0xf]
    %v890 = vld [vmem:[%s1 + $0xd74] sm:$0xf]
    %v891 = vld [vmem:[%s1 + $0xd78] sm:$0xf]
    %v892 = vld [vmem:[%s1 + $0xd7c] sm:$0xf]
    %v893 = vld [vmem:[%s1 + $0xd80] sm:$0xf]
    %v894 = vld [vmem:[%s1 + $0xd84] sm:$0xf]
    %v895 = vld [vmem:[%s1 + $0xd88] sm:$0xf]
    %v896 = vld [vmem:[%s1 + $0xd8c] sm:$0xf]
    %v897 = vld [vmem:[%s1 + $0xd90] sm:$0xf]
    %v898 = vld [vmem:[%s1 + $0xd94] sm:$0xf]
    %v899 = vld [vmem:[%s1 + $0xd98] sm:$0xf]
    %v900 = vld [vmem:[%s1 + $0xd9c] sm:$0xf]
    %v901 = vld [vmem:[%s1 + $0xda0] sm:$0xf]
    %v902 = vld [vmem:[%s1 + $0xda4] sm:$0xf]
    %v903 = vld [vmem:[%s1 + $0xda8] sm:$0xf]
    %v904 = vld [vmem:[%s1 + $0xdac] sm:$0xf]
    %v905 = vld [vmem:[%s1 + $0xdb0] sm:$0xf]
    %v906 = vld [vmem:[%s1 + $0xdb4] sm:$0xf]
    %v907 = vld [vmem:[%s1 + $0xdb8] sm:$0xf]
    %v908 = vld [vmem:[%s1 + $0xdbc] sm:$0xf]
    %v909 = vld [vmem:[%s1 + $0xdc0] sm:$0xf]
    %v910 = vld [vmem:[%s1 + $0xdc4] sm:$0xf]
    %v911 = vld [vmem:[%s1 + $0xdc8] sm:$0xf]
    %v912 = vld [vmem:[%s1 + $0xdcc] sm:$0xf]
    %v913 = vld [vmem:[%s1 + $0xdd0] sm:$0xf]
    %v914 = vld [vmem:[%s1 + $0xdd4] sm:$0xf]
    %v915 = vld [vmem:[%s1 + $0xdd8] sm:$0xf]
    %v916 = vld [vmem:[%s1 + $0xddc] sm:$0xf]
    %v917 = vld [vmem:[%s1 + $0xde0] sm:$0xf]
    %v918 = vld [vmem:[%s1 + $0xde4] sm:$0xf]
    %v919 = vld [vmem:[%s1 + $0xde8] sm:$0xf]
    %v920 = vld [vmem:[%s1 + $0xdec] sm:$0xf]
    %v921 = vld [vmem:[%s1 + $0xdf0] sm:$0xf]
    %v922 = vld [vmem:[%s1 + $0xdf4] sm:$0xf]
    %v923 = vld [vmem:[%s1 + $0xdf8] sm:$0xf]
    %v924 = vld [vmem:[%s1 + $0xdfc] sm:$0xf]
    %v925 = vld [vmem:[%s1 + $0xe00] sm:$0xf]
    %v926 = vld [vmem:[%s1 + $0xe04] sm:$0xf]
    %v927 = vld [vmem:[%s1 + $0xe08] sm:$0xf]
    %v928 = vld [vmem:[%s1 + $0xe0c] sm:$0xf]
    %v929 = vld [vmem:[%s1 + $0xe10] sm:$0xf]
    %v930 = vld [vmem:[%s1 + $0xe14] sm:$0xf]
    %v931 = vld [vmem:[%s1 + $0xe18] sm:$0xf]
    %v932 = vld [vmem:[%s1 + $0xe1c] sm:$0xf]
    %v933 = vld [vmem:[%s1 + $0xe20] sm:$0xf]
    %v934 = vld [vmem:[%s1 + $0xe24] sm:$0xf]
    %v935 = vld [vmem:[%s1 + $0xe28] sm:$0xf]
    %v936 = vld [vmem:[%s1 + $0xe2c] sm:$0xf]
    %v937 = vld [vmem:[%s1 + $0xe30] sm:$0xf]
    %v938 = vld [vmem:[%s1 + $0xe34] sm:$0xf]
    %v939 = vld [vmem:[%s1 + $0xe38] sm:$0xf]
    %v940 = vld [vmem:[%s1 + $0xe3c] sm:$0xf]
    %v941 = vld [vmem:[%s1 + $0xe40] sm:$0xf]
    %v942 = vld [vmem:[%s1 + $0xe44] sm:$0xf]
    %v943 = vld [vmem:[%s1 + $0xe48] sm:$0xf]
    %v944 = vld [vmem:[%s1 + $0xe4c] sm:$0xf]
    %v945 = vld [vmem:[%s1 + $0xe50] sm:$0xf]
    %v946 = vld [vmem:[%s1 + $0xe54] sm:$0xf]
    %v947 = vld [vmem:[%s1 + $0xe58] sm:$0xf]
    %v948 = vld [vmem:[%s1 + $0xe5c] sm:$0xf]
    %v949 = vld [vmem:[%s1 + $0xe60] sm:$0xf]
    %v950 = vld [vmem:[%s1 + $0xe64] sm:$0xf]
    %v951 = vld [vmem:[%s1 + $0xe68] sm:$0xf]
    %v952 = vld [vmem:[%s1 + $0xe6c] sm:$0xf]
    %v953 = vld [vmem:[%s1 + $0xe70] sm:$0xf]
    %v954 = vld [vmem:[%s1 + $0xe74] sm:$0xf]
    %v955 = vld [vmem:[%s1 + $0xe78] sm:$0xf]
    %v956 = vld [vmem:[%s1 + $0xe7c] sm:$0xf]
    %v957 = vld [vmem:[%s1 + $0xe80] sm:$0xf]
    %v958 = vld [vmem:[%s1 + $0xe84] sm:$0xf]
    %v959 = vld [vmem:[%s1 + $0xe88] sm:$0xf]
    %v960 = vld [vmem:[%s1 + $0xe8c] sm:$0xf]
    %v961 = vld [vmem:[%s1 + $0xe90] sm:$0xf]
    %v962 = vld [vmem:[%s1 + $0xe94] sm:$0xf]
    %v963 = vld [vmem:[%s1 + $0xe98] sm:$0xf]
    %v964 = vld [vmem:[%s1 + $0xe9c] sm:$0xf]
    %v965 = vld [vmem:[%s1 + $0xea0] sm:$0xf]
    %v966 = vld [vmem:[%s1 + $0xea4] sm:$0xf]
    %v967 = vld [vmem:[%s1 + $0xea8] sm:$0xf]
    %v968 = vld [vmem:[%s1 + $0xeac] sm:$0xf]
    %v969 = vld [vmem:[%s1 + $0xeb0] sm:$0xf]
    %v970 = vld [vmem:[%s1 + $0xeb4] sm:$0xf]
    %v971 = vld [vmem:[%s1 + $0xeb8] sm:$0xf]
    %v972 = vld [vmem:[%s1 + $0xebc] sm:$0xf]
    %v973 = vld [vmem:[%s1 + $0xec0] sm:$0xf]
    %v974 = vld [vmem:[%s1 + $0xec4] sm:$0xf]
    %v975 = vld [vmem:[%s1 + $0xec8] sm:$0xf]
    %v976 = vld [vmem:[%s1 + $0xecc] sm:$0xf]
    %v977 = vld [vmem:[%s1 + $0xed0] sm:$0xf]
    %v978 = vld [vmem:[%s1 + $0xed4] sm:$0xf]
    %v979 = vld [vmem:[%s1 + $0xed8] sm:$0xf]
    %v980 = vld [vmem:[%s1 + $0xedc] sm:$0xf]
    %v981 = vld [vmem:[%s1 + $0xee0] sm:$0xf]
    %v982 = vld [vmem:[%s1 + $0xee4] sm:$0xf]
    %v983 = vld [vmem:[%s1 + $0xee8] sm:$0xf]
    %v984 = vld [vmem:[%s1 + $0xeec] sm:$0xf]
    %v985 = vld [vmem:[%s1 + $0xef0] sm:$0xf]
    %v986 = vld [vmem:[%s1 + $0xef4] sm:$0xf]
    %v987 = vld [vmem:[%s1 + $0xef8] sm:$0xf]
    %v988 = vld [vmem:[%s1 + $0xefc] sm:$0xf]
    %v989 = vld [vmem:[%s1 + $0xf00] sm:$0xf]
    %v990 = vld [vmem:[%s1 + $0xf04] sm:$0xf]
    %v991 = vld [vmem:[%s1 + $0xf08] sm:$0xf]
    %v992 = vld [vmem:[%s1 + $0xf0c] sm:$0xf]
    %v993 = vld [vmem:[%s1 + $0xf10] sm:$0xf]
    %v994 = vld [vmem:[%s1 + $0xf14] sm:$0xf]
    %v995 = vld [vmem:[%s1 + $0xf18] sm:$0xf]
    %v996 = vld [vmem:[%s1 + $0xf1c] sm:$0xf]
    %v997 = vld [vmem:[%s1 + $0xf20] sm:$0xf]
    %v998 = vld [vmem:[%s1 + $0xf24] sm:$0xf]
    %v999 = vld [vmem:[%s1 + $0xf28] sm:$0xf]
    %v1000 = vld [vmem:[%s1 + $0xf2c] sm:$0xf]
    %v1001 = vld [vmem:[%s1 + $0xf30] sm:$0xf]
    %v1002 = vld [vmem:[%s1 + $0xf34] sm:$0xf]
    %v1003 = vld [vmem:[%s1 + $0xf38] sm:$0xf]
    %v1004 = vld [vmem:[%s1 + $0xf3c] sm:$0xf]
    %v1005 = vld [vmem:[%s1 + $0xf40] sm:$0xf]
    %v1006 = vld [vmem:[%s1 + $0xf44] sm:$0xf]
    %v1007 = vld [vmem:[%s1 + $0xf48] sm:$0xf]
    %v1008 = vld [vmem:[%s1 + $0xf4c] sm:$0xf]
    %v1009 = vld [vmem:[%s1 + $0xf50] sm:$0xf]
    %v1010 = vld [vmem:[%s1 + $0xf54] sm:$0xf]
    %v1011 = vld [vmem:[%s1 + $0xf58] sm:$0xf]
    %v1012 = vld [vmem:[%s1 + $0xf5c] sm:$0xf]
    %v1013 = vld [vmem:[%s1 + $0xf60] sm:$0xf]
    %v1014 = vld [vmem:[%s1 + $0xf64] sm:$0xf]
    %v1015 = vld [vmem:[%s1 + $0xf68] sm:$0xf]
    %v1016 = vld [vmem:[%s1 + $0xf6c] sm:$0xf]
    %v1017 = vld [vmem:[%s1 + $0xf70] sm:$0xf]
    %v1018 = vld [vmem:[%s1 + $0xf74] sm:$0xf]
    %v1019 = vld [vmem:[%s1 + $0xf78] sm:$0xf]
    %v1020 = vld [vmem:[%s1 + $0xf7c] sm:$0xf]
    %v1021 = vld [vmem:[%s1 + $0xf80] sm:$0xf]
    %v1022 = vld [vmem:[%s1 + $0xf84] sm:$0xf]
    %v1023 = vld [vmem:[%s1 + $0xf88] sm:$0xf]
    %v1024 = vld [vmem:[%s1 + $0xf8c] sm:$0xf]
    %v1025 = vld [vmem:[%s1 + $0xf90] sm:$0xf]
    %v1026 = vld [vmem:[%s1 + $0xf94] sm:$0xf]
    %v1027 = vld [vmem:[%s1 + $0xf98] sm:$0xf]
    %v1028 = vld [vmem:[%s1 + $0xf9c] sm:$0xf]
    %v1029 = vld [vmem:[%s1 + $0xfa0] sm:$0xf]
    %v1030 = vld [vmem:[%s1 + $0xfa4] sm:$0xf]
    %v1031 = vld [vmem:[%s1 + $0xfa8] sm:$0xf]
    %v1032 = vld [vmem:[%s1 + $0xfac] sm:$0xf]
    %v1033 = vld [vmem:[%s1 + $0xfb0] sm:$0xf]
    %v1034 = vld [vmem:[%s1 + $0xfb4] sm:$0xf]
    %v1035 = vld [vmem:[%s1 + $0xfb8] sm:$0xf]
    %v1036 = vld [vmem:[%s1 + $0xfbc] sm:$0xf]
    %v1037 = vld [vmem:[%s1 + $0xfc0] sm:$0xf]
    %v1038 = vld [vmem:[%s1 + $0xfc4] sm:$0xf]
    %v1039 = vld [vmem:[%s1 + $0xfc8] sm:$0xf]
    %v1040 = vld [vmem:[%s1 + $0xfcc] sm:$0xf]
    %v1041 = vld [vmem:[%s1 + $0xfd0] sm:$0xf]
    %v1042 = vld [vmem:[%s1 + $0xfd4] sm:$0xf]
    %v1043 = vld [vmem:[%s1 + $0xfd8] sm:$0xf]
    %v1044 = vld [vmem:[%s1 + $0xfdc] sm:$0xf]
    %v1045 = vld [vmem:[%s1 + $0xfe0] sm:$0xf]
    %v1046 = vld [vmem:[%s1 + $0xfe4] sm:$0xf]
    %v1047 = vld [vmem:[%s1 + $0xfe8] sm:$0xf]
    %v1048 = vld [vmem:[%s1 + $0xfec] sm:$0xf]
    %v1049 = vld [vmem:[%s1 + $0xff0] sm:$0xf]
    %v1050 = vld [vmem:[%s1 + $0xff4] sm:$0xf]
    %v1051 = vld [vmem:[%s1 + $0xff8] sm:$0xf]
    %v1052 = vld [vmem:[%s1 + $0xffc] sm:$0xf]
    %v1053 = vld [vmem:[%s2] sm:$0x1]
    %v1055 = vperm.slane %v1053, 0
    %1058 = vst [vmem:[#allocation1] ss:$9 sm:$0xff] %v21
    %v1059 = vld [vmem:[#allocation1] sm:$0xff]
    %v1060 = vld [vmem:[#allocation1 + $0x9] sm:$0xff]
    %v1061 = vld [vmem:[#allocation1 + $0x12] sm:$0xff]
    %v1062 = vld [vmem:[#allocation1 + $0x1b] sm:$0xff]
    %v1063 = vld [vmem:[#allocation1 + $0x24] sm:$0xff]
    %v1064 = vld [vmem:[#allocation1 + $0x2d] sm:$0xff]
    %v1065 = vld [vmem:[#allocation1 + $0x36] sm:$0xff]
    %v1066 = vld [vmem:[#allocation1 + $0x3f] sm:$0xff]
    %1068 = vst [vmem:[#allocation1] ss:$9 sm:$0xff] %v22
    %v1069 = vld [vmem:[#allocation1] sm:$0xff]
    %v1070 = vld [vmem:[#allocation1 + $0x9] sm:$0xff]
    %v1071 = vld [vmem:[#allocation1 + $0x12] sm:$0xff]
    %v1072 = vld [vmem:[#allocation1 + $0x1b] sm:$0xff]
    %v1073 = vld [vmem:[#allocation1 + $0x24] sm:$0xff]
    %v1074 = vld [vmem:[#allocation1 + $0x2d] sm:$0xff]
    %v1075 = vld [vmem:[#allocation1 + $0x36] sm:$0xff]
    %v1076 = vld [vmem:[#allocation1 + $0x3f] sm:$0xff]
    %1078 = vst [vmem:[#allocation1] ss:$9 sm:$0xff] %v23
    %v1079 = vld [vmem:[#allocation1] sm:$0xff]
    %v1080 = vld [vmem:[#allocation1 + $0x9] sm:$0xff]
    %v1081 = vld [vmem:[#allocation1 + $0x12] sm:$0xff]
    %v1082 = vld [vmem:[#allocation1 + $0x1b] sm:$0xff]
    %v1083 = vld [vmem:[#allocation1 + $0x24] sm:$0xff]
    %v1084 = vld [vmem:[#allocation1 + $0x2d] sm:$0xff]
    %v1085 = vld [vmem:[#allocation1 + $0x36] sm:$0xff]
    %v1086 = vld [vmem:[#allocation1 + $0x3f] sm:$0xff]
    %1088 = vst [vmem:[#allocation1] ss:$9 sm:$0xff] %v24
    %v1089 = vld [vmem:[#allocation1] sm:$0xff]
    %v1090 = vld [vmem:[#allocation1 + $0x9] sm:$0xff]
    %v1091 = vld [vmem:[#allocation1 + $0x12] sm:$0xff]
    %v1092 = vld [vmem:[#allocation1 + $0x1b] sm:$0xff]
    %v1093 = vld [vmem:[#allocation1 + $0x24] sm:$0xff]
    %v1094 = vld [vmem:[#allocation1 + $0x2d] sm:$0xff]
    %v1095 = vld [vmem:[#allocation1 + $0x36] sm:$0xff]
    %v1096 = vld [vmem:[#allocation1 + $0x3f] sm:$0xff]
    %1098 = vst [vmem:[#allocation1] ss:$9 sm:$0xff] %v25
    %v1099 = vld [vmem:[#allocation1] sm:$0xff]
    %v1100 = vld [vmem:[#allocation1 + $0x9] sm:$0xff]
    %v1101 = vld [vmem:[#allocation1 + $0x12] sm:$0xff]
    %v1102 = vld [vmem:[#allocation1 + $0x1b] sm:$0xff]
    %v1103 = vld [vmem:[#allocation1 + $0x24] sm:$0xff]
    %v1104 = vld [vmem:[#allocation1 + $0x2d] sm:$0xff]
    %v1105 = vld [vmem:[#allocation1 + $0x36] sm:$0xff]
    %v1106 = vld [vmem:[#allocation1 + $0x3f] sm:$0xff]
    %1108 = vst [vmem:[#allocation1] ss:$9 sm:$0xff] %v26
    %v1109 = vld [vmem:[#allocation1] sm:$0xff]
    %v1110 = vld [vmem:[#allocation1 + $0x9] sm:$0xff]
    %v1111 = vld [vmem:[#allocation1 + $0x12] sm:$0xff]
    %v1112 = vld [vmem:[#allocation1 + $0x1b] sm:$0xff]
    %v1113 = vld [vmem:[#allocation1 + $0x24] sm:$0xff]
    %v1114 = vld [vmem:[#allocation1 + $0x2d] sm:$0xff]
    %v1115 = vld [vmem:[#allocation1 + $0x36] sm:$0xff]
    %v1116 = vld [vmem:[#allocation1 + $0x3f] sm:$0xff]
    %1118 = vst [vmem:[#allocation1] ss:$9 sm:$0xff] %v27
    %v1119 = vld [vmem:[#allocation1] sm:$0xff]
    %v1120 = vld [vmem:[#allocation1 + $0x9] sm:$0xff]
    %v1121 = vld [vmem:[#allocation1 + $0x12] sm:$0xff]
    %v1122 = vld [vmem:[#allocation1 + $0x1b] sm:$0xff]
    %v1123 = vld [vmem:[#allocation1 + $0x24] sm:$0xff]
    %v1124 = vld [vmem:[#allocation1 + $0x2d] sm:$0xff]
    %v1125 = vld [vmem:[#allocation1 + $0x36] sm:$0xff]
    %v1126 = vld [vmem:[#allocation1 + $0x3f] sm:$0xff]
    %1128 = vst [vmem:[#allocation1] ss:$9 sm:$0xff] %v28
    %v1129 = vld [vmem:[#allocation1] sm:$0xff]
    %v1130 = vld [vmem:[#allocation1 + $0x9] sm:$0xff]
    %v1131 = vld [vmem:[#allocation1 + $0x12] sm:$0xff]
    %v1132 = vld [vmem:[#allocation1 + $0x1b] sm:$0xff]
    %v1133 = vld [vmem:[#allocation1 + $0x24] sm:$0xff]
    %v1134 = vld [vmem:[#allocation1 + $0x2d] sm:$0xff]
    %v1135 = vld [vmem:[#allocation1 + $0x36] sm:$0xff]
    %v1136 = vld [vmem:[#allocation1 + $0x3f] sm:$0xff]
    %v2225 = vunpack.c.l.b16 %v29
    %v2226 = vunpack.c.l.b16 %v30
    %v2227 = vunpack.c.l.b16 %v31
    %v2228 = vunpack.c.l.b16 %v32
    %v2229 = vunpack.c.l.b16 %v33
    %v2230 = vunpack.c.l.b16 %v34
    %v2231 = vunpack.c.l.b16 %v35
    %v2232 = vunpack.c.l.b16 %v36
    %v2233 = vunpack.c.l.b16 %v37
    %v2234 = vunpack.c.l.b16 %v38
    %v2235 = vunpack.c.l.b16 %v39
    %v2236 = vunpack.c.l.b16 %v40
    %v2237 = vunpack.c.l.b16 %v41
    %v2238 = vunpack.c.l.b16 %v42
    %v2239 = vunpack.c.l.b16 %v43
    %v2240 = vunpack.c.l.b16 %v44
    %v2241 = vunpack.c.l.b16 %v45
    %v2242 = vunpack.c.l.b16 %v46
    %v2243 = vunpack.c.l.b16 %v47
    %v2244 = vunpack.c.l.b16 %v48
    %v2245 = vunpack.c.l.b16 %v49
    %v2246 = vunpack.c.l.b16 %v50
    %v2247 = vunpack.c.l.b16 %v51
    %v2248 = vunpack.c.l.b16 %v52
    %v2249 = vunpack.c.l.b16 %v53
    %v2250 = vunpack.c.l.b16 %v54
    %v2251 = vunpack.c.l.b16 %v55
    %v2252 = vunpack.c.l.b16 %v56
    %v2253 = vunpack.c.l.b16 %v57
    %v2254 = vunpack.c.l.b16 %v58
    %v2255 = vunpack.c.l.b16 %v59
    %v2256 = vunpack.c.l.b16 %v60
    %v2257 = vunpack.c.l.b16 %v61
    %v2258 = vunpack.c.l.b16 %v62
    %v2259 = vunpack.c.l.b16 %v63
    %v2260 = vunpack.c.l.b16 %v64
    %v2261 = vunpack.c.l.b16 %v65
    %v2262 = vunpack.c.l.b16 %v66
    %v2263 = vunpack.c.l.b16 %v67
    %v2264 = vunpack.c.l.b16 %v68
    %v2265 = vunpack.c.l.b16 %v69
    %v2266 = vunpack.c.l.b16 %v70
    %v2267 = vunpack.c.l.b16 %v71
    %v2268 = vunpack.c.l.b16 %v72
    %v2269 = vunpack.c.l.b16 %v73
    %v2270 = vunpack.c.l.b16 %v74
    %v2271 = vunpack.c.l.b16 %v75
    %v2272 = vunpack.c.l.b16 %v76
    %v2273 = vunpack.c.l.b16 %v77
    %v2274 = vunpack.c.l.b16 %v78
    %v2275 = vunpack.c.l.b16 %v79
    %v2276 = vunpack.c.l.b16 %v80
    %v2277 = vunpack.c.l.b16 %v81
    %v2278 = vunpack.c.l.b16 %v82
    %v2279 = vunpack.c.l.b16 %v83
    %v2280 = vunpack.c.l.b16 %v84
    %v2281 = vunpack.c.l.b16 %v85
    %v2282 = vunpack.c.l.b16 %v86
    %v2283 = vunpack.c.l.b16 %v87
    %v2284 = vunpack.c.l.b16 %v88
    %v2285 = vunpack.c.l.b16 %v89
    %v2286 = vunpack.c.l.b16 %v90
    %v2287 = vunpack.c.l.b16 %v91
    %v2288 = vunpack.c.l.b16 %v92
    %v2289 = vunpack.c.l.b16 %v93
    %v2290 = vunpack.c.l.b16 %v94
    %v2291 = vunpack.c.l.b16 %v95
    %v2292 = vunpack.c.l.b16 %v96
    %v2293 = vunpack.c.l.b16 %v97
    %v2294 = vunpack.c.l.b16 %v98
    %v2295 = vunpack.c.l.b16 %v99
    %v2296 = vunpack.c.l.b16 %v100
    %v2297 = vunpack.c.l.b16 %v101
    %v2298 = vunpack.c.l.b16 %v102
    %v2299 = vunpack.c.l.b16 %v103
    %v2300 = vunpack.c.l.b16 %v104
    %v2301 = vunpack.c.l.b16 %v105
    %v2302 = vunpack.c.l.b16 %v106
    %v2303 = vunpack.c.l.b16 %v107
    %v2304 = vunpack.c.l.b16 %v108
    %v2305 = vunpack.c.l.b16 %v109
    %v2306 = vunpack.c.l.b16 %v110
    %v2307 = vunpack.c.l.b16 %v111
    %v2308 = vunpack.c.l.b16 %v112
    %v2309 = vunpack.c.l.b16 %v113
    %v2310 = vunpack.c.l.b16 %v114
    %v2311 = vunpack.c.l.b16 %v115
    %v2312 = vunpack.c.l.b16 %v116
    %v2313 = vunpack.c.l.b16 %v117
    %v2314 = vunpack.c.l.b16 %v118
    %v2315 = vunpack.c.l.b16 %v119
    %v2316 = vunpack.c.l.b16 %v120
    %v2317 = vunpack.c.l.b16 %v121
    %v2318 = vunpack.c.l.b16 %v122
    %v2319 = vunpack.c.l.b16 %v123
    %v2320 = vunpack.c.l.b16 %v124
    %v2321 = vunpack.c.l.b16 %v125
    %v2322 = vunpack.c.l.b16 %v126
    %v2323 = vunpack.c.l.b16 %v127
    %v2324 = vunpack.c.l.b16 %v128
    %v2325 = vunpack.c.l.b16 %v129
    %v2326 = vunpack.c.l.b16 %v130
    %v2327 = vunpack.c.l.b16 %v131
    %v2328 = vunpack.c.l.b16 %v132
    %v2329 = vunpack.c.l.b16 %v133
    %v2330 = vunpack.c.l.b16 %v134
    %v2331 = vunpack.c.l.b16 %v135
    %v2332 = vunpack.c.l.b16 %v136
    %v2333 = vunpack.c.l.b16 %v137
    %v2334 = vunpack.c.l.b16 %v138
    %v2335 = vunpack.c.l.b16 %v139
    %v2336 = vunpack.c.l.b16 %v140
    %v2337 = vunpack.c.l.b16 %v141
    %v2338 = vunpack.c.l.b16 %v142
    %v2339 = vunpack.c.l.b16 %v143
    %v2340 = vunpack.c.l.b16 %v144
    %v2341 = vunpack.c.l.b16 %v145
    %v2342 = vunpack.c.l.b16 %v146
    %v2343 = vunpack.c.l.b16 %v147
    %v2344 = vunpack.c.l.b16 %v148
    %v2345 = vunpack.c.l.b16 %v149
    %v2346 = vunpack.c.l.b16 %v150
    %v2347 = vunpack.c.l.b16 %v151
    %v2348 = vunpack.c.l.b16 %v152
    %v2349 = vunpack.c.l.b16 %v153
    %v2350 = vunpack.c.l.b16 %v154
    %v2351 = vunpack.c.l.b16 %v155
    %v2352 = vunpack.c.l.b16 %v156
    %v2353 = vunpack.c.l.b16 %v157
    %v2354 = vunpack.c.l.b16 %v158
    %v2355 = vunpack.c.l.b16 %v159
    %v2356 = vunpack.c.l.b16 %v160
    %v2357 = vunpack.c.l.b16 %v161
    %v2358 = vunpack.c.l.b16 %v162
    %v2359 = vunpack.c.l.b16 %v163
    %v2360 = vunpack.c.l.b16 %v164
    %v2361 = vunpack.c.l.b16 %v165
    %v2362 = vunpack.c.l.b16 %v166
    %v2363 = vunpack.c.l.b16 %v167
    %v2364 = vunpack.c.l.b16 %v168
    %v2365 = vunpack.c.l.b16 %v169
    %v2366 = vunpack.c.l.b16 %v170
    %v2367 = vunpack.c.l.b16 %v171
    %v2368 = vunpack.c.l.b16 %v172
    %v2369 = vunpack.c.l.b16 %v173
    %v2370 = vunpack.c.l.b16 %v174
    %v2371 = vunpack.c.l.b16 %v175
    %v2372 = vunpack.c.l.b16 %v176
    %v2373 = vunpack.c.l.b16 %v177
    %v2374 = vunpack.c.l.b16 %v178
    %v2375 = vunpack.c.l.b16 %v179
    %v2376 = vunpack.c.l.b16 %v180
    %v2377 = vunpack.c.l.b16 %v181
    %v2378 = vunpack.c.l.b16 %v182
    %v2379 = vunpack.c.l.b16 %v183
    %v2380 = vunpack.c.l.b16 %v184
    %v2381 = vunpack.c.l.b16 %v185
    %v2382 = vunpack.c.l.b16 %v186
    %v2383 = vunpack.c.l.b16 %v187
    %v2384 = vunpack.c.l.b16 %v188
    %v2385 = vunpack.c.l.b16 %v189
    %v2386 = vunpack.c.l.b16 %v190
    %v2387 = vunpack.c.l.b16 %v191
    %v2388 = vunpack.c.l.b16 %v192
    %v2389 = vunpack.c.l.b16 %v193
    %v2390 = vunpack.c.l.b16 %v194
    %v2391 = vunpack.c.l.b16 %v195
    %v2392 = vunpack.c.l.b16 %v196
    %v2393 = vunpack.c.l.b16 %v197
    %v2394 = vunpack.c.l.b16 %v198
    %v2395 = vunpack.c.l.b16 %v199
    %v2396 = vunpack.c.l.b16 %v200
    %v2397 = vunpack.c.l.b16 %v201
    %v2398 = vunpack.c.l.b16 %v202
    %v2399 = vunpack.c.l.b16 %v203
    %v2400 = vunpack.c.l.b16 %v204
    %v2401 = vunpack.c.l.b16 %v205
    %v2402 = vunpack.c.l.b16 %v206
    %v2403 = vunpack.c.l.b16 %v207
    %v2404 = vunpack.c.l.b16 %v208
    %v2405 = vunpack.c.l.b16 %v209
    %v2406 = vunpack.c.l.b16 %v210
    %v2407 = vunpack.c.l.b16 %v211
    %v2408 = vunpack.c.l.b16 %v212
    %v2409 = vunpack.c.l.b16 %v213
    %v2410 = vunpack.c.l.b16 %v214
    %v2411 = vunpack.c.l.b16 %v215
    %v2412 = vunpack.c.l.b16 %v216
    %v2413 = vunpack.c.l.b16 %v217
    %v2414 = vunpack.c.l.b16 %v218
    %v2415 = vunpack.c.l.b16 %v219
    %v2416 = vunpack.c.l.b16 %v220
    %v2417 = vunpack.c.l.b16 %v221
    %v2418 = vunpack.c.l.b16 %v222
    %v2419 = vunpack.c.l.b16 %v223
    %v2420 = vunpack.c.l.b16 %v224
    %v2421 = vunpack.c.l.b16 %v225
    %v2422 = vunpack.c.l.b16 %v226
    %v2423 = vunpack.c.l.b16 %v227
    %v2424 = vunpack.c.l.b16 %v228
    %v2425 = vunpack.c.l.b16 %v229
    %v2426 = vunpack.c.l.b16 %v230
    %v2427 = vunpack.c.l.b16 %v231
    %v2428 = vunpack.c.l.b16 %v232
    %v2429 = vunpack.c.l.b16 %v233
    %v2430 = vunpack.c.l.b16 %v234
    %v2431 = vunpack.c.l.b16 %v235
    %v2432 = vunpack.c.l.b16 %v236
    %v2433 = vunpack.c.l.b16 %v237
    %v2434 = vunpack.c.l.b16 %v238
    %v2435 = vunpack.c.l.b16 %v239
    %v2436 = vunpack.c.l.b16 %v240
    %v2437 = vunpack.c.l.b16 %v241
    %v2438 = vunpack.c.l.b16 %v242
    %v2439 = vunpack.c.l.b16 %v243
    %v2440 = vunpack.c.l.b16 %v244
    %v2441 = vunpack.c.l.b16 %v245
    %v2442 = vunpack.c.l.b16 %v246
    %v2443 = vunpack.c.l.b16 %v247
    %v2444 = vunpack.c.l.b16 %v248
    %v2445 = vunpack.c.l.b16 %v249
    %v2446 = vunpack.c.l.b16 %v250
    %v2447 = vunpack.c.l.b16 %v251
    %v2448 = vunpack.c.l.b16 %v252
    %v2449 = vunpack.c.l.b16 %v253
    %v2450 = vunpack.c.l.b16 %v254
    %v2451 = vunpack.c.l.b16 %v255
    %v2452 = vunpack.c.l.b16 %v256
    %v2453 = vunpack.c.l.b16 %v257
    %v2454 = vunpack.c.l.b16 %v258
    %v2455 = vunpack.c.l.b16 %v259
    %v2456 = vunpack.c.l.b16 %v260
    %v2457 = vunpack.c.l.b16 %v261
    %v2458 = vunpack.c.l.b16 %v262
    %v2459 = vunpack.c.l.b16 %v263
    %v2460 = vunpack.c.l.b16 %v264
    %v2461 = vunpack.c.l.b16 %v265
    %v2462 = vunpack.c.l.b16 %v266
    %v2463 = vunpack.c.l.b16 %v267
    %v2464 = vunpack.c.l.b16 %v268
    %v2465 = vunpack.c.l.b16 %v269
    %v2466 = vunpack.c.l.b16 %v270
    %v2467 = vunpack.c.l.b16 %v271
    %v2468 = vunpack.c.l.b16 %v272
    %v2469 = vunpack.c.l.b16 %v273
    %v2470 = vunpack.c.l.b16 %v274
    %v2471 = vunpack.c.l.b16 %v275
    %v2472 = vunpack.c.l.b16 %v276
    %v2473 = vunpack.c.l.b16 %v277
    %v2474 = vunpack.c.l.b16 %v278
    %v2475 = vunpack.c.l.b16 %v279
    %v2476 = vunpack.c.l.b16 %v280
    %v2477 = vunpack.c.l.b16 %v281
    %v2478 = vunpack.c.l.b16 %v282
    %v2479 = vunpack.c.l.b16 %v283
    %v2480 = vunpack.c.l.b16 %v284
    %v2481 = vunpack.c.l.b16 %v285
    %v2482 = vunpack.c.l.b16 %v286
    %v2483 = vunpack.c.l.b16 %v287
    %v2484 = vunpack.c.l.b16 %v288
    %v2485 = vunpack.c.l.b16 %v289
    %v2486 = vunpack.c.l.b16 %v290
    %v2487 = vunpack.c.l.b16 %v291
    %v2488 = vunpack.c.l.b16 %v292
    %v2489 = vunpack.c.l.b16 %v293
    %v2490 = vunpack.c.l.b16 %v294
    %v2491 = vunpack.c.l.b16 %v295
    %v2492 = vunpack.c.l.b16 %v296
    %v2493 = vunpack.c.l.b16 %v297
    %v2494 = vunpack.c.l.b16 %v298
    %v2495 = vunpack.c.l.b16 %v299
    %v2496 = vunpack.c.l.b16 %v300
    %v2497 = vunpack.c.l.b16 %v301
    %v2498 = vunpack.c.l.b16 %v302
    %v2499 = vunpack.c.l.b16 %v303
    %v2500 = vunpack.c.l.b16 %v304
    %v2501 = vunpack.c.l.b16 %v305
    %v2502 = vunpack.c.l.b16 %v306
    %v2503 = vunpack.c.l.b16 %v307
    %v2504 = vunpack.c.l.b16 %v308
    %v2505 = vunpack.c.l.b16 %v309
    %v2506 = vunpack.c.l.b16 %v310
    %v2507 = vunpack.c.l.b16 %v311
    %v2508 = vunpack.c.l.b16 %v312
    %v2509 = vunpack.c.l.b16 %v313
    %v2510 = vunpack.c.l.b16 %v314
    %v2511 = vunpack.c.l.b16 %v315
    %v2512 = vunpack.c.l.b16 %v316
    %v2513 = vunpack.c.l.b16 %v317
    %v2514 = vunpack.c.l.b16 %v318
    %v2515 = vunpack.c.l.b16 %v319
    %v2516 = vunpack.c.l.b16 %v320
    %v2517 = vunpack.c.l.b16 %v321
    %v2518 = vunpack.c.l.b16 %v322
    %v2519 = vunpack.c.l.b16 %v323
    %v2520 = vunpack.c.l.b16 %v324
    %v2521 = vunpack.c.l.b16 %v325
    %v2522 = vunpack.c.l.b16 %v326
    %v2523 = vunpack.c.l.b16 %v327
    %v2524 = vunpack.c.l.b16 %v328
    %v2525 = vunpack.c.l.b16 %v329
    %v2526 = vunpack.c.l.b16 %v330
    %v2527 = vunpack.c.l.b16 %v331
    %v2528 = vunpack.c.l.b16 %v332
    %v2529 = vunpack.c.l.b16 %v333
    %v2530 = vunpack.c.l.b16 %v334
    %v2531 = vunpack.c.l.b16 %v335
    %v2532 = vunpack.c.l.b16 %v336
    %v2533 = vunpack.c.l.b16 %v337
    %v2534 = vunpack.c.l.b16 %v338
    %v2535 = vunpack.c.l.b16 %v339
    %v2536 = vunpack.c.l.b16 %v340
    %v2537 = vunpack.c.l.b16 %v341
    %v2538 = vunpack.c.l.b16 %v342
    %v2539 = vunpack.c.l.b16 %v343
    %v2540 = vunpack.c.l.b16 %v344
    %v2541 = vunpack.c.l.b16 %v345
    %v2542 = vunpack.c.l.b16 %v346
    %v2543 = vunpack.c.l.b16 %v347
    %v2544 = vunpack.c.l.b16 %v348
    %v2545 = vunpack.c.l.b16 %v349
    %v2546 = vunpack.c.l.b16 %v350
    %v2547 = vunpack.c.l.b16 %v351
    %v2548 = vunpack.c.l.b16 %v352
    %v2549 = vunpack.c.l.b16 %v353
    %v2550 = vunpack.c.l.b16 %v354
    %v2551 = vunpack.c.l.b16 %v355
    %v2552 = vunpack.c.l.b16 %v356
    %v2553 = vunpack.c.l.b16 %v357
    %v2554 = vunpack.c.l.b16 %v358
    %v2555 = vunpack.c.l.b16 %v359
    %v2556 = vunpack.c.l.b16 %v360
    %v2557 = vunpack.c.l.b16 %v361
    %v2558 = vunpack.c.l.b16 %v362
    %v2559 = vunpack.c.l.b16 %v363
    %v2560 = vunpack.c.l.b16 %v364
    %v2561 = vunpack.c.l.b16 %v365
    %v2562 = vunpack.c.l.b16 %v366
    %v2563 = vunpack.c.l.b16 %v367
    %v2564 = vunpack.c.l.b16 %v368
    %v2565 = vunpack.c.l.b16 %v369
    %v2566 = vunpack.c.l.b16 %v370
    %v2567 = vunpack.c.l.b16 %v371
    %v2568 = vunpack.c.l.b16 %v372
    %v2569 = vunpack.c.l.b16 %v373
    %v2570 = vunpack.c.l.b16 %v374
    %v2571 = vunpack.c.l.b16 %v375
    %v2572 = vunpack.c.l.b16 %v376
    %v2573 = vunpack.c.l.b16 %v377
    %v2574 = vunpack.c.l.b16 %v378
    %v2575 = vunpack.c.l.b16 %v379
    %v2576 = vunpack.c.l.b16 %v380
    %v2577 = vunpack.c.l.b16 %v381
    %v2578 = vunpack.c.l.b16 %v382
    %v2579 = vunpack.c.l.b16 %v383
    %v2580 = vunpack.c.l.b16 %v384
    %v2581 = vunpack.c.l.b16 %v385
    %v2582 = vunpack.c.l.b16 %v386
    %v2583 = vunpack.c.l.b16 %v387
    %v2584 = vunpack.c.l.b16 %v388
    %v2585 = vunpack.c.l.b16 %v389
    %v2586 = vunpack.c.l.b16 %v390
    %v2587 = vunpack.c.l.b16 %v391
    %v2588 = vunpack.c.l.b16 %v392
    %v2589 = vunpack.c.l.b16 %v393
    %v2590 = vunpack.c.l.b16 %v394
    %v2591 = vunpack.c.l.b16 %v395
    %v2592 = vunpack.c.l.b16 %v396
    %v2593 = vunpack.c.l.b16 %v397
    %v2594 = vunpack.c.l.b16 %v398
    %v2595 = vunpack.c.l.b16 %v399
    %v2596 = vunpack.c.l.b16 %v400
    %v2597 = vunpack.c.l.b16 %v401
    %v2598 = vunpack.c.l.b16 %v402
    %v2599 = vunpack.c.l.b16 %v403
    %v2600 = vunpack.c.l.b16 %v404
    %v2601 = vunpack.c.l.b16 %v405
    %v2602 = vunpack.c.l.b16 %v406
    %v2603 = vunpack.c.l.b16 %v407
    %v2604 = vunpack.c.l.b16 %v408
    %v2605 = vunpack.c.l.b16 %v409
    %v2606 = vunpack.c.l.b16 %v410
    %v2607 = vunpack.c.l.b16 %v411
    %v2608 = vunpack.c.l.b16 %v412
    %v2609 = vunpack.c.l.b16 %v413
    %v2610 = vunpack.c.l.b16 %v414
    %v2611 = vunpack.c.l.b16 %v415
    %v2612 = vunpack.c.l.b16 %v416
    %v2613 = vunpack.c.l.b16 %v417
    %v2614 = vunpack.c.l.b16 %v418
    %v2615 = vunpack.c.l.b16 %v419
    %v2616 = vunpack.c.l.b16 %v420
    %v2617 = vunpack.c.l.b16 %v421
    %v2618 = vunpack.c.l.b16 %v422
    %v2619 = vunpack.c.l.b16 %v423
    %v2620 = vunpack.c.l.b16 %v424
    %v2621 = vunpack.c.l.b16 %v425
    %v2622 = vunpack.c.l.b16 %v426
    %v2623 = vunpack.c.l.b16 %v427
    %v2624 = vunpack.c.l.b16 %v428
    %v2625 = vunpack.c.l.b16 %v429
    %v2626 = vunpack.c.l.b16 %v430
    %v2627 = vunpack.c.l.b16 %v431
    %v2628 = vunpack.c.l.b16 %v432
    %v2629 = vunpack.c.l.b16 %v433
    %v2630 = vunpack.c.l.b16 %v434
    %v2631 = vunpack.c.l.b16 %v435
    %v2632 = vunpack.c.l.b16 %v436
    %v2633 = vunpack.c.l.b16 %v437
    %v2634 = vunpack.c.l.b16 %v438
    %v2635 = vunpack.c.l.b16 %v439
    %v2636 = vunpack.c.l.b16 %v440
    %v2637 = vunpack.c.l.b16 %v441
    %v2638 = vunpack.c.l.b16 %v442
    %v2639 = vunpack.c.l.b16 %v443
    %v2640 = vunpack.c.l.b16 %v444
    %v2641 = vunpack.c.l.b16 %v445
    %v2642 = vunpack.c.l.b16 %v446
    %v2643 = vunpack.c.l.b16 %v447
    %v2644 = vunpack.c.l.b16 %v448
    %v2645 = vunpack.c.l.b16 %v449
    %v2646 = vunpack.c.l.b16 %v450
    %v2647 = vunpack.c.l.b16 %v451
    %v2648 = vunpack.c.l.b16 %v452
    %v2649 = vunpack.c.l.b16 %v453
    %v2650 = vunpack.c.l.b16 %v454
    %v2651 = vunpack.c.l.b16 %v455
    %v2652 = vunpack.c.l.b16 %v456
    %v2653 = vunpack.c.l.b16 %v457
    %v2654 = vunpack.c.l.b16 %v458
    %v2655 = vunpack.c.l.b16 %v459
    %v2656 = vunpack.c.l.b16 %v460
    %v2657 = vunpack.c.l.b16 %v461
    %v2658 = vunpack.c.l.b16 %v462
    %v2659 = vunpack.c.l.b16 %v463
    %v2660 = vunpack.c.l.b16 %v464
    %v2661 = vunpack.c.l.b16 %v465
    %v2662 = vunpack.c.l.b16 %v466
    %v2663 = vunpack.c.l.b16 %v467
    %v2664 = vunpack.c.l.b16 %v468
    %v2665 = vunpack.c.l.b16 %v469
    %v2666 = vunpack.c.l.b16 %v470
    %v2667 = vunpack.c.l.b16 %v471
    %v2668 = vunpack.c.l.b16 %v472
    %v2669 = vunpack.c.l.b16 %v473
    %v2670 = vunpack.c.l.b16 %v474
    %v2671 = vunpack.c.l.b16 %v475
    %v2672 = vunpack.c.l.b16 %v476
    %v2673 = vunpack.c.l.b16 %v477
    %v2674 = vunpack.c.l.b16 %v478
    %v2675 = vunpack.c.l.b16 %v479
    %v2676 = vunpack.c.l.b16 %v480
    %v2677 = vunpack.c.l.b16 %v481
    %v2678 = vunpack.c.l.b16 %v482
    %v2679 = vunpack.c.l.b16 %v483
    %v2680 = vunpack.c.l.b16 %v484
    %v2681 = vunpack.c.l.b16 %v485
    %v2682 = vunpack.c.l.b16 %v486
    %v2683 = vunpack.c.l.b16 %v487
    %v2684 = vunpack.c.l.b16 %v488
    %v2685 = vunpack.c.l.b16 %v489
    %v2686 = vunpack.c.l.b16 %v490
    %v2687 = vunpack.c.l.b16 %v491
    %v2688 = vunpack.c.l.b16 %v492
    %v2689 = vunpack.c.l.b16 %v493
    %v2690 = vunpack.c.l.b16 %v494
    %v2691 = vunpack.c.l.b16 %v495
    %v2692 = vunpack.c.l.b16 %v496
    %v2693 = vunpack.c.l.b16 %v497
    %v2694 = vunpack.c.l.b16 %v498
    %v2695 = vunpack.c.l.b16 %v499
    %v2696 = vunpack.c.l.b16 %v500
    %v2697 = vunpack.c.l.b16 %v501
    %v2698 = vunpack.c.l.b16 %v502
    %v2699 = vunpack.c.l.b16 %v503
    %v2700 = vunpack.c.l.b16 %v504
    %v2701 = vunpack.c.l.b16 %v505
    %v2702 = vunpack.c.l.b16 %v506
    %v2703 = vunpack.c.l.b16 %v507
    %v2704 = vunpack.c.l.b16 %v508
    %v2705 = vunpack.c.l.b16 %v509
    %v2706 = vunpack.c.l.b16 %v510
    %v2707 = vunpack.c.l.b16 %v511
    %v2708 = vunpack.c.l.b16 %v512
    %v2709 = vunpack.c.l.b16 %v513
    %v2710 = vunpack.c.l.b16 %v514
    %v2711 = vunpack.c.l.b16 %v515
    %v2712 = vunpack.c.l.b16 %v516
    %v2713 = vunpack.c.l.b16 %v517
    %v2714 = vunpack.c.l.b16 %v518
    %v2715 = vunpack.c.l.b16 %v519
    %v2716 = vunpack.c.l.b16 %v520
    %v2717 = vunpack.c.l.b16 %v521
    %v2718 = vunpack.c.l.b16 %v522
    %v2719 = vunpack.c.l.b16 %v523
    %v2720 = vunpack.c.l.b16 %v524
    %v2721 = vunpack.c.l.b16 %v525
    %v2722 = vunpack.c.l.b16 %v526
    %v2723 = vunpack.c.l.b16 %v527
    %v2724 = vunpack.c.l.b16 %v528
    %v2725 = vunpack.c.l.b16 %v529
    %v2726 = vunpack.c.l.b16 %v530
    %v2727 = vunpack.c.l.b16 %v531
    %v2728 = vunpack.c.l.b16 %v532
    %v2729 = vunpack.c.l.b16 %v533
    %v2730 = vunpack.c.l.b16 %v534
    %v2731 = vunpack.c.l.b16 %v535
    %v2732 = vunpack.c.l.b16 %v536
    %v2733 = vunpack.c.l.b16 %v537
    %v2734 = vunpack.c.l.b16 %v538
    %v2735 = vunpack.c.l.b16 %v539
    %v2736 = vunpack.c.l.b16 %v540
    %v2737 = vunpack.c.l.b16 %v541
    %v2738 = vunpack.c.l.b16 %v542
    %v2739 = vunpack.c.l.b16 %v543
    %v2740 = vunpack.c.l.b16 %v544
    %v2741 = vunpack.c.l.b16 %v545
    %v2742 = vunpack.c.l.b16 %v546
    %v2743 = vunpack.c.l.b16 %v547
    %v2744 = vunpack.c.l.b16 %v548
    %v2745 = vunpack.c.l.b16 %v549
    %v2746 = vunpack.c.l.b16 %v550
    %v2747 = vunpack.c.l.b16 %v551
    %v2748 = vunpack.c.l.b16 %v552
    %v2749 = vunpack.c.l.b16 %v553
    %v2750 = vunpack.c.l.b16 %v554
    %v2751 = vunpack.c.l.b16 %v555
    %v2752 = vunpack.c.l.b16 %v556
    %v2753 = vunpack.c.l.b16 %v557
    %v2754 = vunpack.c.l.b16 %v558
    %v2755 = vunpack.c.l.b16 %v559
    %v2756 = vunpack.c.l.b16 %v560
    %v2757 = vunpack.c.l.b16 %v561
    %v2758 = vunpack.c.l.b16 %v562
    %v2759 = vunpack.c.l.b16 %v563
    %v2760 = vunpack.c.l.b16 %v564
    %v2761 = vunpack.c.l.b16 %v565
    %v2762 = vunpack.c.l.b16 %v566
    %v2763 = vunpack.c.l.b16 %v567
    %v2764 = vunpack.c.l.b16 %v568
    %v2765 = vunpack.c.l.b16 %v569
    %v2766 = vunpack.c.l.b16 %v570
    %v2767 = vunpack.c.l.b16 %v571
    %v2768 = vunpack.c.l.b16 %v572
    %v2769 = vunpack.c.l.b16 %v573
    %v2770 = vunpack.c.l.b16 %v574
    %v2771 = vunpack.c.l.b16 %v575
    %v2772 = vunpack.c.l.b16 %v576
    %v2773 = vunpack.c.l.b16 %v577
    %v2774 = vunpack.c.l.b16 %v578
    %v2775 = vunpack.c.l.b16 %v579
    %v2776 = vunpack.c.l.b16 %v580
    %v2777 = vunpack.c.l.b16 %v581
    %v2778 = vunpack.c.l.b16 %v582
    %v2779 = vunpack.c.l.b16 %v583
    %v2780 = vunpack.c.l.b16 %v584
    %v2781 = vunpack.c.l.b16 %v585
    %v2782 = vunpack.c.l.b16 %v586
    %v2783 = vunpack.c.l.b16 %v587
    %v2784 = vunpack.c.l.b16 %v588
    %v2785 = vunpack.c.l.b16 %v589
    %v2786 = vunpack.c.l.b16 %v590
    %v2787 = vunpack.c.l.b16 %v591
    %v2788 = vunpack.c.l.b16 %v592
    %v2789 = vunpack.c.l.b16 %v593
    %v2790 = vunpack.c.l.b16 %v594
    %v2791 = vunpack.c.l.b16 %v595
    %v2792 = vunpack.c.l.b16 %v596
    %v2793 = vunpack.c.l.b16 %v597
    %v2794 = vunpack.c.l.b16 %v598
    %v2795 = vunpack.c.l.b16 %v599
    %v2796 = vunpack.c.l.b16 %v600
    %v2797 = vunpack.c.l.b16 %v601
    %v2798 = vunpack.c.l.b16 %v602
    %v2799 = vunpack.c.l.b16 %v603
    %v2800 = vunpack.c.l.b16 %v604
    %v2801 = vunpack.c.l.b16 %v605
    %v2802 = vunpack.c.l.b16 %v606
    %v2803 = vunpack.c.l.b16 %v607
    %v2804 = vunpack.c.l.b16 %v608
    %v2805 = vunpack.c.l.b16 %v609
    %v2806 = vunpack.c.l.b16 %v610
    %v2807 = vunpack.c.l.b16 %v611
    %v2808 = vunpack.c.l.b16 %v612
    %v2809 = vunpack.c.l.b16 %v613
    %v2810 = vunpack.c.l.b16 %v614
    %v2811 = vunpack.c.l.b16 %v615
    %v2812 = vunpack.c.l.b16 %v616
    %v2813 = vunpack.c.l.b16 %v617
    %v2814 = vunpack.c.l.b16 %v618
    %v2815 = vunpack.c.l.b16 %v619
    %v2816 = vunpack.c.l.b16 %v620
    %v2817 = vunpack.c.l.b16 %v621
    %v2818 = vunpack.c.l.b16 %v622
    %v2819 = vunpack.c.l.b16 %v623
    %v2820 = vunpack.c.l.b16 %v624
    %v2821 = vunpack.c.l.b16 %v625
    %v2822 = vunpack.c.l.b16 %v626
    %v2823 = vunpack.c.l.b16 %v627
    %v2824 = vunpack.c.l.b16 %v628
    %v2825 = vunpack.c.l.b16 %v629
    %v2826 = vunpack.c.l.b16 %v630
    %v2827 = vunpack.c.l.b16 %v631
    %v2828 = vunpack.c.l.b16 %v632
    %v2829 = vunpack.c.l.b16 %v633
    %v2830 = vunpack.c.l.b16 %v634
    %v2831 = vunpack.c.l.b16 %v635
    %v2832 = vunpack.c.l.b16 %v636
    %v2833 = vunpack.c.l.b16 %v637
    %v2834 = vunpack.c.l.b16 %v638
    %v2835 = vunpack.c.l.b16 %v639
    %v2836 = vunpack.c.l.b16 %v640
    %v2837 = vunpack.c.l.b16 %v641
    %v2838 = vunpack.c.l.b16 %v642
    %v2839 = vunpack.c.l.b16 %v643
    %v2840 = vunpack.c.l.b16 %v644
    %v2841 = vunpack.c.l.b16 %v645
    %v2842 = vunpack.c.l.b16 %v646
    %v2843 = vunpack.c.l.b16 %v647
    %v2844 = vunpack.c.l.b16 %v648
    %v2845 = vunpack.c.l.b16 %v649
    %v2846 = vunpack.c.l.b16 %v650
    %v2847 = vunpack.c.l.b16 %v651
    %v2848 = vunpack.c.l.b16 %v652
    %v2849 = vunpack.c.l.b16 %v653
    %v2850 = vunpack.c.l.b16 %v654
    %v2851 = vunpack.c.l.b16 %v655
    %v2852 = vunpack.c.l.b16 %v656
    %v2853 = vunpack.c.l.b16 %v657
    %v2854 = vunpack.c.l.b16 %v658
    %v2855 = vunpack.c.l.b16 %v659
    %v2856 = vunpack.c.l.b16 %v660
    %v2857 = vunpack.c.l.b16 %v661
    %v2858 = vunpack.c.l.b16 %v662
    %v2859 = vunpack.c.l.b16 %v663
    %v2860 = vunpack.c.l.b16 %v664
    %v2861 = vunpack.c.l.b16 %v665
    %v2862 = vunpack.c.l.b16 %v666
    %v2863 = vunpack.c.l.b16 %v667
    %v2864 = vunpack.c.l.b16 %v668
    %v2865 = vunpack.c.l.b16 %v669
    %v2866 = vunpack.c.l.b16 %v670
    %v2867 = vunpack.c.l.b16 %v671
    %v2868 = vunpack.c.l.b16 %v672
    %v2869 = vunpack.c.l.b16 %v673
    %v2870 = vunpack.c.l.b16 %v674
    %v2871 = vunpack.c.l.b16 %v675
    %v2872 = vunpack.c.l.b16 %v676
    %v2873 = vunpack.c.l.b16 %v677
    %v2874 = vunpack.c.l.b16 %v678
    %v2875 = vunpack.c.l.b16 %v679
    %v2876 = vunpack.c.l.b16 %v680
    %v2877 = vunpack.c.l.b16 %v681
    %v2878 = vunpack.c.l.b16 %v682
    %v2879 = vunpack.c.l.b16 %v683
    %v2880 = vunpack.c.l.b16 %v684
    %v2881 = vunpack.c.l.b16 %v685
    %v2882 = vunpack.c.l.b16 %v686
    %v2883 = vunpack.c.l.b16 %v687
    %v2884 = vunpack.c.l.b16 %v688
    %v2885 = vunpack.c.l.b16 %v689
    %v2886 = vunpack.c.l.b16 %v690
    %v2887 = vunpack.c.l.b16 %v691
    %v2888 = vunpack.c.l.b16 %v692
    %v2889 = vunpack.c.l.b16 %v693
    %v2890 = vunpack.c.l.b16 %v694
    %v2891 = vunpack.c.l.b16 %v695
    %v2892 = vunpack.c.l.b16 %v696
    %v2893 = vunpack.c.l.b16 %v697
    %v2894 = vunpack.c.l.b16 %v698
    %v2895 = vunpack.c.l.b16 %v699
    %v2896 = vunpack.c.l.b16 %v700
    %v2897 = vunpack.c.l.b16 %v701
    %v2898 = vunpack.c.l.b16 %v702
    %v2899 = vunpack.c.l.b16 %v703
    %v2900 = vunpack.c.l.b16 %v704
    %v2901 = vunpack.c.l.b16 %v705
    %v2902 = vunpack.c.l.b16 %v706
    %v2903 = vunpack.c.l.b16 %v707
    %v2904 = vunpack.c.l.b16 %v708
    %v2905 = vunpack.c.l.b16 %v709
    %v2906 = vunpack.c.l.b16 %v710
    %v2907 = vunpack.c.l.b16 %v711
    %v2908 = vunpack.c.l.b16 %v712
    %v2909 = vunpack.c.l.b16 %v713
    %v2910 = vunpack.c.l.b16 %v714
    %v2911 = vunpack.c.l.b16 %v715
    %v2912 = vunpack.c.l.b16 %v716
    %v2913 = vunpack.c.l.b16 %v717
    %v2914 = vunpack.c.l.b16 %v718
    %v2915 = vunpack.c.l.b16 %v719
    %v2916 = vunpack.c.l.b16 %v720
    %v2917 = vunpack.c.l.b16 %v721
    %v2918 = vunpack.c.l.b16 %v722
    %v2919 = vunpack.c.l.b16 %v723
    %v2920 = vunpack.c.l.b16 %v724
    %v2921 = vunpack.c.l.b16 %v725
    %v2922 = vunpack.c.l.b16 %v726
    %v2923 = vunpack.c.l.b16 %v727
    %v2924 = vunpack.c.l.b16 %v728
    %v2925 = vunpack.c.l.b16 %v729
    %v2926 = vunpack.c.l.b16 %v730
    %v2927 = vunpack.c.l.b16 %v731
    %v2928 = vunpack.c.l.b16 %v732
    %v2929 = vunpack.c.l.b16 %v733
    %v2930 = vunpack.c.l.b16 %v734
    %v2931 = vunpack.c.l.b16 %v735
    %v2932 = vunpack.c.l.b16 %v736
    %v2933 = vunpack.c.l.b16 %v737
    %v2934 = vunpack.c.l.b16 %v738
    %v2935 = vunpack.c.l.b16 %v739
    %v2936 = vunpack.c.l.b16 %v740
    %v2937 = vunpack.c.l.b16 %v741
    %v2938 = vunpack.c.l.b16 %v742
    %v2939 = vunpack.c.l.b16 %v743
    %v2940 = vunpack.c.l.b16 %v744
    %v2941 = vunpack.c.l.b16 %v745
    %v2942 = vunpack.c.l.b16 %v746
    %v2943 = vunpack.c.l.b16 %v747
    %v2944 = vunpack.c.l.b16 %v748
    %v2945 = vunpack.c.l.b16 %v749
    %v2946 = vunpack.c.l.b16 %v750
    %v2947 = vunpack.c.l.b16 %v751
    %v2948 = vunpack.c.l.b16 %v752
    %v2949 = vunpack.c.l.b16 %v753
    %v2950 = vunpack.c.l.b16 %v754
    %v2951 = vunpack.c.l.b16 %v755
    %v2952 = vunpack.c.l.b16 %v756
    %v2953 = vunpack.c.l.b16 %v757
    %v2954 = vunpack.c.l.b16 %v758
    %v2955 = vunpack.c.l.b16 %v759
    %v2956 = vunpack.c.l.b16 %v760
    %v2957 = vunpack.c.l.b16 %v761
    %v2958 = vunpack.c.l.b16 %v762
    %v2959 = vunpack.c.l.b16 %v763
    %v2960 = vunpack.c.l.b16 %v764
    %v2961 = vunpack.c.l.b16 %v765
    %v2962 = vunpack.c.l.b16 %v766
    %v2963 = vunpack.c.l.b16 %v767
    %v2964 = vunpack.c.l.b16 %v768
    %v2965 = vunpack.c.l.b16 %v769
    %v2966 = vunpack.c.l.b16 %v770
    %v2967 = vunpack.c.l.b16 %v771
    %v2968 = vunpack.c.l.b16 %v772
    %v2969 = vunpack.c.l.b16 %v773
    %v2970 = vunpack.c.l.b16 %v774
    %v2971 = vunpack.c.l.b16 %v775
    %v2972 = vunpack.c.l.b16 %v776
    %v2973 = vunpack.c.l.b16 %v777
    %v2974 = vunpack.c.l.b16 %v778
    %v2975 = vunpack.c.l.b16 %v779
    %v2976 = vunpack.c.l.b16 %v780
    %v2977 = vunpack.c.l.b16 %v781
    %v2978 = vunpack.c.l.b16 %v782
    %v2979 = vunpack.c.l.b16 %v783
    %v2980 = vunpack.c.l.b16 %v784
    %v2981 = vunpack.c.l.b16 %v785
    %v2982 = vunpack.c.l.b16 %v786
    %v2983 = vunpack.c.l.b16 %v787
    %v2984 = vunpack.c.l.b16 %v788
    %v2985 = vunpack.c.l.b16 %v789
    %v2986 = vunpack.c.l.b16 %v790
    %v2987 = vunpack.c.l.b16 %v791
    %v2988 = vunpack.c.l.b16 %v792
    %v2989 = vunpack.c.l.b16 %v793
    %v2990 = vunpack.c.l.b16 %v794
    %v2991 = vunpack.c.l.b16 %v795
    %v2992 = vunpack.c.l.b16 %v796
    %v2993 = vunpack.c.l.b16 %v797
    %v2994 = vunpack.c.l.b16 %v798
    %v2995 = vunpack.c.l.b16 %v799
    %v2996 = vunpack.c.l.b16 %v800
    %v2997 = vunpack.c.l.b16 %v801
    %v2998 = vunpack.c.l.b16 %v802
    %v2999 = vunpack.c.l.b16 %v803
    %v3000 = vunpack.c.l.b16 %v804
    %v3001 = vunpack.c.l.b16 %v805
    %v3002 = vunpack.c.l.b16 %v806
    %v3003 = vunpack.c.l.b16 %v807
    %v3004 = vunpack.c.l.b16 %v808
    %v3005 = vunpack.c.l.b16 %v809
    %v3006 = vunpack.c.l.b16 %v810
    %v3007 = vunpack.c.l.b16 %v811
    %v3008 = vunpack.c.l.b16 %v812
    %v3009 = vunpack.c.l.b16 %v813
    %v3010 = vunpack.c.l.b16 %v814
    %v3011 = vunpack.c.l.b16 %v815
    %v3012 = vunpack.c.l.b16 %v816
    %v3013 = vunpack.c.l.b16 %v817
    %v3014 = vunpack.c.l.b16 %v818
    %v3015 = vunpack.c.l.b16 %v819
    %v3016 = vunpack.c.l.b16 %v820
    %v3017 = vunpack.c.l.b16 %v821
    %v3018 = vunpack.c.l.b16 %v822
    %v3019 = vunpack.c.l.b16 %v823
    %v3020 = vunpack.c.l.b16 %v824
    %v3021 = vunpack.c.l.b16 %v825
    %v3022 = vunpack.c.l.b16 %v826
    %v3023 = vunpack.c.l.b16 %v827
    %v3024 = vunpack.c.l.b16 %v828
    %v3025 = vunpack.c.l.b16 %v829
    %v3026 = vunpack.c.l.b16 %v830
    %v3027 = vunpack.c.l.b16 %v831
    %v3028 = vunpack.c.l.b16 %v832
    %v3029 = vunpack.c.l.b16 %v833
    %v3030 = vunpack.c.l.b16 %v834
    %v3031 = vunpack.c.l.b16 %v835
    %v3032 = vunpack.c.l.b16 %v836
    %v3033 = vunpack.c.l.b16 %v837
    %v3034 = vunpack.c.l.b16 %v838
    %v3035 = vunpack.c.l.b16 %v839
    %v3036 = vunpack.c.l.b16 %v840
    %v3037 = vunpack.c.l.b16 %v841
    %v3038 = vunpack.c.l.b16 %v842
    %v3039 = vunpack.c.l.b16 %v843
    %v3040 = vunpack.c.l.b16 %v844
    %v3041 = vunpack.c.l.b16 %v845
    %v3042 = vunpack.c.l.b16 %v846
    %v3043 = vunpack.c.l.b16 %v847
    %v3044 = vunpack.c.l.b16 %v848
    %v3045 = vunpack.c.l.b16 %v849
    %v3046 = vunpack.c.l.b16 %v850
    %v3047 = vunpack.c.l.b16 %v851
    %v3048 = vunpack.c.l.b16 %v852
    %v3049 = vunpack.c.l.b16 %v853
    %v3050 = vunpack.c.l.b16 %v854
    %v3051 = vunpack.c.l.b16 %v855
    %v3052 = vunpack.c.l.b16 %v856
    %v3053 = vunpack.c.l.b16 %v857
    %v3054 = vunpack.c.l.b16 %v858
    %v3055 = vunpack.c.l.b16 %v859
    %v3056 = vunpack.c.l.b16 %v860
    %v3057 = vunpack.c.l.b16 %v861
    %v3058 = vunpack.c.l.b16 %v862
    %v3059 = vunpack.c.l.b16 %v863
    %v3060 = vunpack.c.l.b16 %v864
    %v3061 = vunpack.c.l.b16 %v865
    %v3062 = vunpack.c.l.b16 %v866
    %v3063 = vunpack.c.l.b16 %v867
    %v3064 = vunpack.c.l.b16 %v868
    %v3065 = vunpack.c.l.b16 %v869
    %v3066 = vunpack.c.l.b16 %v870
    %v3067 = vunpack.c.l.b16 %v871
    %v3068 = vunpack.c.l.b16 %v872
    %v3069 = vunpack.c.l.b16 %v873
    %v3070 = vunpack.c.l.b16 %v874
    %v3071 = vunpack.c.l.b16 %v875
    %v3072 = vunpack.c.l.b16 %v876
    %v3073 = vunpack.c.l.b16 %v877
    %v3074 = vunpack.c.l.b16 %v878
    %v3075 = vunpack.c.l.b16 %v879
    %v3076 = vunpack.c.l.b16 %v880
    %v3077 = vunpack.c.l.b16 %v881
    %v3078 = vunpack.c.l.b16 %v882
    %v3079 = vunpack.c.l.b16 %v883
    %v3080 = vunpack.c.l.b16 %v884
    %v3081 = vunpack.c.l.b16 %v885
    %v3082 = vunpack.c.l.b16 %v886
    %v3083 = vunpack.c.l.b16 %v887
    %v3084 = vunpack.c.l.b16 %v888
    %v3085 = vunpack.c.l.b16 %v889
    %v3086 = vunpack.c.l.b16 %v890
    %v3087 = vunpack.c.l.b16 %v891
    %v3088 = vunpack.c.l.b16 %v892
    %v3089 = vunpack.c.l.b16 %v893
    %v3090 = vunpack.c.l.b16 %v894
    %v3091 = vunpack.c.l.b16 %v895
    %v3092 = vunpack.c.l.b16 %v896
    %v3093 = vunpack.c.l.b16 %v897
    %v3094 = vunpack.c.l.b16 %v898
    %v3095 = vunpack.c.l.b16 %v899
    %v3096 = vunpack.c.l.b16 %v900
    %v3097 = vunpack.c.l.b16 %v901
    %v3098 = vunpack.c.l.b16 %v902
    %v3099 = vunpack.c.l.b16 %v903
    %v3100 = vunpack.c.l.b16 %v904
    %v3101 = vunpack.c.l.b16 %v905
    %v3102 = vunpack.c.l.b16 %v906
    %v3103 = vunpack.c.l.b16 %v907
    %v3104 = vunpack.c.l.b16 %v908
    %v3105 = vunpack.c.l.b16 %v909
    %v3106 = vunpack.c.l.b16 %v910
    %v3107 = vunpack.c.l.b16 %v911
    %v3108 = vunpack.c.l.b16 %v912
    %v3109 = vunpack.c.l.b16 %v913
    %v3110 = vunpack.c.l.b16 %v914
    %v3111 = vunpack.c.l.b16 %v915
    %v3112 = vunpack.c.l.b16 %v916
    %v3113 = vunpack.c.l.b16 %v917
    %v3114 = vunpack.c.l.b16 %v918
    %v3115 = vunpack.c.l.b16 %v919
    %v3116 = vunpack.c.l.b16 %v920
    %v3117 = vunpack.c.l.b16 %v921
    %v3118 = vunpack.c.l.b16 %v922
    %v3119 = vunpack.c.l.b16 %v923
    %v3120 = vunpack.c.l.b16 %v924
    %v3121 = vunpack.c.l.b16 %v925
    %v3122 = vunpack.c.l.b16 %v926
    %v3123 = vunpack.c.l.b16 %v927
    %v3124 = vunpack.c.l.b16 %v928
    %v3125 = vunpack.c.l.b16 %v929
    %v3126 = vunpack.c.l.b16 %v930
    %v3127 = vunpack.c.l.b16 %v931
    %v3128 = vunpack.c.l.b16 %v932
    %v3129 = vunpack.c.l.b16 %v933
    %v3130 = vunpack.c.l.b16 %v934
    %v3131 = vunpack.c.l.b16 %v935
    %v3132 = vunpack.c.l.b16 %v936
    %v3133 = vunpack.c.l.b16 %v937
    %v3134 = vunpack.c.l.b16 %v938
    %v3135 = vunpack.c.l.b16 %v939
    %v3136 = vunpack.c.l.b16 %v940
    %v3137 = vunpack.c.l.b16 %v941
    %v3138 = vunpack.c.l.b16 %v942
    %v3139 = vunpack.c.l.b16 %v943
    %v3140 = vunpack.c.l.b16 %v944
    %v3141 = vunpack.c.l.b16 %v945
    %v3142 = vunpack.c.l.b16 %v946
    %v3143 = vunpack.c.l.b16 %v947
    %v3144 = vunpack.c.l.b16 %v948
    %v3145 = vunpack.c.l.b16 %v949
    %v3146 = vunpack.c.l.b16 %v950
    %v3147 = vunpack.c.l.b16 %v951
    %v3148 = vunpack.c.l.b16 %v952
    %v3149 = vunpack.c.l.b16 %v953
    %v3150 = vunpack.c.l.b16 %v954
    %v3151 = vunpack.c.l.b16 %v955
    %v3152 = vunpack.c.l.b16 %v956
    %v3153 = vunpack.c.l.b16 %v957
    %v3154 = vunpack.c.l.b16 %v958
    %v3155 = vunpack.c.l.b16 %v959
    %v3156 = vunpack.c.l.b16 %v960
    %v3157 = vunpack.c.l.b16 %v961
    %v3158 = vunpack.c.l.b16 %v962
    %v3159 = vunpack.c.l.b16 %v963
    %v3160 = vunpack.c.l.b16 %v964
    %v3161 = vunpack.c.l.b16 %v965
    %v3162 = vunpack.c.l.b16 %v966
    %v3163 = vunpack.c.l.b16 %v967
    %v3164 = vunpack.c.l.b16 %v968
    %v3165 = vunpack.c.l.b16 %v969
    %v3166 = vunpack.c.l.b16 %v970
    %v3167 = vunpack.c.l.b16 %v971
    %v3168 = vunpack.c.l.b16 %v972
    %v3169 = vunpack.c.l.b16 %v973
    %v3170 = vunpack.c.l.b16 %v974
    %v3171 = vunpack.c.l.b16 %v975
    %v3172 = vunpack.c.l.b16 %v976
    %v3173 = vunpack.c.l.b16 %v977
    %v3174 = vunpack.c.l.b16 %v978
    %v3175 = vunpack.c.l.b16 %v979
    %v3176 = vunpack.c.l.b16 %v980
    %v3177 = vunpack.c.l.b16 %v981
    %v3178 = vunpack.c.l.b16 %v982
    %v3179 = vunpack.c.l.b16 %v983
    %v3180 = vunpack.c.l.b16 %v984
    %v3181 = vunpack.c.l.b16 %v985
    %v3182 = vunpack.c.l.b16 %v986
    %v3183 = vunpack.c.l.b16 %v987
    %v3184 = vunpack.c.l.b16 %v988
    %v3185 = vunpack.c.l.b16 %v989
    %v3186 = vunpack.c.l.b16 %v990
    %v3187 = vunpack.c.l.b16 %v991
    %v3188 = vunpack.c.l.b16 %v992
    %v3189 = vunpack.c.l.b16 %v993
    %v3190 = vunpack.c.l.b16 %v994
    %v3191 = vunpack.c.l.b16 %v995
    %v3192 = vunpack.c.l.b16 %v996
    %v3193 = vunpack.c.l.b16 %v997
    %v3194 = vunpack.c.l.b16 %v998
    %v3195 = vunpack.c.l.b16 %v999
    %v3196 = vunpack.c.l.b16 %v1000
    %v3197 = vunpack.c.l.b16 %v1001
    %v3198 = vunpack.c.l.b16 %v1002
    %v3199 = vunpack.c.l.b16 %v1003
    %v3200 = vunpack.c.l.b16 %v1004
    %v3201 = vunpack.c.l.b16 %v1005
    %v3202 = vunpack.c.l.b16 %v1006
    %v3203 = vunpack.c.l.b16 %v1007
    %v3204 = vunpack.c.l.b16 %v1008
    %v3205 = vunpack.c.l.b16 %v1009
    %v3206 = vunpack.c.l.b16 %v1010
    %v3207 = vunpack.c.l.b16 %v1011
    %v3208 = vunpack.c.l.b16 %v1012
    %v3209 = vunpack.c.l.b16 %v1013
    %v3210 = vunpack.c.l.b16 %v1014
    %v3211 = vunpack.c.l.b16 %v1015
    %v3212 = vunpack.c.l.b16 %v1016
    %v3213 = vunpack.c.l.b16 %v1017
    %v3214 = vunpack.c.l.b16 %v1018
    %v3215 = vunpack.c.l.b16 %v1019
    %v3216 = vunpack.c.l.b16 %v1020
    %v3217 = vunpack.c.l.b16 %v1021
    %v3218 = vunpack.c.l.b16 %v1022
    %v3219 = vunpack.c.l.b16 %v1023
    %v3220 = vunpack.c.l.b16 %v1024
    %v3221 = vunpack.c.l.b16 %v1025
    %v3222 = vunpack.c.l.b16 %v1026
    %v3223 = vunpack.c.l.b16 %v1027
    %v3224 = vunpack.c.l.b16 %v1028
    %v3225 = vunpack.c.l.b16 %v1029
    %v3226 = vunpack.c.l.b16 %v1030
    %v3227 = vunpack.c.l.b16 %v1031
    %v3228 = vunpack.c.l.b16 %v1032
    %v3229 = vunpack.c.l.b16 %v1033
    %v3230 = vunpack.c.l.b16 %v1034
    %v3231 = vunpack.c.l.b16 %v1035
    %v3232 = vunpack.c.l.b16 %v1036
    %v3233 = vunpack.c.l.b16 %v1037
    %v3234 = vunpack.c.l.b16 %v1038
    %v3235 = vunpack.c.l.b16 %v1039
    %v3236 = vunpack.c.l.b16 %v1040
    %v3237 = vunpack.c.l.b16 %v1041
    %v3238 = vunpack.c.l.b16 %v1042
    %v3239 = vunpack.c.l.b16 %v1043
    %v3240 = vunpack.c.l.b16 %v1044
    %v3241 = vunpack.c.l.b16 %v1045
    %v3242 = vunpack.c.l.b16 %v1046
    %v3243 = vunpack.c.l.b16 %v1047
    %v3244 = vunpack.c.l.b16 %v1048
    %v3245 = vunpack.c.l.b16 %v1049
    %v3246 = vunpack.c.l.b16 %v1050
    %v3247 = vunpack.c.l.b16 %v1051
    %v3248 = vunpack.c.l.b16 %v1052
    %v3249 = vpack.c.b16 %v2226, %v2225
    %v3250 = vpack.c.b16 %v2228, %v2227
    %v3251 = vpack.c.b16 %v2230, %v2229
    %v3252 = vpack.c.b16 %v2232, %v2231
    %v3253 = vpack.c.b16 %v2234, %v2233
    %v3254 = vpack.c.b16 %v2236, %v2235
    %v3255 = vpack.c.b16 %v2238, %v2237
    %v3256 = vpack.c.b16 %v2240, %v2239
    %v3257 = vpack.c.b16 %v2242, %v2241
    %v3258 = vpack.c.b16 %v2244, %v2243
    %v3259 = vpack.c.b16 %v2246, %v2245
    %v3260 = vpack.c.b16 %v2248, %v2247
    %v3261 = vpack.c.b16 %v2250, %v2249
    %v3262 = vpack.c.b16 %v2252, %v2251
    %v3263 = vpack.c.b16 %v2254, %v2253
    %v3264 = vpack.c.b16 %v2256, %v2255
    %v3265 = vpack.c.b16 %v2258, %v2257
    %v3266 = vpack.c.b16 %v2260, %v2259
    %v3267 = vpack.c.b16 %v2262, %v2261
    %v3268 = vpack.c.b16 %v2264, %v2263
    %v3269 = vpack.c.b16 %v2266, %v2265
    %v3270 = vpack.c.b16 %v2268, %v2267
    %v3271 = vpack.c.b16 %v2270, %v2269
    %v3272 = vpack.c.b16 %v2272, %v2271
    %v3273 = vpack.c.b16 %v2274, %v2273
    %v3274 = vpack.c.b16 %v2276, %v2275
    %v3275 = vpack.c.b16 %v2278, %v2277
    %v3276 = vpack.c.b16 %v2280, %v2279
    %v3277 = vpack.c.b16 %v2282, %v2281
    %v3278 = vpack.c.b16 %v2284, %v2283
    %v3279 = vpack.c.b16 %v2286, %v2285
    %v3280 = vpack.c.b16 %v2288, %v2287
    %v3281 = vpack.c.b16 %v2290, %v2289
    %v3282 = vpack.c.b16 %v2292, %v2291
    %v3283 = vpack.c.b16 %v2294, %v2293
    %v3284 = vpack.c.b16 %v2296, %v2295
    %v3285 = vpack.c.b16 %v2298, %v2297
    %v3286 = vpack.c.b16 %v2300, %v2299
    %v3287 = vpack.c.b16 %v2302, %v2301
    %v3288 = vpack.c.b16 %v2304, %v2303
    %v3289 = vpack.c.b16 %v2306, %v2305
    %v3290 = vpack.c.b16 %v2308, %v2307
    %v3291 = vpack.c.b16 %v2310, %v2309
    %v3292 = vpack.c.b16 %v2312, %v2311
    %v3293 = vpack.c.b16 %v2314, %v2313
    %v3294 = vpack.c.b16 %v2316, %v2315
    %v3295 = vpack.c.b16 %v2318, %v2317
    %v3296 = vpack.c.b16 %v2320, %v2319
    %v3297 = vpack.c.b16 %v2322, %v2321
    %v3298 = vpack.c.b16 %v2324, %v2323
    %v3299 = vpack.c.b16 %v2326, %v2325
    %v3300 = vpack.c.b16 %v2328, %v2327
    %v3301 = vpack.c.b16 %v2330, %v2329
    %v3302 = vpack.c.b16 %v2332, %v2331
    %v3303 = vpack.c.b16 %v2334, %v2333
    %v3304 = vpack.c.b16 %v2336, %v2335
    %v3305 = vpack.c.b16 %v2338, %v2337
    %v3306 = vpack.c.b16 %v2340, %v2339
    %v3307 = vpack.c.b16 %v2342, %v2341
    %v3308 = vpack.c.b16 %v2344, %v2343
    %v3309 = vpack.c.b16 %v2346, %v2345
    %v3310 = vpack.c.b16 %v2348, %v2347
    %v3311 = vpack.c.b16 %v2350, %v2349
    %v3312 = vpack.c.b16 %v2352, %v2351
    %v3313 = vpack.c.b16 %v2354, %v2353
    %v3314 = vpack.c.b16 %v2356, %v2355
    %v3315 = vpack.c.b16 %v2358, %v2357
    %v3316 = vpack.c.b16 %v2360, %v2359
    %v3317 = vpack.c.b16 %v2362, %v2361
    %v3318 = vpack.c.b16 %v2364, %v2363
    %v3319 = vpack.c.b16 %v2366, %v2365
    %v3320 = vpack.c.b16 %v2368, %v2367
    %v3321 = vpack.c.b16 %v2370, %v2369
    %v3322 = vpack.c.b16 %v2372, %v2371
    %v3323 = vpack.c.b16 %v2374, %v2373
    %v3324 = vpack.c.b16 %v2376, %v2375
    %v3325 = vpack.c.b16 %v2378, %v2377
    %v3326 = vpack.c.b16 %v2380, %v2379
    %v3327 = vpack.c.b16 %v2382, %v2381
    %v3328 = vpack.c.b16 %v2384, %v2383
    %v3329 = vpack.c.b16 %v2386, %v2385
    %v3330 = vpack.c.b16 %v2388, %v2387
    %v3331 = vpack.c.b16 %v2390, %v2389
    %v3332 = vpack.c.b16 %v2392, %v2391
    %v3333 = vpack.c.b16 %v2394, %v2393
    %v3334 = vpack.c.b16 %v2396, %v2395
    %v3335 = vpack.c.b16 %v2398, %v2397
    %v3336 = vpack.c.b16 %v2400, %v2399
    %v3337 = vpack.c.b16 %v2402, %v2401
    %v3338 = vpack.c.b16 %v2404, %v2403
    %v3339 = vpack.c.b16 %v2406, %v2405
    %v3340 = vpack.c.b16 %v2408, %v2407
    %v3341 = vpack.c.b16 %v2410, %v2409
    %v3342 = vpack.c.b16 %v2412, %v2411
    %v3343 = vpack.c.b16 %v2414, %v2413
    %v3344 = vpack.c.b16 %v2416, %v2415
    %v3345 = vpack.c.b16 %v2418, %v2417
    %v3346 = vpack.c.b16 %v2420, %v2419
    %v3347 = vpack.c.b16 %v2422, %v2421
    %v3348 = vpack.c.b16 %v2424, %v2423
    %v3349 = vpack.c.b16 %v2426, %v2425
    %v3350 = vpack.c.b16 %v2428, %v2427
    %v3351 = vpack.c.b16 %v2430, %v2429
    %v3352 = vpack.c.b16 %v2432, %v2431
    %v3353 = vpack.c.b16 %v2434, %v2433
    %v3354 = vpack.c.b16 %v2436, %v2435
    %v3355 = vpack.c.b16 %v2438, %v2437
    %v3356 = vpack.c.b16 %v2440, %v2439
    %v3357 = vpack.c.b16 %v2442, %v2441
    %v3358 = vpack.c.b16 %v2444, %v2443
    %v3359 = vpack.c.b16 %v2446, %v2445
    %v3360 = vpack.c.b16 %v2448, %v2447
    %v3361 = vpack.c.b16 %v2450, %v2449
    %v3362 = vpack.c.b16 %v2452, %v2451
    %v3363 = vpack.c.b16 %v2454, %v2453
    %v3364 = vpack.c.b16 %v2456, %v2455
    %v3365 = vpack.c.b16 %v2458, %v2457
    %v3366 = vpack.c.b16 %v2460, %v2459
    %v3367 = vpack.c.b16 %v2462, %v2461
    %v3368 = vpack.c.b16 %v2464, %v2463
    %v3369 = vpack.c.b16 %v2466, %v2465
    %v3370 = vpack.c.b16 %v2468, %v2467
    %v3371 = vpack.c.b16 %v2470, %v2469
    %v3372 = vpack.c.b16 %v2472, %v2471
    %v3373 = vpack.c.b16 %v2474, %v2473
    %v3374 = vpack.c.b16 %v2476, %v2475
    %v3375 = vpack.c.b16 %v2478, %v2477
    %v3376 = vpack.c.b16 %v2480, %v2479
    %v3377 = vpack.c.b16 %v2482, %v2481
    %v3378 = vpack.c.b16 %v2484, %v2483
    %v3379 = vpack.c.b16 %v2486, %v2485
    %v3380 = vpack.c.b16 %v2488, %v2487
    %v3381 = vpack.c.b16 %v2490, %v2489
    %v3382 = vpack.c.b16 %v2492, %v2491
    %v3383 = vpack.c.b16 %v2494, %v2493
    %v3384 = vpack.c.b16 %v2496, %v2495
    %v3385 = vpack.c.b16 %v2498, %v2497
    %v3386 = vpack.c.b16 %v2500, %v2499
    %v3387 = vpack.c.b16 %v2502, %v2501
    %v3388 = vpack.c.b16 %v2504, %v2503
    %v3389 = vpack.c.b16 %v2506, %v2505
    %v3390 = vpack.c.b16 %v2508, %v2507
    %v3391 = vpack.c.b16 %v2510, %v2509
    %v3392 = vpack.c.b16 %v2512, %v2511
    %v3393 = vpack.c.b16 %v2514, %v2513
    %v3394 = vpack.c.b16 %v2516, %v2515
    %v3395 = vpack.c.b16 %v2518, %v2517
    %v3396 = vpack.c.b16 %v2520, %v2519
    %v3397 = vpack.c.b16 %v2522, %v2521
    %v3398 = vpack.c.b16 %v2524, %v2523
    %v3399 = vpack.c.b16 %v2526, %v2525
    %v3400 = vpack.c.b16 %v2528, %v2527
    %v3401 = vpack.c.b16 %v2530, %v2529
    %v3402 = vpack.c.b16 %v2532, %v2531
    %v3403 = vpack.c.b16 %v2534, %v2533
    %v3404 = vpack.c.b16 %v2536, %v2535
    %v3405 = vpack.c.b16 %v2538, %v2537
    %v3406 = vpack.c.b16 %v2540, %v2539
    %v3407 = vpack.c.b16 %v2542, %v2541
    %v3408 = vpack.c.b16 %v2544, %v2543
    %v3409 = vpack.c.b16 %v2546, %v2545
    %v3410 = vpack.c.b16 %v2548, %v2547
    %v3411 = vpack.c.b16 %v2550, %v2549
    %v3412 = vpack.c.b16 %v2552, %v2551
    %v3413 = vpack.c.b16 %v2554, %v2553
    %v3414 = vpack.c.b16 %v2556, %v2555
    %v3415 = vpack.c.b16 %v2558, %v2557
    %v3416 = vpack.c.b16 %v2560, %v2559
    %v3417 = vpack.c.b16 %v2562, %v2561
    %v3418 = vpack.c.b16 %v2564, %v2563
    %v3419 = vpack.c.b16 %v2566, %v2565
    %v3420 = vpack.c.b16 %v2568, %v2567
    %v3421 = vpack.c.b16 %v2570, %v2569
    %v3422 = vpack.c.b16 %v2572, %v2571
    %v3423 = vpack.c.b16 %v2574, %v2573
    %v3424 = vpack.c.b16 %v2576, %v2575
    %v3425 = vpack.c.b16 %v2578, %v2577
    %v3426 = vpack.c.b16 %v2580, %v2579
    %v3427 = vpack.c.b16 %v2582, %v2581
    %v3428 = vpack.c.b16 %v2584, %v2583
    %v3429 = vpack.c.b16 %v2586, %v2585
    %v3430 = vpack.c.b16 %v2588, %v2587
    %v3431 = vpack.c.b16 %v2590, %v2589
    %v3432 = vpack.c.b16 %v2592, %v2591
    %v3433 = vpack.c.b16 %v2594, %v2593
    %v3434 = vpack.c.b16 %v2596, %v2595
    %v3435 = vpack.c.b16 %v2598, %v2597
    %v3436 = vpack.c.b16 %v2600, %v2599
    %v3437 = vpack.c.b16 %v2602, %v2601
    %v3438 = vpack.c.b16 %v2604, %v2603
    %v3439 = vpack.c.b16 %v2606, %v2605
    %v3440 = vpack.c.b16 %v2608, %v2607
    %v3441 = vpack.c.b16 %v2610, %v2609
    %v3442 = vpack.c.b16 %v2612, %v2611
    %v3443 = vpack.c.b16 %v2614, %v2613
    %v3444 = vpack.c.b16 %v2616, %v2615
    %v3445 = vpack.c.b16 %v2618, %v2617
    %v3446 = vpack.c.b16 %v2620, %v2619
    %v3447 = vpack.c.b16 %v2622, %v2621
    %v3448 = vpack.c.b16 %v2624, %v2623
    %v3449 = vpack.c.b16 %v2626, %v2625
    %v3450 = vpack.c.b16 %v2628, %v2627
    %v3451 = vpack.c.b16 %v2630, %v2629
    %v3452 = vpack.c.b16 %v2632, %v2631
    %v3453 = vpack.c.b16 %v2634, %v2633
    %v3454 = vpack.c.b16 %v2636, %v2635
    %v3455 = vpack.c.b16 %v2638, %v2637
    %v3456 = vpack.c.b16 %v2640, %v2639
    %v3457 = vpack.c.b16 %v2642, %v2641
    %v3458 = vpack.c.b16 %v2644, %v2643
    %v3459 = vpack.c.b16 %v2646, %v2645
    %v3460 = vpack.c.b16 %v2648, %v2647
    %v3461 = vpack.c.b16 %v2650, %v2649
    %v3462 = vpack.c.b16 %v2652, %v2651
    %v3463 = vpack.c.b16 %v2654, %v2653
    %v3464 = vpack.c.b16 %v2656, %v2655
    %v3465 = vpack.c.b16 %v2658, %v2657
    %v3466 = vpack.c.b16 %v2660, %v2659
    %v3467 = vpack.c.b16 %v2662, %v2661
    %v3468 = vpack.c.b16 %v2664, %v2663
    %v3469 = vpack.c.b16 %v2666, %v2665
    %v3470 = vpack.c.b16 %v2668, %v2667
    %v3471 = vpack.c.b16 %v2670, %v2669
    %v3472 = vpack.c.b16 %v2672, %v2671
    %v3473 = vpack.c.b16 %v2674, %v2673
    %v3474 = vpack.c.b16 %v2676, %v2675
    %v3475 = vpack.c.b16 %v2678, %v2677
    %v3476 = vpack.c.b16 %v2680, %v2679
    %v3477 = vpack.c.b16 %v2682, %v2681
    %v3478 = vpack.c.b16 %v2684, %v2683
    %v3479 = vpack.c.b16 %v2686, %v2685
    %v3480 = vpack.c.b16 %v2688, %v2687
    %v3481 = vpack.c.b16 %v2690, %v2689
    %v3482 = vpack.c.b16 %v2692, %v2691
    %v3483 = vpack.c.b16 %v2694, %v2693
    %v3484 = vpack.c.b16 %v2696, %v2695
    %v3485 = vpack.c.b16 %v2698, %v2697
    %v3486 = vpack.c.b16 %v2700, %v2699
    %v3487 = vpack.c.b16 %v2702, %v2701
    %v3488 = vpack.c.b16 %v2704, %v2703
    %v3489 = vpack.c.b16 %v2706, %v2705
    %v3490 = vpack.c.b16 %v2708, %v2707
    %v3491 = vpack.c.b16 %v2710, %v2709
    %v3492 = vpack.c.b16 %v2712, %v2711
    %v3493 = vpack.c.b16 %v2714, %v2713
    %v3494 = vpack.c.b16 %v2716, %v2715
    %v3495 = vpack.c.b16 %v2718, %v2717
    %v3496 = vpack.c.b16 %v2720, %v2719
    %v3497 = vpack.c.b16 %v2722, %v2721
    %v3498 = vpack.c.b16 %v2724, %v2723
    %v3499 = vpack.c.b16 %v2726, %v2725
    %v3500 = vpack.c.b16 %v2728, %v2727
    %v3501 = vpack.c.b16 %v2730, %v2729
    %v3502 = vpack.c.b16 %v2732, %v2731
    %v3503 = vpack.c.b16 %v2734, %v2733
    %v3504 = vpack.c.b16 %v2736, %v2735
    %v3505 = vpack.c.b16 %v2738, %v2737
    %v3506 = vpack.c.b16 %v2740, %v2739
    %v3507 = vpack.c.b16 %v2742, %v2741
    %v3508 = vpack.c.b16 %v2744, %v2743
    %v3509 = vpack.c.b16 %v2746, %v2745
    %v3510 = vpack.c.b16 %v2748, %v2747
    %v3511 = vpack.c.b16 %v2750, %v2749
    %v3512 = vpack.c.b16 %v2752, %v2751
    %v3513 = vpack.c.b16 %v2754, %v2753
    %v3514 = vpack.c.b16 %v2756, %v2755
    %v3515 = vpack.c.b16 %v2758, %v2757
    %v3516 = vpack.c.b16 %v2760, %v2759
    %v3517 = vpack.c.b16 %v2762, %v2761
    %v3518 = vpack.c.b16 %v2764, %v2763
    %v3519 = vpack.c.b16 %v2766, %v2765
    %v3520 = vpack.c.b16 %v2768, %v2767
    %v3521 = vpack.c.b16 %v2770, %v2769
    %v3522 = vpack.c.b16 %v2772, %v2771
    %v3523 = vpack.c.b16 %v2774, %v2773
    %v3524 = vpack.c.b16 %v2776, %v2775
    %v3525 = vpack.c.b16 %v2778, %v2777
    %v3526 = vpack.c.b16 %v2780, %v2779
    %v3527 = vpack.c.b16 %v2782, %v2781
    %v3528 = vpack.c.b16 %v2784, %v2783
    %v3529 = vpack.c.b16 %v2786, %v2785
    %v3530 = vpack.c.b16 %v2788, %v2787
    %v3531 = vpack.c.b16 %v2790, %v2789
    %v3532 = vpack.c.b16 %v2792, %v2791
    %v3533 = vpack.c.b16 %v2794, %v2793
    %v3534 = vpack.c.b16 %v2796, %v2795
    %v3535 = vpack.c.b16 %v2798, %v2797
    %v3536 = vpack.c.b16 %v2800, %v2799
    %v3537 = vpack.c.b16 %v2802, %v2801
    %v3538 = vpack.c.b16 %v2804, %v2803
    %v3539 = vpack.c.b16 %v2806, %v2805
    %v3540 = vpack.c.b16 %v2808, %v2807
    %v3541 = vpack.c.b16 %v2810, %v2809
    %v3542 = vpack.c.b16 %v2812, %v2811
    %v3543 = vpack.c.b16 %v2814, %v2813
    %v3544 = vpack.c.b16 %v2816, %v2815
    %v3545 = vpack.c.b16 %v2818, %v2817
    %v3546 = vpack.c.b16 %v2820, %v2819
    %v3547 = vpack.c.b16 %v2822, %v2821
    %v3548 = vpack.c.b16 %v2824, %v2823
    %v3549 = vpack.c.b16 %v2826, %v2825
    %v3550 = vpack.c.b16 %v2828, %v2827
    %v3551 = vpack.c.b16 %v2830, %v2829
    %v3552 = vpack.c.b16 %v2832, %v2831
    %v3553 = vpack.c.b16 %v2834, %v2833
    %v3554 = vpack.c.b16 %v2836, %v2835
    %v3555 = vpack.c.b16 %v2838, %v2837
    %v3556 = vpack.c.b16 %v2840, %v2839
    %v3557 = vpack.c.b16 %v2842, %v2841
    %v3558 = vpack.c.b16 %v2844, %v2843
    %v3559 = vpack.c.b16 %v2846, %v2845
    %v3560 = vpack.c.b16 %v2848, %v2847
    %v3561 = vpack.c.b16 %v2850, %v2849
    %v3562 = vpack.c.b16 %v2852, %v2851
    %v3563 = vpack.c.b16 %v2854, %v2853
    %v3564 = vpack.c.b16 %v2856, %v2855
    %v3565 = vpack.c.b16 %v2858, %v2857
    %v3566 = vpack.c.b16 %v2860, %v2859
    %v3567 = vpack.c.b16 %v2862, %v2861
    %v3568 = vpack.c.b16 %v2864, %v2863
    %v3569 = vpack.c.b16 %v2866, %v2865
    %v3570 = vpack.c.b16 %v2868, %v2867
    %v3571 = vpack.c.b16 %v2870, %v2869
    %v3572 = vpack.c.b16 %v2872, %v2871
    %v3573 = vpack.c.b16 %v2874, %v2873
    %v3574 = vpack.c.b16 %v2876, %v2875
    %v3575 = vpack.c.b16 %v2878, %v2877
    %v3576 = vpack.c.b16 %v2880, %v2879
    %v3577 = vpack.c.b16 %v2882, %v2881
    %v3578 = vpack.c.b16 %v2884, %v2883
    %v3579 = vpack.c.b16 %v2886, %v2885
    %v3580 = vpack.c.b16 %v2888, %v2887
    %v3581 = vpack.c.b16 %v2890, %v2889
    %v3582 = vpack.c.b16 %v2892, %v2891
    %v3583 = vpack.c.b16 %v2894, %v2893
    %v3584 = vpack.c.b16 %v2896, %v2895
    %v3585 = vpack.c.b16 %v2898, %v2897
    %v3586 = vpack.c.b16 %v2900, %v2899
    %v3587 = vpack.c.b16 %v2902, %v2901
    %v3588 = vpack.c.b16 %v2904, %v2903
    %v3589 = vpack.c.b16 %v2906, %v2905
    %v3590 = vpack.c.b16 %v2908, %v2907
    %v3591 = vpack.c.b16 %v2910, %v2909
    %v3592 = vpack.c.b16 %v2912, %v2911
    %v3593 = vpack.c.b16 %v2914, %v2913
    %v3594 = vpack.c.b16 %v2916, %v2915
    %v3595 = vpack.c.b16 %v2918, %v2917
    %v3596 = vpack.c.b16 %v2920, %v2919
    %v3597 = vpack.c.b16 %v2922, %v2921
    %v3598 = vpack.c.b16 %v2924, %v2923
    %v3599 = vpack.c.b16 %v2926, %v2925
    %v3600 = vpack.c.b16 %v2928, %v2927
    %v3601 = vpack.c.b16 %v2930, %v2929
    %v3602 = vpack.c.b16 %v2932, %v2931
    %v3603 = vpack.c.b16 %v2934, %v2933
    %v3604 = vpack.c.b16 %v2936, %v2935
    %v3605 = vpack.c.b16 %v2938, %v2937
    %v3606 = vpack.c.b16 %v2940, %v2939
    %v3607 = vpack.c.b16 %v2942, %v2941
    %v3608 = vpack.c.b16 %v2944, %v2943
    %v3609 = vpack.c.b16 %v2946, %v2945
    %v3610 = vpack.c.b16 %v2948, %v2947
    %v3611 = vpack.c.b16 %v2950, %v2949
    %v3612 = vpack.c.b16 %v2952, %v2951
    %v3613 = vpack.c.b16 %v2954, %v2953
    %v3614 = vpack.c.b16 %v2956, %v2955
    %v3615 = vpack.c.b16 %v2958, %v2957
    %v3616 = vpack.c.b16 %v2960, %v2959
    %v3617 = vpack.c.b16 %v2962, %v2961
    %v3618 = vpack.c.b16 %v2964, %v2963
    %v3619 = vpack.c.b16 %v2966, %v2965
    %v3620 = vpack.c.b16 %v2968, %v2967
    %v3621 = vpack.c.b16 %v2970, %v2969
    %v3622 = vpack.c.b16 %v2972, %v2971
    %v3623 = vpack.c.b16 %v2974, %v2973
    %v3624 = vpack.c.b16 %v2976, %v2975
    %v3625 = vpack.c.b16 %v2978, %v2977
    %v3626 = vpack.c.b16 %v2980, %v2979
    %v3627 = vpack.c.b16 %v2982, %v2981
    %v3628 = vpack.c.b16 %v2984, %v2983
    %v3629 = vpack.c.b16 %v2986, %v2985
    %v3630 = vpack.c.b16 %v2988, %v2987
    %v3631 = vpack.c.b16 %v2990, %v2989
    %v3632 = vpack.c.b16 %v2992, %v2991
    %v3633 = vpack.c.b16 %v2994, %v2993
    %v3634 = vpack.c.b16 %v2996, %v2995
    %v3635 = vpack.c.b16 %v2998, %v2997
    %v3636 = vpack.c.b16 %v3000, %v2999
    %v3637 = vpack.c.b16 %v3002, %v3001
    %v3638 = vpack.c.b16 %v3004, %v3003
    %v3639 = vpack.c.b16 %v3006, %v3005
    %v3640 = vpack.c.b16 %v3008, %v3007
    %v3641 = vpack.c.b16 %v3010, %v3009
    %v3642 = vpack.c.b16 %v3012, %v3011
    %v3643 = vpack.c.b16 %v3014, %v3013
    %v3644 = vpack.c.b16 %v3016, %v3015
    %v3645 = vpack.c.b16 %v3018, %v3017
    %v3646 = vpack.c.b16 %v3020, %v3019
    %v3647 = vpack.c.b16 %v3022, %v3021
    %v3648 = vpack.c.b16 %v3024, %v3023
    %v3649 = vpack.c.b16 %v3026, %v3025
    %v3650 = vpack.c.b16 %v3028, %v3027
    %v3651 = vpack.c.b16 %v3030, %v3029
    %v3652 = vpack.c.b16 %v3032, %v3031
    %v3653 = vpack.c.b16 %v3034, %v3033
    %v3654 = vpack.c.b16 %v3036, %v3035
    %v3655 = vpack.c.b16 %v3038, %v3037
    %v3656 = vpack.c.b16 %v3040, %v3039
    %v3657 = vpack.c.b16 %v3042, %v3041
    %v3658 = vpack.c.b16 %v3044, %v3043
    %v3659 = vpack.c.b16 %v3046, %v3045
    %v3660 = vpack.c.b16 %v3048, %v3047
    %v3661 = vpack.c.b16 %v3050, %v3049
    %v3662 = vpack.c.b16 %v3052, %v3051
    %v3663 = vpack.c.b16 %v3054, %v3053
    %v3664 = vpack.c.b16 %v3056, %v3055
    %v3665 = vpack.c.b16 %v3058, %v3057
    %v3666 = vpack.c.b16 %v3060, %v3059
    %v3667 = vpack.c.b16 %v3062, %v3061
    %v3668 = vpack.c.b16 %v3064, %v3063
    %v3669 = vpack.c.b16 %v3066, %v3065
    %v3670 = vpack.c.b16 %v3068, %v3067
    %v3671 = vpack.c.b16 %v3070, %v3069
    %v3672 = vpack.c.b16 %v3072, %v3071
    %v3673 = vpack.c.b16 %v3074, %v3073
    %v3674 = vpack.c.b16 %v3076, %v3075
    %v3675 = vpack.c.b16 %v3078, %v3077
    %v3676 = vpack.c.b16 %v3080, %v3079
    %v3677 = vpack.c.b16 %v3082, %v3081
    %v3678 = vpack.c.b16 %v3084, %v3083
    %v3679 = vpack.c.b16 %v3086, %v3085
    %v3680 = vpack.c.b16 %v3088, %v3087
    %v3681 = vpack.c.b16 %v3090, %v3089
    %v3682 = vpack.c.b16 %v3092, %v3091
    %v3683 = vpack.c.b16 %v3094, %v3093
    %v3684 = vpack.c.b16 %v3096, %v3095
    %v3685 = vpack.c.b16 %v3098, %v3097
    %v3686 = vpack.c.b16 %v3100, %v3099
    %v3687 = vpack.c.b16 %v3102, %v3101
    %v3688 = vpack.c.b16 %v3104, %v3103
    %v3689 = vpack.c.b16 %v3106, %v3105
    %v3690 = vpack.c.b16 %v3108, %v3107
    %v3691 = vpack.c.b16 %v3110, %v3109
    %v3692 = vpack.c.b16 %v3112, %v3111
    %v3693 = vpack.c.b16 %v3114, %v3113
    %v3694 = vpack.c.b16 %v3116, %v3115
    %v3695 = vpack.c.b16 %v3118, %v3117
    %v3696 = vpack.c.b16 %v3120, %v3119
    %v3697 = vpack.c.b16 %v3122, %v3121
    %v3698 = vpack.c.b16 %v3124, %v3123
    %v3699 = vpack.c.b16 %v3126, %v3125
    %v3700 = vpack.c.b16 %v3128, %v3127
    %v3701 = vpack.c.b16 %v3130, %v3129
    %v3702 = vpack.c.b16 %v3132, %v3131
    %v3703 = vpack.c.b16 %v3134, %v3133
    %v3704 = vpack.c.b16 %v3136, %v3135
    %v3705 = vpack.c.b16 %v3138, %v3137
    %v3706 = vpack.c.b16 %v3140, %v3139
    %v3707 = vpack.c.b16 %v3142, %v3141
    %v3708 = vpack.c.b16 %v3144, %v3143
    %v3709 = vpack.c.b16 %v3146, %v3145
    %v3710 = vpack.c.b16 %v3148, %v3147
    %v3711 = vpack.c.b16 %v3150, %v3149
    %v3712 = vpack.c.b16 %v3152, %v3151
    %v3713 = vpack.c.b16 %v3154, %v3153
    %v3714 = vpack.c.b16 %v3156, %v3155
    %v3715 = vpack.c.b16 %v3158, %v3157
    %v3716 = vpack.c.b16 %v3160, %v3159
    %v3717 = vpack.c.b16 %v3162, %v3161
    %v3718 = vpack.c.b16 %v3164, %v3163
    %v3719 = vpack.c.b16 %v3166, %v3165
    %v3720 = vpack.c.b16 %v3168, %v3167
    %v3721 = vpack.c.b16 %v3170, %v3169
    %v3722 = vpack.c.b16 %v3172, %v3171
    %v3723 = vpack.c.b16 %v3174, %v3173
    %v3724 = vpack.c.b16 %v3176, %v3175
    %v3725 = vpack.c.b16 %v3178, %v3177
    %v3726 = vpack.c.b16 %v3180, %v3179
    %v3727 = vpack.c.b16 %v3182, %v3181
    %v3728 = vpack.c.b16 %v3184, %v3183
    %v3729 = vpack.c.b16 %v3186, %v3185
    %v3730 = vpack.c.b16 %v3188, %v3187
    %v3731 = vpack.c.b16 %v3190, %v3189
    %v3732 = vpack.c.b16 %v3192, %v3191
    %v3733 = vpack.c.b16 %v3194, %v3193
    %v3734 = vpack.c.b16 %v3196, %v3195
    %v3735 = vpack.c.b16 %v3198, %v3197
    %v3736 = vpack.c.b16 %v3200, %v3199
    %v3737 = vpack.c.b16 %v3202, %v3201
    %v3738 = vpack.c.b16 %v3204, %v3203
    %v3739 = vpack.c.b16 %v3206, %v3205
    %v3740 = vpack.c.b16 %v3208, %v3207
    %v3741 = vpack.c.b16 %v3210, %v3209
    %v3742 = vpack.c.b16 %v3212, %v3211
    %v3743 = vpack.c.b16 %v3214, %v3213
    %v3744 = vpack.c.b16 %v3216, %v3215
    %v3745 = vpack.c.b16 %v3218, %v3217
    %v3746 = vpack.c.b16 %v3220, %v3219
    %v3747 = vpack.c.b16 %v3222, %v3221
    %v3748 = vpack.c.b16 %v3224, %v3223
    %v3749 = vpack.c.b16 %v3226, %v3225
    %v3750 = vpack.c.b16 %v3228, %v3227
    %v3751 = vpack.c.b16 %v3230, %v3229
    %v3752 = vpack.c.b16 %v3232, %v3231
    %v3753 = vpack.c.b16 %v3234, %v3233
    %v3754 = vpack.c.b16 %v3236, %v3235
    %v3755 = vpack.c.b16 %v3238, %v3237
    %v3756 = vpack.c.b16 %v3240, %v3239
    %v3757 = vpack.c.b16 %v3242, %v3241
    %v3758 = vpack.c.b16 %v3244, %v3243
    %v3759 = vpack.c.b16 %v3246, %v3245
    %v3760 = vpack.c.b16 %v3248, %v3247
    %4273 = vmatpush.bf16.msra.mxu0 %v3256
    %4274 = vmatpush.bf16.msra.mxu0 %v3255
    %4275 = vmatpush.bf16.msra.mxu0 %v3254
    %4276 = vmatpush.bf16.msra.mxu0 %v3253
    %4277 = vmatpush.bf16.msra.mxu0 %v3252
    %4278 = vmatpush.bf16.msra.mxu0 %v3251
    %4279 = vmatpush.bf16.msra.mxu0 %v3250
    %4280 = vmatpush.bf16.msra.mxu0 %v3249
    %4281 = vmatmul.bf16.gmra.mxu0 %v1059
    %v4282 = vpop.f32.mrf.mxu0
    %v4283 = vadd.f32 %v1055, %v4282
    %v4284 = vpop.f32.mrf.mxu0
    %4285 = vdwg.mxu0
    %4286 = vmatpush.bf16.msra.mxu0 %v3264
    %4287 = vmatpush.bf16.msra.mxu0 %v3263
    %4288 = vmatpush.bf16.msra.mxu0 %v3262
    %4289 = vmatpush.bf16.msra.mxu0 %v3261
    %4290 = vmatpush.bf16.msra.mxu0 %v3260
    %4291 = vmatpush.bf16.msra.mxu0 %v3259
    %4292 = vmatpush.bf16.msra.mxu0 %v3258
    %4293 = vmatpush.bf16.msra.mxu0 %v3257
    %4294 = vmatmul.bf16.gmra.mxu0 %v1060
    %v4295 = vpop.f32.mrf.mxu0
    %v4296 = vadd.f32 %v4283, %v4295
    %v4297 = vpop.f32.mrf.mxu0
    %4298 = vdwg.mxu0
    %4299 = vmatpush.bf16.msra.mxu0 %v3272
    %4300 = vmatpush.bf16.msra.mxu0 %v3271
    %4301 = vmatpush.bf16.msra.mxu0 %v3270
    %4302 = vmatpush.bf16.msra.mxu0 %v3269
    %4303 = vmatpush.bf16.msra.mxu0 %v3268
    %4304 = vmatpush.bf16.msra.mxu0 %v3267
    %4305 = vmatpush.bf16.msra.mxu0 %v3266
    %4306 = vmatpush.bf16.msra.mxu0 %v3265
    %4307 = vmatmul.bf16.gmra.mxu0 %v1061
    %v4308 = vpop.f32.mrf.mxu0
    %v4309 = vadd.f32 %v4296, %v4308
    %v4310 = vpop.f32.mrf.mxu0
    %4311 = vdwg.mxu0
    %4312 = vmatpush.bf16.msra.mxu0 %v3280
    %4313 = vmatpush.bf16.msra.mxu0 %v3279
    %4314 = vmatpush.bf16.msra.mxu0 %v3278
    %4315 = vmatpush.bf16.msra.mxu0 %v3277
    %4316 = vmatpush.bf16.msra.mxu0 %v3276
    %4317 = vmatpush.bf16.msra.mxu0 %v3275
    %4318 = vmatpush.bf16.msra.mxu0 %v3274
    %4319 = vmatpush.bf16.msra.mxu0 %v3273
    %4320 = vmatmul.bf16.gmra.mxu0 %v1062
    %v4321 = vpop.f32.mrf.mxu0
    %v4322 = vadd.f32 %v4309, %v4321
    %v4323 = vpop.f32.mrf.mxu0
    %4324 = vdwg.mxu0
    %4325 = vmatpush.bf16.msra.mxu0 %v3288
    %4326 = vmatpush.bf16.msra.mxu0 %v3287
    %4327 = vmatpush.bf16.msra.mxu0 %v3286
    %4328 = vmatpush.bf16.msra.mxu0 %v3285
    %4329 = vmatpush.bf16.msra.mxu0 %v3284
    %4330 = vmatpush.bf16.msra.mxu0 %v3283
    %4331 = vmatpush.bf16.msra.mxu0 %v3282
    %4332 = vmatpush.bf16.msra.mxu0 %v3281
    %4333 = vmatmul.bf16.gmra.mxu0 %v1063
    %v4334 = vpop.f32.mrf.mxu0
    %v4335 = vadd.f32 %v4322, %v4334
    %v4336 = vpop.f32.mrf.mxu0
    %4337 = vdwg.mxu0
    %4338 = vmatpush.bf16.msra.mxu0 %v3296
    %4339 = vmatpush.bf16.msra.mxu0 %v3295
    %4340 = vmatpush.bf16.msra.mxu0 %v3294
    %4341 = vmatpush.bf16.msra.mxu0 %v3293
    %4342 = vmatpush.bf16.msra.mxu0 %v3292
    %4343 = vmatpush.bf16.msra.mxu0 %v3291
    %4344 = vmatpush.bf16.msra.mxu0 %v3290
    %4345 = vmatpush.bf16.msra.mxu0 %v3289
    %4346 = vmatmul.bf16.gmra.mxu0 %v1064
    %v4347 = vpop.f32.mrf.mxu0
    %v4348 = vadd.f32 %v4335, %v4347
    %v4349 = vpop.f32.mrf.mxu0
    %4350 = vdwg.mxu0
    %4351 = vmatpush.bf16.msra.mxu0 %v3304
    %4352 = vmatpush.bf16.msra.mxu0 %v3303
    %4353 = vmatpush.bf16.msra.mxu0 %v3302
    %4354 = vmatpush.bf16.msra.mxu0 %v3301
    %4355 = vmatpush.bf16.msra.mxu0 %v3300
    %4356 = vmatpush.bf16.msra.mxu0 %v3299
    %4357 = vmatpush.bf16.msra.mxu0 %v3298
    %4358 = vmatpush.bf16.msra.mxu0 %v3297
    %4359 = vmatmul.bf16.gmra.mxu0 %v1065
    %v4360 = vpop.f32.mrf.mxu0
    %v4361 = vadd.f32 %v4348, %v4360
    %v4362 = vpop.f32.mrf.mxu0
    %4363 = vdwg.mxu0
    %4364 = vmatpush.bf16.msra.mxu0 %v3312
    %4365 = vmatpush.bf16.msra.mxu0 %v3311
    %4366 = vmatpush.bf16.msra.mxu0 %v3310
    %4367 = vmatpush.bf16.msra.mxu0 %v3309
    %4368 = vmatpush.bf16.msra.mxu0 %v3308
    %4369 = vmatpush.bf16.msra.mxu0 %v3307
    %4370 = vmatpush.bf16.msra.mxu0 %v3306
    %4371 = vmatpush.bf16.msra.mxu0 %v3305
    %4372 = vmatmul.bf16.gmra.mxu0 %v1066
    %v4373 = vpop.f32.mrf.mxu0
    %v4374 = vadd.f32 %v4361, %v4373
    %v4375 = vpop.f32.mrf.mxu0
    %4376 = vdwg.mxu0
    %4377 = vmatpush.bf16.msra.mxu0 %v3320
    %4378 = vmatpush.bf16.msra.mxu0 %v3319
    %4379 = vmatpush.bf16.msra.mxu0 %v3318
    %4380 = vmatpush.bf16.msra.mxu0 %v3317
    %4381 = vmatpush.bf16.msra.mxu0 %v3316
    %4382 = vmatpush.bf16.msra.mxu0 %v3315
    %4383 = vmatpush.bf16.msra.mxu0 %v3314
    %4384 = vmatpush.bf16.msra.mxu0 %v3313
    %4385 = vmatmul.bf16.gmra.mxu0 %v1069
    %v4386 = vpop.f32.mrf.mxu0
    %v4387 = vadd.f32 %v4374, %v4386
    %v4388 = vpop.f32.mrf.mxu0
    %4389 = vdwg.mxu0
    %4390 = vmatpush.bf16.msra.mxu0 %v3328
    %4391 = vmatpush.bf16.msra.mxu0 %v3327
    %4392 = vmatpush.bf16.msra.mxu0 %v3326
    %4393 = vmatpush.bf16.msra.mxu0 %v3325
    %4394 = vmatpush.bf16.msra.mxu0 %v3324
    %4395 = vmatpush.bf16.msra.mxu0 %v3323
    %4396 = vmatpush.bf16.msra.mxu0 %v3322
    %4397 = vmatpush.bf16.msra.mxu0 %v3321
    %4398 = vmatmul.bf16.gmra.mxu0 %v1070
    %v4399 = vpop.f32.mrf.mxu0
    %v4400 = vadd.f32 %v4387, %v4399
    %v4401 = vpop.f32.mrf.mxu0
    %4402 = vdwg.mxu0
    %4403 = vmatpush.bf16.msra.mxu0 %v3336
    %4404 = vmatpush.bf16.msra.mxu0 %v3335
    %4405 = vmatpush.bf16.msra.mxu0 %v3334
    %4406 = vmatpush.bf16.msra.mxu0 %v3333
    %4407 = vmatpush.bf16.msra.mxu0 %v3332
    %4408 = vmatpush.bf16.msra.mxu0 %v3331
    %4409 = vmatpush.bf16.msra.mxu0 %v3330
    %4410 = vmatpush.bf16.msra.mxu0 %v3329
    %4411 = vmatmul.bf16.gmra.mxu0 %v1071
    %v4412 = vpop.f32.mrf.mxu0
    %v4413 = vadd.f32 %v4400, %v4412
    %v4414 = vpop.f32.mrf.mxu0
    %4415 = vdwg.mxu0
    %4416 = vmatpush.bf16.msra.mxu0 %v3344
    %4417 = vmatpush.bf16.msra.mxu0 %v3343
    %4418 = vmatpush.bf16.msra.mxu0 %v3342
    %4419 = vmatpush.bf16.msra.mxu0 %v3341
    %4420 = vmatpush.bf16.msra.mxu0 %v3340
    %4421 = vmatpush.bf16.msra.mxu0 %v3339
    %4422 = vmatpush.bf16.msra.mxu0 %v3338
    %4423 = vmatpush.bf16.msra.mxu0 %v3337
    %4424 = vmatmul.bf16.gmra.mxu0 %v1072
    %v4425 = vpop.f32.mrf.mxu0
    %v4426 = vadd.f32 %v4413, %v4425
    %v4427 = vpop.f32.mrf.mxu0
    %4428 = vdwg.mxu0
    %4429 = vmatpush.bf16.msra.mxu0 %v3352
    %4430 = vmatpush.bf16.msra.mxu0 %v3351
    %4431 = vmatpush.bf16.msra.mxu0 %v3350
    %4432 = vmatpush.bf16.msra.mxu0 %v3349
    %4433 = vmatpush.bf16.msra.mxu0 %v3348
    %4434 = vmatpush.bf16.msra.mxu0 %v3347
    %4435 = vmatpush.bf16.msra.mxu0 %v3346
    %4436 = vmatpush.bf16.msra.mxu0 %v3345
    %4437 = vmatmul.bf16.gmra.mxu0 %v1073
    %v4438 = vpop.f32.mrf.mxu0
    %v4439 = vadd.f32 %v4426, %v4438
    %v4440 = vpop.f32.mrf.mxu0
    %4441 = vdwg.mxu0
    %4442 = vmatpush.bf16.msra.mxu0 %v3360
    %4443 = vmatpush.bf16.msra.mxu0 %v3359
    %4444 = vmatpush.bf16.msra.mxu0 %v3358
    %4445 = vmatpush.bf16.msra.mxu0 %v3357
    %4446 = vmatpush.bf16.msra.mxu0 %v3356
    %4447 = vmatpush.bf16.msra.mxu0 %v3355
    %4448 = vmatpush.bf16.msra.mxu0 %v3354
    %4449 = vmatpush.bf16.msra.mxu0 %v3353
    %4450 = vmatmul.bf16.gmra.mxu0 %v1074
    %v4451 = vpop.f32.mrf.mxu0
    %v4452 = vadd.f32 %v4439, %v4451
    %v4453 = vpop.f32.mrf.mxu0
    %4454 = vdwg.mxu0
    %4455 = vmatpush.bf16.msra.mxu0 %v3368
    %4456 = vmatpush.bf16.msra.mxu0 %v3367
    %4457 = vmatpush.bf16.msra.mxu0 %v3366
    %4458 = vmatpush.bf16.msra.mxu0 %v3365
    %4459 = vmatpush.bf16.msra.mxu0 %v3364
    %4460 = vmatpush.bf16.msra.mxu0 %v3363
    %4461 = vmatpush.bf16.msra.mxu0 %v3362
    %4462 = vmatpush.bf16.msra.mxu0 %v3361
    %4463 = vmatmul.bf16.gmra.mxu0 %v1075
    %v4464 = vpop.f32.mrf.mxu0
    %v4465 = vadd.f32 %v4452, %v4464
    %v4466 = vpop.f32.mrf.mxu0
    %4467 = vdwg.mxu0
    %4468 = vmatpush.bf16.msra.mxu0 %v3376
    %4469 = vmatpush.bf16.msra.mxu0 %v3375
    %4470 = vmatpush.bf16.msra.mxu0 %v3374
    %4471 = vmatpush.bf16.msra.mxu0 %v3373
    %4472 = vmatpush.bf16.msra.mxu0 %v3372
    %4473 = vmatpush.bf16.msra.mxu0 %v3371
    %4474 = vmatpush.bf16.msra.mxu0 %v3370
    %4475 = vmatpush.bf16.msra.mxu0 %v3369
    %4476 = vmatmul.bf16.gmra.mxu0 %v1076
    %v4477 = vpop.f32.mrf.mxu0
    %v4478 = vadd.f32 %v4465, %v4477
    %v4479 = vpop.f32.mrf.mxu0
    %4480 = vdwg.mxu0
    %4481 = vmatpush.bf16.msra.mxu0 %v3384
    %4482 = vmatpush.bf16.msra.mxu0 %v3383
    %4483 = vmatpush.bf16.msra.mxu0 %v3382
    %4484 = vmatpush.bf16.msra.mxu0 %v3381
    %4485 = vmatpush.bf16.msra.mxu0 %v3380
    %4486 = vmatpush.bf16.msra.mxu0 %v3379
    %4487 = vmatpush.bf16.msra.mxu0 %v3378
    %4488 = vmatpush.bf16.msra.mxu0 %v3377
    %4489 = vmatmul.bf16.gmra.mxu0 %v1079
    %v4490 = vpop.f32.mrf.mxu0
    %v4491 = vadd.f32 %v4478, %v4490
    %v4492 = vpop.f32.mrf.mxu0
    %4493 = vdwg.mxu0
    %4494 = vmatpush.bf16.msra.mxu0 %v3392
    %4495 = vmatpush.bf16.msra.mxu0 %v3391
    %4496 = vmatpush.bf16.msra.mxu0 %v3390
    %4497 = vmatpush.bf16.msra.mxu0 %v3389
    %4498 = vmatpush.bf16.msra.mxu0 %v3388
    %4499 = vmatpush.bf16.msra.mxu0 %v3387
    %4500 = vmatpush.bf16.msra.mxu0 %v3386
    %4501 = vmatpush.bf16.msra.mxu0 %v3385
    %4502 = vmatmul.bf16.gmra.mxu0 %v1080
    %v4503 = vpop.f32.mrf.mxu0
    %v4504 = vadd.f32 %v4491, %v4503
    %v4505 = vpop.f32.mrf.mxu0
    %4506 = vdwg.mxu0
    %4507 = vmatpush.bf16.msra.mxu0 %v3400
    %4508 = vmatpush.bf16.msra.mxu0 %v3399
    %4509 = vmatpush.bf16.msra.mxu0 %v3398
    %4510 = vmatpush.bf16.msra.mxu0 %v3397
    %4511 = vmatpush.bf16.msra.mxu0 %v3396
    %4512 = vmatpush.bf16.msra.mxu0 %v3395
    %4513 = vmatpush.bf16.msra.mxu0 %v3394
    %4514 = vmatpush.bf16.msra.mxu0 %v3393
    %4515 = vmatmul.bf16.gmra.mxu0 %v1081
    %v4516 = vpop.f32.mrf.mxu0
    %v4517 = vadd.f32 %v4504, %v4516
    %v4518 = vpop.f32.mrf.mxu0
    %4519 = vdwg.mxu0
    %4520 = vmatpush.bf16.msra.mxu0 %v3408
    %4521 = vmatpush.bf16.msra.mxu0 %v3407
    %4522 = vmatpush.bf16.msra.mxu0 %v3406
    %4523 = vmatpush.bf16.msra.mxu0 %v3405
    %4524 = vmatpush.bf16.msra.mxu0 %v3404
    %4525 = vmatpush.bf16.msra.mxu0 %v3403
    %4526 = vmatpush.bf16.msra.mxu0 %v3402
    %4527 = vmatpush.bf16.msra.mxu0 %v3401
    %4528 = vmatmul.bf16.gmra.mxu0 %v1082
    %v4529 = vpop.f32.mrf.mxu0
    %v4530 = vadd.f32 %v4517, %v4529
    %v4531 = vpop.f32.mrf.mxu0
    %4532 = vdwg.mxu0
    %4533 = vmatpush.bf16.msra.mxu0 %v3416
    %4534 = vmatpush.bf16.msra.mxu0 %v3415
    %4535 = vmatpush.bf16.msra.mxu0 %v3414
    %4536 = vmatpush.bf16.msra.mxu0 %v3413
    %4537 = vmatpush.bf16.msra.mxu0 %v3412
    %4538 = vmatpush.bf16.msra.mxu0 %v3411
    %4539 = vmatpush.bf16.msra.mxu0 %v3410
    %4540 = vmatpush.bf16.msra.mxu0 %v3409
    %4541 = vmatmul.bf16.gmra.mxu0 %v1083
    %v4542 = vpop.f32.mrf.mxu0
    %v4543 = vadd.f32 %v4530, %v4542
    %v4544 = vpop.f32.mrf.mxu0
    %4545 = vdwg.mxu0
    %4546 = vmatpush.bf16.msra.mxu0 %v3424
    %4547 = vmatpush.bf16.msra.mxu0 %v3423
    %4548 = vmatpush.bf16.msra.mxu0 %v3422
    %4549 = vmatpush.bf16.msra.mxu0 %v3421
    %4550 = vmatpush.bf16.msra.mxu0 %v3420
    %4551 = vmatpush.bf16.msra.mxu0 %v3419
    %4552 = vmatpush.bf16.msra.mxu0 %v3418
    %4553 = vmatpush.bf16.msra.mxu0 %v3417
    %4554 = vmatmul.bf16.gmra.mxu0 %v1084
    %v4555 = vpop.f32.mrf.mxu0
    %v4556 = vadd.f32 %v4543, %v4555
    %v4557 = vpop.f32.mrf.mxu0
    %4558 = vdwg.mxu0
    %4559 = vmatpush.bf16.msra.mxu0 %v3432
    %4560 = vmatpush.bf16.msra.mxu0 %v3431
    %4561 = vmatpush.bf16.msra.mxu0 %v3430
    %4562 = vmatpush.bf16.msra.mxu0 %v3429
    %4563 = vmatpush.bf16.msra.mxu0 %v3428
    %4564 = vmatpush.bf16.msra.mxu0 %v3427
    %4565 = vmatpush.bf16.msra.mxu0 %v3426
    %4566 = vmatpush.bf16.msra.mxu0 %v3425
    %4567 = vmatmul.bf16.gmra.mxu0 %v1085
    %v4568 = vpop.f32.mrf.mxu0
    %v4569 = vadd.f32 %v4556, %v4568
    %v4570 = vpop.f32.mrf.mxu0
    %4571 = vdwg.mxu0
    %4572 = vmatpush.bf16.msra.mxu0 %v3440
    %4573 = vmatpush.bf16.msra.mxu0 %v3439
    %4574 = vmatpush.bf16.msra.mxu0 %v3438
    %4575 = vmatpush.bf16.msra.mxu0 %v3437
    %4576 = vmatpush.bf16.msra.mxu0 %v3436
    %4577 = vmatpush.bf16.msra.mxu0 %v3435
    %4578 = vmatpush.bf16.msra.mxu0 %v3434
    %4579 = vmatpush.bf16.msra.mxu0 %v3433
    %4580 = vmatmul.bf16.gmra.mxu0 %v1086
    %v4581 = vpop.f32.mrf.mxu0
    %v4582 = vadd.f32 %v4569, %v4581
    %v4583 = vpop.f32.mrf.mxu0
    %4584 = vdwg.mxu0
    %4585 = vmatpush.bf16.msra.mxu0 %v3448
    %4586 = vmatpush.bf16.msra.mxu0 %v3447
    %4587 = vmatpush.bf16.msra.mxu0 %v3446
    %4588 = vmatpush.bf16.msra.mxu0 %v3445
    %4589 = vmatpush.bf16.msra.mxu0 %v3444
    %4590 = vmatpush.bf16.msra.mxu0 %v3443
    %4591 = vmatpush.bf16.msra.mxu0 %v3442
    %4592 = vmatpush.bf16.msra.mxu0 %v3441
    %4593 = vmatmul.bf16.gmra.mxu0 %v1089
    %v4594 = vpop.f32.mrf.mxu0
    %v4595 = vadd.f32 %v4582, %v4594
    %v4596 = vpop.f32.mrf.mxu0
    %4597 = vdwg.mxu0
    %4598 = vmatpush.bf16.msra.mxu0 %v3456
    %4599 = vmatpush.bf16.msra.mxu0 %v3455
    %4600 = vmatpush.bf16.msra.mxu0 %v3454
    %4601 = vmatpush.bf16.msra.mxu0 %v3453
    %4602 = vmatpush.bf16.msra.mxu0 %v3452
    %4603 = vmatpush.bf16.msra.mxu0 %v3451
    %4604 = vmatpush.bf16.msra.mxu0 %v3450
    %4605 = vmatpush.bf16.msra.mxu0 %v3449
    %4606 = vmatmul.bf16.gmra.mxu0 %v1090
    %v4607 = vpop.f32.mrf.mxu0
    %v4608 = vadd.f32 %v4595, %v4607
    %v4609 = vpop.f32.mrf.mxu0
    %4610 = vdwg.mxu0
    %4611 = vmatpush.bf16.msra.mxu0 %v3464
    %4612 = vmatpush.bf16.msra.mxu0 %v3463
    %4613 = vmatpush.bf16.msra.mxu0 %v3462
    %4614 = vmatpush.bf16.msra.mxu0 %v3461
    %4615 = vmatpush.bf16.msra.mxu0 %v3460
    %4616 = vmatpush.bf16.msra.mxu0 %v3459
    %4617 = vmatpush.bf16.msra.mxu0 %v3458
    %4618 = vmatpush.bf16.msra.mxu0 %v3457
    %4619 = vmatmul.bf16.gmra.mxu0 %v1091
    %v4620 = vpop.f32.mrf.mxu0
    %v4621 = vadd.f32 %v4608, %v4620
    %v4622 = vpop.f32.mrf.mxu0
    %4623 = vdwg.mxu0
    %4624 = vmatpush.bf16.msra.mxu0 %v3472
    %4625 = vmatpush.bf16.msra.mxu0 %v3471
    %4626 = vmatpush.bf16.msra.mxu0 %v3470
    %4627 = vmatpush.bf16.msra.mxu0 %v3469
    %4628 = vmatpush.bf16.msra.mxu0 %v3468
    %4629 = vmatpush.bf16.msra.mxu0 %v3467
    %4630 = vmatpush.bf16.msra.mxu0 %v3466
    %4631 = vmatpush.bf16.msra.mxu0 %v3465
    %4632 = vmatmul.bf16.gmra.mxu0 %v1092
    %v4633 = vpop.f32.mrf.mxu0
    %v4634 = vadd.f32 %v4621, %v4633
    %v4635 = vpop.f32.mrf.mxu0
    %4636 = vdwg.mxu0
    %4637 = vmatpush.bf16.msra.mxu0 %v3480
    %4638 = vmatpush.bf16.msra.mxu0 %v3479
    %4639 = vmatpush.bf16.msra.mxu0 %v3478
    %4640 = vmatpush.bf16.msra.mxu0 %v3477
    %4641 = vmatpush.bf16.msra.mxu0 %v3476
    %4642 = vmatpush.bf16.msra.mxu0 %v3475
    %4643 = vmatpush.bf16.msra.mxu0 %v3474
    %4644 = vmatpush.bf16.msra.mxu0 %v3473
    %4645 = vmatmul.bf16.gmra.mxu0 %v1093
    %v4646 = vpop.f32.mrf.mxu0
    %v4647 = vadd.f32 %v4634, %v4646
    %v4648 = vpop.f32.mrf.mxu0
    %4649 = vdwg.mxu0
    %4650 = vmatpush.bf16.msra.mxu0 %v3488
    %4651 = vmatpush.bf16.msra.mxu0 %v3487
    %4652 = vmatpush.bf16.msra.mxu0 %v3486
    %4653 = vmatpush.bf16.msra.mxu0 %v3485
    %4654 = vmatpush.bf16.msra.mxu0 %v3484
    %4655 = vmatpush.bf16.msra.mxu0 %v3483
    %4656 = vmatpush.bf16.msra.mxu0 %v3482
    %4657 = vmatpush.bf16.msra.mxu0 %v3481
    %4658 = vmatmul.bf16.gmra.mxu0 %v1094
    %v4659 = vpop.f32.mrf.mxu0
    %v4660 = vadd.f32 %v4647, %v4659
    %v4661 = vpop.f32.mrf.mxu0
    %4662 = vdwg.mxu0
    %4663 = vmatpush.bf16.msra.mxu0 %v3496
    %4664 = vmatpush.bf16.msra.mxu0 %v3495
    %4665 = vmatpush.bf16.msra.mxu0 %v3494
    %4666 = vmatpush.bf16.msra.mxu0 %v3493
    %4667 = vmatpush.bf16.msra.mxu0 %v3492
    %4668 = vmatpush.bf16.msra.mxu0 %v3491
    %4669 = vmatpush.bf16.msra.mxu0 %v3490
    %4670 = vmatpush.bf16.msra.mxu0 %v3489
    %4671 = vmatmul.bf16.gmra.mxu0 %v1095
    %v4672 = vpop.f32.mrf.mxu0
    %v4673 = vadd.f32 %v4660, %v4672
    %v4674 = vpop.f32.mrf.mxu0
    %4675 = vdwg.mxu0
    %4676 = vmatpush.bf16.msra.mxu0 %v3504
    %4677 = vmatpush.bf16.msra.mxu0 %v3503
    %4678 = vmatpush.bf16.msra.mxu0 %v3502
    %4679 = vmatpush.bf16.msra.mxu0 %v3501
    %4680 = vmatpush.bf16.msra.mxu0 %v3500
    %4681 = vmatpush.bf16.msra.mxu0 %v3499
    %4682 = vmatpush.bf16.msra.mxu0 %v3498
    %4683 = vmatpush.bf16.msra.mxu0 %v3497
    %4684 = vmatmul.bf16.gmra.mxu0 %v1096
    %v4685 = vpop.f32.mrf.mxu0
    %v4686 = vadd.f32 %v4673, %v4685
    %v4687 = vpop.f32.mrf.mxu0
    %4688 = vdwg.mxu0
    %4689 = vmatpush.bf16.msra.mxu0 %v3512
    %4690 = vmatpush.bf16.msra.mxu0 %v3511
    %4691 = vmatpush.bf16.msra.mxu0 %v3510
    %4692 = vmatpush.bf16.msra.mxu0 %v3509
    %4693 = vmatpush.bf16.msra.mxu0 %v3508
    %4694 = vmatpush.bf16.msra.mxu0 %v3507
    %4695 = vmatpush.bf16.msra.mxu0 %v3506
    %4696 = vmatpush.bf16.msra.mxu0 %v3505
    %4697 = vmatmul.bf16.gmra.mxu0 %v1099
    %v4698 = vpop.f32.mrf.mxu0
    %v4699 = vadd.f32 %v4686, %v4698
    %v4700 = vpop.f32.mrf.mxu0
    %4701 = vdwg.mxu0
    %4702 = vmatpush.bf16.msra.mxu0 %v3520
    %4703 = vmatpush.bf16.msra.mxu0 %v3519
    %4704 = vmatpush.bf16.msra.mxu0 %v3518
    %4705 = vmatpush.bf16.msra.mxu0 %v3517
    %4706 = vmatpush.bf16.msra.mxu0 %v3516
    %4707 = vmatpush.bf16.msra.mxu0 %v3515
    %4708 = vmatpush.bf16.msra.mxu0 %v3514
    %4709 = vmatpush.bf16.msra.mxu0 %v3513
    %4710 = vmatmul.bf16.gmra.mxu0 %v1100
    %v4711 = vpop.f32.mrf.mxu0
    %v4712 = vadd.f32 %v4699, %v4711
    %v4713 = vpop.f32.mrf.mxu0
    %4714 = vdwg.mxu0
    %4715 = vmatpush.bf16.msra.mxu0 %v3528
    %4716 = vmatpush.bf16.msra.mxu0 %v3527
    %4717 = vmatpush.bf16.msra.mxu0 %v3526
    %4718 = vmatpush.bf16.msra.mxu0 %v3525
    %4719 = vmatpush.bf16.msra.mxu0 %v3524
    %4720 = vmatpush.bf16.msra.mxu0 %v3523
    %4721 = vmatpush.bf16.msra.mxu0 %v3522
    %4722 = vmatpush.bf16.msra.mxu0 %v3521
    %4723 = vmatmul.bf16.gmra.mxu0 %v1101
    %v4724 = vpop.f32.mrf.mxu0
    %v4725 = vadd.f32 %v4712, %v4724
    %v4726 = vpop.f32.mrf.mxu0
    %4727 = vdwg.mxu0
    %4728 = vmatpush.bf16.msra.mxu0 %v3536
    %4729 = vmatpush.bf16.msra.mxu0 %v3535
    %4730 = vmatpush.bf16.msra.mxu0 %v3534
    %4731 = vmatpush.bf16.msra.mxu0 %v3533
    %4732 = vmatpush.bf16.msra.mxu0 %v3532
    %4733 = vmatpush.bf16.msra.mxu0 %v3531
    %4734 = vmatpush.bf16.msra.mxu0 %v3530
    %4735 = vmatpush.bf16.msra.mxu0 %v3529
    %4736 = vmatmul.bf16.gmra.mxu0 %v1102
    %v4737 = vpop.f32.mrf.mxu0
    %v4738 = vadd.f32 %v4725, %v4737
    %v4739 = vpop.f32.mrf.mxu0
    %4740 = vdwg.mxu0
    %4741 = vmatpush.bf16.msra.mxu0 %v3544
    %4742 = vmatpush.bf16.msra.mxu0 %v3543
    %4743 = vmatpush.bf16.msra.mxu0 %v3542
    %4744 = vmatpush.bf16.msra.mxu0 %v3541
    %4745 = vmatpush.bf16.msra.mxu0 %v3540
    %4746 = vmatpush.bf16.msra.mxu0 %v3539
    %4747 = vmatpush.bf16.msra.mxu0 %v3538
    %4748 = vmatpush.bf16.msra.mxu0 %v3537
    %4749 = vmatmul.bf16.gmra.mxu0 %v1103
    %v4750 = vpop.f32.mrf.mxu0
    %v4751 = vadd.f32 %v4738, %v4750
    %v4752 = vpop.f32.mrf.mxu0
    %4753 = vdwg.mxu0
    %4754 = vmatpush.bf16.msra.mxu0 %v3552
    %4755 = vmatpush.bf16.msra.mxu0 %v3551
    %4756 = vmatpush.bf16.msra.mxu0 %v3550
    %4757 = vmatpush.bf16.msra.mxu0 %v3549
    %4758 = vmatpush.bf16.msra.mxu0 %v3548
    %4759 = vmatpush.bf16.msra.mxu0 %v3547
    %4760 = vmatpush.bf16.msra.mxu0 %v3546
    %4761 = vmatpush.bf16.msra.mxu0 %v3545
    %4762 = vmatmul.bf16.gmra.mxu0 %v1104
    %v4763 = vpop.f32.mrf.mxu0
    %v4764 = vadd.f32 %v4751, %v4763
    %v4765 = vpop.f32.mrf.mxu0
    %4766 = vdwg.mxu0
    %4767 = vmatpush.bf16.msra.mxu0 %v3560
    %4768 = vmatpush.bf16.msra.mxu0 %v3559
    %4769 = vmatpush.bf16.msra.mxu0 %v3558
    %4770 = vmatpush.bf16.msra.mxu0 %v3557
    %4771 = vmatpush.bf16.msra.mxu0 %v3556
    %4772 = vmatpush.bf16.msra.mxu0 %v3555
    %4773 = vmatpush.bf16.msra.mxu0 %v3554
    %4774 = vmatpush.bf16.msra.mxu0 %v3553
    %4775 = vmatmul.bf16.gmra.mxu0 %v1105
    %v4776 = vpop.f32.mrf.mxu0
    %v4777 = vadd.f32 %v4764, %v4776
    %v4778 = vpop.f32.mrf.mxu0
    %4779 = vdwg.mxu0
    %4780 = vmatpush.bf16.msra.mxu0 %v3568
    %4781 = vmatpush.bf16.msra.mxu0 %v3567
    %4782 = vmatpush.bf16.msra.mxu0 %v3566
    %4783 = vmatpush.bf16.msra.mxu0 %v3565
    %4784 = vmatpush.bf16.msra.mxu0 %v3564
    %4785 = vmatpush.bf16.msra.mxu0 %v3563
    %4786 = vmatpush.bf16.msra.mxu0 %v3562
    %4787 = vmatpush.bf16.msra.mxu0 %v3561
    %4788 = vmatmul.bf16.gmra.mxu0 %v1106
    %v4789 = vpop.f32.mrf.mxu0
    %v4790 = vadd.f32 %v4777, %v4789
    %v4791 = vpop.f32.mrf.mxu0
    %4792 = vdwg.mxu0
    %4793 = vmatpush.bf16.msra.mxu0 %v3576
    %4794 = vmatpush.bf16.msra.mxu0 %v3575
    %4795 = vmatpush.bf16.msra.mxu0 %v3574
    %4796 = vmatpush.bf16.msra.mxu0 %v3573
    %4797 = vmatpush.bf16.msra.mxu0 %v3572
    %4798 = vmatpush.bf16.msra.mxu0 %v3571
    %4799 = vmatpush.bf16.msra.mxu0 %v3570
    %4800 = vmatpush.bf16.msra.mxu0 %v3569
    %4801 = vmatmul.bf16.gmra.mxu0 %v1109
    %v4802 = vpop.f32.mrf.mxu0
    %v4803 = vadd.f32 %v4790, %v4802
    %v4804 = vpop.f32.mrf.mxu0
    %4805 = vdwg.mxu0
    %4806 = vmatpush.bf16.msra.mxu0 %v3584
    %4807 = vmatpush.bf16.msra.mxu0 %v3583
    %4808 = vmatpush.bf16.msra.mxu0 %v3582
    %4809 = vmatpush.bf16.msra.mxu0 %v3581
    %4810 = vmatpush.bf16.msra.mxu0 %v3580
    %4811 = vmatpush.bf16.msra.mxu0 %v3579
    %4812 = vmatpush.bf16.msra.mxu0 %v3578
    %4813 = vmatpush.bf16.msra.mxu0 %v3577
    %4814 = vmatmul.bf16.gmra.mxu0 %v1110
    %v4815 = vpop.f32.mrf.mxu0
    %v4816 = vadd.f32 %v4803, %v4815
    %v4817 = vpop.f32.mrf.mxu0
    %4818 = vdwg.mxu0
    %4819 = vmatpush.bf16.msra.mxu0 %v3592
    %4820 = vmatpush.bf16.msra.mxu0 %v3591
    %4821 = vmatpush.bf16.msra.mxu0 %v3590
    %4822 = vmatpush.bf16.msra.mxu0 %v3589
    %4823 = vmatpush.bf16.msra.mxu0 %v3588
    %4824 = vmatpush.bf16.msra.mxu0 %v3587
    %4825 = vmatpush.bf16.msra.mxu0 %v3586
    %4826 = vmatpush.bf16.msra.mxu0 %v3585
    %4827 = vmatmul.bf16.gmra.mxu0 %v1111
    %v4828 = vpop.f32.mrf.mxu0
    %v4829 = vadd.f32 %v4816, %v4828
    %v4830 = vpop.f32.mrf.mxu0
    %4831 = vdwg.mxu0
    %4832 = vmatpush.bf16.msra.mxu0 %v3600
    %4833 = vmatpush.bf16.msra.mxu0 %v3599
    %4834 = vmatpush.bf16.msra.mxu0 %v3598
    %4835 = vmatpush.bf16.msra.mxu0 %v3597
    %4836 = vmatpush.bf16.msra.mxu0 %v3596
    %4837 = vmatpush.bf16.msra.mxu0 %v3595
    %4838 = vmatpush.bf16.msra.mxu0 %v3594
    %4839 = vmatpush.bf16.msra.mxu0 %v3593
    %4840 = vmatmul.bf16.gmra.mxu0 %v1112
    %v4841 = vpop.f32.mrf.mxu0
    %v4842 = vadd.f32 %v4829, %v4841
    %v4843 = vpop.f32.mrf.mxu0
    %4844 = vdwg.mxu0
    %4845 = vmatpush.bf16.msra.mxu0 %v3608
    %4846 = vmatpush.bf16.msra.mxu0 %v3607
    %4847 = vmatpush.bf16.msra.mxu0 %v3606
    %4848 = vmatpush.bf16.msra.mxu0 %v3605
    %4849 = vmatpush.bf16.msra.mxu0 %v3604
    %4850 = vmatpush.bf16.msra.mxu0 %v3603
    %4851 = vmatpush.bf16.msra.mxu0 %v3602
    %4852 = vmatpush.bf16.msra.mxu0 %v3601
    %4853 = vmatmul.bf16.gmra.mxu0 %v1113
    %v4854 = vpop.f32.mrf.mxu0
    %v4855 = vadd.f32 %v4842, %v4854
    %v4856 = vpop.f32.mrf.mxu0
    %4857 = vdwg.mxu0
    %4858 = vmatpush.bf16.msra.mxu0 %v3616
    %4859 = vmatpush.bf16.msra.mxu0 %v3615
    %4860 = vmatpush.bf16.msra.mxu0 %v3614
    %4861 = vmatpush.bf16.msra.mxu0 %v3613
    %4862 = vmatpush.bf16.msra.mxu0 %v3612
    %4863 = vmatpush.bf16.msra.mxu0 %v3611
    %4864 = vmatpush.bf16.msra.mxu0 %v3610
    %4865 = vmatpush.bf16.msra.mxu0 %v3609
    %4866 = vmatmul.bf16.gmra.mxu0 %v1114
    %v4867 = vpop.f32.mrf.mxu0
    %v4868 = vadd.f32 %v4855, %v4867
    %v4869 = vpop.f32.mrf.mxu0
    %4870 = vdwg.mxu0
    %4871 = vmatpush.bf16.msra.mxu0 %v3624
    %4872 = vmatpush.bf16.msra.mxu0 %v3623
    %4873 = vmatpush.bf16.msra.mxu0 %v3622
    %4874 = vmatpush.bf16.msra.mxu0 %v3621
    %4875 = vmatpush.bf16.msra.mxu0 %v3620
    %4876 = vmatpush.bf16.msra.mxu0 %v3619
    %4877 = vmatpush.bf16.msra.mxu0 %v3618
    %4878 = vmatpush.bf16.msra.mxu0 %v3617
    %4879 = vmatmul.bf16.gmra.mxu0 %v1115
    %v4880 = vpop.f32.mrf.mxu0
    %v4881 = vadd.f32 %v4868, %v4880
    %v4882 = vpop.f32.mrf.mxu0
    %4883 = vdwg.mxu0
    %4884 = vmatpush.bf16.msra.mxu0 %v3632
    %4885 = vmatpush.bf16.msra.mxu0 %v3631
    %4886 = vmatpush.bf16.msra.mxu0 %v3630
    %4887 = vmatpush.bf16.msra.mxu0 %v3629
    %4888 = vmatpush.bf16.msra.mxu0 %v3628
    %4889 = vmatpush.bf16.msra.mxu0 %v3627
    %4890 = vmatpush.bf16.msra.mxu0 %v3626
    %4891 = vmatpush.bf16.msra.mxu0 %v3625
    %4892 = vmatmul.bf16.gmra.mxu0 %v1116
    %v4893 = vpop.f32.mrf.mxu0
    %v4894 = vadd.f32 %v4881, %v4893
    %v4895 = vpop.f32.mrf.mxu0
    %4896 = vdwg.mxu0
    %4897 = vmatpush.bf16.msra.mxu0 %v3640
    %4898 = vmatpush.bf16.msra.mxu0 %v3639
    %4899 = vmatpush.bf16.msra.mxu0 %v3638
    %4900 = vmatpush.bf16.msra.mxu0 %v3637
    %4901 = vmatpush.bf16.msra.mxu0 %v3636
    %4902 = vmatpush.bf16.msra.mxu0 %v3635
    %4903 = vmatpush.bf16.msra.mxu0 %v3634
    %4904 = vmatpush.bf16.msra.mxu0 %v3633
    %4905 = vmatmul.bf16.gmra.mxu0 %v1119
    %v4906 = vpop.f32.mrf.mxu0
    %v4907 = vadd.f32 %v4894, %v4906
    %v4908 = vpop.f32.mrf.mxu0
    %4909 = vdwg.mxu0
    %4910 = vmatpush.bf16.msra.mxu0 %v3648
    %4911 = vmatpush.bf16.msra.mxu0 %v3647
    %4912 = vmatpush.bf16.msra.mxu0 %v3646
    %4913 = vmatpush.bf16.msra.mxu0 %v3645
    %4914 = vmatpush.bf16.msra.mxu0 %v3644
    %4915 = vmatpush.bf16.msra.mxu0 %v3643
    %4916 = vmatpush.bf16.msra.mxu0 %v3642
    %4917 = vmatpush.bf16.msra.mxu0 %v3641
    %4918 = vmatmul.bf16.gmra.mxu0 %v1120
    %v4919 = vpop.f32.mrf.mxu0
    %v4920 = vadd.f32 %v4907, %v4919
    %v4921 = vpop.f32.mrf.mxu0
    %4922 = vdwg.mxu0
    %4923 = vmatpush.bf16.msra.mxu0 %v3656
    %4924 = vmatpush.bf16.msra.mxu0 %v3655
    %4925 = vmatpush.bf16.msra.mxu0 %v3654
    %4926 = vmatpush.bf16.msra.mxu0 %v3653
    %4927 = vmatpush.bf16.msra.mxu0 %v3652
    %4928 = vmatpush.bf16.msra.mxu0 %v3651
    %4929 = vmatpush.bf16.msra.mxu0 %v3650
    %4930 = vmatpush.bf16.msra.mxu0 %v3649
    %4931 = vmatmul.bf16.gmra.mxu0 %v1121
    %v4932 = vpop.f32.mrf.mxu0
    %v4933 = vadd.f32 %v4920, %v4932
    %v4934 = vpop.f32.mrf.mxu0
    %4935 = vdwg.mxu0
    %4936 = vmatpush.bf16.msra.mxu0 %v3664
    %4937 = vmatpush.bf16.msra.mxu0 %v3663
    %4938 = vmatpush.bf16.msra.mxu0 %v3662
    %4939 = vmatpush.bf16.msra.mxu0 %v3661
    %4940 = vmatpush.bf16.msra.mxu0 %v3660
    %4941 = vmatpush.bf16.msra.mxu0 %v3659
    %4942 = vmatpush.bf16.msra.mxu0 %v3658
    %4943 = vmatpush.bf16.msra.mxu0 %v3657
    %4944 = vmatmul.bf16.gmra.mxu0 %v1122
    %v4945 = vpop.f32.mrf.mxu0
    %v4946 = vadd.f32 %v4933, %v4945
    %v4947 = vpop.f32.mrf.mxu0
    %4948 = vdwg.mxu0
    %4949 = vmatpush.bf16.msra.mxu0 %v3672
    %4950 = vmatpush.bf16.msra.mxu0 %v3671
    %4951 = vmatpush.bf16.msra.mxu0 %v3670
    %4952 = vmatpush.bf16.msra.mxu0 %v3669
    %4953 = vmatpush.bf16.msra.mxu0 %v3668
    %4954 = vmatpush.bf16.msra.mxu0 %v3667
    %4955 = vmatpush.bf16.msra.mxu0 %v3666
    %4956 = vmatpush.bf16.msra.mxu0 %v3665
    %4957 = vmatmul.bf16.gmra.mxu0 %v1123
    %v4958 = vpop.f32.mrf.mxu0
    %v4959 = vadd.f32 %v4946, %v4958
    %v4960 = vpop.f32.mrf.mxu0
    %4961 = vdwg.mxu0
    %4962 = vmatpush.bf16.msra.mxu0 %v3680
    %4963 = vmatpush.bf16.msra.mxu0 %v3679
    %4964 = vmatpush.bf16.msra.mxu0 %v3678
    %4965 = vmatpush.bf16.msra.mxu0 %v3677
    %4966 = vmatpush.bf16.msra.mxu0 %v3676
    %4967 = vmatpush.bf16.msra.mxu0 %v3675
    %4968 = vmatpush.bf16.msra.mxu0 %v3674
    %4969 = vmatpush.bf16.msra.mxu0 %v3673
    %4970 = vmatmul.bf16.gmra.mxu0 %v1124
    %v4971 = vpop.f32.mrf.mxu0
    %v4972 = vadd.f32 %v4959, %v4971
    %v4973 = vpop.f32.mrf.mxu0
    %4974 = vdwg.mxu0
    %4975 = vmatpush.bf16.msra.mxu0 %v3688
    %4976 = vmatpush.bf16.msra.mxu0 %v3687
    %4977 = vmatpush.bf16.msra.mxu0 %v3686
    %4978 = vmatpush.bf16.msra.mxu0 %v3685
    %4979 = vmatpush.bf16.msra.mxu0 %v3684
    %4980 = vmatpush.bf16.msra.mxu0 %v3683
    %4981 = vmatpush.bf16.msra.mxu0 %v3682
    %4982 = vmatpush.bf16.msra.mxu0 %v3681
    %4983 = vmatmul.bf16.gmra.mxu0 %v1125
    %v4984 = vpop.f32.mrf.mxu0
    %v4985 = vadd.f32 %v4972, %v4984
    %v4986 = vpop.f32.mrf.mxu0
    %4987 = vdwg.mxu0
    %4988 = vmatpush.bf16.msra.mxu0 %v3696
    %4989 = vmatpush.bf16.msra.mxu0 %v3695
    %4990 = vmatpush.bf16.msra.mxu0 %v3694
    %4991 = vmatpush.bf16.msra.mxu0 %v3693
    %4992 = vmatpush.bf16.msra.mxu0 %v3692
    %4993 = vmatpush.bf16.msra.mxu0 %v3691
    %4994 = vmatpush.bf16.msra.mxu0 %v3690
    %4995 = vmatpush.bf16.msra.mxu0 %v3689
    %4996 = vmatmul.bf16.gmra.mxu0 %v1126
    %v4997 = vpop.f32.mrf.mxu0
    %v4998 = vadd.f32 %v4985, %v4997
    %v4999 = vpop.f32.mrf.mxu0
    %5000 = vdwg.mxu0
    %5001 = vmatpush.bf16.msra.mxu0 %v3704
    %5002 = vmatpush.bf16.msra.mxu0 %v3703
    %5003 = vmatpush.bf16.msra.mxu0 %v3702
    %5004 = vmatpush.bf16.msra.mxu0 %v3701
    %5005 = vmatpush.bf16.msra.mxu0 %v3700
    %5006 = vmatpush.bf16.msra.mxu0 %v3699
    %5007 = vmatpush.bf16.msra.mxu0 %v3698
    %5008 = vmatpush.bf16.msra.mxu0 %v3697
    %5009 = vmatmul.bf16.gmra.mxu0 %v1129
    %v5010 = vpop.f32.mrf.mxu0
    %v5011 = vadd.f32 %v4998, %v5010
    %v5012 = vpop.f32.mrf.mxu0
    %5013 = vdwg.mxu0
    %5014 = vmatpush.bf16.msra.mxu0 %v3712
    %5015 = vmatpush.bf16.msra.mxu0 %v3711
    %5016 = vmatpush.bf16.msra.mxu0 %v3710
    %5017 = vmatpush.bf16.msra.mxu0 %v3709
    %5018 = vmatpush.bf16.msra.mxu0 %v3708
    %5019 = vmatpush.bf16.msra.mxu0 %v3707
    %5020 = vmatpush.bf16.msra.mxu0 %v3706
    %5021 = vmatpush.bf16.msra.mxu0 %v3705
    %5022 = vmatmul.bf16.gmra.mxu0 %v1130
    %v5023 = vpop.f32.mrf.mxu0
    %v5024 = vadd.f32 %v5011, %v5023
    %v5025 = vpop.f32.mrf.mxu0
    %5026 = vdwg.mxu0
    %5027 = vmatpush.bf16.msra.mxu0 %v3720
    %5028 = vmatpush.bf16.msra.mxu0 %v3719
    %5029 = vmatpush.bf16.msra.mxu0 %v3718
    %5030 = vmatpush.bf16.msra.mxu0 %v3717
    %5031 = vmatpush.bf16.msra.mxu0 %v3716
    %5032 = vmatpush.bf16.msra.mxu0 %v3715
    %5033 = vmatpush.bf16.msra.mxu0 %v3714
    %5034 = vmatpush.bf16.msra.mxu0 %v3713
    %5035 = vmatmul.bf16.gmra.mxu0 %v1131
    %v5036 = vpop.f32.mrf.mxu0
    %v5037 = vadd.f32 %v5024, %v5036
    %v5038 = vpop.f32.mrf.mxu0
    %5039 = vdwg.mxu0
    %5040 = vmatpush.bf16.msra.mxu0 %v3728
    %5041 = vmatpush.bf16.msra.mxu0 %v3727
    %5042 = vmatpush.bf16.msra.mxu0 %v3726
    %5043 = vmatpush.bf16.msra.mxu0 %v3725
    %5044 = vmatpush.bf16.msra.mxu0 %v3724
    %5045 = vmatpush.bf16.msra.mxu0 %v3723
    %5046 = vmatpush.bf16.msra.mxu0 %v3722
    %5047 = vmatpush.bf16.msra.mxu0 %v3721
    %5048 = vmatmul.bf16.gmra.mxu0 %v1132
    %v5049 = vpop.f32.mrf.mxu0
    %v5050 = vadd.f32 %v5037, %v5049
    %v5051 = vpop.f32.mrf.mxu0
    %5052 = vdwg.mxu0
    %5053 = vmatpush.bf16.msra.mxu0 %v3736
    %5054 = vmatpush.bf16.msra.mxu0 %v3735
    %5055 = vmatpush.bf16.msra.mxu0 %v3734
    %5056 = vmatpush.bf16.msra.mxu0 %v3733
    %5057 = vmatpush.bf16.msra.mxu0 %v3732
    %5058 = vmatpush.bf16.msra.mxu0 %v3731
    %5059 = vmatpush.bf16.msra.mxu0 %v3730
    %5060 = vmatpush.bf16.msra.mxu0 %v3729
    %5061 = vmatmul.bf16.gmra.mxu0 %v1133
    %v5062 = vpop.f32.mrf.mxu0
    %v5063 = vadd.f32 %v5050, %v5062
    %v5064 = vpop.f32.mrf.mxu0
    %5065 = vdwg.mxu0
    %5066 = vmatpush.bf16.msra.mxu0 %v3744
    %5067 = vmatpush.bf16.msra.mxu0 %v3743
    %5068 = vmatpush.bf16.msra.mxu0 %v3742
    %5069 = vmatpush.bf16.msra.mxu0 %v3741
    %5070 = vmatpush.bf16.msra.mxu0 %v3740
    %5071 = vmatpush.bf16.msra.mxu0 %v3739
    %5072 = vmatpush.bf16.msra.mxu0 %v3738
    %5073 = vmatpush.bf16.msra.mxu0 %v3737
    %5074 = vmatmul.bf16.gmra.mxu0 %v1134
    %v5075 = vpop.f32.mrf.mxu0
    %v5076 = vadd.f32 %v5063, %v5075
    %v5077 = vpop.f32.mrf.mxu0
    %5078 = vdwg.mxu0
    %5079 = vmatpush.bf16.msra.mxu0 %v3752
    %5080 = vmatpush.bf16.msra.mxu0 %v3751
    %5081 = vmatpush.bf16.msra.mxu0 %v3750
    %5082 = vmatpush.bf16.msra.mxu0 %v3749
    %5083 = vmatpush.bf16.msra.mxu0 %v3748
    %5084 = vmatpush.bf16.msra.mxu0 %v3747
    %5085 = vmatpush.bf16.msra.mxu0 %v3746
    %5086 = vmatpush.bf16.msra.mxu0 %v3745
    %5087 = vmatmul.bf16.gmra.mxu0 %v1135
    %v5088 = vpop.f32.mrf.mxu0
    %v5089 = vadd.f32 %v5076, %v5088
    %v5090 = vpop.f32.mrf.mxu0
    %5091 = vdwg.mxu0
    %5092 = vmatpush.bf16.msra.mxu0 %v3760
    %5093 = vmatpush.bf16.msra.mxu0 %v3759
    %5094 = vmatpush.bf16.msra.mxu0 %v3758
    %5095 = vmatpush.bf16.msra.mxu0 %v3757
    %5096 = vmatpush.bf16.msra.mxu0 %v3756
    %5097 = vmatpush.bf16.msra.mxu0 %v3755
    %5098 = vmatpush.bf16.msra.mxu0 %v3754
    %5099 = vmatpush.bf16.msra.mxu0 %v3753
    %5100 = vmatmul.bf16.gmra.mxu0 %v1136
    %v5101 = vpop.f32.mrf.mxu0
    %v5102 = vadd.f32 %v5089, %v5101
    %v5103 = vpop.f32.mrf.mxu0
    %5104 = vdwg.mxu0
    %v5105 = vmax.f32 %v5102, 0.0
    %v5106 = vpack.c.bf16 %v5105, %v5105
    %v5107 = vld [vmem:[%s3] sm:$0xf]
    %v5108 = vld [vmem:[%s3 + $0x4] sm:$0xf]
    %v5109 = vld [vmem:[%s3 + $0x8] sm:$0xf]
    %v5110 = vld [vmem:[%s3 + $0xc] sm:$0xf]
    %v5111 = vld [vmem:[%s3 + $0x10] sm:$0xf]
    %v5112 = vld [vmem:[%s3 + $0x14] sm:$0xf]
    %v5113 = vld [vmem:[%s3 + $0x18] sm:$0xf]
    %v5114 = vld [vmem:[%s3 + $0x1c] sm:$0xf]
    %v5115 = vld [vmem:[%s3 + $0x20] sm:$0xf]
    %v5116 = vld [vmem:[%s3 + $0x24] sm:$0xf]
    %v5117 = vld [vmem:[%s3 + $0x28] sm:$0xf]
    %v5118 = vld [vmem:[%s3 + $0x2c] sm:$0xf]
    %v5119 = vld [vmem:[%s3 + $0x30] sm:$0xf]
    %v5120 = vld [vmem:[%s3 + $0x34] sm:$0xf]
    %v5121 = vld [vmem:[%s3 + $0x38] sm:$0xf]
    %v5122 = vld [vmem:[%s3 + $0x3c] sm:$0xf]
    %v5123 = vld [vmem:[%s4] sm:$0x1]
    %v5125 = vperm.slane %v5123, 0
    %v5143 = vunpack.c.l.b16 %v5107
    %v5144 = vunpack.c.l.b16 %v5108
    %v5145 = vunpack.c.l.b16 %v5109
    %v5146 = vunpack.c.l.b16 %v5110
    %v5147 = vunpack.c.l.b16 %v5111
    %v5148 = vunpack.c.l.b16 %v5112
    %v5149 = vunpack.c.l.b16 %v5113
    %v5150 = vunpack.c.l.b16 %v5114
    %v5151 = vunpack.c.l.b16 %v5115
    %v5152 = vunpack.c.l.b16 %v5116
    %v5153 = vunpack.c.l.b16 %v5117
    %v5154 = vunpack.c.l.b16 %v5118
    %v5155 = vunpack.c.l.b16 %v5119
    %v5156 = vunpack.c.l.b16 %v5120
    %v5157 = vunpack.c.l.b16 %v5121
    %v5158 = vunpack.c.l.b16 %v5122
    %v5159 = vpack.c.b16 %v5144, %v5143
    %v5160 = vpack.c.b16 %v5146, %v5145
    %v5161 = vpack.c.b16 %v5148, %v5147
    %v5162 = vpack.c.b16 %v5150, %v5149
    %v5163 = vpack.c.b16 %v5152, %v5151
    %v5164 = vpack.c.b16 %v5154, %v5153
    %v5165 = vpack.c.b16 %v5156, %v5155
    %v5166 = vpack.c.b16 %v5158, %v5157
    %5175 = vmatpush.bf16.msra.mxu0 %v5166
    %5176 = vmatpush.bf16.msra.mxu0 %v5165
    %5177 = vmatpush.bf16.msra.mxu0 %v5164
    %5178 = vmatpush.bf16.msra.mxu0 %v5163
    %5179 = vmatpush.bf16.msra.mxu0 %v5162
    %5180 = vmatpush.bf16.msra.mxu0 %v5161
    %5181 = vmatpush.bf16.msra.mxu0 %v5160
    %5182 = vmatpush.bf16.msra.mxu0 %v5159
    %5183 = vmatmul.bf16.gmra.mxu0 %v5106
    %v5184 = vpop.f32.mrf.mxu0
    %v5185 = vadd.f32 %v5125, %v5184
    %v5186 = vpop.f32.mrf.mxu0
    %5187 = vdwg.mxu0
    %vm5188 = vcmask 1041408
    %v5189 = vsel %vm5188, %v5185, -inf
    %5190 = vmax.xlane.f32.xlu0 %v5189
    %v5191 = vpop.xlane.xlu0 %5190
    %v5192 = vsub.f32 %v5185, %v5191
    %v5193 = vmul.f32 %v5192, 1.442695
    %v5194 = vpow.pop %v5193
    %v5195 = vsel %vm5188, %v5194, 0.0
    %5196 = vadd.xlane.f32.xlu0 %v5195
    %v5197 = vpop.xlane.xlu0 %5196
    %v5198 = vrcp.pop %v5197
    %v5199 = vmul.f32 %v5194, %v5198
    %5200 = vst [vmem:[#allocation2] sm:$0x3] %v5199
    // Predicated region
    $region22: #{mnist_cnn_forward.3} parent=1 // pred_check
      _
    $region23: #{mnist_cnn_forward.3} parent=1 // pred_check_branch
      %5202 = sbr.rel (0) target = $region25
    $region24: #{mnist_cnn_forward.3} parent=1 // pred_region
      %5204 = vsyncadd [#allocation3], 0
      %s5206 = sshll.u32 [#allocation2], 4
      %s5207 = int_to_ptr.vmem [resolvable:$true] %s5206
      %s5208 = sshll.u32 %s5, 4
      %s5209 = int_to_ptr.hbm [resolvable:$true] %s5208
      %5211 = dma.vmem_to_hbm [thread:$0]  %s5207, 32, %s5209, [#allocation3]
    $region25: #{mnist_cnn_forward.3} parent=1 // pred_fallthru
      _
    // Predicated region
    $region26: #{mnist_cnn_forward.3} parent=1 // pred_check
      _
    $region27: #{mnist_cnn_forward.3} parent=1 // pred_check_branch
      %5213 = sbr.rel (0) target = $region29
    $region28: #{mnist_cnn_forward.3} parent=1 // pred_region
      %5215 = dma.done [#allocation3], 32
    $region29: #{mnist_cnn_forward.3} parent=1 // pred_fallthru
      _
    %5216 = vsyncpa [#allocation3], 1

</llo_original>
